<compile_context>
chip_gen: v7x
topology: tpu7x:2x2x1
jax: 0.10.0
libtpu: 0.0.40
codegen_flags: <defaults>
</compile_context>

<pallas_src>
import functools

import jax
import jax.numpy as jnp
from jax.experimental import pallas as pl
from jax.experimental.pallas import tpu as pltpu


def _round_up(x, m):
    return -(-x // m) * m


@functools.lru_cache(maxsize=None)
def _vmem_limit_bytes():
    """~75% of physical per-core VMEM (v5e/v6e -> ~96 MiB, v7x -> ~48 MiB)."""
    try:
        info = pltpu.get_tpu_info()
        cap = getattr(info, "vmem_capacity_bytes", None)
        if cap:
            return int(min(max(cap * 3 // 4, 32 * 1024 * 1024), 100 * 1024 * 1024))
    except Exception:
        pass
    return 48 * 1024 * 1024   # safe on every generation


def _weight_spec(shape, index_map):
    """Constant-index weight/bias block: fetched once, single-buffered."""
    buffered = getattr(pl, "Buffered", None)
    if buffered is not None:
        try:
            return pl.BlockSpec(shape, index_map, pipeline_mode=buffered(1))
        except TypeError:
            pass
    return pl.BlockSpec(shape, index_map)


# --------------------- stage 1: point MLPs + max pool ------------------------
def _encoder_kernel(x_ref, w1, b1, w2, b2, w3, b3, w4, b4, w5, b5, g_ref,
                    *, point_chunk):
    """Conv1d(k=1)+BN+ReLU x5 fused with the global max pool.

    The point axis of the current tile is chunked in-kernel so the last layer's
    (rows, 1024) f32 activation stays small; the pooled output block (resident
    across the point grid axis) is the running-max accumulator."""
    f32, bf16 = jnp.float32, jnp.bfloat16
    TB, TN, CIN = x_ref.shape
    PC = point_chunk
    n_chunks = TN // PC

    @pl.when(pl.program_id(1) == 0)
    def _init():
        g_ref[...] = jnp.full(g_ref.shape, -jnp.inf, g_ref.dtype)

    def mm(a_bf16, w_ref, b_ref):
        # 2-D dot: M = TB*PC point-rows, bf16 inputs, f32 accumulate + bias.
        return jnp.dot(a_bf16, w_ref[...], preferred_element_type=f32) + b_ref[...]

    def relu_bf16(a):
        # relu in f32; store inter-layer activation in bf16 (halves live bytes).
        return jnp.maximum(a, 0.0).astype(bf16)

    @pl.loop(0, n_chunks)
    def _chunk(ci):
        start = pl.multiple_of(ci * PC, PC)
        xc = x_ref[:, pl.ds(start, PC), :]                    # (TB, PC, CIN) f32
        h = xc.reshape(TB * PC, CIN).astype(bf16)             # collapse to 2-D
        h = relu_bf16(mm(h, w1, b1))
        h = relu_bf16(mm(h, w2, b2))
        h = relu_bf16(mm(h, w3, b3))
        h = relu_bf16(mm(h, w4, b4))
        h5 = jnp.maximum(mm(h, w5, b5), 0.0)                  # (TB*PC, 1024) f32
        cmax = jnp.max(h5.reshape(TB, PC, 1024), axis=1)      # (TB, 1024)
        g_ref[...] = jnp.maximum(g_ref[...], cmax[:, None, :])


# ----------------- stage 2: fc + L2 normalize + decoder ----------------------
def _decoder_kernel(g_ref, wfc, bfc, wd1, bd1, wd2, bd2, wd3, bd3, z_ref, y_ref):
    f32, bf16 = jnp.float32, jnp.bfloat16

    def mm(a, w_ref, b_ref):
        return jnp.dot(a.astype(bf16), w_ref[...],
                       preferred_element_type=f32) + b_ref[...]

    g = g_ref[...]                                    # (TB2, 1024) pooled features
    z = mm(g, wfc, bfc)                               # encoder fc (pad lanes = 0)
    ssq = jnp.sum(z * z, axis=-1, keepdims=True)
    z = z * jax.lax.rsqrt(jnp.maximum(ssq, 1e-24))    # == z / max(||z||, 1e-12)
    z_ref[...] = z

    d = jnp.maximum(mm(z, wd1, bd1), 0.0)
    d = jnp.maximum(mm(d, wd2, bd2), 0.0)
    y_ref[...] = jnp.tanh(mm(d, wd3, bd3))


# ------------------------- parameter initialization -------------------------
def init_params(key, embedding_size, input_channels, output_channels,
                num_points_out, *, cin_pad=8):
    """Kernel-ready params: BN folded (inference mode), transposed to (in, out),
    zero-padded to lane-dense sizes, weights bf16, biases (1, out_pad) f32."""
    emb_pad = _round_up(embedding_size, 128)
    pout_pad = _round_up(num_points_out * output_channels, 128)

    # (in_real, out_real, in_pad, out_pad, has_bn)
    layer_specs = [
        (input_channels, 64, cin_pad, 128, True),          # encoder mlp1 conv1
        (64, 64, 128, 128, True),                          # encoder mlp1 conv2
        (64, 64, 128, 128, True),                          # encoder mlp2 conv1
        (64, 128, 128, 128, True),                         # encoder mlp2 conv2
        (128, 1024, 128, 1024, True),                      # encoder mlp2 conv3
        (1024, embedding_size, 1024, emb_pad, False),      # encoder fc
        (embedding_size, 1024, emb_pad, 1024, True),       # decoder fc1
        (1024, 1024, 1024, 1024, True),                    # decoder fc2
        (1024, num_points_out * output_channels, 1024, pout_pad, False),  # dec fc3
    ]

    keys = jax.random.split(key, 2 * len(layer_specs))
    params = []
    for i, (cin, cout, cin_p, cout_p, has_bn) in enumerate(layer_specs):
        kw, kb = keys[2 * i], keys[2 * i + 1]
        k1, k2 = jax.random.split(kw)
        w = jax.random.normal(k1, (cout, cin), jnp.float32) * 0.1
        b = jax.random.normal(k2, (cout,), jnp.float32) * 0.1
        if has_bn:
            g1, g2, g3, g4 = jax.random.split(kb, 4)
            gamma = 1.0 + 0.1 * jax.random.normal(g1, (cout,), jnp.float32)
            beta = 0.1 * jax.random.normal(g2, (cout,), jnp.float32)
            rmean = 0.1 * jax.random.normal(g3, (cout,), jnp.float32)
            rvar = 0.9 + 0.1 * jnp.abs(jax.random.normal(g4, (cout,), jnp.float32))
            scale = gamma / jnp.sqrt(rvar + 1e-5)           # fold inference-mode BN
            w = w * scale[:, None]
            b = (b - rmean) * scale + beta
        wt = jnp.pad(w.T, ((0, cin_p - cin), (0, cout_p - cout))).astype(jnp.bfloat16)
        bp = jnp.pad(b, (0, cout_p - cout))[None, :].astype(jnp.float32)
        params.extend([wt, bp])
    return params   # 18 arrays: [w1,b1,...,w5,b5, wfc,bfc, wd1,bd1,wd2,bd2,wd3,bd3]


# ------------------------------- tile choices ---------------------------------
def _choose_encoder_batch_tile(B):
    if B <= 1:
        return 1
    if B <= 16:
        return max(1, B // 2)   # >= 2 'parallel' tiles so v7x can use both TCs
    return 16


def _largest_divisor_leq(n, cap):
    cap = max(1, min(n, cap))
    for d in range(cap, 0, -1):
        if n % d == 0:
            return d
    return n


def _choose_point_tile(N, TB):
    # x block (TB, TN, 8): the 8-lane dim is padded to 128 in VMEM (16x), so
    # budget ~8 MiB double-buffered -> TB*TN <= 8192 (cin_pad=8, f32).
    return _largest_divisor_leq(N, max(128, 8192 // max(TB, 1)))


def _choose_point_chunk(TN, TB):
    # keep the per-chunk (TB*PC, 1024) f32 activation <= ~8 MiB and M ~ 1-2K rows
    return _largest_divisor_leq(TN, max(8, 2048 // max(TB, 1)))


def _choose_decoder_batch_tile(B):
    if B <= 16:
        return max(1, B)         # whole batch in one tile -> max matmul M
    return max(8, min(128, _round_up(B, 16) // 2))   # >= 2 tiles for v7x dual-TC


# -------------------------------- wrapper ------------------------------------
def pointnet_autoencoder(x, params, *, input_channels=3, output_channels=3,
                         num_points_out=1024, embedding_size=32,
                         batch_tile=None, point_tile=None, point_chunk=None):
    """x: (B, 1, N, C) float32, mirrors the PyTorch forward. Returns (y, z)."""
    B, _, N, _ = x.shape
    cin_pad = params[0].shape[0]
    emb_pad = params[10].shape[1]
    pout_pad = params[16].shape[1]
    p_out = num_points_out * output_channels
    enc_params, dec_params = params[:10], params[10:]

    # squeeze(1), keep first input_channels, zero-pad channel dim
    xs = x[:, 0, :, :input_channels].astype(jnp.float32)              # (B, N, Cin)
    xs = jnp.pad(xs, ((0, 0), (0, 0), (0, cin_pad - input_channels)))

    TB1 = batch_tile if batch_tile is not None else _choose_encoder_batch_tile(B)
    TN = point_tile if point_tile is not None else _choose_point_tile(N, TB1)
    assert N % TN == 0, "point tile must divide N"
    PC = point_chunk if point_chunk is not None else _choose_point_chunk(TN, TB1)
    assert TN % PC == 0, "point chunk must divide point tile"

    B_pad1 = _round_up(B, TB1)
    if B_pad1 != B:
        xs = jnp.pad(xs, ((0, B_pad1 - B), (0, 0), (0, 0)))   # garbage rows sliced off

    vmem_limit = _vmem_limit_bytes()

    # ---------------- stage 1: per-point MLPs + global max pool -------------
    enc_grid = (B_pad1 // TB1, N // TN)
    enc_in_specs = [pl.BlockSpec((TB1, TN, cin_pad), lambda b, p: (b, p, 0))]
    for arr in enc_params:
        enc_in_specs.append(_weight_spec(arr.shape, lambda b, p: (0, 0)))
    enc_out_spec = pl.BlockSpec((TB1, 1, 1024), lambda b, p: (b, 0, 0))

    enc_macs = cin_pad * 128 + 3 * 128 * 128 + 128 * 1024
    enc_param_bytes = sum(int(p.size) * p.dtype.itemsize for p in enc_params)
    enc_cost = pl.CostEstimate(
        flops=int(2 * B_pad1 * N * enc_macs),
        transcendentals=0,
        bytes_accessed=int(xs.size * 4 + enc_param_bytes + B_pad1 * 1024 * 4))

    g = pl.pallas_call(
        functools.partial(_encoder_kernel, point_chunk=PC),
        out_shape=jax.ShapeDtypeStruct((B_pad1, 1, 1024), jnp.float32),
        grid_spec=pltpu.PrefetchScalarGridSpec(
            num_scalar_prefetch=0,
            grid=enc_grid,
            in_specs=enc_in_specs,
            out_specs=enc_out_spec),
        compiler_params=pltpu.CompilerParams(
            dimension_semantics=("parallel", "arbitrary"),
            vmem_limit_bytes=vmem_limit),
        cost_estimate=enc_cost,
    )(xs, *enc_params)

    g = g.reshape(B_pad1, 1024)

    # -------- stage 2: fc + L2 normalize + decoder with M = batch tile -------
    TB2 = _choose_decoder_batch_tile(B)
    B_pad2 = _round_up(B, TB2)
    if B_pad2 > B_pad1:
        g = jnp.pad(g, ((0, B_pad2 - B_pad1), (0, 0)))
    elif B_pad2 < B_pad1:
        g = g[:B_pad2]

    dec_grid = (B_pad2 // TB2,)
    dec_in_specs = [pl.BlockSpec((TB2, 1024), lambda b: (b, 0))]
    for arr in dec_params:
        dec_in_specs.append(_weight_spec(arr.shape, lambda b: (0, 0)))
    dec_out_specs = [
        pl.BlockSpec((TB2, emb_pad), lambda b: (b, 0)),
        pl.BlockSpec((TB2, pout_pad), lambda b: (b, 0)),
    ]

    dec_macs = 1024 * emb_pad + emb_pad * 1024 + 1024 * 1024 + 1024 * pout_pad
    dec_param_bytes = sum(int(p.size) * p.dtype.itemsize for p in dec_params)
    dec_cost = pl.CostEstimate(
        flops=int(2 * B_pad2 * dec_macs),
        transcendentals=int(B_pad2 * (pout_pad + 1)),
        bytes_accessed=int(B_pad2 * 1024 * 4 + dec_param_bytes
                           + B_pad2 * (emb_pad + pout_pad) * 4))

    z_full, y_full = pl.pallas_call(
        _decoder_kernel,
        out_shape=(
            jax.ShapeDtypeStruct((B_pad2, emb_pad), jnp.float32),
            jax.ShapeDtypeStruct((B_pad2, pout_pad), jnp.float32),
        ),
        grid_spec=pltpu.PrefetchScalarGridSpec(
            num_scalar_prefetch=0,
            grid=dec_grid,
            in_specs=dec_in_specs,
            out_specs=dec_out_specs),
        compiler_params=pltpu.CompilerParams(
            dimension_semantics=("parallel",),
            vmem_limit_bytes=vmem_limit),
        cost_estimate=dec_cost,
    )(g, *dec_params)

    z = z_full[:B, :embedding_size]
    y = y_full[:B, :p_out].reshape(B, num_points_out, output_channels)
    return y, z


# ----------------------------- pure-JAX reference ----------------------------
def _reference(x, params, *, input_channels, output_channels, num_points_out,
               embedding_size):
    cin_pad = params[0].shape[0]
    xs = x[:, 0, :, :input_channels].astype(jnp.float32)
    xs = jnp.pad(xs, ((0, 0), (0, 0), (0, cin_pad - input_channels)))
    layers = [(params[2 * i], params[2 * i + 1]) for i in range(9)]

    def mm(a, w, b):
        return jnp.einsum("...c,cd->...d", a.astype(jnp.bfloat16), w,
                          preferred_element_type=jnp.float32) + b

    h = xs
    for w, b in layers[:5]:
        h = jax.nn.relu(mm(h, w, b))
    g = jnp.max(h, axis=1)                                    # (B, 1024)
    z = mm(g, *layers[5])
    z = z / jnp.maximum(jnp.linalg.norm(z, axis=-1, keepdims=True), 1e-12)
    d = jax.nn.relu(mm(z, *layers[6]))
    d = jax.nn.relu(mm(d, *layers[7]))
    y = jnp.tanh(mm(d, *layers[8]))
    p_out = num_points_out * output_channels
    return (y[:, :p_out].reshape(x.shape[0], num_points_out, output_channels),
            z[:, :embedding_size])


# ---------------------------------- main --------------------------------------
if __name__ == "__main__":
    B, N, C = 2, 16, 4              # batch, input points, raw input channel count
    INPUT_CHANNELS = 3              # model keeps only the first 3 channels
    OUTPUT_CHANNELS = 3
    NUM_POINTS_OUT = 16             # decoder output points (small synthetic size)
    EMBEDDING_SIZE = 32

    key = jax.random.PRNGKey(0)
    k_x, k_p = jax.random.split(key)
    x = jax.random.normal(k_x, (B, 1, N, C), jnp.float32)

    params = init_params(k_p, EMBEDDING_SIZE, INPUT_CHANNELS, OUTPUT_CHANNELS,
                         NUM_POINTS_OUT)

    run = functools.partial(
        pointnet_autoencoder,
        input_channels=INPUT_CHANNELS,
        output_channels=OUTPUT_CHANNELS,
        num_points_out=NUM_POINTS_OUT,
        embedding_size=EMBEDDING_SIZE,
    )

    y, z = jax.jit(lambda a: run(a, params))(x)
    jax.block_until_ready((y, z))

    # sanity check against a pure-JAX reference of the same (bf16-weight) math
    y_ref, z_ref = _reference(
        x, params,
        input_channels=INPUT_CHANNELS, output_channels=OUTPUT_CHANNELS,
        num_points_out=NUM_POINTS_OUT, embedding_size=EMBEDDING_SIZE,
    )
    assert y.shape == (B, NUM_POINTS_OUT, OUTPUT_CHANNELS)
    assert z.shape == (B, EMBEDDING_SIZE)
    assert jnp.allclose(y, y_ref, atol=2e-2, rtol=2e-2)
    assert jnp.allclose(z, z_ref, atol=2e-2, rtol=2e-2)

    print("KERNEL_OK")
</pallas_src>

<mosaic_0001>
module attributes {stable_mosaic.version = 11 : i64} {
  func.func @_encoder_kernel(%arg0: i32, %arg1: i32, %arg2: memref<1x16x8xf32, #tpu.memory_space<vmem>>, %arg3: memref<8x128xbf16, #tpu.memory_space<vmem>>, %arg4: memref<1x128xf32, #tpu.memory_space<vmem>>, %arg5: memref<128x128xbf16, #tpu.memory_space<vmem>>, %arg6: memref<1x128xf32, #tpu.memory_space<vmem>>, %arg7: memref<128x128xbf16, #tpu.memory_space<vmem>>, %arg8: memref<1x128xf32, #tpu.memory_space<vmem>>, %arg9: memref<128x128xbf16, #tpu.memory_space<vmem>>, %arg10: memref<1x128xf32, #tpu.memory_space<vmem>>, %arg11: memref<128x1024xbf16, #tpu.memory_space<vmem>>, %arg12: memref<1x1024xf32, #tpu.memory_space<vmem>>, %arg13: memref<1x1x1024xf32, #tpu.memory_space<vmem>>) attributes {dimension_semantics = [#tpu.dimension_semantics<parallel>, #tpu.dimension_semantics<arbitrary>], iteration_bounds = array<i64: 2, 1>, scalar_prefetch = 0 : i64, scratch_operands = 0 : i64, tpu.core_type = #tpu.core_type<tc>, window_params = [{transform_indices = @transform_0, window_bounds = array<i64: 1, 16, 8>}, {pipeline_mode = #tpu.pipeline_mode<synchronous>, transform_indices = @transform_1, window_bounds = array<i64: 8, 128>}, {pipeline_mode = #tpu.pipeline_mode<synchronous>, transform_indices = @transform_2, window_bounds = array<i64: 1, 128>}, {pipeline_mode = #tpu.pipeline_mode<synchronous>, transform_indices = @transform_3, window_bounds = array<i64: 128, 128>}, {pipeline_mode = #tpu.pipeline_mode<synchronous>, transform_indices = @transform_4, window_bounds = array<i64: 1, 128>}, {pipeline_mode = #tpu.pipeline_mode<synchronous>, transform_indices = @transform_5, window_bounds = array<i64: 128, 128>}, {pipeline_mode = #tpu.pipeline_mode<synchronous>, transform_indices = @transform_6, window_bounds = array<i64: 1, 128>}, {pipeline_mode = #tpu.pipeline_mode<synchronous>, transform_indices = @transform_7, window_bounds = array<i64: 128, 128>}, {pipeline_mode = #tpu.pipeline_mode<synchronous>, transform_indices = @transform_8, window_bounds = array<i64: 1, 128>}, {pipeline_mode = #tpu.pipeline_mode<synchronous>, transform_indices = @transform_9, window_bounds = array<i64: 128, 1024>}, {pipeline_mode = #tpu.pipeline_mode<synchronous>, transform_indices = @transform_10, window_bounds = array<i64: 1, 1024>}, {transform_indices = @transform_11, window_bounds = array<i64: 1, 1, 1024>}]} {
    %c0_i32 = arith.constant 0 : i32
    %0 = arith.cmpi eq, %arg1, %c0_i32 : i32
    %1 = arith.extui %0 : i1 to i32
    %c0_i32_0 = arith.constant 0 : i32
    %2 = arith.cmpi ne, %1, %c0_i32_0 : i32
    scf.if %2 {
      %cst_41 = arith.constant 0xFF800000 : f32
      %56 = vector.broadcast %cst_41 : f32 to vector<1x1x1024xf32>
      %c0_42 = arith.constant 0 : index
      %c0_43 = arith.constant 0 : index
      %c0_44 = arith.constant 0 : index
      %57 = vector.load %arg13[%c0_42, %c0_43, %c0_44] : memref<1x1x1024xf32, #tpu.memory_space<vmem>>, vector<1x1x1024xf32>
      tpu.vector_store %arg13[%c0_42, %c0_43, %c0_44], %56 {strides = array<i32>} : memref<1x1x1024xf32, #tpu.memory_space<vmem>>, vector<1x1x1024xf32>,
    } else {
    }
    %c0_i32_1 = arith.constant 0 : i32
    %c1_i32 = arith.constant 1 : i32
    %3 = arith.muli %c0_i32_1, %c1_i32 : i32
    %c0_i32_2 = arith.constant 0 : i32
    %4 = arith.addi %c0_i32_2, %3 : i32
    %c16_i32 = arith.constant 16 : i32
    %5 = arith.muli %4, %c16_i32 : i32
    %6 = tpu.assume_multiple %5, 16 : i32
    %c0 = arith.constant 0 : index
    %7 = arith.index_cast %6 : i32 to index
    %c0_3 = arith.constant 0 : index
    %8 = vector.load %arg2[%c0, %7, %c0_3] : memref<1x16x8xf32, #tpu.memory_space<vmem>>, vector<1x16x8xf32>
    %9 = vector.shape_cast %8 : vector<1x16x8xf32> to vector<16x8xf32>
    %10 = arith.truncf %9 : vector<16x8xf32> to vector<16x8xbf16>
    %c0_4 = arith.constant 0 : index
    %c0_5 = arith.constant 0 : index
    %11 = vector.load %arg3[%c0_4, %c0_5] : memref<8x128xbf16, #tpu.memory_space<vmem>>, vector<8x128xbf16>
    %cst = arith.constant dense<0.000000e+00> : vector<16x128xf32>
    %12 = tpu.matmul %10, %11, %cst {dimension_numbers = #tpu.dot_dimension_numbers<[1], [0], [0], [1], [0, 0, 1, 1], [], []>} : vector<16x8xbf16>, vector<8x128xbf16>, vector<16x128xf32> -> vector<16x128xf32>
    %c0_6 = arith.constant 0 : index
    %c0_7 = arith.constant 0 : index
    %13 = vector.load %arg4[%c0_6, %c0_7] : memref<1x128xf32, #tpu.memory_space<vmem>>, vector<1x128xf32>
    %14 = vector.broadcast %13 : vector<1x128xf32> to vector<16x128xf32>
    %15 = arith.addf %12, %14 : vector<16x128xf32>
    %cst_8 = arith.constant 0.000000e+00 : f32
    %16 = vector.broadcast %cst_8 : f32 to vector<16x128xf32>
    %17 = arith.maximumf %15, %16 : vector<16x128xf32>
    %18 = arith.truncf %17 : vector<16x128xf32> to vector<16x128xbf16>
    %c0_9 = arith.constant 0 : index
    %c0_10 = arith.constant 0 : index
    %19 = vector.load %arg5[%c0_9, %c0_10] : memref<128x128xbf16, #tpu.memory_space<vmem>>, vector<128x128xbf16>
    %cst_11 = arith.constant dense<0.000000e+00> : vector<16x128xf32>
    %20 = tpu.matmul %18, %19, %cst_11 {dimension_numbers = #tpu.dot_dimension_numbers<[1], [0], [0], [1], [0, 0, 1, 1], [], []>} : vector<16x128xbf16>, vector<128x128xbf16>, vector<16x128xf32> -> vector<16x128xf32>
    %c0_12 = arith.constant 0 : index
    %c0_13 = arith.constant 0 : index
    %21 = vector.load %arg6[%c0_12, %c0_13] : memref<1x128xf32, #tpu.memory_space<vmem>>, vector<1x128xf32>
    %22 = vector.broadcast %21 : vector<1x128xf32> to vector<16x128xf32>
    %23 = arith.addf %20, %22 : vector<16x128xf32>
    %cst_14 = arith.constant 0.000000e+00 : f32
    %24 = vector.broadcast %cst_14 : f32 to vector<16x128xf32>
    %25 = arith.maximumf %23, %24 : vector<16x128xf32>
    %26 = arith.truncf %25 : vector<16x128xf32> to vector<16x128xbf16>
    %c0_15 = arith.constant 0 : index
    %c0_16 = arith.constant 0 : index
    %27 = vector.load %arg7[%c0_15, %c0_16] : memref<128x128xbf16, #tpu.memory_space<vmem>>, vector<128x128xbf16>
    %cst_17 = arith.constant dense<0.000000e+00> : vector<16x128xf32>
    %28 = tpu.matmul %26, %27, %cst_17 {dimension_numbers = #tpu.dot_dimension_numbers<[1], [0], [0], [1], [0, 0, 1, 1], [], []>} : vector<16x128xbf16>, vector<128x128xbf16>, vector<16x128xf32> -> vector<16x128xf32>
    %c0_18 = arith.constant 0 : index
    %c0_19 = arith.constant 0 : index
    %29 = vector.load %arg8[%c0_18, %c0_19] : memref<1x128xf32, #tpu.memory_space<vmem>>, vector<1x128xf32>
    %30 = vector.broadcast %29 : vector<1x128xf32> to vector<16x128xf32>
    %31 = arith.addf %28, %30 : vector<16x128xf32>
    %cst_20 = arith.constant 0.000000e+00 : f32
    %32 = vector.broadcast %cst_20 : f32 to vector<16x128xf32>
    %33 = arith.maximumf %31, %32 : vector<16x128xf32>
    %34 = arith.truncf %33 : vector<16x128xf32> to vector<16x128xbf16>
    %c0_21 = arith.constant 0 : index
    %c0_22 = arith.constant 0 : index
    %35 = vector.load %arg9[%c0_21, %c0_22] : memref<128x128xbf16, #tpu.memory_space<vmem>>, vector<128x128xbf16>
    %cst_23 = arith.constant dense<0.000000e+00> : vector<16x128xf32>
    %36 = tpu.matmul %34, %35, %cst_23 {dimension_numbers = #tpu.dot_dimension_numbers<[1], [0], [0], [1], [0, 0, 1, 1], [], []>} : vector<16x128xbf16>, vector<128x128xbf16>, vector<16x128xf32> -> vector<16x128xf32>
    %c0_24 = arith.constant 0 : index
    %c0_25 = arith.constant 0 : index
    %37 = vector.load %arg10[%c0_24, %c0_25] : memref<1x128xf32, #tpu.memory_space<vmem>>, vector<1x128xf32>
    %38 = vector.broadcast %37 : vector<1x128xf32> to vector<16x128xf32>
    %39 = arith.addf %36, %38 : vector<16x128xf32>
    %cst_26 = arith.constant 0.000000e+00 : f32
    %40 = vector.broadcast %cst_26 : f32 to vector<16x128xf32>
    %41 = arith.maximumf %39, %40 : vector<16x128xf32>
    %42 = arith.truncf %41 : vector<16x128xf32> to vector<16x128xbf16>
    %c0_27 = arith.constant 0 : index
    %c0_28 = arith.constant 0 : index
    %43 = vector.load %arg11[%c0_27, %c0_28] : memref<128x1024xbf16, #tpu.memory_space<vmem>>, vector<128x1024xbf16>
    %cst_29 = arith.constant dense<0.000000e+00> : vector<16x1024xf32>
    %44 = tpu.matmul %42, %43, %cst_29 {dimension_numbers = #tpu.dot_dimension_numbers<[1], [0], [0], [1], [0, 0, 1, 1], [], []>} : vector<16x128xbf16>, vector<128x1024xbf16>, vector<16x1024xf32> -> vector<16x1024xf32>
    %c0_30 = arith.constant 0 : index
    %c0_31 = arith.constant 0 : index
    %45 = vector.load %arg12[%c0_30, %c0_31] : memref<1x1024xf32, #tpu.memory_space<vmem>>, vector<1x1024xf32>
    %46 = vector.broadcast %45 : vector<1x1024xf32> to vector<16x1024xf32>
    %47 = arith.addf %44, %46 : vector<16x1024xf32>
    %cst_32 = arith.constant 0.000000e+00 : f32
    %48 = vector.broadcast %cst_32 : f32 to vector<16x1024xf32>
    %49 = arith.maximumf %47, %48 : vector<16x1024xf32>
    %50 = vector.shape_cast %49 : vector<16x1024xf32> to vector<1x16x1024xf32>
    %cst_33 = arith.constant dense<0xFF800000> : vector<1x1024xf32>
    %51 = vector.multi_reduction <maximumf>, %50, %cst_33 [1] : vector<1x16x1024xf32> to vector<1x1024xf32>
    %c0_34 = arith.constant 0 : index
    %c0_35 = arith.constant 0 : index
    %c0_36 = arith.constant 0 : index
    %52 = vector.load %arg13[%c0_34, %c0_35, %c0_36] : memref<1x1x1024xf32, #tpu.memory_space<vmem>>, vector<1x1x1024xf32>
    %53 = vector.shape_cast %51 : vector<1x1024xf32> to vector<1x1x1024xf32>
    %54 = arith.maximumf %52, %53 : vector<1x1x1024xf32>
    %c0_37 = arith.constant 0 : index
    %c0_38 = arith.constant 0 : index
    %c0_39 = arith.constant 0 : index
    %55 = vector.load %arg13[%c0_37, %c0_38, %c0_39] : memref<1x1x1024xf32, #tpu.memory_space<vmem>>, vector<1x1x1024xf32>
    tpu.vector_store %arg13[%c0_37, %c0_38, %c0_39], %54 {strides = array<i32>} : memref<1x1x1024xf32, #tpu.memory_space<vmem>>, vector<1x1x1024xf32>,
    %c1_i32_40 = arith.constant 1 : i32
    return
  }
  func.func @transform_0(%arg0: i32, %arg1: i32) -> (i32, i32, i32) {
    %c0_i32 = arith.constant 0 : i32
    %c0_i32_0 = arith.constant 0 : i32
    return %arg0, %arg1, %c0_i32 : i32, i32, i32
  }
  func.func @transform_1(%arg0: i32, %arg1: i32) -> (i32, i32) {
    %c0_i32 = arith.constant 0 : i32
    %c0_i32_0 = arith.constant 0 : i32
    %c0_i32_1 = arith.constant 0 : i32
    return %c0_i32, %c0_i32_0 : i32, i32
  }
  func.func @transform_2(%arg0: i32, %arg1: i32) -> (i32, i32) {
    %c0_i32 = arith.constant 0 : i32
    %c0_i32_0 = arith.constant 0 : i32
    %c0_i32_1 = arith.constant 0 : i32
    return %c0_i32, %c0_i32_0 : i32, i32
  }
  func.func @transform_3(%arg0: i32, %arg1: i32) -> (i32, i32) {
    %c0_i32 = arith.constant 0 : i32
    %c0_i32_0 = arith.constant 0 : i32
    %c0_i32_1 = arith.constant 0 : i32
    return %c0_i32, %c0_i32_0 : i32, i32
  }
  func.func @transform_4(%arg0: i32, %arg1: i32) -> (i32, i32) {
    %c0_i32 = arith.constant 0 : i32
    %c0_i32_0 = arith.constant 0 : i32
    %c0_i32_1 = arith.constant 0 : i32
    return %c0_i32, %c0_i32_0 : i32, i32
  }
  func.func @transform_5(%arg0: i32, %arg1: i32) -> (i32, i32) {
    %c0_i32 = arith.constant 0 : i32
    %c0_i32_0 = arith.constant 0 : i32
    %c0_i32_1 = arith.constant 0 : i32
    return %c0_i32, %c0_i32_0 : i32, i32
  }
  func.func @transform_6(%arg0: i32, %arg1: i32) -> (i32, i32) {
    %c0_i32 = arith.constant 0 : i32
    %c0_i32_0 = arith.constant 0 : i32
    %c0_i32_1 = arith.constant 0 : i32
    return %c0_i32, %c0_i32_0 : i32, i32
  }
  func.func @transform_7(%arg0: i32, %arg1: i32) -> (i32, i32) {
    %c0_i32 = arith.constant 0 : i32
    %c0_i32_0 = arith.constant 0 : i32
    %c0_i32_1 = arith.constant 0 : i32
    return %c0_i32, %c0_i32_0 : i32, i32
  }
  func.func @transform_8(%arg0: i32, %arg1: i32) -> (i32, i32) {
    %c0_i32 = arith.constant 0 : i32
    %c0_i32_0 = arith.constant 0 : i32
    %c0_i32_1 = arith.constant 0 : i32
    return %c0_i32, %c0_i32_0 : i32, i32
  }
  func.func @transform_9(%arg0: i32, %arg1: i32) -> (i32, i32) {
    %c0_i32 = arith.constant 0 : i32
    %c0_i32_0 = arith.constant 0 : i32
    %c0_i32_1 = arith.constant 0 : i32
    return %c0_i32, %c0_i32_0 : i32, i32
  }
  func.func @transform_10(%arg0: i32, %arg1: i32) -> (i32, i32) {
    %c0_i32 = arith.constant 0 : i32
    %c0_i32_0 = arith.constant 0 : i32
    %c0_i32_1 = arith.constant 0 : i32
    return %c0_i32, %c0_i32_0 : i32, i32
  }
  func.func @transform_11(%arg0: i32, %arg1: i32) -> (i32, i32, i32) {
    %c0_i32 = arith.constant 0 : i32
    %c0_i32_0 = arith.constant 0 : i32
    %c0_i32_1 = arith.constant 0 : i32
    return %arg0, %c0_i32, %c0_i32_0 : i32, i32, i32
  }
}

module attributes {stable_mosaic.version = 11 : i64} {
  func.func @_decoder_kernel(%arg0: i32, %arg1: memref<2x1024xf32, #tpu.memory_space<vmem>>, %arg2: memref<1024x128xbf16, #tpu.memory_space<vmem>>, %arg3: memref<1x128xf32, #tpu.memory_space<vmem>>, %arg4: memref<128x1024xbf16, #tpu.memory_space<vmem>>, %arg5: memref<1x1024xf32, #tpu.memory_space<vmem>>, %arg6: memref<1024x1024xbf16, #tpu.memory_space<vmem>>, %arg7: memref<1x1024xf32, #tpu.memory_space<vmem>>, %arg8: memref<1024x128xbf16, #tpu.memory_space<vmem>>, %arg9: memref<1x128xf32, #tpu.memory_space<vmem>>, %arg10: memref<2x128xf32, #tpu.memory_space<vmem>>, %arg11: memref<2x128xf32, #tpu.memory_space<vmem>>) attributes {dimension_semantics = [#tpu.dimension_semantics<parallel>], iteration_bounds = array<i64: 1>, scalar_prefetch = 0 : i64, scratch_operands = 0 : i64, tpu.core_type = #tpu.core_type<tc>, window_params = [{transform_indices = @transform_0, window_bounds = array<i64: 2, 1024>}, {pipeline_mode = #tpu.pipeline_mode<synchronous>, transform_indices = @transform_1, window_bounds = array<i64: 1024, 128>}, {pipeline_mode = #tpu.pipeline_mode<synchronous>, transform_indices = @transform_2, window_bounds = array<i64: 1, 128>}, {pipeline_mode = #tpu.pipeline_mode<synchronous>, transform_indices = @transform_3, window_bounds = array<i64: 128, 1024>}, {pipeline_mode = #tpu.pipeline_mode<synchronous>, transform_indices = @transform_4, window_bounds = array<i64: 1, 1024>}, {pipeline_mode = #tpu.pipeline_mode<synchronous>, transform_indices = @transform_5, window_bounds = array<i64: 1024, 1024>}, {pipeline_mode = #tpu.pipeline_mode<synchronous>, transform_indices = @transform_6, window_bounds = array<i64: 1, 1024>}, {pipeline_mode = #tpu.pipeline_mode<synchronous>, transform_indices = @transform_7, window_bounds = array<i64: 1024, 128>}, {pipeline_mode = #tpu.pipeline_mode<synchronous>, transform_indices = @transform_8, window_bounds = array<i64: 1, 128>}, {transform_indices = @transform_9, window_bounds = array<i64: 2, 128>}, {transform_indices = @transform_10, window_bounds = array<i64: 2, 128>}]} {
    %c0 = arith.constant 0 : index
    %c0_0 = arith.constant 0 : index
    %0 = vector.load %arg1[%c0, %c0_0] : memref<2x1024xf32, #tpu.memory_space<vmem>>, vector<2x1024xf32>
    %1 = arith.truncf %0 : vector<2x1024xf32> to vector<2x1024xbf16>
    %c0_1 = arith.constant 0 : index
    %c0_2 = arith.constant 0 : index
    %2 = vector.load %arg2[%c0_1, %c0_2] : memref<1024x128xbf16, #tpu.memory_space<vmem>>, vector<1024x128xbf16>
    %cst = arith.constant dense<0.000000e+00> : vector<2x128xf32>
    %3 = tpu.matmul %1, %2, %cst {dimension_numbers = #tpu.dot_dimension_numbers<[1], [0], [0], [1], [0, 0, 1, 1], [], []>} : vector<2x1024xbf16>, vector<1024x128xbf16>, vector<2x128xf32> -> vector<2x128xf32>
    %c0_3 = arith.constant 0 : index
    %c0_4 = arith.constant 0 : index
    %4 = vector.load %arg3[%c0_3, %c0_4] : memref<1x128xf32, #tpu.memory_space<vmem>>, vector<1x128xf32>
    %5 = vector.broadcast %4 : vector<1x128xf32> to vector<2x128xf32>
    %6 = arith.addf %3, %5 : vector<2x128xf32>
    %7 = arith.mulf %6, %6 : vector<2x128xf32>
    %cst_5 = arith.constant dense<0.000000e+00> : vector<2xf32>
    %8 = vector.multi_reduction <add>, %7, %cst_5 [1] : vector<2x128xf32> to vector<2xf32>
    %9 = vector.shape_cast %8 : vector<2xf32> to vector<2x1xf32>
    %cst_6 = arith.constant 1.000000e-24 : f32
    %10 = vector.broadcast %cst_6 : f32 to vector<2x1xf32>
    %11 = arith.maximumf %9, %10 : vector<2x1xf32>
    %12 = math.rsqrt %11 : vector<2x1xf32>
    %13 = vector.broadcast %12 : vector<2x1xf32> to vector<2x128xf32>
    %14 = arith.mulf %6, %13 : vector<2x128xf32>
    %c0_7 = arith.constant 0 : index
    %c0_8 = arith.constant 0 : index
    %15 = vector.load %arg10[%c0_7, %c0_8] : memref<2x128xf32, #tpu.memory_space<vmem>>, vector<2x128xf32>
    tpu.vector_store %arg10[%c0_7, %c0_8], %14 {strides = array<i32>} : memref<2x128xf32, #tpu.memory_space<vmem>>, vector<2x128xf32>,
    %16 = arith.truncf %14 : vector<2x128xf32> to vector<2x128xbf16>
    %c0_9 = arith.constant 0 : index
    %c0_10 = arith.constant 0 : index
    %17 = vector.load %arg4[%c0_9, %c0_10] : memref<128x1024xbf16, #tpu.memory_space<vmem>>, vector<128x1024xbf16>
    %cst_11 = arith.constant dense<0.000000e+00> : vector<2x1024xf32>
    %18 = tpu.matmul %16, %17, %cst_11 {dimension_numbers = #tpu.dot_dimension_numbers<[1], [0], [0], [1], [0, 0, 1, 1], [], []>} : vector<2x128xbf16>, vector<128x1024xbf16>, vector<2x1024xf32> -> vector<2x1024xf32>
    %c0_12 = arith.constant 0 : index
    %c0_13 = arith.constant 0 : index
    %19 = vector.load %arg5[%c0_12, %c0_13] : memref<1x1024xf32, #tpu.memory_space<vmem>>, vector<1x1024xf32>
    %20 = vector.broadcast %19 : vector<1x1024xf32> to vector<2x1024xf32>
    %21 = arith.addf %18, %20 : vector<2x1024xf32>
    %cst_14 = arith.constant 0.000000e+00 : f32
    %22 = vector.broadcast %cst_14 : f32 to vector<2x1024xf32>
    %23 = arith.maximumf %21, %22 : vector<2x1024xf32>
    %24 = arith.truncf %23 : vector<2x1024xf32> to vector<2x1024xbf16>
    %c0_15 = arith.constant 0 : index
    %c0_16 = arith.constant 0 : index
    %25 = vector.load %arg6[%c0_15, %c0_16] : memref<1024x1024xbf16, #tpu.memory_space<vmem>>, vector<1024x1024xbf16>
    %cst_17 = arith.constant dense<0.000000e+00> : vector<2x1024xf32>
    %26 = tpu.matmul %24, %25, %cst_17 {dimension_numbers = #tpu.dot_dimension_numbers<[1], [0], [0], [1], [0, 0, 1, 1], [], []>} : vector<2x1024xbf16>, vector<1024x1024xbf16>, vector<2x1024xf32> -> vector<2x1024xf32>
    %c0_18 = arith.constant 0 : index
    %c0_19 = arith.constant 0 : index
    %27 = vector.load %arg7[%c0_18, %c0_19] : memref<1x1024xf32, #tpu.memory_space<vmem>>, vector<1x1024xf32>
    %28 = vector.broadcast %27 : vector<1x1024xf32> to vector<2x1024xf32>
    %29 = arith.addf %26, %28 : vector<2x1024xf32>
    %cst_20 = arith.constant 0.000000e+00 : f32
    %30 = vector.broadcast %cst_20 : f32 to vector<2x1024xf32>
    %31 = arith.maximumf %29, %30 : vector<2x1024xf32>
    %32 = arith.truncf %31 : vector<2x1024xf32> to vector<2x1024xbf16>
    %c0_21 = arith.constant 0 : index
    %c0_22 = arith.constant 0 : index
    %33 = vector.load %arg8[%c0_21, %c0_22] : memref<1024x128xbf16, #tpu.memory_space<vmem>>, vector<1024x128xbf16>
    %cst_23 = arith.constant dense<0.000000e+00> : vector<2x128xf32>
    %34 = tpu.matmul %32, %33, %cst_23 {dimension_numbers = #tpu.dot_dimension_numbers<[1], [0], [0], [1], [0, 0, 1, 1], [], []>} : vector<2x1024xbf16>, vector<1024x128xbf16>, vector<2x128xf32> -> vector<2x128xf32>
    %c0_24 = arith.constant 0 : index
    %c0_25 = arith.constant 0 : index
    %35 = vector.load %arg9[%c0_24, %c0_25] : memref<1x128xf32, #tpu.memory_space<vmem>>, vector<1x128xf32>
    %36 = vector.broadcast %35 : vector<1x128xf32> to vector<2x128xf32>
    %37 = arith.addf %34, %36 : vector<2x128xf32>
    %38 = math.tanh %37 : vector<2x128xf32>
    %c0_26 = arith.constant 0 : index
    %c0_27 = arith.constant 0 : index
    %39 = vector.load %arg11[%c0_26, %c0_27] : memref<2x128xf32, #tpu.memory_space<vmem>>, vector<2x128xf32>
    tpu.vector_store %arg11[%c0_26, %c0_27], %38 {strides = array<i32>} : memref<2x128xf32, #tpu.memory_space<vmem>>, vector<2x128xf32>,
    return
  }
  func.func @transform_0(%arg0: i32) -> (i32, i32) {
    %c0_i32 = arith.constant 0 : i32
    %c0_i32_0 = arith.constant 0 : i32
    return %arg0, %c0_i32 : i32, i32
  }
  func.func @transform_1(%arg0: i32) -> (i32, i32) {
    %c0_i32 = arith.constant 0 : i32
    %c0_i32_0 = arith.constant 0 : i32
    %c0_i32_1 = arith.constant 0 : i32
    return %c0_i32, %c0_i32_0 : i32, i32
  }
  func.func @transform_2(%arg0: i32) -> (i32, i32) {
    %c0_i32 = arith.constant 0 : i32
    %c0_i32_0 = arith.constant 0 : i32
    %c0_i32_1 = arith.constant 0 : i32
    return %c0_i32, %c0_i32_0 : i32, i32
  }
  func.func @transform_3(%arg0: i32) -> (i32, i32) {
    %c0_i32 = arith.constant 0 : i32
    %c0_i32_0 = arith.constant 0 : i32
    %c0_i32_1 = arith.constant 0 : i32
    return %c0_i32, %c0_i32_0 : i32, i32
  }
  func.func @transform_4(%arg0: i32) -> (i32, i32) {
    %c0_i32 = arith.constant 0 : i32
    %c0_i32_0 = arith.constant 0 : i32
    %c0_i32_1 = arith.constant 0 : i32
    return %c0_i32, %c0_i32_0 : i32, i32
  }
  func.func @transform_5(%arg0: i32) -> (i32, i32) {
    %c0_i32 = arith.constant 0 : i32
    %c0_i32_0 = arith.constant 0 : i32
    %c0_i32_1 = arith.constant 0 : i32
    return %c0_i32, %c0_i32_0 : i32, i32
  }
  func.func @transform_6(%arg0: i32) -> (i32, i32) {
    %c0_i32 = arith.constant 0 : i32
    %c0_i32_0 = arith.constant 0 : i32
    %c0_i32_1 = arith.constant 0 : i32
    return %c0_i32, %c0_i32_0 : i32, i32
  }
  func.func @transform_7(%arg0: i32) -> (i32, i32) {
    %c0_i32 = arith.constant 0 : i32
    %c0_i32_0 = arith.constant 0 : i32
    %c0_i32_1 = arith.constant 0 : i32
    return %c0_i32, %c0_i32_0 : i32, i32
  }
  func.func @transform_8(%arg0: i32) -> (i32, i32) {
    %c0_i32 = arith.constant 0 : i32
    %c0_i32_0 = arith.constant 0 : i32
    %c0_i32_1 = arith.constant 0 : i32
    return %c0_i32, %c0_i32_0 : i32, i32
  }
  func.func @transform_9(%arg0: i32) -> (i32, i32) {
    %c0_i32 = arith.constant 0 : i32
    %c0_i32_0 = arith.constant 0 : i32
    return %arg0, %c0_i32 : i32, i32
  }
  func.func @transform_10(%arg0: i32) -> (i32, i32) {
    %c0_i32 = arith.constant 0 : i32
    %c0_i32_0 = arith.constant 0 : i32
    return %arg0, %c0_i32 : i32, i32
  }
}

</mosaic_0001>

<llo_original>
// kernel: _lambda_.2
$region0: #{_lambda_.2}
  #allocation0 [shape = 'u32[]', space=smem, size = 0x4, offset = 0x4, fixed_abs, tag = 'smem constant byte address 0x4 - core index']
  #allocation1 [shape = 'u32[144,128]{1,0:T(1,128)}', space=vmem, size = 0x12000, scoped, tag = 'internal scratch']
  %s0 = inlined_call_operand.vmem [shape: f32[2,16,8], index: 0, kind: input, shape index: {}]
  %s1 = inlined_call_operand.hbm [shape: bf16[8,128], index: 1, kind: input, shape index: {}]
  %s2 = inlined_call_operand.hbm [shape: f32[1,128], index: 2, kind: input, shape index: {}]
  %s3 = inlined_call_operand.hbm [shape: bf16[128,128], index: 3, kind: input, shape index: {}]
  %s4 = inlined_call_operand.hbm [shape: f32[1,128], index: 4, kind: input, shape index: {}]
  %s5 = inlined_call_operand.hbm [shape: bf16[128,128], index: 5, kind: input, shape index: {}]
  %s6 = inlined_call_operand.hbm [shape: f32[1,128], index: 6, kind: input, shape index: {}]
  %s7 = inlined_call_operand.hbm [shape: bf16[128,128], index: 7, kind: input, shape index: {}]
  %s8 = inlined_call_operand.hbm [shape: f32[1,128], index: 8, kind: input, shape index: {}]
  %s9 = inlined_call_operand.vmem [shape: bf16[128,1024], index: 9, kind: input, shape index: {}]
  %s10 = inlined_call_operand.hbm [shape: f32[1,1024], index: 10, kind: input, shape index: {}]
  %s11 = inlined_call_operand.vmem [shape: f32[2,1,1024], index: 11, kind: output, shape index: {}]
  %s12 = sld [smem:[#allocation0]]
  $region117: #{_lambda_.2} parent=0
    _
  %s14 = ssub.s32 1, %s12
  %s15 = scalar_select 0, %s14, %s12
  $region1: #{_lambda_.2} parent=0
    #allocation2 [shape = 'u8[2048]{0}', space=vmem, size = 0x800, scoped, tag = 'input window, operand 1, single buffered']
    #allocation3 [shape = 's32[2]{0}', space=sflag, size = 0x8, scoped, tag = 'scoped memory for _lambda_.2']
    #allocation4 [shape = 'u8[512]{0}', space=vmem, size = 0x400, scoped, tag = 'input window, operand 2, single buffered']
    #allocation5 [shape = 's32[1]{0}', space=sflag, size = 0x4, scoped, tag = 'scoped memory for _lambda_.2']
    #allocation6 [shape = 'u8[32768]{0}', space=vmem, size = 0x8000, scoped, tag = 'input window, operand 3, single buffered']
    #allocation7 [shape = 'u8[512]{0}', space=vmem, size = 0x400, scoped, tag = 'input window, operand 4, single buffered']
    #allocation8 [shape = 's32[1]{0}', space=sflag, size = 0x4, scoped, tag = 'scoped memory for _lambda_.2']
    #allocation9 [shape = 'u8[32768]{0}', space=vmem, size = 0x8000, scoped, tag = 'input window, operand 5, single buffered']
    #allocation10 [shape = 'u8[512]{0}', space=vmem, size = 0x400, scoped, tag = 'input window, operand 6, single buffered']
    #allocation11 [shape = 's32[1]{0}', space=sflag, size = 0x4, scoped, tag = 'scoped memory for _lambda_.2']
    #allocation12 [shape = 'u8[32768]{0}', space=vmem, size = 0x8000, scoped, tag = 'input window, operand 7, single buffered']
    #allocation13 [shape = 'u8[512]{0}', space=vmem, size = 0x400, scoped, tag = 'input window, operand 8, single buffered']
    #allocation14 [shape = 's32[1]{0}', space=sflag, size = 0x4, scoped, tag = 'scoped memory for _lambda_.2']
    #allocation15 [shape = 'u8[4096]{0}', space=vmem, size = 0x1000, scoped, tag = 'input window, operand 10, single buffered']
    %16 = vsyncpa [#allocation3], 0
    %17 = vsyncpa [#allocation5], 0
    %18 = vsyncpa [#allocation8], 0
    %19 = vsyncpa [#allocation11], 0
    %20 = vsyncpa [#allocation14], 0
    loop: start=0, step=1, limit=4
    $region2: #{_lambda_.2} parent=1 // loop_pre_header
      _
    $region3: #{_lambda_.2} parent=1 // loop_header
      %s22 = sphi 0, %s26
      %p23 = scmp.ge.s32.totalorder %s22, 4
      %s29 = sphi 0, %s41
      %s30 = sphi 0, %s37
      %s31 = sphi 0, %s29
      %s32 = sphi 0, %s30
      %s33 = sphi 0, %s31
      %s34 = sphi 0, %s32
      %s46 = sphi 0, %s48
      %s49 = sphi 0, %s46
      %s50 = sphi 0, %s49
      %s66 = sphi 0, %s50
      %s70 = sphi 0, %s70
      %s72 = sphi 0, %s70
      %s73 = sphi 0, %s72
      %s87 = sphi 0, %s73
      %s91 = sphi 0, %s91
      %s93 = sphi 0, %s91
      %s94 = sphi 0, %s93
      %s108 = sphi 0, %s94
      %s112 = sphi 0, %s112
      %s114 = sphi 0, %s112
      %s115 = sphi 0, %s114
      %s129 = sphi 0, %s115
      %s133 = sphi 0, %s133
      %s135 = sphi 0, %s133
      %s136 = sphi 0, %s135
      %s150 = sphi 0, %s136
      %s154 = sphi 0, %s154
      %s156 = sphi 0, %s154
      %s157 = sphi 0, %s156
      %s171 = sphi 0, %s157
      %s175 = sphi 0, %s175
      %s177 = sphi 0, %s175
      %s178 = sphi 0, %s177
      %s192 = sphi 0, %s178
      %s196 = sphi 0, %s196
      %s198 = sphi 0, %s196
      %s199 = sphi 0, %s198
      %s213 = sphi 0, %s199
      %s217 = sphi 0, %s217
      %s219 = sphi 0, %s217
      %s220 = sphi 0, %s219
      %s234 = sphi 0, %s220
      %s238 = sphi 0, %s238
      %s240 = sphi 0, %s238
      %s241 = sphi 0, %s240
      %s255 = sphi 0, %s241
      %s259 = sphi 0, %s259
      %s261 = sphi 0, %s259
      %s262 = sphi 0, %s261
      %s276 = sphi 0, %s262
      %s282 = sphi 0, %s284
      %s285 = sphi 0, %s282
      %s286 = sphi 0, %s285
      %s302 = sphi 0, %s286
    $region4: #{_lambda_.2} parent=1 // loop_header_branch
      %25 = sbr.rel (%p23) target = $region8
    $region5: #{_lambda_.2} parent=1 // loop_body
      %s27 = ssub.s32 %s22, 1
      %s28 = ssub.s32 %s22, 2
      %s35 = sadd.s32 1, %s30
      %p36 = scmp.ge.s32.totalorder %s35, 1
      %s37 = scalar_select %p36, 0, %s35
      %s38 = sadd.s32 1, %s29
      %s39 = scalar_select %p36, %s38, %s29
      %p40 = scmp.ge.s32.totalorder %s39, 2
      %s41 = scalar_select %p40, 0, %s39
      %s42 = ssub.s32 %s29, %s41
      %s43 = ssub.s32 %s30, %s37
      %s44 = sor.u32 %s42, %s43
      %p45 = scmp.eq.s32.totalorder %s44, 0
      %s47 = sadd.s32 %s46, 1
      %s48 = scalar_select %p45, %s46, %s47
      %p51 = pneg %p45
      %p52 = scmp.eq.s32.totalorder %s22, 1
      %p53 = por %p51, %p52
      %p54 = scmp.ne.s32.totalorder %s46, %s49
      %p55 = scmp.eq.s32.totalorder %s22, 0
      %p56 = por %p54, %p55
      %p57 = scmp.ne.s32.totalorder %s46, %s49
      %p58 = scmp.eq.s32.totalorder %s27, 1
      %p59 = por %p57, %p58
      %p60 = scmp.ne.s32.totalorder %s49, %s50
      %p61 = scmp.eq.s32.totalorder %s27, 0
      %p62 = por %p60, %p61
      %p63 = scmp.ne.s32.totalorder %s49, %s50
      %p64 = scmp.eq.s32.totalorder %s28, 1
      %p65 = por %p63, %p64
      %p67 = scmp.ne.s32.totalorder %s50, %s66
      %p68 = scmp.eq.s32.totalorder %s28, 0
      %p69 = por %p67, %p68
      %s71 = sadd.s32 %s70, 1
      %p74 = scmp.eq.s32.totalorder %s22, 1
      %p75 = scmp.ne.s32.totalorder %s70, %s72
      %p76 = scmp.eq.s32.totalorder %s22, 0
      %p77 = por %p75, %p76
      %p78 = scmp.ne.s32.totalorder %s70, %s72
      %p79 = scmp.eq.s32.totalorder %s27, 1
      %p80 = por %p78, %p79
      %p81 = scmp.ne.s32.totalorder %s72, %s73
      %p82 = scmp.eq.s32.totalorder %s27, 0
      %p83 = por %p81, %p82
      %p84 = scmp.ne.s32.totalorder %s72, %s73
      %p85 = scmp.eq.s32.totalorder %s28, 1
      %p86 = por %p84, %p85
      %p88 = scmp.ne.s32.totalorder %s73, %s87
      %p89 = scmp.eq.s32.totalorder %s28, 0
      %p90 = por %p88, %p89
      %s92 = sadd.s32 %s91, 1
      %p95 = scmp.eq.s32.totalorder %s22, 1
      %p96 = scmp.ne.s32.totalorder %s91, %s93
      %p97 = scmp.eq.s32.totalorder %s22, 0
      %p98 = por %p96, %p97
      %p99 = scmp.ne.s32.totalorder %s91, %s93
      %p100 = scmp.eq.s32.totalorder %s27, 1
      %p101 = por %p99, %p100
      %p102 = scmp.ne.s32.totalorder %s93, %s94
      %p103 = scmp.eq.s32.totalorder %s27, 0
      %p104 = por %p102, %p103
      %p105 = scmp.ne.s32.totalorder %s93, %s94
      %p106 = scmp.eq.s32.totalorder %s28, 1
      %p107 = por %p105, %p106
      %p109 = scmp.ne.s32.totalorder %s94, %s108
      %p110 = scmp.eq.s32.totalorder %s28, 0
      %p111 = por %p109, %p110
      %s113 = sadd.s32 %s112, 1
      %p116 = scmp.eq.s32.totalorder %s22, 1
      %p117 = scmp.ne.s32.totalorder %s112, %s114
      %p118 = scmp.eq.s32.totalorder %s22, 0
      %p119 = por %p117, %p118
      %p120 = scmp.ne.s32.totalorder %s112, %s114
      %p121 = scmp.eq.s32.totalorder %s27, 1
      %p122 = por %p120, %p121
      %p123 = scmp.ne.s32.totalorder %s114, %s115
      %p124 = scmp.eq.s32.totalorder %s27, 0
      %p125 = por %p123, %p124
      %p126 = scmp.ne.s32.totalorder %s114, %s115
      %p127 = scmp.eq.s32.totalorder %s28, 1
      %p128 = por %p126, %p127
      %p130 = scmp.ne.s32.totalorder %s115, %s129
      %p131 = scmp.eq.s32.totalorder %s28, 0
      %p132 = por %p130, %p131
      %s134 = sadd.s32 %s133, 1
      %p137 = scmp.eq.s32.totalorder %s22, 1
      %p138 = scmp.ne.s32.totalorder %s133, %s135
      %p139 = scmp.eq.s32.totalorder %s22, 0
      %p140 = por %p138, %p139
      %p141 = scmp.ne.s32.totalorder %s133, %s135
      %p142 = scmp.eq.s32.totalorder %s27, 1
      %p143 = por %p141, %p142
      %p144 = scmp.ne.s32.totalorder %s135, %s136
      %p145 = scmp.eq.s32.totalorder %s27, 0
      %p146 = por %p144, %p145
      %p147 = scmp.ne.s32.totalorder %s135, %s136
      %p148 = scmp.eq.s32.totalorder %s28, 1
      %p149 = por %p147, %p148
      %p151 = scmp.ne.s32.totalorder %s136, %s150
      %p152 = scmp.eq.s32.totalorder %s28, 0
      %p153 = por %p151, %p152
      %s155 = sadd.s32 %s154, 1
      %p158 = scmp.eq.s32.totalorder %s22, 1
      %p159 = scmp.ne.s32.totalorder %s154, %s156
      %p160 = scmp.eq.s32.totalorder %s22, 0
      %p161 = por %p159, %p160
      %p162 = scmp.ne.s32.totalorder %s154, %s156
      %p163 = scmp.eq.s32.totalorder %s27, 1
      %p164 = por %p162, %p163
      %p165 = scmp.ne.s32.totalorder %s156, %s157
      %p166 = scmp.eq.s32.totalorder %s27, 0
      %p167 = por %p165, %p166
      %p168 = scmp.ne.s32.totalorder %s156, %s157
      %p169 = scmp.eq.s32.totalorder %s28, 1
      %p170 = por %p168, %p169
      %p172 = scmp.ne.s32.totalorder %s157, %s171
      %p173 = scmp.eq.s32.totalorder %s28, 0
      %p174 = por %p172, %p173
      %s176 = sadd.s32 %s175, 1
      %p179 = scmp.eq.s32.totalorder %s22, 1
      %p180 = scmp.ne.s32.totalorder %s175, %s177
      %p181 = scmp.eq.s32.totalorder %s22, 0
      %p182 = por %p180, %p181
      %p183 = scmp.ne.s32.totalorder %s175, %s177
      %p184 = scmp.eq.s32.totalorder %s27, 1
      %p185 = por %p183, %p184
      %p186 = scmp.ne.s32.totalorder %s177, %s178
      %p187 = scmp.eq.s32.totalorder %s27, 0
      %p188 = por %p186, %p187
      %p189 = scmp.ne.s32.totalorder %s177, %s178
      %p190 = scmp.eq.s32.totalorder %s28, 1
      %p191 = por %p189, %p190
      %p193 = scmp.ne.s32.totalorder %s178, %s192
      %p194 = scmp.eq.s32.totalorder %s28, 0
      %p195 = por %p193, %p194
      %s197 = sadd.s32 %s196, 1
      %p200 = scmp.eq.s32.totalorder %s22, 1
      %p201 = scmp.ne.s32.totalorder %s196, %s198
      %p202 = scmp.eq.s32.totalorder %s22, 0
      %p203 = por %p201, %p202
      %p204 = scmp.ne.s32.totalorder %s196, %s198
      %p205 = scmp.eq.s32.totalorder %s27, 1
      %p206 = por %p204, %p205
      %p207 = scmp.ne.s32.totalorder %s198, %s199
      %p208 = scmp.eq.s32.totalorder %s27, 0
      %p209 = por %p207, %p208
      %p210 = scmp.ne.s32.totalorder %s198, %s199
      %p211 = scmp.eq.s32.totalorder %s28, 1
      %p212 = por %p210, %p211
      %p214 = scmp.ne.s32.totalorder %s199, %s213
      %p215 = scmp.eq.s32.totalorder %s28, 0
      %p216 = por %p214, %p215
      %s218 = sadd.s32 %s217, 1
      %p221 = scmp.eq.s32.totalorder %s22, 1
      %p222 = scmp.ne.s32.totalorder %s217, %s219
      %p223 = scmp.eq.s32.totalorder %s22, 0
      %p224 = por %p222, %p223
      %p225 = scmp.ne.s32.totalorder %s217, %s219
      %p226 = scmp.eq.s32.totalorder %s27, 1
      %p227 = por %p225, %p226
      %p228 = scmp.ne.s32.totalorder %s219, %s220
      %p229 = scmp.eq.s32.totalorder %s27, 0
      %p230 = por %p228, %p229
      %p231 = scmp.ne.s32.totalorder %s219, %s220
      %p232 = scmp.eq.s32.totalorder %s28, 1
      %p233 = por %p231, %p232
      %p235 = scmp.ne.s32.totalorder %s220, %s234
      %p236 = scmp.eq.s32.totalorder %s28, 0
      %p237 = por %p235, %p236
      %s239 = sadd.s32 %s238, 1
      %p242 = scmp.eq.s32.totalorder %s22, 1
      %p243 = scmp.ne.s32.totalorder %s238, %s240
      %p244 = scmp.eq.s32.totalorder %s22, 0
      %p245 = por %p243, %p244
      %p246 = scmp.ne.s32.totalorder %s238, %s240
      %p247 = scmp.eq.s32.totalorder %s27, 1
      %p248 = por %p246, %p247
      %p249 = scmp.ne.s32.totalorder %s240, %s241
      %p250 = scmp.eq.s32.totalorder %s27, 0
      %p251 = por %p249, %p250
      %p252 = scmp.ne.s32.totalorder %s240, %s241
      %p253 = scmp.eq.s32.totalorder %s28, 1
      %p254 = por %p252, %p253
      %p256 = scmp.ne.s32.totalorder %s241, %s255
      %p257 = scmp.eq.s32.totalorder %s28, 0
      %p258 = por %p256, %p257
      %s260 = sadd.s32 %s259, 1
      %p263 = scmp.eq.s32.totalorder %s22, 1
      %p264 = scmp.ne.s32.totalorder %s259, %s261
      %p265 = scmp.eq.s32.totalorder %s22, 0
      %p266 = por %p264, %p265
      %p267 = scmp.ne.s32.totalorder %s259, %s261
      %p268 = scmp.eq.s32.totalorder %s27, 1
      %p269 = por %p267, %p268
      %p270 = scmp.ne.s32.totalorder %s261, %s262
      %p271 = scmp.eq.s32.totalorder %s27, 0
      %p272 = por %p270, %p271
      %p273 = scmp.ne.s32.totalorder %s261, %s262
      %p274 = scmp.eq.s32.totalorder %s28, 1
      %p275 = por %p273, %p274
      %p277 = scmp.ne.s32.totalorder %s262, %s276
      %p278 = scmp.eq.s32.totalorder %s28, 0
      %p279 = por %p277, %p278
      %s280 = ssub.s32 %s29, %s41
      %p281 = scmp.eq.s32.totalorder %s280, 0
      %s283 = sadd.s32 %s282, 1
      %s284 = scalar_select %p281, %s282, %s283
      %p287 = pneg %p281
      %p288 = scmp.eq.s32.totalorder %s22, 1
      %p289 = por %p287, %p288
      %p290 = scmp.ne.s32.totalorder %s282, %s285
      %p291 = scmp.eq.s32.totalorder %s22, 0
      %p292 = por %p290, %p291
      %p293 = scmp.ne.s32.totalorder %s282, %s285
      %p294 = scmp.eq.s32.totalorder %s27, 1
      %p295 = por %p293, %p294
      %p296 = scmp.ne.s32.totalorder %s285, %s286
      %p297 = scmp.eq.s32.totalorder %s27, 0
      %p298 = por %p296, %p297
      %p299 = scmp.ne.s32.totalorder %s285, %s286
      %p300 = scmp.eq.s32.totalorder %s28, 1
      %p301 = por %p299, %p300
      %p303 = scmp.ne.s32.totalorder %s286, %s302
      %p304 = scmp.eq.s32.totalorder %s28, 0
      %p305 = por %p303, %p304
      %p306 = scmp.le.s32.totalorder 1, %s22
      %p307 = scmp.lt.s32.totalorder %s22, 3
      %p308 = pnand %p306, %p307
      %p309 = pneg %p308
      // Predicated region
      $region9: #{_lambda_.2} parent=5 // pred_check
        _
      $region10: #{_lambda_.2} parent=5 // pred_check_branch
        %311 = sbr.rel (%p308) target = $region12
      $region11: #{_lambda_.2} parent=5 // pred_region
        %s312 = ssub.s32 %s22, 1
        // Predicated region
        $region13: #{_lambda_.2} parent=11 // pred_check
          %p313 = pneg %p83
        $region14: #{_lambda_.2} parent=11 // pred_check_branch
          %315 = sbr.rel (%p313) target = $region16
        $region15: #{_lambda_.2} parent=11 // pred_region
          %s317 = ssub.s32 64, 64
          %318 = vsyncadd [#allocation3], %s317
          %s320 = sshll.u32 [#allocation2], 4
          %s321 = int_to_ptr.vmem [resolvable:$true] %s320
          %323 = dma.hbm_to_vmem [thread:$0]  %s1, 64, %s321, [#allocation3]
        $region16: #{_lambda_.2} parent=11 // pred_fallthru
          _
        // Predicated region
        $region17: #{_lambda_.2} parent=11 // pred_check
          %p324 = pneg %p104
        $region18: #{_lambda_.2} parent=11 // pred_check_branch
          %326 = sbr.rel (%p324) target = $region20
        $region19: #{_lambda_.2} parent=11 // pred_region
          %s328 = ssub.s32 16, 16
          %329 = vsyncadd [#allocation5], %s328
          %s331 = sshll.u32 [#allocation4], 4
          %s332 = int_to_ptr.vmem [resolvable:$true] %s331
          %334 = dma.hbm_to_vmem [thread:$0]  %s2, 16, %s332, [#allocation5]
        $region20: #{_lambda_.2} parent=11 // pred_fallthru
          _
        // Predicated region
        $region21: #{_lambda_.2} parent=11 // pred_check
          %p335 = pneg %p125
        $region22: #{_lambda_.2} parent=11 // pred_check_branch
          %337 = sbr.rel (%p335) target = $region24
        $region23: #{_lambda_.2} parent=11 // pred_region
          %s339 = ssub.s32 1024, 1024
          %340 = vsyncadd [#allocation5], %s339
          %s341 = sshll.u32 [#allocation6], 4
          %s342 = int_to_ptr.vmem [resolvable:$true] %s341
          %347 = dma.hbm_to_vmem [thread:$0]  %s3, 1024, %s342, [#allocation5], 64, 64, 4
        $region24: #{_lambda_.2} parent=11 // pred_fallthru
          _
        // Predicated region
        $region25: #{_lambda_.2} parent=11 // pred_check
          %p348 = pneg %p146
        $region26: #{_lambda_.2} parent=11 // pred_check_branch
          %350 = sbr.rel (%p348) target = $region28
        $region27: #{_lambda_.2} parent=11 // pred_region
          %s352 = ssub.s32 16, 16
          %353 = vsyncadd [#allocation8], %s352
          %s355 = sshll.u32 [#allocation7], 4
          %s356 = int_to_ptr.vmem [resolvable:$true] %s355
          %358 = dma.hbm_to_vmem [thread:$0]  %s4, 16, %s356, [#allocation8]
        $region28: #{_lambda_.2} parent=11 // pred_fallthru
          _
        // Predicated region
        $region29: #{_lambda_.2} parent=11 // pred_check
          %p359 = pneg %p167
        $region30: #{_lambda_.2} parent=11 // pred_check_branch
          %361 = sbr.rel (%p359) target = $region32
        $region31: #{_lambda_.2} parent=11 // pred_region
          %s363 = ssub.s32 1024, 1024
          %364 = vsyncadd [#allocation8], %s363
          %s365 = sshll.u32 [#allocation9], 4
          %s366 = int_to_ptr.vmem [resolvable:$true] %s365
          %371 = dma.hbm_to_vmem [thread:$0]  %s5, 1024, %s366, [#allocation8], 64, 64, 4
        $region32: #{_lambda_.2} parent=11 // pred_fallthru
          _
        // Predicated region
        $region33: #{_lambda_.2} parent=11 // pred_check
          %p372 = pneg %p188
        $region34: #{_lambda_.2} parent=11 // pred_check_branch
          %374 = sbr.rel (%p372) target = $region36
        $region35: #{_lambda_.2} parent=11 // pred_region
          %s376 = ssub.s32 16, 16
          %377 = vsyncadd [#allocation11], %s376
          %s379 = sshll.u32 [#allocation10], 4
          %s380 = int_to_ptr.vmem [resolvable:$true] %s379
          %382 = dma.hbm_to_vmem [thread:$0]  %s6, 16, %s380, [#allocation11]
        $region36: #{_lambda_.2} parent=11 // pred_fallthru
          _
        // Predicated region
        $region37: #{_lambda_.2} parent=11 // pred_check
          %p383 = pneg %p209
        $region38: #{_lambda_.2} parent=11 // pred_check_branch
          %385 = sbr.rel (%p383) target = $region40
        $region39: #{_lambda_.2} parent=11 // pred_region
          %s387 = ssub.s32 1024, 1024
          %388 = vsyncadd [#allocation11], %s387
          %s389 = sshll.u32 [#allocation12], 4
          %s390 = int_to_ptr.vmem [resolvable:$true] %s389
          %395 = dma.hbm_to_vmem [thread:$0]  %s7, 1024, %s390, [#allocation11], 64, 64, 4
        $region40: #{_lambda_.2} parent=11 // pred_fallthru
          _
        // Predicated region
        $region41: #{_lambda_.2} parent=11 // pred_check
          %p396 = pneg %p230
        $region42: #{_lambda_.2} parent=11 // pred_check_branch
          %398 = sbr.rel (%p396) target = $region44
        $region43: #{_lambda_.2} parent=11 // pred_region
          %s400 = ssub.s32 16, 16
          %401 = vsyncadd [#allocation14], %s400
          %s403 = sshll.u32 [#allocation13], 4
          %s404 = int_to_ptr.vmem [resolvable:$true] %s403
          %406 = dma.hbm_to_vmem [thread:$0]  %s8, 16, %s404, [#allocation14]
        $region44: #{_lambda_.2} parent=11 // pred_fallthru
          _
        // Predicated region
        $region45: #{_lambda_.2} parent=11 // pred_check
          %p407 = pneg %p251
        $region46: #{_lambda_.2} parent=11 // pred_check_branch
          %409 = sbr.rel (%p407) target = $region48
        $region47: #{_lambda_.2} parent=11 // pred_region
          _
        $region48: #{_lambda_.2} parent=11 // pred_fallthru
          _
        // Predicated region
        $region49: #{_lambda_.2} parent=11 // pred_check
          %p410 = pneg %p272
        $region50: #{_lambda_.2} parent=11 // pred_check_branch
          %412 = sbr.rel (%p410) target = $region52
        $region51: #{_lambda_.2} parent=11 // pred_region
          %s414 = ssub.s32 128, 128
          %415 = vsyncadd [#allocation14], %s414
          %s417 = sshll.u32 [#allocation15], 4
          %s418 = int_to_ptr.vmem [resolvable:$true] %s417
          %420 = dma.hbm_to_vmem [thread:$0]  %s10, 128, %s418, [#allocation14]
        $region52: #{_lambda_.2} parent=11 // pred_fallthru
          _
      $region12: #{_lambda_.2} parent=5 // pred_fallthru
        _
      %p421 = scmp.lt.s32.totalorder %s22, 2
      // Predicated region
      $region53: #{_lambda_.2} parent=5 // pred_check
        %p422 = pneg %p421
      $region54: #{_lambda_.2} parent=5 // pred_check_branch
        %424 = sbr.rel (%p422) target = $region56
      $region55: #{_lambda_.2} parent=5 // pred_region
        // Predicated region
        $region57: #{_lambda_.2} parent=55 // pred_check
          %p425 = pneg %p56
        $region58: #{_lambda_.2} parent=55 // pred_check_branch
          %427 = sbr.rel (%p425) target = $region60
        $region59: #{_lambda_.2} parent=55 // pred_region
          %s428 = smul.u32 2, %s30
          %p429 = scmp.lt.s32.totalorder %s29, 1
          %s430 = scalar_select %p429, %s29, 1
          %p431 = scmp.lt.s32.totalorder %s428, 1
          %s432 = scalar_select %p431, %s428, 1
          %s433 = smul.addr %s430, 2
          %s434 = sadd.s32 %s432, %s433
          %s435 = smul.addr %s434, 8
          %s436 = scalar_lea.vmem %s0, %s435
          %s437 = smul.u32 2, %s30
        $region60: #{_lambda_.2} parent=55 // pred_fallthru
          _
      $region56: #{_lambda_.2} parent=5 // pred_fallthru
        _
      %p438 = scmp.le.s32.totalorder 1, %s22
      %p439 = scmp.lt.s32.totalorder %s22, 3
      %p440 = pnand %p438, %p439
      %p441 = pneg %p440
      // Predicated region
      $region61: #{_lambda_.2} parent=5 // pred_check
        _
      $region62: #{_lambda_.2} parent=5 // pred_check_branch
        %443 = sbr.rel (%p440) target = $region64
      $region63: #{_lambda_.2} parent=5 // pred_region
        %s444 = ssub.s32 %s22, 1
        // Predicated region
        $region65: #{_lambda_.2} parent=63 // pred_check
          %p445 = pneg %p83
        $region66: #{_lambda_.2} parent=63 // pred_check_branch
          %447 = sbr.rel (%p445) target = $region68
        $region67: #{_lambda_.2} parent=63 // pred_region
          %448 = dma.done [#allocation3], 64
        $region68: #{_lambda_.2} parent=63 // pred_fallthru
          _
        // Predicated region
        $region69: #{_lambda_.2} parent=63 // pred_check
          %p449 = pneg %p104
        $region70: #{_lambda_.2} parent=63 // pred_check_branch
          %451 = sbr.rel (%p449) target = $region72
        $region71: #{_lambda_.2} parent=63 // pred_region
          %452 = dma.done [#allocation5], 16
        $region72: #{_lambda_.2} parent=63 // pred_fallthru
          _
        // Predicated region
        $region73: #{_lambda_.2} parent=63 // pred_check
          %p453 = pneg %p125
        $region74: #{_lambda_.2} parent=63 // pred_check_branch
          %455 = sbr.rel (%p453) target = $region76
        $region75: #{_lambda_.2} parent=63 // pred_region
          %456 = dma.done [#allocation5], 1024
        $region76: #{_lambda_.2} parent=63 // pred_fallthru
          _
        // Predicated region
        $region77: #{_lambda_.2} parent=63 // pred_check
          %p457 = pneg %p146
        $region78: #{_lambda_.2} parent=63 // pred_check_branch
          %459 = sbr.rel (%p457) target = $region80
        $region79: #{_lambda_.2} parent=63 // pred_region
          %460 = dma.done [#allocation8], 16
        $region80: #{_lambda_.2} parent=63 // pred_fallthru
          _
        // Predicated region
        $region81: #{_lambda_.2} parent=63 // pred_check
          %p461 = pneg %p167
        $region82: #{_lambda_.2} parent=63 // pred_check_branch
          %463 = sbr.rel (%p461) target = $region84
        $region83: #{_lambda_.2} parent=63 // pred_region
          %464 = dma.done [#allocation8], 1024
        $region84: #{_lambda_.2} parent=63 // pred_fallthru
          _
        // Predicated region
        $region85: #{_lambda_.2} parent=63 // pred_check
          %p465 = pneg %p188
        $region86: #{_lambda_.2} parent=63 // pred_check_branch
          %467 = sbr.rel (%p465) target = $region88
        $region87: #{_lambda_.2} parent=63 // pred_region
          %468 = dma.done [#allocation11], 16
        $region88: #{_lambda_.2} parent=63 // pred_fallthru
          _
        // Predicated region
        $region89: #{_lambda_.2} parent=63 // pred_check
          %p469 = pneg %p209
        $region90: #{_lambda_.2} parent=63 // pred_check_branch
          %471 = sbr.rel (%p469) target = $region92
        $region91: #{_lambda_.2} parent=63 // pred_region
          %472 = dma.done [#allocation11], 1024
        $region92: #{_lambda_.2} parent=63 // pred_fallthru
          _
        // Predicated region
        $region93: #{_lambda_.2} parent=63 // pred_check
          %p473 = pneg %p230
        $region94: #{_lambda_.2} parent=63 // pred_check_branch
          %475 = sbr.rel (%p473) target = $region96
        $region95: #{_lambda_.2} parent=63 // pred_region
          %476 = dma.done [#allocation14], 16
        $region96: #{_lambda_.2} parent=63 // pred_fallthru
          _
        // Predicated region
        $region97: #{_lambda_.2} parent=63 // pred_check
          %p477 = pneg %p272
        $region98: #{_lambda_.2} parent=63 // pred_check_branch
          %479 = sbr.rel (%p477) target = $region100
        $region99: #{_lambda_.2} parent=63 // pred_region
          %480 = dma.done [#allocation14], 128
        $region100: #{_lambda_.2} parent=63 // pred_fallthru
          _
        %s481 = smul.u32 2, %s32
        %p482 = scmp.lt.s32.totalorder %s31, 1
        %s483 = scalar_select %p482, %s31, 1
        %p484 = scmp.lt.s32.totalorder %s481, 1
        %s485 = scalar_select %p484, %s481, 1
        %s486 = smul.addr %s483, 2
        %s487 = sadd.s32 %s485, %s486
        %s488 = smul.addr %s487, 8
        %s489 = scalar_lea.vmem %s0, %s488
        %p490 = pneg %p62
        %p491 = pneg %p59
        %p492 = pneg %p83
        %p493 = pneg %p80
        %p494 = pneg %p104
        %p495 = pneg %p101
        %p496 = pneg %p125
        %p497 = pneg %p122
        %p498 = pneg %p146
        %p499 = pneg %p143
        %p500 = pneg %p167
        %p501 = pneg %p164
        %p502 = pneg %p188
        %p503 = pneg %p185
        %p504 = pneg %p209
        %p505 = pneg %p206
        %p506 = pneg %p230
        %p507 = pneg %p227
        %p508 = pneg %p251
        %p509 = pneg %p248
        %p510 = pneg %p272
        %p511 = pneg %p269
        %p512 = pneg %p298
        %p513 = pneg %p295
        %p514 = scmp.lt.s32.totalorder %s31, 1
        %s515 = scalar_select %p514, %s31, 1
        %s516 = smul.addr %s515, 8
        %s517 = scalar_lea.vmem %s11, %s516
        %s518 = smul.u32 2, %s32
        %p519 = scmp.lt.s32.totalorder %s31, 1
        %s520 = scalar_select %p519, %s31, 1
        %p521 = scmp.lt.s32.totalorder %s518, 1
        %s522 = scalar_select %p521, %s518, 1
        %s523 = smul.addr %s520, 2
        %s524 = sadd.s32 %s522, %s523
        %s525 = smul.addr %s524, 8
        %s526 = scalar_lea.vmem %s0, %s525
        %s527 = smul.u32 2, %s32
        %p528 = scmp.lt.s32.totalorder %s31, 1
        %s529 = scalar_select %p528, %s31, 1
        %s530 = smul.addr %s529, 8
        %s531 = scalar_lea.vmem %s11, %s530
        %p533 = scmp.eq.s32.totalorder %s32, 0
        // Predicated region
        $region101: #{_lambda_.2} parent=63 // pred_check
          %p534 = pneg %p533
        $region102: #{_lambda_.2} parent=63 // pred_check_branch
          %536 = sbr.rel (%p534) target = $region104
        $region103: #{_lambda_.2} parent=63 // pred_region
          %537 = vst [vmem:[%s531] sm:$0xff] -inf
        $region104: #{_lambda_.2} parent=63 // pred_fallthru
          _
        %v538 = vld [vmem:[%s526] sm:$0xff]
        %v539 = vld [vmem:[%s526 + $0x8] sm:$0xff]
        %v540 = vpack.c.bf16 %v539, %v538
        %v541 = vld [vmem:[#allocation2] sm:$0xf]
        %v542 = vld [vmem:[#allocation4] sm:$0x1]
        %v544 = vlaneseq
        %v545 = vshrl.u32 %v544, 7
        %v546 = vsub.s32 0, %v545
        %v547 = vrot.slane %v542, %v546
        %vm549 = vcmask 64512
        %v551 = vsel %vm549, %v540, 0
        %vm553 = vcmask 1043456
        %v555 = vsel %vm553, %v541, 0
        %557 = vmatprep.subr.bf16.mxu0 0
        %558 = vmatpush1.bf16.msra.mxu0 %v555
        %559 = vmatprep.subr.bf16.mxu0 0
        %560 = vmatpush1.bf16.msra.mxu0 0
        %561 = vmatprep.subr.bf16.mxu0 0
        %562 = vmatpush1.bf16.msra.mxu0 0
        %563 = vmatprep.subr.bf16.mxu0 0
        %564 = vmatpush1.bf16.msra.mxu0 0
        %565 = vmatprep.subr.bf16.mxu0 0
        %566 = vmatpush1.bf16.msra.mxu0 0
        %567 = vmatprep.subr.bf16.mxu0 0
        %568 = vmatpush1.bf16.msra.mxu0 0
        %569 = vmatprep.subr.bf16.mxu0 0
        %570 = vmatpush1.bf16.msra.mxu0 0
        %571 = vmatprep.subr.bf16.mxu0 0
        %572 = vmatpush1.bf16.msra.mxu0 0
        %573 = vmatprep.subr.bf16.mxu0 0
        %574 = vmatpush1.bf16.msra.mxu0 0
        %575 = vmatprep.subr.bf16.mxu0 0
        %576 = vmatpush1.bf16.msra.mxu0 0
        %577 = vmatprep.subr.bf16.mxu0 0
        %578 = vmatpush1.bf16.msra.mxu0 0
        %579 = vmatprep.subr.bf16.mxu0 0
        %580 = vmatpush1.bf16.msra.mxu0 0
        %581 = vmatprep.subr.bf16.mxu0 0
        %582 = vmatpush1.bf16.msra.mxu0 0
        %583 = vmatprep.subr.bf16.mxu0 0
        %584 = vmatpush1.bf16.msra.mxu0 0
        %585 = vmatprep.subr.bf16.mxu0 0
        %586 = vmatpush1.bf16.msra.mxu0 0
        %587 = vmatprep.subr.bf16.mxu0 0
        %588 = vmatpush1.bf16.msra.mxu0 0
        %589 = vmatprep.mubr.bf16.mxu0 0
        %590 = vmatmul.mubr.bf16.gmra.mrb[0].mxu0 %v551
        %v591 = vpop.f32.mrb[0].mxu0
        %v592 = vadd.f32 %v547, %v591
        %v593 = vpop.f32.mrb[0].mxu0
        %v594 = vpop.f32.mrb[0].mxu0
        %v595 = vadd.f32 %v547, %v594
        %v596 = vpop.f32.mrb[0].mxu0
        %597 = vdwg.mxu0
        %v598 = vmax.f32 %v592, 0.0
        %v599 = vmax.f32 %v595, 0.0
        %v600 = vpack.c.bf16 %v599, %v598
        %v601 = vld [vmem:[#allocation6] sm:$0xf]
        %v602 = vld [vmem:[#allocation6 + $0x4] sm:$0xf]
        %v603 = vld [vmem:[#allocation6 + $0x8] sm:$0xf]
        %v604 = vld [vmem:[#allocation6 + $0xc] sm:$0xf]
        %v605 = vld [vmem:[#allocation6 + $0x10] sm:$0xf]
        %v606 = vld [vmem:[#allocation6 + $0x14] sm:$0xf]
        %v607 = vld [vmem:[#allocation6 + $0x18] sm:$0xf]
        %v608 = vld [vmem:[#allocation6 + $0x1c] sm:$0xf]
        %v609 = vld [vmem:[#allocation6 + $0x20] sm:$0xf]
        %v610 = vld [vmem:[#allocation6 + $0x24] sm:$0xf]
        %v611 = vld [vmem:[#allocation6 + $0x28] sm:$0xf]
        %v612 = vld [vmem:[#allocation6 + $0x2c] sm:$0xf]
        %v613 = vld [vmem:[#allocation6 + $0x30] sm:$0xf]
        %v614 = vld [vmem:[#allocation6 + $0x34] sm:$0xf]
        %v615 = vld [vmem:[#allocation6 + $0x38] sm:$0xf]
        %v616 = vld [vmem:[#allocation6 + $0x3c] sm:$0xf]
        %v617 = vld [vmem:[#allocation7] sm:$0x1]
        %v619 = vlaneseq
        %v620 = vshrl.u32 %v619, 7
        %v621 = vsub.s32 0, %v620
        %v622 = vrot.slane %v617, %v621
        %v640 = vunpack.c.l.b16 %v601
        %v641 = vunpack.c.l.b16 %v602
        %v642 = vunpack.c.l.b16 %v603
        %v643 = vunpack.c.l.b16 %v604
        %v644 = vunpack.c.l.b16 %v605
        %v645 = vunpack.c.l.b16 %v606
        %v646 = vunpack.c.l.b16 %v607
        %v647 = vunpack.c.l.b16 %v608
        %v648 = vunpack.c.l.b16 %v609
        %v649 = vunpack.c.l.b16 %v610
        %v650 = vunpack.c.l.b16 %v611
        %v651 = vunpack.c.l.b16 %v612
        %v652 = vunpack.c.l.b16 %v613
        %v653 = vunpack.c.l.b16 %v614
        %v654 = vunpack.c.l.b16 %v615
        %v655 = vunpack.c.l.b16 %v616
        %v656 = vpack.c.b16 %v641, %v640
        %v657 = vpack.c.b16 %v643, %v642
        %v658 = vpack.c.b16 %v645, %v644
        %v659 = vpack.c.b16 %v647, %v646
        %v660 = vpack.c.b16 %v649, %v648
        %v661 = vpack.c.b16 %v651, %v650
        %v662 = vpack.c.b16 %v653, %v652
        %v663 = vpack.c.b16 %v655, %v654
        %672 = vmatprep.subr.bf16.mxu0 0
        %673 = vmatpush1.bf16.msra.mxu0 %v656
        %674 = vmatprep.subr.bf16.mxu0 0
        %675 = vmatpush1.bf16.msra.mxu0 %v657
        %676 = vmatprep.subr.bf16.mxu0 0
        %677 = vmatpush1.bf16.msra.mxu0 %v658
        %678 = vmatprep.subr.bf16.mxu0 0
        %679 = vmatpush1.bf16.msra.mxu0 %v659
        %680 = vmatprep.subr.bf16.mxu0 0
        %681 = vmatpush1.bf16.msra.mxu0 %v660
        %682 = vmatprep.subr.bf16.mxu0 0
        %683 = vmatpush1.bf16.msra.mxu0 %v661
        %684 = vmatprep.subr.bf16.mxu0 0
        %685 = vmatpush1.bf16.msra.mxu0 %v662
        %686 = vmatprep.subr.bf16.mxu0 0
        %687 = vmatpush1.bf16.msra.mxu0 %v663
        %688 = vmatprep.subr.bf16.mxu0 0
        %689 = vmatpush1.bf16.msra.mxu0 0
        %690 = vmatprep.subr.bf16.mxu0 0
        %691 = vmatpush1.bf16.msra.mxu0 0
        %692 = vmatprep.subr.bf16.mxu0 0
        %693 = vmatpush1.bf16.msra.mxu0 0
        %694 = vmatprep.subr.bf16.mxu0 0
        %695 = vmatpush1.bf16.msra.mxu0 0
        %696 = vmatprep.subr.bf16.mxu0 0
        %697 = vmatpush1.bf16.msra.mxu0 0
        %698 = vmatprep.subr.bf16.mxu0 0
        %699 = vmatpush1.bf16.msra.mxu0 0
        %700 = vmatprep.subr.bf16.mxu0 0
        %701 = vmatpush1.bf16.msra.mxu0 0
        %702 = vmatprep.subr.bf16.mxu0 0
        %703 = vmatpush1.bf16.msra.mxu0 0
        %704 = vmatprep.mubr.bf16.mxu0 0
        %705 = vmatmul.mubr.bf16.gmra.mrb[0].mxu0 %v600
        %v706 = vpop.f32.mrb[0].mxu0
        %v707 = vadd.f32 %v622, %v706
        %v708 = vpop.f32.mrb[0].mxu0
        %v709 = vpop.f32.mrb[0].mxu0
        %v710 = vadd.f32 %v622, %v709
        %v711 = vpop.f32.mrb[0].mxu0
        %712 = vdwg.mxu0
        %v713 = vmax.f32 %v707, 0.0
        %v714 = vmax.f32 %v710, 0.0
        %v715 = vpack.c.bf16 %v714, %v713
        %v716 = vld [vmem:[#allocation9] sm:$0xf]
        %v717 = vld [vmem:[#allocation9 + $0x4] sm:$0xf]
        %v718 = vld [vmem:[#allocation9 + $0x8] sm:$0xf]
        %v719 = vld [vmem:[#allocation9 + $0xc] sm:$0xf]
        %v720 = vld [vmem:[#allocation9 + $0x10] sm:$0xf]
        %v721 = vld [vmem:[#allocation9 + $0x14] sm:$0xf]
        %v722 = vld [vmem:[#allocation9 + $0x18] sm:$0xf]
        %v723 = vld [vmem:[#allocation9 + $0x1c] sm:$0xf]
        %v724 = vld [vmem:[#allocation9 + $0x20] sm:$0xf]
        %v725 = vld [vmem:[#allocation9 + $0x24] sm:$0xf]
        %v726 = vld [vmem:[#allocation9 + $0x28] sm:$0xf]
        %v727 = vld [vmem:[#allocation9 + $0x2c] sm:$0xf]
        %v728 = vld [vmem:[#allocation9 + $0x30] sm:$0xf]
        %v729 = vld [vmem:[#allocation9 + $0x34] sm:$0xf]
        %v730 = vld [vmem:[#allocation9 + $0x38] sm:$0xf]
        %v731 = vld [vmem:[#allocation9 + $0x3c] sm:$0xf]
        %v732 = vld [vmem:[#allocation10] sm:$0x1]
        %v734 = vlaneseq
        %v735 = vshrl.u32 %v734, 7
        %v736 = vsub.s32 0, %v735
        %v737 = vrot.slane %v732, %v736
        %v755 = vunpack.c.l.b16 %v716
        %v756 = vunpack.c.l.b16 %v717
        %v757 = vunpack.c.l.b16 %v718
        %v758 = vunpack.c.l.b16 %v719
        %v759 = vunpack.c.l.b16 %v720
        %v760 = vunpack.c.l.b16 %v721
        %v761 = vunpack.c.l.b16 %v722
        %v762 = vunpack.c.l.b16 %v723
        %v763 = vunpack.c.l.b16 %v724
        %v764 = vunpack.c.l.b16 %v725
        %v765 = vunpack.c.l.b16 %v726
        %v766 = vunpack.c.l.b16 %v727
        %v767 = vunpack.c.l.b16 %v728
        %v768 = vunpack.c.l.b16 %v729
        %v769 = vunpack.c.l.b16 %v730
        %v770 = vunpack.c.l.b16 %v731
        %v771 = vpack.c.b16 %v756, %v755
        %v772 = vpack.c.b16 %v758, %v757
        %v773 = vpack.c.b16 %v760, %v759
        %v774 = vpack.c.b16 %v762, %v761
        %v775 = vpack.c.b16 %v764, %v763
        %v776 = vpack.c.b16 %v766, %v765
        %v777 = vpack.c.b16 %v768, %v767
        %v778 = vpack.c.b16 %v770, %v769
        %787 = vmatprep.subr.bf16.mxu0 0
        %788 = vmatpush1.bf16.msra.mxu0 %v771
        %789 = vmatprep.subr.bf16.mxu0 0
        %790 = vmatpush1.bf16.msra.mxu0 %v772
        %791 = vmatprep.subr.bf16.mxu0 0
        %792 = vmatpush1.bf16.msra.mxu0 %v773
        %793 = vmatprep.subr.bf16.mxu0 0
        %794 = vmatpush1.bf16.msra.mxu0 %v774
        %795 = vmatprep.subr.bf16.mxu0 0
        %796 = vmatpush1.bf16.msra.mxu0 %v775
        %797 = vmatprep.subr.bf16.mxu0 0
        %798 = vmatpush1.bf16.msra.mxu0 %v776
        %799 = vmatprep.subr.bf16.mxu0 0
        %800 = vmatpush1.bf16.msra.mxu0 %v777
        %801 = vmatprep.subr.bf16.mxu0 0
        %802 = vmatpush1.bf16.msra.mxu0 %v778
        %803 = vmatprep.subr.bf16.mxu0 0
        %804 = vmatpush1.bf16.msra.mxu0 0
        %805 = vmatprep.subr.bf16.mxu0 0
        %806 = vmatpush1.bf16.msra.mxu0 0
        %807 = vmatprep.subr.bf16.mxu0 0
        %808 = vmatpush1.bf16.msra.mxu0 0
        %809 = vmatprep.subr.bf16.mxu0 0
        %810 = vmatpush1.bf16.msra.mxu0 0
        %811 = vmatprep.subr.bf16.mxu0 0
        %812 = vmatpush1.bf16.msra.mxu0 0
        %813 = vmatprep.subr.bf16.mxu0 0
        %814 = vmatpush1.bf16.msra.mxu0 0
        %815 = vmatprep.subr.bf16.mxu0 0
        %816 = vmatpush1.bf16.msra.mxu0 0
        %817 = vmatprep.subr.bf16.mxu0 0
        %818 = vmatpush1.bf16.msra.mxu0 0
        %819 = vmatprep.mubr.bf16.mxu0 0
        %820 = vmatmul.mubr.bf16.gmra.mrb[0].mxu0 %v715
        %v821 = vpop.f32.mrb[0].mxu0
        %v822 = vadd.f32 %v737, %v821
        %v823 = vpop.f32.mrb[0].mxu0
        %v824 = vpop.f32.mrb[0].mxu0
        %v825 = vadd.f32 %v737, %v824
        %v826 = vpop.f32.mrb[0].mxu0
        %827 = vdwg.mxu0
        %v828 = vmax.f32 %v822, 0.0
        %v829 = vmax.f32 %v825, 0.0
        %v830 = vpack.c.bf16 %v829, %v828
        %v831 = vld [vmem:[#allocation12] sm:$0xf]
        %v832 = vld [vmem:[#allocation12 + $0x4] sm:$0xf]
        %v833 = vld [vmem:[#allocation12 + $0x8] sm:$0xf]
        %v834 = vld [vmem:[#allocation12 + $0xc] sm:$0xf]
        %v835 = vld [vmem:[#allocation12 + $0x10] sm:$0xf]
        %v836 = vld [vmem:[#allocation12 + $0x14] sm:$0xf]
        %v837 = vld [vmem:[#allocation12 + $0x18] sm:$0xf]
        %v838 = vld [vmem:[#allocation12 + $0x1c] sm:$0xf]
        %v839 = vld [vmem:[#allocation12 + $0x20] sm:$0xf]
        %v840 = vld [vmem:[#allocation12 + $0x24] sm:$0xf]
        %v841 = vld [vmem:[#allocation12 + $0x28] sm:$0xf]
        %v842 = vld [vmem:[#allocation12 + $0x2c] sm:$0xf]
        %v843 = vld [vmem:[#allocation12 + $0x30] sm:$0xf]
        %v844 = vld [vmem:[#allocation12 + $0x34] sm:$0xf]
        %v845 = vld [vmem:[#allocation12 + $0x38] sm:$0xf]
        %v846 = vld [vmem:[#allocation12 + $0x3c] sm:$0xf]
        %v847 = vld [vmem:[#allocation13] sm:$0x1]
        %v849 = vlaneseq
        %v850 = vshrl.u32 %v849, 7
        %v851 = vsub.s32 0, %v850
        %v852 = vrot.slane %v847, %v851
        %v870 = vunpack.c.l.b16 %v831
        %v871 = vunpack.c.l.b16 %v832
        %v872 = vunpack.c.l.b16 %v833
        %v873 = vunpack.c.l.b16 %v834
        %v874 = vunpack.c.l.b16 %v835
        %v875 = vunpack.c.l.b16 %v836
        %v876 = vunpack.c.l.b16 %v837
        %v877 = vunpack.c.l.b16 %v838
        %v878 = vunpack.c.l.b16 %v839
        %v879 = vunpack.c.l.b16 %v840
        %v880 = vunpack.c.l.b16 %v841
        %v881 = vunpack.c.l.b16 %v842
        %v882 = vunpack.c.l.b16 %v843
        %v883 = vunpack.c.l.b16 %v844
        %v884 = vunpack.c.l.b16 %v845
        %v885 = vunpack.c.l.b16 %v846
        %v886 = vpack.c.b16 %v871, %v870
        %v887 = vpack.c.b16 %v873, %v872
        %v888 = vpack.c.b16 %v875, %v874
        %v889 = vpack.c.b16 %v877, %v876
        %v890 = vpack.c.b16 %v879, %v878
        %v891 = vpack.c.b16 %v881, %v880
        %v892 = vpack.c.b16 %v883, %v882
        %v893 = vpack.c.b16 %v885, %v884
        %902 = vmatprep.subr.bf16.mxu0 0
        %903 = vmatpush1.bf16.msra.mxu0 %v886
        %904 = vmatprep.subr.bf16.mxu0 0
        %905 = vmatpush1.bf16.msra.mxu0 %v887
        %906 = vmatprep.subr.bf16.mxu0 0
        %907 = vmatpush1.bf16.msra.mxu0 %v888
        %908 = vmatprep.subr.bf16.mxu0 0
        %909 = vmatpush1.bf16.msra.mxu0 %v889
        %910 = vmatprep.subr.bf16.mxu0 0
        %911 = vmatpush1.bf16.msra.mxu0 %v890
        %912 = vmatprep.subr.bf16.mxu0 0
        %913 = vmatpush1.bf16.msra.mxu0 %v891
        %914 = vmatprep.subr.bf16.mxu0 0
        %915 = vmatpush1.bf16.msra.mxu0 %v892
        %916 = vmatprep.subr.bf16.mxu0 0
        %917 = vmatpush1.bf16.msra.mxu0 %v893
        %918 = vmatprep.subr.bf16.mxu0 0
        %919 = vmatpush1.bf16.msra.mxu0 0
        %920 = vmatprep.subr.bf16.mxu0 0
        %921 = vmatpush1.bf16.msra.mxu0 0
        %922 = vmatprep.subr.bf16.mxu0 0
        %923 = vmatpush1.bf16.msra.mxu0 0
        %924 = vmatprep.subr.bf16.mxu0 0
        %925 = vmatpush1.bf16.msra.mxu0 0
        %926 = vmatprep.subr.bf16.mxu0 0
        %927 = vmatpush1.bf16.msra.mxu0 0
        %928 = vmatprep.subr.bf16.mxu0 0
        %929 = vmatpush1.bf16.msra.mxu0 0
        %930 = vmatprep.subr.bf16.mxu0 0
        %931 = vmatpush1.bf16.msra.mxu0 0
        %932 = vmatprep.subr.bf16.mxu0 0
        %933 = vmatpush1.bf16.msra.mxu0 0
        %934 = vmatprep.mubr.bf16.mxu0 0
        %935 = vmatmul.mubr.bf16.gmra.mrb[0].mxu0 %v830
        %v936 = vpop.f32.mrb[0].mxu0
        %v937 = vadd.f32 %v852, %v936
        %v938 = vpop.f32.mrb[0].mxu0
        %v939 = vpop.f32.mrb[0].mxu0
        %v940 = vadd.f32 %v852, %v939
        %v941 = vpop.f32.mrb[0].mxu0
        %942 = vdwg.mxu0
        %v943 = vmax.f32 %v937, 0.0
        %v944 = vmax.f32 %v940, 0.0
        %v945 = vpack.c.bf16 %v944, %v943
        %v946 = vld [vmem:[%s9] sm:$0xff]
        %v947 = vld [vmem:[%s9 + $0x8] sm:$0xff]
        %v948 = vld [vmem:[%s9 + $0x10] sm:$0xff]
        %v949 = vld [vmem:[%s9 + $0x18] sm:$0xff]
        %v950 = vld [vmem:[%s9 + $0x20] sm:$0xff]
        %v951 = vld [vmem:[%s9 + $0x28] sm:$0xff]
        %v952 = vld [vmem:[%s9 + $0x30] sm:$0xff]
        %v953 = vld [vmem:[%s9 + $0x38] sm:$0xff]
        %v954 = vld [vmem:[%s9 + $0x40] sm:$0xff]
        %v955 = vld [vmem:[%s9 + $0x48] sm:$0xff]
        %v956 = vld [vmem:[%s9 + $0x50] sm:$0xff]
        %v957 = vld [vmem:[%s9 + $0x58] sm:$0xff]
        %v958 = vld [vmem:[%s9 + $0x60] sm:$0xff]
        %v959 = vld [vmem:[%s9 + $0x68] sm:$0xff]
        %v960 = vld [vmem:[%s9 + $0x70] sm:$0xff]
        %v961 = vld [vmem:[%s9 + $0x78] sm:$0xff]
        %v962 = vld [vmem:[%s9 + $0x80] sm:$0xff]
        %v963 = vld [vmem:[%s9 + $0x88] sm:$0xff]
        %v964 = vld [vmem:[%s9 + $0x90] sm:$0xff]
        %v965 = vld [vmem:[%s9 + $0x98] sm:$0xff]
        %v966 = vld [vmem:[%s9 + $0xa0] sm:$0xff]
        %v967 = vld [vmem:[%s9 + $0xa8] sm:$0xff]
        %v968 = vld [vmem:[%s9 + $0xb0] sm:$0xff]
        %v969 = vld [vmem:[%s9 + $0xb8] sm:$0xff]
        %v970 = vld [vmem:[%s9 + $0xc0] sm:$0xff]
        %v971 = vld [vmem:[%s9 + $0xc8] sm:$0xff]
        %v972 = vld [vmem:[%s9 + $0xd0] sm:$0xff]
        %v973 = vld [vmem:[%s9 + $0xd8] sm:$0xff]
        %v974 = vld [vmem:[%s9 + $0xe0] sm:$0xff]
        %v975 = vld [vmem:[%s9 + $0xe8] sm:$0xff]
        %v976 = vld [vmem:[%s9 + $0xf0] sm:$0xff]
        %v977 = vld [vmem:[%s9 + $0xf8] sm:$0xff]
        %v978 = vld [vmem:[%s9 + $0x100] sm:$0xff]
        %v979 = vld [vmem:[%s9 + $0x108] sm:$0xff]
        %v980 = vld [vmem:[%s9 + $0x110] sm:$0xff]
        %v981 = vld [vmem:[%s9 + $0x118] sm:$0xff]
        %v982 = vld [vmem:[%s9 + $0x120] sm:$0xff]
        %v983 = vld [vmem:[%s9 + $0x128] sm:$0xff]
        %v984 = vld [vmem:[%s9 + $0x130] sm:$0xff]
        %v985 = vld [vmem:[%s9 + $0x138] sm:$0xff]
        %v986 = vld [vmem:[%s9 + $0x140] sm:$0xff]
        %v987 = vld [vmem:[%s9 + $0x148] sm:$0xff]
        %v988 = vld [vmem:[%s9 + $0x150] sm:$0xff]
        %v989 = vld [vmem:[%s9 + $0x158] sm:$0xff]
        %v990 = vld [vmem:[%s9 + $0x160] sm:$0xff]
        %v991 = vld [vmem:[%s9 + $0x168] sm:$0xff]
        %v992 = vld [vmem:[%s9 + $0x170] sm:$0xff]
        %v993 = vld [vmem:[%s9 + $0x178] sm:$0xff]
        %v994 = vld [vmem:[%s9 + $0x180] sm:$0xff]
        %v995 = vld [vmem:[%s9 + $0x188] sm:$0xff]
        %v996 = vld [vmem:[%s9 + $0x190] sm:$0xff]
        %v997 = vld [vmem:[%s9 + $0x198] sm:$0xff]
        %v998 = vld [vmem:[%s9 + $0x1a0] sm:$0xff]
        %v999 = vld [vmem:[%s9 + $0x1a8] sm:$0xff]
        %v1000 = vld [vmem:[%s9 + $0x1b0] sm:$0xff]
        %v1001 = vld [vmem:[%s9 + $0x1b8] sm:$0xff]
        %v1002 = vld [vmem:[%s9 + $0x1c0] sm:$0xff]
        %v1003 = vld [vmem:[%s9 + $0x1c8] sm:$0xff]
        %v1004 = vld [vmem:[%s9 + $0x1d0] sm:$0xff]
        %v1005 = vld [vmem:[%s9 + $0x1d8] sm:$0xff]
        %v1006 = vld [vmem:[%s9 + $0x1e0] sm:$0xff]
        %v1007 = vld [vmem:[%s9 + $0x1e8] sm:$0xff]
        %v1008 = vld [vmem:[%s9 + $0x1f0] sm:$0xff]
        %v1009 = vld [vmem:[%s9 + $0x1f8] sm:$0xff]
        %v1010 = vld [vmem:[#allocation15] sm:$0xff]
        %v1012 = vlaneseq
        %v1013 = vshrl.u32 %v1012, 7
        %v1014 = vsub.s32 0, %v1013
        %v1015 = vrot.slane %v1010, %v1014
        %v1016 = vlaneseq
        %v1017 = vshrl.u32 %v1016, 7
        %v1018 = vsub.s32 1, %v1017
        %v1019 = vrot.slane %v1010, %v1018
        %v1020 = vlaneseq
        %v1021 = vshrl.u32 %v1020, 7
        %v1022 = vsub.s32 2, %v1021
        %v1023 = vrot.slane %v1010, %v1022
        %v1024 = vlaneseq
        %v1025 = vshrl.u32 %v1024, 7
        %v1026 = vsub.s32 3, %v1025
        %v1027 = vrot.slane %v1010, %v1026
        %v1028 = vlaneseq
        %v1029 = vshrl.u32 %v1028, 7
        %v1030 = vsub.s32 4, %v1029
        %v1031 = vrot.slane %v1010, %v1030
        %v1032 = vlaneseq
        %v1033 = vshrl.u32 %v1032, 7
        %v1034 = vsub.s32 5, %v1033
        %v1035 = vrot.slane %v1010, %v1034
        %v1036 = vlaneseq
        %v1037 = vshrl.u32 %v1036, 7
        %v1038 = vsub.s32 6, %v1037
        %v1039 = vrot.slane %v1010, %v1038
        %v1040 = vlaneseq
        %v1041 = vshrl.u32 %v1040, 7
        %v1042 = vsub.s32 7, %v1041
        %v1043 = vrot.slane %v1010, %v1042
        %v1116 = vunpack.c.l.b16 %v946
        %v1117 = vunpack.c.h.b16 %v946
        %v1118 = vunpack.c.l.b16 %v947
        %v1119 = vunpack.c.h.b16 %v947
        %v1120 = vunpack.c.l.b16 %v948
        %v1121 = vunpack.c.h.b16 %v948
        %v1122 = vunpack.c.l.b16 %v949
        %v1123 = vunpack.c.h.b16 %v949
        %v1124 = vunpack.c.l.b16 %v950
        %v1125 = vunpack.c.h.b16 %v950
        %v1126 = vunpack.c.l.b16 %v951
        %v1127 = vunpack.c.h.b16 %v951
        %v1128 = vunpack.c.l.b16 %v952
        %v1129 = vunpack.c.h.b16 %v952
        %v1130 = vunpack.c.l.b16 %v953
        %v1131 = vunpack.c.h.b16 %v953
        %v1132 = vunpack.c.l.b16 %v954
        %v1133 = vunpack.c.h.b16 %v954
        %v1134 = vunpack.c.l.b16 %v955
        %v1135 = vunpack.c.h.b16 %v955
        %v1136 = vunpack.c.l.b16 %v956
        %v1137 = vunpack.c.h.b16 %v956
        %v1138 = vunpack.c.l.b16 %v957
        %v1139 = vunpack.c.h.b16 %v957
        %v1140 = vunpack.c.l.b16 %v958
        %v1141 = vunpack.c.h.b16 %v958
        %v1142 = vunpack.c.l.b16 %v959
        %v1143 = vunpack.c.h.b16 %v959
        %v1144 = vunpack.c.l.b16 %v960
        %v1145 = vunpack.c.h.b16 %v960
        %v1146 = vunpack.c.l.b16 %v961
        %v1147 = vunpack.c.h.b16 %v961
        %v1148 = vunpack.c.l.b16 %v962
        %v1149 = vunpack.c.h.b16 %v962
        %v1150 = vunpack.c.l.b16 %v963
        %v1151 = vunpack.c.h.b16 %v963
        %v1152 = vunpack.c.l.b16 %v964
        %v1153 = vunpack.c.h.b16 %v964
        %v1154 = vunpack.c.l.b16 %v965
        %v1155 = vunpack.c.h.b16 %v965
        %v1156 = vunpack.c.l.b16 %v966
        %v1157 = vunpack.c.h.b16 %v966
        %v1158 = vunpack.c.l.b16 %v967
        %v1159 = vunpack.c.h.b16 %v967
        %v1160 = vunpack.c.l.b16 %v968
        %v1161 = vunpack.c.h.b16 %v968
        %v1162 = vunpack.c.l.b16 %v969
        %v1163 = vunpack.c.h.b16 %v969
        %v1164 = vunpack.c.l.b16 %v970
        %v1165 = vunpack.c.h.b16 %v970
        %v1166 = vunpack.c.l.b16 %v971
        %v1167 = vunpack.c.h.b16 %v971
        %v1168 = vunpack.c.l.b16 %v972
        %v1169 = vunpack.c.h.b16 %v972
        %v1170 = vunpack.c.l.b16 %v973
        %v1171 = vunpack.c.h.b16 %v973
        %v1172 = vunpack.c.l.b16 %v974
        %v1173 = vunpack.c.h.b16 %v974
        %v1174 = vunpack.c.l.b16 %v975
        %v1175 = vunpack.c.h.b16 %v975
        %v1176 = vunpack.c.l.b16 %v976
        %v1177 = vunpack.c.h.b16 %v976
        %v1178 = vunpack.c.l.b16 %v977
        %v1179 = vunpack.c.h.b16 %v977
        %v1180 = vunpack.c.l.b16 %v978
        %v1181 = vunpack.c.h.b16 %v978
        %v1182 = vunpack.c.l.b16 %v979
        %v1183 = vunpack.c.h.b16 %v979
        %v1184 = vunpack.c.l.b16 %v980
        %v1185 = vunpack.c.h.b16 %v980
        %v1186 = vunpack.c.l.b16 %v981
        %v1187 = vunpack.c.h.b16 %v981
        %v1188 = vunpack.c.l.b16 %v982
        %v1189 = vunpack.c.h.b16 %v982
        %v1190 = vunpack.c.l.b16 %v983
        %v1191 = vunpack.c.h.b16 %v983
        %v1192 = vunpack.c.l.b16 %v984
        %v1193 = vunpack.c.h.b16 %v984
        %v1194 = vunpack.c.l.b16 %v985
        %v1195 = vunpack.c.h.b16 %v985
        %v1196 = vunpack.c.l.b16 %v986
        %v1197 = vunpack.c.h.b16 %v986
        %v1198 = vunpack.c.l.b16 %v987
        %v1199 = vunpack.c.h.b16 %v987
        %v1200 = vunpack.c.l.b16 %v988
        %v1201 = vunpack.c.h.b16 %v988
        %v1202 = vunpack.c.l.b16 %v989
        %v1203 = vunpack.c.h.b16 %v989
        %v1204 = vunpack.c.l.b16 %v990
        %v1205 = vunpack.c.h.b16 %v990
        %v1206 = vunpack.c.l.b16 %v991
        %v1207 = vunpack.c.h.b16 %v991
        %v1208 = vunpack.c.l.b16 %v992
        %v1209 = vunpack.c.h.b16 %v992
        %v1210 = vunpack.c.l.b16 %v993
        %v1211 = vunpack.c.h.b16 %v993
        %v1212 = vunpack.c.l.b16 %v994
        %v1213 = vunpack.c.h.b16 %v994
        %v1214 = vunpack.c.l.b16 %v995
        %v1215 = vunpack.c.h.b16 %v995
        %v1216 = vunpack.c.l.b16 %v996
        %v1217 = vunpack.c.h.b16 %v996
        %v1218 = vunpack.c.l.b16 %v997
        %v1219 = vunpack.c.h.b16 %v997
        %v1220 = vunpack.c.l.b16 %v998
        %v1221 = vunpack.c.h.b16 %v998
        %v1222 = vunpack.c.l.b16 %v999
        %v1223 = vunpack.c.h.b16 %v999
        %v1224 = vunpack.c.l.b16 %v1000
        %v1225 = vunpack.c.h.b16 %v1000
        %v1226 = vunpack.c.l.b16 %v1001
        %v1227 = vunpack.c.h.b16 %v1001
        %v1228 = vunpack.c.l.b16 %v1002
        %v1229 = vunpack.c.h.b16 %v1002
        %v1230 = vunpack.c.l.b16 %v1003
        %v1231 = vunpack.c.h.b16 %v1003
        %v1232 = vunpack.c.l.b16 %v1004
        %v1233 = vunpack.c.h.b16 %v1004
        %v1234 = vunpack.c.l.b16 %v1005
        %v1235 = vunpack.c.h.b16 %v1005
        %v1236 = vunpack.c.l.b16 %v1006
        %v1237 = vunpack.c.h.b16 %v1006
        %v1238 = vunpack.c.l.b16 %v1007
        %v1239 = vunpack.c.h.b16 %v1007
        %v1240 = vunpack.c.l.b16 %v1008
        %v1241 = vunpack.c.h.b16 %v1008
        %v1242 = vunpack.c.l.b16 %v1009
        %v1243 = vunpack.c.h.b16 %v1009
        %v1244 = vpack.c.b16 %v1124, %v1116
        %v1245 = vpack.c.b16 %v1125, %v1117
        %v1246 = vpack.c.b16 %v1126, %v1118
        %v1247 = vpack.c.b16 %v1127, %v1119
        %v1248 = vpack.c.b16 %v1128, %v1120
        %v1249 = vpack.c.b16 %v1129, %v1121
        %v1250 = vpack.c.b16 %v1130, %v1122
        %v1251 = vpack.c.b16 %v1131, %v1123
        %v1252 = vpack.c.b16 %v1140, %v1132
        %v1253 = vpack.c.b16 %v1141, %v1133
        %v1254 = vpack.c.b16 %v1142, %v1134
        %v1255 = vpack.c.b16 %v1143, %v1135
        %v1256 = vpack.c.b16 %v1144, %v1136
        %v1257 = vpack.c.b16 %v1145, %v1137
        %v1258 = vpack.c.b16 %v1146, %v1138
        %v1259 = vpack.c.b16 %v1147, %v1139
        %v1260 = vpack.c.b16 %v1156, %v1148
        %v1261 = vpack.c.b16 %v1157, %v1149
        %v1262 = vpack.c.b16 %v1158, %v1150
        %v1263 = vpack.c.b16 %v1159, %v1151
        %v1264 = vpack.c.b16 %v1160, %v1152
        %v1265 = vpack.c.b16 %v1161, %v1153
        %v1266 = vpack.c.b16 %v1162, %v1154
        %v1267 = vpack.c.b16 %v1163, %v1155
        %v1268 = vpack.c.b16 %v1172, %v1164
        %v1269 = vpack.c.b16 %v1173, %v1165
        %v1270 = vpack.c.b16 %v1174, %v1166
        %v1271 = vpack.c.b16 %v1175, %v1167
        %v1272 = vpack.c.b16 %v1176, %v1168
        %v1273 = vpack.c.b16 %v1177, %v1169
        %v1274 = vpack.c.b16 %v1178, %v1170
        %v1275 = vpack.c.b16 %v1179, %v1171
        %v1276 = vpack.c.b16 %v1188, %v1180
        %v1277 = vpack.c.b16 %v1189, %v1181
        %v1278 = vpack.c.b16 %v1190, %v1182
        %v1279 = vpack.c.b16 %v1191, %v1183
        %v1280 = vpack.c.b16 %v1192, %v1184
        %v1281 = vpack.c.b16 %v1193, %v1185
        %v1282 = vpack.c.b16 %v1194, %v1186
        %v1283 = vpack.c.b16 %v1195, %v1187
        %v1284 = vpack.c.b16 %v1204, %v1196
        %v1285 = vpack.c.b16 %v1205, %v1197
        %v1286 = vpack.c.b16 %v1206, %v1198
        %v1287 = vpack.c.b16 %v1207, %v1199
        %v1288 = vpack.c.b16 %v1208, %v1200
        %v1289 = vpack.c.b16 %v1209, %v1201
        %v1290 = vpack.c.b16 %v1210, %v1202
        %v1291 = vpack.c.b16 %v1211, %v1203
        %v1292 = vpack.c.b16 %v1220, %v1212
        %v1293 = vpack.c.b16 %v1221, %v1213
        %v1294 = vpack.c.b16 %v1222, %v1214
        %v1295 = vpack.c.b16 %v1223, %v1215
        %v1296 = vpack.c.b16 %v1224, %v1216
        %v1297 = vpack.c.b16 %v1225, %v1217
        %v1298 = vpack.c.b16 %v1226, %v1218
        %v1299 = vpack.c.b16 %v1227, %v1219
        %v1300 = vpack.c.b16 %v1236, %v1228
        %v1301 = vpack.c.b16 %v1237, %v1229
        %v1302 = vpack.c.b16 %v1238, %v1230
        %v1303 = vpack.c.b16 %v1239, %v1231
        %v1304 = vpack.c.b16 %v1240, %v1232
        %v1305 = vpack.c.b16 %v1241, %v1233
        %v1306 = vpack.c.b16 %v1242, %v1234
        %v1307 = vpack.c.b16 %v1243, %v1235
        %1372 = vmatprep.subr.bf16.mxu0 %v1245
        %1373 = vmatpush1.bf16.msra.mxu0 %v1244
        %1374 = vmatprep.subr.bf16.mxu0 %v1253
        %1375 = vmatpush1.bf16.msra.mxu0 %v1252
        %1376 = vmatprep.subr.bf16.mxu0 %v1261
        %1377 = vmatpush1.bf16.msra.mxu0 %v1260
        %1378 = vmatprep.subr.bf16.mxu0 %v1269
        %1379 = vmatpush1.bf16.msra.mxu0 %v1268
        %1380 = vmatprep.subr.bf16.mxu0 %v1277
        %1381 = vmatpush1.bf16.msra.mxu0 %v1276
        %1382 = vmatprep.subr.bf16.mxu0 %v1285
        %1383 = vmatpush1.bf16.msra.mxu0 %v1284
        %1384 = vmatprep.subr.bf16.mxu0 %v1293
        %1385 = vmatpush1.bf16.msra.mxu0 %v1292
        %1386 = vmatprep.subr.bf16.mxu0 %v1301
        %1387 = vmatpush1.bf16.msra.mxu0 %v1300
        %1388 = vmatprep.subr.bf16.mxu0 0
        %1389 = vmatpush1.bf16.msra.mxu0 0
        %1390 = vmatprep.subr.bf16.mxu0 0
        %1391 = vmatpush1.bf16.msra.mxu0 0
        %1392 = vmatprep.subr.bf16.mxu0 0
        %1393 = vmatpush1.bf16.msra.mxu0 0
        %1394 = vmatprep.subr.bf16.mxu0 0
        %1395 = vmatpush1.bf16.msra.mxu0 0
        %1396 = vmatprep.subr.bf16.mxu0 0
        %1397 = vmatpush1.bf16.msra.mxu0 0
        %1398 = vmatprep.subr.bf16.mxu0 0
        %1399 = vmatpush1.bf16.msra.mxu0 0
        %1400 = vmatprep.subr.bf16.mxu0 0
        %1401 = vmatpush1.bf16.msra.mxu0 0
        %1402 = vmatprep.subr.bf16.mxu0 0
        %1403 = vmatpush1.bf16.msra.mxu0 0
        %1404 = vmatprep.mubr.bf16.mxu0 0
        %1405 = vmatmul.mubr.bf16.gmra.mrb[0].mxu0 %v945
        %v1406 = vpop.f32.mrb[0].mxu0
        %v1407 = vadd.f32 %v1015, %v1406
        %v1408 = vpop.f32.mrb[0].mxu0
        %v1409 = vadd.f32 %v1019, %v1408
        %v1410 = vpop.f32.mrb[0].mxu0
        %v1411 = vadd.f32 %v1015, %v1410
        %v1412 = vpop.f32.mrb[0].mxu0
        %v1413 = vadd.f32 %v1019, %v1412
        %1414 = vdwg.mxu0
        %1415 = vmatprep.subr.bf16.mxu0 %v1247
        %1416 = vmatpush1.bf16.msra.mxu0 %v1246
        %1417 = vmatprep.subr.bf16.mxu0 %v1255
        %1418 = vmatpush1.bf16.msra.mxu0 %v1254
        %1419 = vmatprep.subr.bf16.mxu0 %v1263
        %1420 = vmatpush1.bf16.msra.mxu0 %v1262
        %1421 = vmatprep.subr.bf16.mxu0 %v1271
        %1422 = vmatpush1.bf16.msra.mxu0 %v1270
        %1423 = vmatprep.subr.bf16.mxu0 %v1279
        %1424 = vmatpush1.bf16.msra.mxu0 %v1278
        %1425 = vmatprep.subr.bf16.mxu0 %v1287
        %1426 = vmatpush1.bf16.msra.mxu0 %v1286
        %1427 = vmatprep.subr.bf16.mxu0 %v1295
        %1428 = vmatpush1.bf16.msra.mxu0 %v1294
        %1429 = vmatprep.subr.bf16.mxu0 %v1303
        %1430 = vmatpush1.bf16.msra.mxu0 %v1302
        %1431 = vmatprep.subr.bf16.mxu0 0
        %1432 = vmatpush1.bf16.msra.mxu0 0
        %1433 = vmatprep.subr.bf16.mxu0 0
        %1434 = vmatpush1.bf16.msra.mxu0 0
        %1435 = vmatprep.subr.bf16.mxu0 0
        %1436 = vmatpush1.bf16.msra.mxu0 0
        %1437 = vmatprep.subr.bf16.mxu0 0
        %1438 = vmatpush1.bf16.msra.mxu0 0
        %1439 = vmatprep.subr.bf16.mxu0 0
        %1440 = vmatpush1.bf16.msra.mxu0 0
        %1441 = vmatprep.subr.bf16.mxu0 0
        %1442 = vmatpush1.bf16.msra.mxu0 0
        %1443 = vmatprep.subr.bf16.mxu0 0
        %1444 = vmatpush1.bf16.msra.mxu0 0
        %1445 = vmatprep.subr.bf16.mxu0 0
        %1446 = vmatpush1.bf16.msra.mxu0 0
        %1447 = vmatprep.mubr.bf16.mxu0 0
        %1448 = vmatmul.mubr.bf16.gmra.mrb[0].mxu0 %v945
        %v1449 = vpop.f32.mrb[0].mxu0
        %v1450 = vadd.f32 %v1023, %v1449
        %v1451 = vpop.f32.mrb[0].mxu0
        %v1452 = vadd.f32 %v1027, %v1451
        %v1453 = vpop.f32.mrb[0].mxu0
        %v1454 = vadd.f32 %v1023, %v1453
        %v1455 = vpop.f32.mrb[0].mxu0
        %v1456 = vadd.f32 %v1027, %v1455
        %1457 = vdwg.mxu0
        %1458 = vmatprep.subr.bf16.mxu0 %v1249
        %1459 = vmatpush1.bf16.msra.mxu0 %v1248
        %1460 = vmatprep.subr.bf16.mxu0 %v1257
        %1461 = vmatpush1.bf16.msra.mxu0 %v1256
        %1462 = vmatprep.subr.bf16.mxu0 %v1265
        %1463 = vmatpush1.bf16.msra.mxu0 %v1264
        %1464 = vmatprep.subr.bf16.mxu0 %v1273
        %1465 = vmatpush1.bf16.msra.mxu0 %v1272
        %1466 = vmatprep.subr.bf16.mxu0 %v1281
        %1467 = vmatpush1.bf16.msra.mxu0 %v1280
        %1468 = vmatprep.subr.bf16.mxu0 %v1289
        %1469 = vmatpush1.bf16.msra.mxu0 %v1288
        %1470 = vmatprep.subr.bf16.mxu0 %v1297
        %1471 = vmatpush1.bf16.msra.mxu0 %v1296
        %1472 = vmatprep.subr.bf16.mxu0 %v1305
        %1473 = vmatpush1.bf16.msra.mxu0 %v1304
        %1474 = vmatprep.subr.bf16.mxu0 0
        %1475 = vmatpush1.bf16.msra.mxu0 0
        %1476 = vmatprep.subr.bf16.mxu0 0
        %1477 = vmatpush1.bf16.msra.mxu0 0
        %1478 = vmatprep.subr.bf16.mxu0 0
        %1479 = vmatpush1.bf16.msra.mxu0 0
        %1480 = vmatprep.subr.bf16.mxu0 0
        %1481 = vmatpush1.bf16.msra.mxu0 0
        %1482 = vmatprep.subr.bf16.mxu0 0
        %1483 = vmatpush1.bf16.msra.mxu0 0
        %1484 = vmatprep.subr.bf16.mxu0 0
        %1485 = vmatpush1.bf16.msra.mxu0 0
        %1486 = vmatprep.subr.bf16.mxu0 0
        %1487 = vmatpush1.bf16.msra.mxu0 0
        %1488 = vmatprep.subr.bf16.mxu0 0
        %1489 = vmatpush1.bf16.msra.mxu0 0
        %1490 = vmatprep.mubr.bf16.mxu0 0
        %1491 = vmatmul.mubr.bf16.gmra.mrb[0].mxu0 %v945
        %v1492 = vpop.f32.mrb[0].mxu0
        %v1493 = vadd.f32 %v1031, %v1492
        %v1494 = vpop.f32.mrb[0].mxu0
        %v1495 = vadd.f32 %v1035, %v1494
        %v1496 = vpop.f32.mrb[0].mxu0
        %v1497 = vadd.f32 %v1031, %v1496
        %v1498 = vpop.f32.mrb[0].mxu0
        %v1499 = vadd.f32 %v1035, %v1498
        %1500 = vdwg.mxu0
        %1501 = vmatprep.subr.bf16.mxu0 %v1251
        %1502 = vmatpush1.bf16.msra.mxu0 %v1250
        %1503 = vmatprep.subr.bf16.mxu0 %v1259
        %1504 = vmatpush1.bf16.msra.mxu0 %v1258
        %1505 = vmatprep.subr.bf16.mxu0 %v1267
        %1506 = vmatpush1.bf16.msra.mxu0 %v1266
        %1507 = vmatprep.subr.bf16.mxu0 %v1275
        %1508 = vmatpush1.bf16.msra.mxu0 %v1274
        %1509 = vmatprep.subr.bf16.mxu0 %v1283
        %1510 = vmatpush1.bf16.msra.mxu0 %v1282
        %1511 = vmatprep.subr.bf16.mxu0 %v1291
        %1512 = vmatpush1.bf16.msra.mxu0 %v1290
        %1513 = vmatprep.subr.bf16.mxu0 %v1299
        %1514 = vmatpush1.bf16.msra.mxu0 %v1298
        %1515 = vmatprep.subr.bf16.mxu0 %v1307
        %1516 = vmatpush1.bf16.msra.mxu0 %v1306
        %1517 = vmatprep.subr.bf16.mxu0 0
        %1518 = vmatpush1.bf16.msra.mxu0 0
        %1519 = vmatprep.subr.bf16.mxu0 0
        %1520 = vmatpush1.bf16.msra.mxu0 0
        %1521 = vmatprep.subr.bf16.mxu0 0
        %1522 = vmatpush1.bf16.msra.mxu0 0
        %1523 = vmatprep.subr.bf16.mxu0 0
        %1524 = vmatpush1.bf16.msra.mxu0 0
        %1525 = vmatprep.subr.bf16.mxu0 0
        %1526 = vmatpush1.bf16.msra.mxu0 0
        %1527 = vmatprep.subr.bf16.mxu0 0
        %1528 = vmatpush1.bf16.msra.mxu0 0
        %1529 = vmatprep.subr.bf16.mxu0 0
        %1530 = vmatpush1.bf16.msra.mxu0 0
        %1531 = vmatprep.subr.bf16.mxu0 0
        %1532 = vmatpush1.bf16.msra.mxu0 0
        %1533 = vmatprep.mubr.bf16.mxu0 0
        %1534 = vmatmul.mubr.bf16.gmra.mrb[0].mxu0 %v945
        %v1535 = vpop.f32.mrb[0].mxu0
        %v1536 = vadd.f32 %v1039, %v1535
        %v1537 = vpop.f32.mrb[0].mxu0
        %v1538 = vadd.f32 %v1043, %v1537
        %v1539 = vpop.f32.mrb[0].mxu0
        %v1540 = vadd.f32 %v1039, %v1539
        %v1541 = vpop.f32.mrb[0].mxu0
        %v1542 = vadd.f32 %v1043, %v1541
        %1543 = vdwg.mxu0
        %v1544 = vmax.f32 %v1407, 0.0
        %v1545 = vmax.f32 %v1409, 0.0
        %v1546 = vmax.f32 %v1450, 0.0
        %v1547 = vmax.f32 %v1452, 0.0
        %v1548 = vmax.f32 %v1493, 0.0
        %v1549 = vmax.f32 %v1495, 0.0
        %v1550 = vmax.f32 %v1536, 0.0
        %v1551 = vmax.f32 %v1538, 0.0
        %v1552 = vmax.f32 %v1411, 0.0
        %v1553 = vmax.f32 %v1413, 0.0
        %v1554 = vmax.f32 %v1454, 0.0
        %v1555 = vmax.f32 %v1456, 0.0
        %v1556 = vmax.f32 %v1497, 0.0
        %v1557 = vmax.f32 %v1499, 0.0
        %v1558 = vmax.f32 %v1540, 0.0
        %v1559 = vmax.f32 %v1542, 0.0
        %v1560 = vmax.f32 %v1544, %v1552
        %v1561 = vrot.slane %v1560, 4
        %v1562 = vmax.f32 %v1560, %v1561
        %v1563 = vrot.slane %v1562, 2
        %v1564 = vmax.f32 %v1562, %v1563
        %v1565 = vrot.slane %v1564, 1
        %v1566 = vmax.f32 %v1564, %v1565
        %v1567 = vmax.f32 %v1545, %v1553
        %v1568 = vrot.slane %v1567, 4
        %v1569 = vmax.f32 %v1567, %v1568
        %v1570 = vrot.slane %v1569, 2
        %v1571 = vmax.f32 %v1569, %v1570
        %v1572 = vrot.slane %v1571, 1
        %v1573 = vmax.f32 %v1571, %v1572
        %v1574 = vmax.f32 %v1546, %v1554
        %v1575 = vrot.slane %v1574, 4
        %v1576 = vmax.f32 %v1574, %v1575
        %v1577 = vrot.slane %v1576, 2
        %v1578 = vmax.f32 %v1576, %v1577
        %v1579 = vrot.slane %v1578, 1
        %v1580 = vmax.f32 %v1578, %v1579
        %v1581 = vmax.f32 %v1547, %v1555
        %v1582 = vrot.slane %v1581, 4
        %v1583 = vmax.f32 %v1581, %v1582
        %v1584 = vrot.slane %v1583, 2
        %v1585 = vmax.f32 %v1583, %v1584
        %v1586 = vrot.slane %v1585, 1
        %v1587 = vmax.f32 %v1585, %v1586
        %v1588 = vmax.f32 %v1548, %v1556
        %v1589 = vrot.slane %v1588, 4
        %v1590 = vmax.f32 %v1588, %v1589
        %v1591 = vrot.slane %v1590, 2
        %v1592 = vmax.f32 %v1590, %v1591
        %v1593 = vrot.slane %v1592, 1
        %v1594 = vmax.f32 %v1592, %v1593
        %v1595 = vmax.f32 %v1549, %v1557
        %v1596 = vrot.slane %v1595, 4
        %v1597 = vmax.f32 %v1595, %v1596
        %v1598 = vrot.slane %v1597, 2
        %v1599 = vmax.f32 %v1597, %v1598
        %v1600 = vrot.slane %v1599, 1
        %v1601 = vmax.f32 %v1599, %v1600
        %v1602 = vmax.f32 %v1550, %v1558
        %v1603 = vrot.slane %v1602, 4
        %v1604 = vmax.f32 %v1602, %v1603
        %v1605 = vrot.slane %v1604, 2
        %v1606 = vmax.f32 %v1604, %v1605
        %v1607 = vrot.slane %v1606, 1
        %v1608 = vmax.f32 %v1606, %v1607
        %v1609 = vmax.f32 %v1551, %v1559
        %v1610 = vrot.slane %v1609, 4
        %v1611 = vmax.f32 %v1609, %v1610
        %v1612 = vrot.slane %v1611, 2
        %v1613 = vmax.f32 %v1611, %v1612
        %v1614 = vrot.slane %v1613, 1
        %v1615 = vmax.f32 %v1613, %v1614
        %v1616 = vld [vmem:[%s531] sm:$0xff]
        %v1625 = vcombine.low %v1566, %v1573
        %v1626 = vcombine.low %v1580, %v1587
        %v1627 = vcombine.low %v1594, %v1601
        %v1628 = vcombine.low %v1608, %v1615
        %v1630 = vunpack.c.l.s4 1966171168
        %v1631 = vunpack.c.0.s8 %v1630
        %v1632 = vlaneseq
        %v1633 = vshrl.u32 %v1632, 7
        %v1634 = vsub.s32 %v1631, %v1633
        %v1635 = vrot.slane %v1625, %v1634
        %v1637 = vunpack.c.l.s4 1966171168
        %v1638 = vunpack.c.0.s8 %v1637
        %v1639 = vlaneseq
        %v1640 = vshrl.u32 %v1639, 7
        %v1641 = vsub.s32 %v1638, %v1640
        %v1642 = vrot.slane %v1626, %v1641
        %v1644 = vunpack.c.l.s4 1966171168
        %v1645 = vunpack.c.0.s8 %v1644
        %v1646 = vlaneseq
        %v1647 = vshrl.u32 %v1646, 7
        %v1648 = vsub.s32 %v1645, %v1647
        %v1649 = vrot.slane %v1627, %v1648
        %v1651 = vunpack.c.l.s4 1966171168
        %v1652 = vunpack.c.0.s8 %v1651
        %v1653 = vlaneseq
        %v1654 = vshrl.u32 %v1653, 7
        %v1655 = vsub.s32 %v1652, %v1654
        %v1656 = vrot.slane %v1628, %v1655
        %v1657 = vcombine.low %v1635, %v1642
        %v1658 = vcombine.low %v1649, %v1656
        %v1660 = vunpack.c.l.s4 1966171168
        %v1661 = vunpack.c.0.s8 %v1660
        %v1662 = vlaneseq
        %v1663 = vshrl.u32 %v1662, 7
        %v1664 = vsub.s32 %v1661, %v1663
        %v1665 = vrot.slane %v1657, %v1664
        %v1667 = vunpack.c.l.s4 1966171168
        %v1668 = vunpack.c.0.s8 %v1667
        %v1669 = vlaneseq
        %v1670 = vshrl.u32 %v1669, 7
        %v1671 = vsub.s32 %v1668, %v1670
        %v1672 = vrot.slane %v1658, %v1671
        %v1673 = vcombine.low %v1665, %v1672
        %v1675 = vmax.f32 %v1616, %v1673
        %1676 = vst [vmem:[%s531] sm:$0xff] %v1675
        %p1677 = scmp.lt.s32.totalorder %s31, 1
        %s1678 = scalar_select %p1677, %s31, 1
        %s1679 = smul.addr %s1678, 8
        %s1680 = scalar_lea.vmem %s11, %s1679
        // Predicated region
        $region105: #{_lambda_.2} parent=63 // pred_check
          %p1681 = pneg %p295
        $region106: #{_lambda_.2} parent=63 // pred_check_branch
          %1683 = sbr.rel (%p1681) target = $region108
        $region107: #{_lambda_.2} parent=63 // pred_region
          _
        $region108: #{_lambda_.2} parent=63 // pred_fallthru
          _
      $region64: #{_lambda_.2} parent=5 // pred_fallthru
        _
      %p1684 = scmp.le.s32.totalorder 2, %s22
      // Predicated region
      $region109: #{_lambda_.2} parent=5 // pred_check
        %p1685 = pneg %p1684
      $region110: #{_lambda_.2} parent=5 // pred_check_branch
        %1687 = sbr.rel (%p1685) target = $region112
      $region111: #{_lambda_.2} parent=5 // pred_region
        %s1688 = ssub.s32 %s22, 2
        // Predicated region
        $region113: #{_lambda_.2} parent=111 // pred_check
          %p1689 = pneg %p301
        $region114: #{_lambda_.2} parent=111 // pred_check_branch
          %1691 = sbr.rel (%p1689) target = $region116
        $region115: #{_lambda_.2} parent=111 // pred_region
          %p1692 = scmp.lt.s32.totalorder %s33, 1
          %s1693 = scalar_select %p1692, %s33, 1
          %s1694 = smul.addr %s1693, 8
          %s1695 = scalar_lea.vmem %s11, %s1694
        $region116: #{_lambda_.2} parent=111 // pred_fallthru
          _
      $region112: #{_lambda_.2} parent=5 // pred_fallthru
        _
    $region6: #{_lambda_.2} parent=1 // loop_footer
      %s26 = sadd.s32 1, %s22
    $region7: #{_lambda_.2} parent=1 // loop_footer_branch
      %21 = sbr.rel target = $region3
    $region8: #{_lambda_.2} parent=1 // loop_exit
      _
    %1696 = vsyncpa [#allocation3], 1
    %s1697 = scalar_lea.sflag [#allocation3], 1
    %1698 = vsyncpa %s1697, 1
    %1699 = vsyncpa [#allocation5], 1
    %1700 = vsyncpa [#allocation8], 1
    %1701 = vsyncpa [#allocation11], 1
    %1702 = vsyncpa [#allocation14], 1

// kernel: _lambda_.3
$region0: #{_lambda_.3}
  #allocation0 [shape = 'u32[]', space=smem, size = 0x4, offset = 0x4, fixed_abs, tag = 'smem constant byte address 0x4 - core index']
  #allocation1 [shape = 'u32[144,128]{1,0:T(1,128)}', space=vmem, size = 0x12000, scoped, tag = 'internal scratch']
  %s0 = inlined_call_operand.vmem [shape: f32[2,1024], index: 0, kind: input, shape index: {}]
  %s1 = inlined_call_operand.vmem [shape: bf16[1024,128], index: 1, kind: input, shape index: {}]
  %s2 = inlined_call_operand.vmem [shape: f32[1,128], index: 2, kind: input, shape index: {}]
  %s3 = inlined_call_operand.vmem [shape: bf16[128,1024], index: 3, kind: input, shape index: {}]
  %s4 = inlined_call_operand.vmem [shape: f32[1,1024], index: 4, kind: input, shape index: {}]
  %s5 = inlined_call_operand.vmem [shape: bf16[1024,1024], index: 5, kind: input, shape index: {}]
  %s6 = inlined_call_operand.vmem [shape: f32[1,1024], index: 6, kind: input, shape index: {}]
  %s7 = inlined_call_operand.vmem [shape: bf16[1024,128], index: 7, kind: input, shape index: {}]
  %s8 = inlined_call_operand.vmem [shape: f32[1,128], index: 8, kind: input, shape index: {}]
  %s9 = inlined_call_operand.hbm [shape: f32[2,128], index: 9, kind: output, shape index: {0}]
  %s10 = inlined_call_operand.vmem [shape: f32[2,128], index: 10, kind: output, shape index: {1}]
  %11 = xla_tuple %s9, %s10
  %s12 = sld [smem:[#allocation0]]
  $region54: #{_lambda_.3} parent=0
    _
  %s14 = ssub.s32 1, %s12
  %s15 = scalar_select 0, %s14, %s12
  $region1: #{_lambda_.3} parent=0
    #allocation2 [shape = 'u8[1024]{0}', space=vmem, size = 0x400, scoped, tag = 'output window, operand 0, single buffered']
    #allocation3 [shape = 's32[1]{0}', space=sflag, size = 0x4, scoped, tag = 'scoped memory for _lambda_.3']
    %16 = vsyncpa [#allocation3], 0
    // Predicated region
    $region2: #{_lambda_.3} parent=1 // pred_check
      _
    $region3: #{_lambda_.3} parent=1 // pred_check_branch
      %18 = sbr.rel (0) target = $region5
    $region4: #{_lambda_.3} parent=1 // pred_region
      _
    $region5: #{_lambda_.3} parent=1 // pred_fallthru
      _
    // Predicated region
    $region6: #{_lambda_.3} parent=1 // pred_check
      _
    $region7: #{_lambda_.3} parent=1 // pred_check_branch
      %20 = sbr.rel (0) target = $region9
    $region8: #{_lambda_.3} parent=1 // pred_region
      _
    $region9: #{_lambda_.3} parent=1 // pred_fallthru
      _
    // Predicated region
    $region10: #{_lambda_.3} parent=1 // pred_check
      _
    $region11: #{_lambda_.3} parent=1 // pred_check_branch
      %22 = sbr.rel (0) target = $region13
    $region12: #{_lambda_.3} parent=1 // pred_region
      _
    $region13: #{_lambda_.3} parent=1 // pred_fallthru
      _
    // Predicated region
    $region14: #{_lambda_.3} parent=1 // pred_check
      _
    $region15: #{_lambda_.3} parent=1 // pred_check_branch
      %24 = sbr.rel (0) target = $region17
    $region16: #{_lambda_.3} parent=1 // pred_region
      _
    $region17: #{_lambda_.3} parent=1 // pred_fallthru
      _
    // Predicated region
    $region18: #{_lambda_.3} parent=1 // pred_check
      _
    $region19: #{_lambda_.3} parent=1 // pred_check_branch
      %26 = sbr.rel (0) target = $region21
    $region20: #{_lambda_.3} parent=1 // pred_region
      _
    $region21: #{_lambda_.3} parent=1 // pred_fallthru
      _
    // Predicated region
    $region22: #{_lambda_.3} parent=1 // pred_check
      _
    $region23: #{_lambda_.3} parent=1 // pred_check_branch
      %28 = sbr.rel (0) target = $region25
    $region24: #{_lambda_.3} parent=1 // pred_region
      _
    $region25: #{_lambda_.3} parent=1 // pred_fallthru
      _
    // Predicated region
    $region26: #{_lambda_.3} parent=1 // pred_check
      _
    $region27: #{_lambda_.3} parent=1 // pred_check_branch
      %30 = sbr.rel (0) target = $region29
    $region28: #{_lambda_.3} parent=1 // pred_region
      _
    $region29: #{_lambda_.3} parent=1 // pred_fallthru
      _
    // Predicated region
    $region30: #{_lambda_.3} parent=1 // pred_check
      _
    $region31: #{_lambda_.3} parent=1 // pred_check_branch
      %32 = sbr.rel (0) target = $region33
    $region32: #{_lambda_.3} parent=1 // pred_region
      _
    $region33: #{_lambda_.3} parent=1 // pred_fallthru
      _
    // Predicated region
    $region34: #{_lambda_.3} parent=1 // pred_check
      _
    $region35: #{_lambda_.3} parent=1 // pred_check_branch
      %34 = sbr.rel (0) target = $region37
    $region36: #{_lambda_.3} parent=1 // pred_region
      _
    $region37: #{_lambda_.3} parent=1 // pred_fallthru
      _
    %v36 = vld [vmem:[%s0] sm:$0xff]
    %v37 = vld [vmem:[%s0 + $0x8] sm:$0xff]
    %v40 = vcombine.high %v36, %v36
    %v42 = vunpack.c.l.s4 1983009808
    %v43 = vunpack.c.0.s8 %v42
    %v44 = vlaneseq
    %v45 = vshrl.u32 %v44, 7
    %v46 = vsub.s32 %v43, %v45
    %v47 = vrot.slane %v36, %v46
    %v49 = vunpack.c.l.s4 1983009808
    %v50 = vunpack.c.0.s8 %v49
    %v51 = vlaneseq
    %v52 = vshrl.u32 %v51, 7
    %v53 = vsub.s32 %v50, %v52
    %v54 = vrot.slane %v40, %v53
    %v55 = vcombine.high %v47, %v47
    %v56 = vcombine.high %v54, %v54
    %v57 = vcombine.high %v37, %v37
    %v59 = vunpack.c.l.s4 1983009808
    %v60 = vunpack.c.0.s8 %v59
    %v61 = vlaneseq
    %v62 = vshrl.u32 %v61, 7
    %v63 = vsub.s32 %v60, %v62
    %v64 = vrot.slane %v37, %v63
    %v66 = vunpack.c.l.s4 1983009808
    %v67 = vunpack.c.0.s8 %v66
    %v68 = vlaneseq
    %v69 = vshrl.u32 %v68, 7
    %v70 = vsub.s32 %v67, %v69
    %v71 = vrot.slane %v57, %v70
    %v72 = vcombine.high %v64, %v64
    %v73 = vcombine.high %v71, %v71
    %v82 = vpack.c.bf16 %v47, %v47
    %v83 = vpack.c.bf16 %v55, %v55
    %v84 = vpack.c.bf16 %v54, %v54
    %v85 = vpack.c.bf16 %v56, %v56
    %v86 = vpack.c.bf16 %v64, %v64
    %v87 = vpack.c.bf16 %v72, %v72
    %v88 = vpack.c.bf16 %v71, %v71
    %v89 = vpack.c.bf16 %v73, %v73
    %v90 = vld [vmem:[%s1] sm:$0xf]
    %v91 = vld [vmem:[%s1 + $0x4] sm:$0xf]
    %v92 = vld [vmem:[%s1 + $0x8] sm:$0xf]
    %v93 = vld [vmem:[%s1 + $0xc] sm:$0xf]
    %v94 = vld [vmem:[%s1 + $0x10] sm:$0xf]
    %v95 = vld [vmem:[%s1 + $0x14] sm:$0xf]
    %v96 = vld [vmem:[%s1 + $0x18] sm:$0xf]
    %v97 = vld [vmem:[%s1 + $0x1c] sm:$0xf]
    %v98 = vld [vmem:[%s1 + $0x20] sm:$0xf]
    %v99 = vld [vmem:[%s1 + $0x24] sm:$0xf]
    %v100 = vld [vmem:[%s1 + $0x28] sm:$0xf]
    %v101 = vld [vmem:[%s1 + $0x2c] sm:$0xf]
    %v102 = vld [vmem:[%s1 + $0x30] sm:$0xf]
    %v103 = vld [vmem:[%s1 + $0x34] sm:$0xf]
    %v104 = vld [vmem:[%s1 + $0x38] sm:$0xf]
    %v105 = vld [vmem:[%s1 + $0x3c] sm:$0xf]
    %v106 = vld [vmem:[%s1 + $0x40] sm:$0xf]
    %v107 = vld [vmem:[%s1 + $0x44] sm:$0xf]
    %v108 = vld [vmem:[%s1 + $0x48] sm:$0xf]
    %v109 = vld [vmem:[%s1 + $0x4c] sm:$0xf]
    %v110 = vld [vmem:[%s1 + $0x50] sm:$0xf]
    %v111 = vld [vmem:[%s1 + $0x54] sm:$0xf]
    %v112 = vld [vmem:[%s1 + $0x58] sm:$0xf]
    %v113 = vld [vmem:[%s1 + $0x5c] sm:$0xf]
    %v114 = vld [vmem:[%s1 + $0x60] sm:$0xf]
    %v115 = vld [vmem:[%s1 + $0x64] sm:$0xf]
    %v116 = vld [vmem:[%s1 + $0x68] sm:$0xf]
    %v117 = vld [vmem:[%s1 + $0x6c] sm:$0xf]
    %v118 = vld [vmem:[%s1 + $0x70] sm:$0xf]
    %v119 = vld [vmem:[%s1 + $0x74] sm:$0xf]
    %v120 = vld [vmem:[%s1 + $0x78] sm:$0xf]
    %v121 = vld [vmem:[%s1 + $0x7c] sm:$0xf]
    %v122 = vld [vmem:[%s1 + $0x80] sm:$0xf]
    %v123 = vld [vmem:[%s1 + $0x84] sm:$0xf]
    %v124 = vld [vmem:[%s1 + $0x88] sm:$0xf]
    %v125 = vld [vmem:[%s1 + $0x8c] sm:$0xf]
    %v126 = vld [vmem:[%s1 + $0x90] sm:$0xf]
    %v127 = vld [vmem:[%s1 + $0x94] sm:$0xf]
    %v128 = vld [vmem:[%s1 + $0x98] sm:$0xf]
    %v129 = vld [vmem:[%s1 + $0x9c] sm:$0xf]
    %v130 = vld [vmem:[%s1 + $0xa0] sm:$0xf]
    %v131 = vld [vmem:[%s1 + $0xa4] sm:$0xf]
    %v132 = vld [vmem:[%s1 + $0xa8] sm:$0xf]
    %v133 = vld [vmem:[%s1 + $0xac] sm:$0xf]
    %v134 = vld [vmem:[%s1 + $0xb0] sm:$0xf]
    %v135 = vld [vmem:[%s1 + $0xb4] sm:$0xf]
    %v136 = vld [vmem:[%s1 + $0xb8] sm:$0xf]
    %v137 = vld [vmem:[%s1 + $0xbc] sm:$0xf]
    %v138 = vld [vmem:[%s1 + $0xc0] sm:$0xf]
    %v139 = vld [vmem:[%s1 + $0xc4] sm:$0xf]
    %v140 = vld [vmem:[%s1 + $0xc8] sm:$0xf]
    %v141 = vld [vmem:[%s1 + $0xcc] sm:$0xf]
    %v142 = vld [vmem:[%s1 + $0xd0] sm:$0xf]
    %v143 = vld [vmem:[%s1 + $0xd4] sm:$0xf]
    %v144 = vld [vmem:[%s1 + $0xd8] sm:$0xf]
    %v145 = vld [vmem:[%s1 + $0xdc] sm:$0xf]
    %v146 = vld [vmem:[%s1 + $0xe0] sm:$0xf]
    %v147 = vld [vmem:[%s1 + $0xe4] sm:$0xf]
    %v148 = vld [vmem:[%s1 + $0xe8] sm:$0xf]
    %v149 = vld [vmem:[%s1 + $0xec] sm:$0xf]
    %v150 = vld [vmem:[%s1 + $0xf0] sm:$0xf]
    %v151 = vld [vmem:[%s1 + $0xf4] sm:$0xf]
    %v152 = vld [vmem:[%s1 + $0xf8] sm:$0xf]
    %v153 = vld [vmem:[%s1 + $0xfc] sm:$0xf]
    %v154 = vld [vmem:[%s1 + $0x100] sm:$0xf]
    %v155 = vld [vmem:[%s1 + $0x104] sm:$0xf]
    %v156 = vld [vmem:[%s1 + $0x108] sm:$0xf]
    %v157 = vld [vmem:[%s1 + $0x10c] sm:$0xf]
    %v158 = vld [vmem:[%s1 + $0x110] sm:$0xf]
    %v159 = vld [vmem:[%s1 + $0x114] sm:$0xf]
    %v160 = vld [vmem:[%s1 + $0x118] sm:$0xf]
    %v161 = vld [vmem:[%s1 + $0x11c] sm:$0xf]
    %v162 = vld [vmem:[%s1 + $0x120] sm:$0xf]
    %v163 = vld [vmem:[%s1 + $0x124] sm:$0xf]
    %v164 = vld [vmem:[%s1 + $0x128] sm:$0xf]
    %v165 = vld [vmem:[%s1 + $0x12c] sm:$0xf]
    %v166 = vld [vmem:[%s1 + $0x130] sm:$0xf]
    %v167 = vld [vmem:[%s1 + $0x134] sm:$0xf]
    %v168 = vld [vmem:[%s1 + $0x138] sm:$0xf]
    %v169 = vld [vmem:[%s1 + $0x13c] sm:$0xf]
    %v170 = vld [vmem:[%s1 + $0x140] sm:$0xf]
    %v171 = vld [vmem:[%s1 + $0x144] sm:$0xf]
    %v172 = vld [vmem:[%s1 + $0x148] sm:$0xf]
    %v173 = vld [vmem:[%s1 + $0x14c] sm:$0xf]
    %v174 = vld [vmem:[%s1 + $0x150] sm:$0xf]
    %v175 = vld [vmem:[%s1 + $0x154] sm:$0xf]
    %v176 = vld [vmem:[%s1 + $0x158] sm:$0xf]
    %v177 = vld [vmem:[%s1 + $0x15c] sm:$0xf]
    %v178 = vld [vmem:[%s1 + $0x160] sm:$0xf]
    %v179 = vld [vmem:[%s1 + $0x164] sm:$0xf]
    %v180 = vld [vmem:[%s1 + $0x168] sm:$0xf]
    %v181 = vld [vmem:[%s1 + $0x16c] sm:$0xf]
    %v182 = vld [vmem:[%s1 + $0x170] sm:$0xf]
    %v183 = vld [vmem:[%s1 + $0x174] sm:$0xf]
    %v184 = vld [vmem:[%s1 + $0x178] sm:$0xf]
    %v185 = vld [vmem:[%s1 + $0x17c] sm:$0xf]
    %v186 = vld [vmem:[%s1 + $0x180] sm:$0xf]
    %v187 = vld [vmem:[%s1 + $0x184] sm:$0xf]
    %v188 = vld [vmem:[%s1 + $0x188] sm:$0xf]
    %v189 = vld [vmem:[%s1 + $0x18c] sm:$0xf]
    %v190 = vld [vmem:[%s1 + $0x190] sm:$0xf]
    %v191 = vld [vmem:[%s1 + $0x194] sm:$0xf]
    %v192 = vld [vmem:[%s1 + $0x198] sm:$0xf]
    %v193 = vld [vmem:[%s1 + $0x19c] sm:$0xf]
    %v194 = vld [vmem:[%s1 + $0x1a0] sm:$0xf]
    %v195 = vld [vmem:[%s1 + $0x1a4] sm:$0xf]
    %v196 = vld [vmem:[%s1 + $0x1a8] sm:$0xf]
    %v197 = vld [vmem:[%s1 + $0x1ac] sm:$0xf]
    %v198 = vld [vmem:[%s1 + $0x1b0] sm:$0xf]
    %v199 = vld [vmem:[%s1 + $0x1b4] sm:$0xf]
    %v200 = vld [vmem:[%s1 + $0x1b8] sm:$0xf]
    %v201 = vld [vmem:[%s1 + $0x1bc] sm:$0xf]
    %v202 = vld [vmem:[%s1 + $0x1c0] sm:$0xf]
    %v203 = vld [vmem:[%s1 + $0x1c4] sm:$0xf]
    %v204 = vld [vmem:[%s1 + $0x1c8] sm:$0xf]
    %v205 = vld [vmem:[%s1 + $0x1cc] sm:$0xf]
    %v206 = vld [vmem:[%s1 + $0x1d0] sm:$0xf]
    %v207 = vld [vmem:[%s1 + $0x1d4] sm:$0xf]
    %v208 = vld [vmem:[%s1 + $0x1d8] sm:$0xf]
    %v209 = vld [vmem:[%s1 + $0x1dc] sm:$0xf]
    %v210 = vld [vmem:[%s1 + $0x1e0] sm:$0xf]
    %v211 = vld [vmem:[%s1 + $0x1e4] sm:$0xf]
    %v212 = vld [vmem:[%s1 + $0x1e8] sm:$0xf]
    %v213 = vld [vmem:[%s1 + $0x1ec] sm:$0xf]
    %v214 = vld [vmem:[%s1 + $0x1f0] sm:$0xf]
    %v215 = vld [vmem:[%s1 + $0x1f4] sm:$0xf]
    %v216 = vld [vmem:[%s1 + $0x1f8] sm:$0xf]
    %v217 = vld [vmem:[%s1 + $0x1fc] sm:$0xf]
    %v218 = vld [vmem:[%s2] sm:$0x1]
    %v220 = vlaneseq
    %v221 = vshrl.u32 %v220, 7
    %v222 = vsub.s32 0, %v221
    %v223 = vrot.slane %v218, %v222
    %v353 = vunpack.c.l.b16 %v90
    %v354 = vunpack.c.l.b16 %v91
    %v355 = vunpack.c.l.b16 %v92
    %v356 = vunpack.c.l.b16 %v93
    %v357 = vunpack.c.l.b16 %v94
    %v358 = vunpack.c.l.b16 %v95
    %v359 = vunpack.c.l.b16 %v96
    %v360 = vunpack.c.l.b16 %v97
    %v361 = vunpack.c.l.b16 %v98
    %v362 = vunpack.c.l.b16 %v99
    %v363 = vunpack.c.l.b16 %v100
    %v364 = vunpack.c.l.b16 %v101
    %v365 = vunpack.c.l.b16 %v102
    %v366 = vunpack.c.l.b16 %v103
    %v367 = vunpack.c.l.b16 %v104
    %v368 = vunpack.c.l.b16 %v105
    %v369 = vunpack.c.l.b16 %v106
    %v370 = vunpack.c.l.b16 %v107
    %v371 = vunpack.c.l.b16 %v108
    %v372 = vunpack.c.l.b16 %v109
    %v373 = vunpack.c.l.b16 %v110
    %v374 = vunpack.c.l.b16 %v111
    %v375 = vunpack.c.l.b16 %v112
    %v376 = vunpack.c.l.b16 %v113
    %v377 = vunpack.c.l.b16 %v114
    %v378 = vunpack.c.l.b16 %v115
    %v379 = vunpack.c.l.b16 %v116
    %v380 = vunpack.c.l.b16 %v117
    %v381 = vunpack.c.l.b16 %v118
    %v382 = vunpack.c.l.b16 %v119
    %v383 = vunpack.c.l.b16 %v120
    %v384 = vunpack.c.l.b16 %v121
    %v385 = vunpack.c.l.b16 %v122
    %v386 = vunpack.c.l.b16 %v123
    %v387 = vunpack.c.l.b16 %v124
    %v388 = vunpack.c.l.b16 %v125
    %v389 = vunpack.c.l.b16 %v126
    %v390 = vunpack.c.l.b16 %v127
    %v391 = vunpack.c.l.b16 %v128
    %v392 = vunpack.c.l.b16 %v129
    %v393 = vunpack.c.l.b16 %v130
    %v394 = vunpack.c.l.b16 %v131
    %v395 = vunpack.c.l.b16 %v132
    %v396 = vunpack.c.l.b16 %v133
    %v397 = vunpack.c.l.b16 %v134
    %v398 = vunpack.c.l.b16 %v135
    %v399 = vunpack.c.l.b16 %v136
    %v400 = vunpack.c.l.b16 %v137
    %v401 = vunpack.c.l.b16 %v138
    %v402 = vunpack.c.l.b16 %v139
    %v403 = vunpack.c.l.b16 %v140
    %v404 = vunpack.c.l.b16 %v141
    %v405 = vunpack.c.l.b16 %v142
    %v406 = vunpack.c.l.b16 %v143
    %v407 = vunpack.c.l.b16 %v144
    %v408 = vunpack.c.l.b16 %v145
    %v409 = vunpack.c.l.b16 %v146
    %v410 = vunpack.c.l.b16 %v147
    %v411 = vunpack.c.l.b16 %v148
    %v412 = vunpack.c.l.b16 %v149
    %v413 = vunpack.c.l.b16 %v150
    %v414 = vunpack.c.l.b16 %v151
    %v415 = vunpack.c.l.b16 %v152
    %v416 = vunpack.c.l.b16 %v153
    %v417 = vunpack.c.l.b16 %v154
    %v418 = vunpack.c.l.b16 %v155
    %v419 = vunpack.c.l.b16 %v156
    %v420 = vunpack.c.l.b16 %v157
    %v421 = vunpack.c.l.b16 %v158
    %v422 = vunpack.c.l.b16 %v159
    %v423 = vunpack.c.l.b16 %v160
    %v424 = vunpack.c.l.b16 %v161
    %v425 = vunpack.c.l.b16 %v162
    %v426 = vunpack.c.l.b16 %v163
    %v427 = vunpack.c.l.b16 %v164
    %v428 = vunpack.c.l.b16 %v165
    %v429 = vunpack.c.l.b16 %v166
    %v430 = vunpack.c.l.b16 %v167
    %v431 = vunpack.c.l.b16 %v168
    %v432 = vunpack.c.l.b16 %v169
    %v433 = vunpack.c.l.b16 %v170
    %v434 = vunpack.c.l.b16 %v171
    %v435 = vunpack.c.l.b16 %v172
    %v436 = vunpack.c.l.b16 %v173
    %v437 = vunpack.c.l.b16 %v174
    %v438 = vunpack.c.l.b16 %v175
    %v439 = vunpack.c.l.b16 %v176
    %v440 = vunpack.c.l.b16 %v177
    %v441 = vunpack.c.l.b16 %v178
    %v442 = vunpack.c.l.b16 %v179
    %v443 = vunpack.c.l.b16 %v180
    %v444 = vunpack.c.l.b16 %v181
    %v445 = vunpack.c.l.b16 %v182
    %v446 = vunpack.c.l.b16 %v183
    %v447 = vunpack.c.l.b16 %v184
    %v448 = vunpack.c.l.b16 %v185
    %v449 = vunpack.c.l.b16 %v186
    %v450 = vunpack.c.l.b16 %v187
    %v451 = vunpack.c.l.b16 %v188
    %v452 = vunpack.c.l.b16 %v189
    %v453 = vunpack.c.l.b16 %v190
    %v454 = vunpack.c.l.b16 %v191
    %v455 = vunpack.c.l.b16 %v192
    %v456 = vunpack.c.l.b16 %v193
    %v457 = vunpack.c.l.b16 %v194
    %v458 = vunpack.c.l.b16 %v195
    %v459 = vunpack.c.l.b16 %v196
    %v460 = vunpack.c.l.b16 %v197
    %v461 = vunpack.c.l.b16 %v198
    %v462 = vunpack.c.l.b16 %v199
    %v463 = vunpack.c.l.b16 %v200
    %v464 = vunpack.c.l.b16 %v201
    %v465 = vunpack.c.l.b16 %v202
    %v466 = vunpack.c.l.b16 %v203
    %v467 = vunpack.c.l.b16 %v204
    %v468 = vunpack.c.l.b16 %v205
    %v469 = vunpack.c.l.b16 %v206
    %v470 = vunpack.c.l.b16 %v207
    %v471 = vunpack.c.l.b16 %v208
    %v472 = vunpack.c.l.b16 %v209
    %v473 = vunpack.c.l.b16 %v210
    %v474 = vunpack.c.l.b16 %v211
    %v475 = vunpack.c.l.b16 %v212
    %v476 = vunpack.c.l.b16 %v213
    %v477 = vunpack.c.l.b16 %v214
    %v478 = vunpack.c.l.b16 %v215
    %v479 = vunpack.c.l.b16 %v216
    %v480 = vunpack.c.l.b16 %v217
    %v481 = vpack.c.b16 %v354, %v353
    %v482 = vpack.c.b16 %v356, %v355
    %v483 = vpack.c.b16 %v358, %v357
    %v484 = vpack.c.b16 %v360, %v359
    %v485 = vpack.c.b16 %v362, %v361
    %v486 = vpack.c.b16 %v364, %v363
    %v487 = vpack.c.b16 %v366, %v365
    %v488 = vpack.c.b16 %v368, %v367
    %v489 = vpack.c.b16 %v370, %v369
    %v490 = vpack.c.b16 %v372, %v371
    %v491 = vpack.c.b16 %v374, %v373
    %v492 = vpack.c.b16 %v376, %v375
    %v493 = vpack.c.b16 %v378, %v377
    %v494 = vpack.c.b16 %v380, %v379
    %v495 = vpack.c.b16 %v382, %v381
    %v496 = vpack.c.b16 %v384, %v383
    %v497 = vpack.c.b16 %v386, %v385
    %v498 = vpack.c.b16 %v388, %v387
    %v499 = vpack.c.b16 %v390, %v389
    %v500 = vpack.c.b16 %v392, %v391
    %v501 = vpack.c.b16 %v394, %v393
    %v502 = vpack.c.b16 %v396, %v395
    %v503 = vpack.c.b16 %v398, %v397
    %v504 = vpack.c.b16 %v400, %v399
    %v505 = vpack.c.b16 %v402, %v401
    %v506 = vpack.c.b16 %v404, %v403
    %v507 = vpack.c.b16 %v406, %v405
    %v508 = vpack.c.b16 %v408, %v407
    %v509 = vpack.c.b16 %v410, %v409
    %v510 = vpack.c.b16 %v412, %v411
    %v511 = vpack.c.b16 %v414, %v413
    %v512 = vpack.c.b16 %v416, %v415
    %v513 = vpack.c.b16 %v418, %v417
    %v514 = vpack.c.b16 %v420, %v419
    %v515 = vpack.c.b16 %v422, %v421
    %v516 = vpack.c.b16 %v424, %v423
    %v517 = vpack.c.b16 %v426, %v425
    %v518 = vpack.c.b16 %v428, %v427
    %v519 = vpack.c.b16 %v430, %v429
    %v520 = vpack.c.b16 %v432, %v431
    %v521 = vpack.c.b16 %v434, %v433
    %v522 = vpack.c.b16 %v436, %v435
    %v523 = vpack.c.b16 %v438, %v437
    %v524 = vpack.c.b16 %v440, %v439
    %v525 = vpack.c.b16 %v442, %v441
    %v526 = vpack.c.b16 %v444, %v443
    %v527 = vpack.c.b16 %v446, %v445
    %v528 = vpack.c.b16 %v448, %v447
    %v529 = vpack.c.b16 %v450, %v449
    %v530 = vpack.c.b16 %v452, %v451
    %v531 = vpack.c.b16 %v454, %v453
    %v532 = vpack.c.b16 %v456, %v455
    %v533 = vpack.c.b16 %v458, %v457
    %v534 = vpack.c.b16 %v460, %v459
    %v535 = vpack.c.b16 %v462, %v461
    %v536 = vpack.c.b16 %v464, %v463
    %v537 = vpack.c.b16 %v466, %v465
    %v538 = vpack.c.b16 %v468, %v467
    %v539 = vpack.c.b16 %v470, %v469
    %v540 = vpack.c.b16 %v472, %v471
    %v541 = vpack.c.b16 %v474, %v473
    %v542 = vpack.c.b16 %v476, %v475
    %v543 = vpack.c.b16 %v478, %v477
    %v544 = vpack.c.b16 %v480, %v479
    %609 = vmatprep.subr.bf16.mxu0 0
    %610 = vmatpush1.bf16.msra.mxu0 %v481
    %611 = vmatprep.subr.bf16.mxu0 0
    %612 = vmatpush1.bf16.msra.mxu0 %v482
    %613 = vmatprep.subr.bf16.mxu0 0
    %614 = vmatpush1.bf16.msra.mxu0 %v483
    %615 = vmatprep.subr.bf16.mxu0 0
    %616 = vmatpush1.bf16.msra.mxu0 %v484
    %617 = vmatprep.subr.bf16.mxu0 0
    %618 = vmatpush1.bf16.msra.mxu0 %v485
    %619 = vmatprep.subr.bf16.mxu0 0
    %620 = vmatpush1.bf16.msra.mxu0 %v486
    %621 = vmatprep.subr.bf16.mxu0 0
    %622 = vmatpush1.bf16.msra.mxu0 %v487
    %623 = vmatprep.subr.bf16.mxu0 0
    %624 = vmatpush1.bf16.msra.mxu0 %v488
    %625 = vmatprep.subr.bf16.mxu0 0
    %626 = vmatpush1.bf16.msra.mxu0 %v489
    %627 = vmatprep.subr.bf16.mxu0 0
    %628 = vmatpush1.bf16.msra.mxu0 %v490
    %629 = vmatprep.subr.bf16.mxu0 0
    %630 = vmatpush1.bf16.msra.mxu0 %v491
    %631 = vmatprep.subr.bf16.mxu0 0
    %632 = vmatpush1.bf16.msra.mxu0 %v492
    %633 = vmatprep.subr.bf16.mxu0 0
    %634 = vmatpush1.bf16.msra.mxu0 %v493
    %635 = vmatprep.subr.bf16.mxu0 0
    %636 = vmatpush1.bf16.msra.mxu0 %v494
    %637 = vmatprep.subr.bf16.mxu0 0
    %638 = vmatpush1.bf16.msra.mxu0 %v495
    %639 = vmatprep.subr.bf16.mxu0 0
    %640 = vmatpush1.bf16.msra.mxu0 %v496
    %641 = vmatprep.mubr.bf16.mxu0 %v83
    %642 = vmatmul.mubr.bf16.gmra.mrb[0].mxu0 %v82
    %v643 = vpop.f32.mrb[0].mxu0
    %v644 = vadd.f32 %v223, %v643
    %v645 = vpop.f32.mrb[0].mxu0
    %v646 = vpop.f32.mrb[0].mxu0
    %v647 = vpop.f32.mrb[0].mxu0
    %648 = vdwg.mxu0
    %649 = vmatprep.subr.bf16.mxu0 0
    %650 = vmatpush1.bf16.msra.mxu0 %v497
    %651 = vmatprep.subr.bf16.mxu0 0
    %652 = vmatpush1.bf16.msra.mxu0 %v498
    %653 = vmatprep.subr.bf16.mxu0 0
    %654 = vmatpush1.bf16.msra.mxu0 %v499
    %655 = vmatprep.subr.bf16.mxu0 0
    %656 = vmatpush1.bf16.msra.mxu0 %v500
    %657 = vmatprep.subr.bf16.mxu0 0
    %658 = vmatpush1.bf16.msra.mxu0 %v501
    %659 = vmatprep.subr.bf16.mxu0 0
    %660 = vmatpush1.bf16.msra.mxu0 %v502
    %661 = vmatprep.subr.bf16.mxu0 0
    %662 = vmatpush1.bf16.msra.mxu0 %v503
    %663 = vmatprep.subr.bf16.mxu0 0
    %664 = vmatpush1.bf16.msra.mxu0 %v504
    %665 = vmatprep.subr.bf16.mxu0 0
    %666 = vmatpush1.bf16.msra.mxu0 %v505
    %667 = vmatprep.subr.bf16.mxu0 0
    %668 = vmatpush1.bf16.msra.mxu0 %v506
    %669 = vmatprep.subr.bf16.mxu0 0
    %670 = vmatpush1.bf16.msra.mxu0 %v507
    %671 = vmatprep.subr.bf16.mxu0 0
    %672 = vmatpush1.bf16.msra.mxu0 %v508
    %673 = vmatprep.subr.bf16.mxu0 0
    %674 = vmatpush1.bf16.msra.mxu0 %v509
    %675 = vmatprep.subr.bf16.mxu0 0
    %676 = vmatpush1.bf16.msra.mxu0 %v510
    %677 = vmatprep.subr.bf16.mxu0 0
    %678 = vmatpush1.bf16.msra.mxu0 %v511
    %679 = vmatprep.subr.bf16.mxu0 0
    %680 = vmatpush1.bf16.msra.mxu0 %v512
    %681 = vmatprep.mubr.bf16.mxu0 %v85
    %682 = vmatmul.mubr.bf16.gmra.mrb[0].mxu0 %v84
    %v683 = vpop.f32.mrb[0].mxu0
    %v684 = vadd.f32 %v644, %v683
    %v685 = vpop.f32.mrb[0].mxu0
    %v686 = vpop.f32.mrb[0].mxu0
    %v687 = vpop.f32.mrb[0].mxu0
    %688 = vdwg.mxu0
    %689 = vmatprep.subr.bf16.mxu0 0
    %690 = vmatpush1.bf16.msra.mxu0 %v513
    %691 = vmatprep.subr.bf16.mxu0 0
    %692 = vmatpush1.bf16.msra.mxu0 %v514
    %693 = vmatprep.subr.bf16.mxu0 0
    %694 = vmatpush1.bf16.msra.mxu0 %v515
    %695 = vmatprep.subr.bf16.mxu0 0
    %696 = vmatpush1.bf16.msra.mxu0 %v516
    %697 = vmatprep.subr.bf16.mxu0 0
    %698 = vmatpush1.bf16.msra.mxu0 %v517
    %699 = vmatprep.subr.bf16.mxu0 0
    %700 = vmatpush1.bf16.msra.mxu0 %v518
    %701 = vmatprep.subr.bf16.mxu0 0
    %702 = vmatpush1.bf16.msra.mxu0 %v519
    %703 = vmatprep.subr.bf16.mxu0 0
    %704 = vmatpush1.bf16.msra.mxu0 %v520
    %705 = vmatprep.subr.bf16.mxu0 0
    %706 = vmatpush1.bf16.msra.mxu0 %v521
    %707 = vmatprep.subr.bf16.mxu0 0
    %708 = vmatpush1.bf16.msra.mxu0 %v522
    %709 = vmatprep.subr.bf16.mxu0 0
    %710 = vmatpush1.bf16.msra.mxu0 %v523
    %711 = vmatprep.subr.bf16.mxu0 0
    %712 = vmatpush1.bf16.msra.mxu0 %v524
    %713 = vmatprep.subr.bf16.mxu0 0
    %714 = vmatpush1.bf16.msra.mxu0 %v525
    %715 = vmatprep.subr.bf16.mxu0 0
    %716 = vmatpush1.bf16.msra.mxu0 %v526
    %717 = vmatprep.subr.bf16.mxu0 0
    %718 = vmatpush1.bf16.msra.mxu0 %v527
    %719 = vmatprep.subr.bf16.mxu0 0
    %720 = vmatpush1.bf16.msra.mxu0 %v528
    %721 = vmatprep.mubr.bf16.mxu0 %v87
    %722 = vmatmul.mubr.bf16.gmra.mrb[0].mxu0 %v86
    %v723 = vpop.f32.mrb[0].mxu0
    %v724 = vadd.f32 %v684, %v723
    %v725 = vpop.f32.mrb[0].mxu0
    %v726 = vpop.f32.mrb[0].mxu0
    %v727 = vpop.f32.mrb[0].mxu0
    %728 = vdwg.mxu0
    %729 = vmatprep.subr.bf16.mxu0 0
    %730 = vmatpush1.bf16.msra.mxu0 %v529
    %731 = vmatprep.subr.bf16.mxu0 0
    %732 = vmatpush1.bf16.msra.mxu0 %v530
    %733 = vmatprep.subr.bf16.mxu0 0
    %734 = vmatpush1.bf16.msra.mxu0 %v531
    %735 = vmatprep.subr.bf16.mxu0 0
    %736 = vmatpush1.bf16.msra.mxu0 %v532
    %737 = vmatprep.subr.bf16.mxu0 0
    %738 = vmatpush1.bf16.msra.mxu0 %v533
    %739 = vmatprep.subr.bf16.mxu0 0
    %740 = vmatpush1.bf16.msra.mxu0 %v534
    %741 = vmatprep.subr.bf16.mxu0 0
    %742 = vmatpush1.bf16.msra.mxu0 %v535
    %743 = vmatprep.subr.bf16.mxu0 0
    %744 = vmatpush1.bf16.msra.mxu0 %v536
    %745 = vmatprep.subr.bf16.mxu0 0
    %746 = vmatpush1.bf16.msra.mxu0 %v537
    %747 = vmatprep.subr.bf16.mxu0 0
    %748 = vmatpush1.bf16.msra.mxu0 %v538
    %749 = vmatprep.subr.bf16.mxu0 0
    %750 = vmatpush1.bf16.msra.mxu0 %v539
    %751 = vmatprep.subr.bf16.mxu0 0
    %752 = vmatpush1.bf16.msra.mxu0 %v540
    %753 = vmatprep.subr.bf16.mxu0 0
    %754 = vmatpush1.bf16.msra.mxu0 %v541
    %755 = vmatprep.subr.bf16.mxu0 0
    %756 = vmatpush1.bf16.msra.mxu0 %v542
    %757 = vmatprep.subr.bf16.mxu0 0
    %758 = vmatpush1.bf16.msra.mxu0 %v543
    %759 = vmatprep.subr.bf16.mxu0 0
    %760 = vmatpush1.bf16.msra.mxu0 %v544
    %761 = vmatprep.mubr.bf16.mxu0 %v89
    %762 = vmatmul.mubr.bf16.gmra.mrb[0].mxu0 %v88
    %v763 = vpop.f32.mrb[0].mxu0
    %v764 = vadd.f32 %v724, %v763
    %v765 = vpop.f32.mrb[0].mxu0
    %v766 = vpop.f32.mrb[0].mxu0
    %v767 = vpop.f32.mrb[0].mxu0
    %768 = vdwg.mxu0
    %v769 = vmul.f32 %v764, %v764
    %vm770 = vcmask 1041408
    %v771 = vsel %vm770, %v769, 0.0
    %772 = vadd.xlane.f32.xlu0 %v771
    %v773 = vpop.xlane.xlu0 %772
    %v774 = vmax.f32 %v773, 1e-24
    %v775 = vrsqrt.pop %v774
    %v776 = vmul.f32 %v764, %v775
    %777 = vst [vmem:[#allocation2] sm:$0x3] %v776
    %v778 = vpack.c.bf16 %v776, %v776
    %v779 = vld [vmem:[%s3] sm:$0xff]
    %v780 = vld [vmem:[%s3 + $0x8] sm:$0xff]
    %v781 = vld [vmem:[%s3 + $0x10] sm:$0xff]
    %v782 = vld [vmem:[%s3 + $0x18] sm:$0xff]
    %v783 = vld [vmem:[%s3 + $0x20] sm:$0xff]
    %v784 = vld [vmem:[%s3 + $0x28] sm:$0xff]
    %v785 = vld [vmem:[%s3 + $0x30] sm:$0xff]
    %v786 = vld [vmem:[%s3 + $0x38] sm:$0xff]
    %v787 = vld [vmem:[%s3 + $0x40] sm:$0xff]
    %v788 = vld [vmem:[%s3 + $0x48] sm:$0xff]
    %v789 = vld [vmem:[%s3 + $0x50] sm:$0xff]
    %v790 = vld [vmem:[%s3 + $0x58] sm:$0xff]
    %v791 = vld [vmem:[%s3 + $0x60] sm:$0xff]
    %v792 = vld [vmem:[%s3 + $0x68] sm:$0xff]
    %v793 = vld [vmem:[%s3 + $0x70] sm:$0xff]
    %v794 = vld [vmem:[%s3 + $0x78] sm:$0xff]
    %v795 = vld [vmem:[%s3 + $0x80] sm:$0xff]
    %v796 = vld [vmem:[%s3 + $0x88] sm:$0xff]
    %v797 = vld [vmem:[%s3 + $0x90] sm:$0xff]
    %v798 = vld [vmem:[%s3 + $0x98] sm:$0xff]
    %v799 = vld [vmem:[%s3 + $0xa0] sm:$0xff]
    %v800 = vld [vmem:[%s3 + $0xa8] sm:$0xff]
    %v801 = vld [vmem:[%s3 + $0xb0] sm:$0xff]
    %v802 = vld [vmem:[%s3 + $0xb8] sm:$0xff]
    %v803 = vld [vmem:[%s3 + $0xc0] sm:$0xff]
    %v804 = vld [vmem:[%s3 + $0xc8] sm:$0xff]
    %v805 = vld [vmem:[%s3 + $0xd0] sm:$0xff]
    %v806 = vld [vmem:[%s3 + $0xd8] sm:$0xff]
    %v807 = vld [vmem:[%s3 + $0xe0] sm:$0xff]
    %v808 = vld [vmem:[%s3 + $0xe8] sm:$0xff]
    %v809 = vld [vmem:[%s3 + $0xf0] sm:$0xff]
    %v810 = vld [vmem:[%s3 + $0xf8] sm:$0xff]
    %v811 = vld [vmem:[%s3 + $0x100] sm:$0xff]
    %v812 = vld [vmem:[%s3 + $0x108] sm:$0xff]
    %v813 = vld [vmem:[%s3 + $0x110] sm:$0xff]
    %v814 = vld [vmem:[%s3 + $0x118] sm:$0xff]
    %v815 = vld [vmem:[%s3 + $0x120] sm:$0xff]
    %v816 = vld [vmem:[%s3 + $0x128] sm:$0xff]
    %v817 = vld [vmem:[%s3 + $0x130] sm:$0xff]
    %v818 = vld [vmem:[%s3 + $0x138] sm:$0xff]
    %v819 = vld [vmem:[%s3 + $0x140] sm:$0xff]
    %v820 = vld [vmem:[%s3 + $0x148] sm:$0xff]
    %v821 = vld [vmem:[%s3 + $0x150] sm:$0xff]
    %v822 = vld [vmem:[%s3 + $0x158] sm:$0xff]
    %v823 = vld [vmem:[%s3 + $0x160] sm:$0xff]
    %v824 = vld [vmem:[%s3 + $0x168] sm:$0xff]
    %v825 = vld [vmem:[%s3 + $0x170] sm:$0xff]
    %v826 = vld [vmem:[%s3 + $0x178] sm:$0xff]
    %v827 = vld [vmem:[%s3 + $0x180] sm:$0xff]
    %v828 = vld [vmem:[%s3 + $0x188] sm:$0xff]
    %v829 = vld [vmem:[%s3 + $0x190] sm:$0xff]
    %v830 = vld [vmem:[%s3 + $0x198] sm:$0xff]
    %v831 = vld [vmem:[%s3 + $0x1a0] sm:$0xff]
    %v832 = vld [vmem:[%s3 + $0x1a8] sm:$0xff]
    %v833 = vld [vmem:[%s3 + $0x1b0] sm:$0xff]
    %v834 = vld [vmem:[%s3 + $0x1b8] sm:$0xff]
    %v835 = vld [vmem:[%s3 + $0x1c0] sm:$0xff]
    %v836 = vld [vmem:[%s3 + $0x1c8] sm:$0xff]
    %v837 = vld [vmem:[%s3 + $0x1d0] sm:$0xff]
    %v838 = vld [vmem:[%s3 + $0x1d8] sm:$0xff]
    %v839 = vld [vmem:[%s3 + $0x1e0] sm:$0xff]
    %v840 = vld [vmem:[%s3 + $0x1e8] sm:$0xff]
    %v841 = vld [vmem:[%s3 + $0x1f0] sm:$0xff]
    %v842 = vld [vmem:[%s3 + $0x1f8] sm:$0xff]
    %v843 = vld [vmem:[%s4] sm:$0xff]
    %v845 = vlaneseq
    %v846 = vshrl.u32 %v845, 7
    %v847 = vsub.s32 0, %v846
    %v848 = vrot.slane %v843, %v847
    %v849 = vlaneseq
    %v850 = vshrl.u32 %v849, 7
    %v851 = vsub.s32 1, %v850
    %v852 = vrot.slane %v843, %v851
    %v853 = vlaneseq
    %v854 = vshrl.u32 %v853, 7
    %v855 = vsub.s32 2, %v854
    %v856 = vrot.slane %v843, %v855
    %v857 = vlaneseq
    %v858 = vshrl.u32 %v857, 7
    %v859 = vsub.s32 3, %v858
    %v860 = vrot.slane %v843, %v859
    %v861 = vlaneseq
    %v862 = vshrl.u32 %v861, 7
    %v863 = vsub.s32 4, %v862
    %v864 = vrot.slane %v843, %v863
    %v865 = vlaneseq
    %v866 = vshrl.u32 %v865, 7
    %v867 = vsub.s32 5, %v866
    %v868 = vrot.slane %v843, %v867
    %v869 = vlaneseq
    %v870 = vshrl.u32 %v869, 7
    %v871 = vsub.s32 6, %v870
    %v872 = vrot.slane %v843, %v871
    %v873 = vlaneseq
    %v874 = vshrl.u32 %v873, 7
    %v875 = vsub.s32 7, %v874
    %v876 = vrot.slane %v843, %v875
    %v949 = vunpack.c.l.b16 %v779
    %v950 = vunpack.c.h.b16 %v779
    %v951 = vunpack.c.l.b16 %v780
    %v952 = vunpack.c.h.b16 %v780
    %v953 = vunpack.c.l.b16 %v781
    %v954 = vunpack.c.h.b16 %v781
    %v955 = vunpack.c.l.b16 %v782
    %v956 = vunpack.c.h.b16 %v782
    %v957 = vunpack.c.l.b16 %v783
    %v958 = vunpack.c.h.b16 %v783
    %v959 = vunpack.c.l.b16 %v784
    %v960 = vunpack.c.h.b16 %v784
    %v961 = vunpack.c.l.b16 %v785
    %v962 = vunpack.c.h.b16 %v785
    %v963 = vunpack.c.l.b16 %v786
    %v964 = vunpack.c.h.b16 %v786
    %v965 = vunpack.c.l.b16 %v787
    %v966 = vunpack.c.h.b16 %v787
    %v967 = vunpack.c.l.b16 %v788
    %v968 = vunpack.c.h.b16 %v788
    %v969 = vunpack.c.l.b16 %v789
    %v970 = vunpack.c.h.b16 %v789
    %v971 = vunpack.c.l.b16 %v790
    %v972 = vunpack.c.h.b16 %v790
    %v973 = vunpack.c.l.b16 %v791
    %v974 = vunpack.c.h.b16 %v791
    %v975 = vunpack.c.l.b16 %v792
    %v976 = vunpack.c.h.b16 %v792
    %v977 = vunpack.c.l.b16 %v793
    %v978 = vunpack.c.h.b16 %v793
    %v979 = vunpack.c.l.b16 %v794
    %v980 = vunpack.c.h.b16 %v794
    %v981 = vunpack.c.l.b16 %v795
    %v982 = vunpack.c.h.b16 %v795
    %v983 = vunpack.c.l.b16 %v796
    %v984 = vunpack.c.h.b16 %v796
    %v985 = vunpack.c.l.b16 %v797
    %v986 = vunpack.c.h.b16 %v797
    %v987 = vunpack.c.l.b16 %v798
    %v988 = vunpack.c.h.b16 %v798
    %v989 = vunpack.c.l.b16 %v799
    %v990 = vunpack.c.h.b16 %v799
    %v991 = vunpack.c.l.b16 %v800
    %v992 = vunpack.c.h.b16 %v800
    %v993 = vunpack.c.l.b16 %v801
    %v994 = vunpack.c.h.b16 %v801
    %v995 = vunpack.c.l.b16 %v802
    %v996 = vunpack.c.h.b16 %v802
    %v997 = vunpack.c.l.b16 %v803
    %v998 = vunpack.c.h.b16 %v803
    %v999 = vunpack.c.l.b16 %v804
    %v1000 = vunpack.c.h.b16 %v804
    %v1001 = vunpack.c.l.b16 %v805
    %v1002 = vunpack.c.h.b16 %v805
    %v1003 = vunpack.c.l.b16 %v806
    %v1004 = vunpack.c.h.b16 %v806
    %v1005 = vunpack.c.l.b16 %v807
    %v1006 = vunpack.c.h.b16 %v807
    %v1007 = vunpack.c.l.b16 %v808
    %v1008 = vunpack.c.h.b16 %v808
    %v1009 = vunpack.c.l.b16 %v809
    %v1010 = vunpack.c.h.b16 %v809
    %v1011 = vunpack.c.l.b16 %v810
    %v1012 = vunpack.c.h.b16 %v810
    %v1013 = vunpack.c.l.b16 %v811
    %v1014 = vunpack.c.h.b16 %v811
    %v1015 = vunpack.c.l.b16 %v812
    %v1016 = vunpack.c.h.b16 %v812
    %v1017 = vunpack.c.l.b16 %v813
    %v1018 = vunpack.c.h.b16 %v813
    %v1019 = vunpack.c.l.b16 %v814
    %v1020 = vunpack.c.h.b16 %v814
    %v1021 = vunpack.c.l.b16 %v815
    %v1022 = vunpack.c.h.b16 %v815
    %v1023 = vunpack.c.l.b16 %v816
    %v1024 = vunpack.c.h.b16 %v816
    %v1025 = vunpack.c.l.b16 %v817
    %v1026 = vunpack.c.h.b16 %v817
    %v1027 = vunpack.c.l.b16 %v818
    %v1028 = vunpack.c.h.b16 %v818
    %v1029 = vunpack.c.l.b16 %v819
    %v1030 = vunpack.c.h.b16 %v819
    %v1031 = vunpack.c.l.b16 %v820
    %v1032 = vunpack.c.h.b16 %v820
    %v1033 = vunpack.c.l.b16 %v821
    %v1034 = vunpack.c.h.b16 %v821
    %v1035 = vunpack.c.l.b16 %v822
    %v1036 = vunpack.c.h.b16 %v822
    %v1037 = vunpack.c.l.b16 %v823
    %v1038 = vunpack.c.h.b16 %v823
    %v1039 = vunpack.c.l.b16 %v824
    %v1040 = vunpack.c.h.b16 %v824
    %v1041 = vunpack.c.l.b16 %v825
    %v1042 = vunpack.c.h.b16 %v825
    %v1043 = vunpack.c.l.b16 %v826
    %v1044 = vunpack.c.h.b16 %v826
    %v1045 = vunpack.c.l.b16 %v827
    %v1046 = vunpack.c.h.b16 %v827
    %v1047 = vunpack.c.l.b16 %v828
    %v1048 = vunpack.c.h.b16 %v828
    %v1049 = vunpack.c.l.b16 %v829
    %v1050 = vunpack.c.h.b16 %v829
    %v1051 = vunpack.c.l.b16 %v830
    %v1052 = vunpack.c.h.b16 %v830
    %v1053 = vunpack.c.l.b16 %v831
    %v1054 = vunpack.c.h.b16 %v831
    %v1055 = vunpack.c.l.b16 %v832
    %v1056 = vunpack.c.h.b16 %v832
    %v1057 = vunpack.c.l.b16 %v833
    %v1058 = vunpack.c.h.b16 %v833
    %v1059 = vunpack.c.l.b16 %v834
    %v1060 = vunpack.c.h.b16 %v834
    %v1061 = vunpack.c.l.b16 %v835
    %v1062 = vunpack.c.h.b16 %v835
    %v1063 = vunpack.c.l.b16 %v836
    %v1064 = vunpack.c.h.b16 %v836
    %v1065 = vunpack.c.l.b16 %v837
    %v1066 = vunpack.c.h.b16 %v837
    %v1067 = vunpack.c.l.b16 %v838
    %v1068 = vunpack.c.h.b16 %v838
    %v1069 = vunpack.c.l.b16 %v839
    %v1070 = vunpack.c.h.b16 %v839
    %v1071 = vunpack.c.l.b16 %v840
    %v1072 = vunpack.c.h.b16 %v840
    %v1073 = vunpack.c.l.b16 %v841
    %v1074 = vunpack.c.h.b16 %v841
    %v1075 = vunpack.c.l.b16 %v842
    %v1076 = vunpack.c.h.b16 %v842
    %v1077 = vpack.c.b16 %v957, %v949
    %v1078 = vpack.c.b16 %v958, %v950
    %v1079 = vpack.c.b16 %v959, %v951
    %v1080 = vpack.c.b16 %v960, %v952
    %v1081 = vpack.c.b16 %v961, %v953
    %v1082 = vpack.c.b16 %v962, %v954
    %v1083 = vpack.c.b16 %v963, %v955
    %v1084 = vpack.c.b16 %v964, %v956
    %v1085 = vpack.c.b16 %v973, %v965
    %v1086 = vpack.c.b16 %v974, %v966
    %v1087 = vpack.c.b16 %v975, %v967
    %v1088 = vpack.c.b16 %v976, %v968
    %v1089 = vpack.c.b16 %v977, %v969
    %v1090 = vpack.c.b16 %v978, %v970
    %v1091 = vpack.c.b16 %v979, %v971
    %v1092 = vpack.c.b16 %v980, %v972
    %v1093 = vpack.c.b16 %v989, %v981
    %v1094 = vpack.c.b16 %v990, %v982
    %v1095 = vpack.c.b16 %v991, %v983
    %v1096 = vpack.c.b16 %v992, %v984
    %v1097 = vpack.c.b16 %v993, %v985
    %v1098 = vpack.c.b16 %v994, %v986
    %v1099 = vpack.c.b16 %v995, %v987
    %v1100 = vpack.c.b16 %v996, %v988
    %v1101 = vpack.c.b16 %v1005, %v997
    %v1102 = vpack.c.b16 %v1006, %v998
    %v1103 = vpack.c.b16 %v1007, %v999
    %v1104 = vpack.c.b16 %v1008, %v1000
    %v1105 = vpack.c.b16 %v1009, %v1001
    %v1106 = vpack.c.b16 %v1010, %v1002
    %v1107 = vpack.c.b16 %v1011, %v1003
    %v1108 = vpack.c.b16 %v1012, %v1004
    %v1109 = vpack.c.b16 %v1021, %v1013
    %v1110 = vpack.c.b16 %v1022, %v1014
    %v1111 = vpack.c.b16 %v1023, %v1015
    %v1112 = vpack.c.b16 %v1024, %v1016
    %v1113 = vpack.c.b16 %v1025, %v1017
    %v1114 = vpack.c.b16 %v1026, %v1018
    %v1115 = vpack.c.b16 %v1027, %v1019
    %v1116 = vpack.c.b16 %v1028, %v1020
    %v1117 = vpack.c.b16 %v1037, %v1029
    %v1118 = vpack.c.b16 %v1038, %v1030
    %v1119 = vpack.c.b16 %v1039, %v1031
    %v1120 = vpack.c.b16 %v1040, %v1032
    %v1121 = vpack.c.b16 %v1041, %v1033
    %v1122 = vpack.c.b16 %v1042, %v1034
    %v1123 = vpack.c.b16 %v1043, %v1035
    %v1124 = vpack.c.b16 %v1044, %v1036
    %v1125 = vpack.c.b16 %v1053, %v1045
    %v1126 = vpack.c.b16 %v1054, %v1046
    %v1127 = vpack.c.b16 %v1055, %v1047
    %v1128 = vpack.c.b16 %v1056, %v1048
    %v1129 = vpack.c.b16 %v1057, %v1049
    %v1130 = vpack.c.b16 %v1058, %v1050
    %v1131 = vpack.c.b16 %v1059, %v1051
    %v1132 = vpack.c.b16 %v1060, %v1052
    %v1133 = vpack.c.b16 %v1069, %v1061
    %v1134 = vpack.c.b16 %v1070, %v1062
    %v1135 = vpack.c.b16 %v1071, %v1063
    %v1136 = vpack.c.b16 %v1072, %v1064
    %v1137 = vpack.c.b16 %v1073, %v1065
    %v1138 = vpack.c.b16 %v1074, %v1066
    %v1139 = vpack.c.b16 %v1075, %v1067
    %v1140 = vpack.c.b16 %v1076, %v1068
    %1205 = vmatprep.subr.bf16.mxu0 %v1078
    %1206 = vmatpush1.bf16.msra.mxu0 %v1077
    %1207 = vmatprep.subr.bf16.mxu0 %v1086
    %1208 = vmatpush1.bf16.msra.mxu0 %v1085
    %1209 = vmatprep.subr.bf16.mxu0 %v1094
    %1210 = vmatpush1.bf16.msra.mxu0 %v1093
    %1211 = vmatprep.subr.bf16.mxu0 %v1102
    %1212 = vmatpush1.bf16.msra.mxu0 %v1101
    %1213 = vmatprep.subr.bf16.mxu0 %v1110
    %1214 = vmatpush1.bf16.msra.mxu0 %v1109
    %1215 = vmatprep.subr.bf16.mxu0 %v1118
    %1216 = vmatpush1.bf16.msra.mxu0 %v1117
    %1217 = vmatprep.subr.bf16.mxu0 %v1126
    %1218 = vmatpush1.bf16.msra.mxu0 %v1125
    %1219 = vmatprep.subr.bf16.mxu0 %v1134
    %1220 = vmatpush1.bf16.msra.mxu0 %v1133
    %1221 = vmatprep.subr.bf16.mxu0 0
    %1222 = vmatpush1.bf16.msra.mxu0 0
    %1223 = vmatprep.subr.bf16.mxu0 0
    %1224 = vmatpush1.bf16.msra.mxu0 0
    %1225 = vmatprep.subr.bf16.mxu0 0
    %1226 = vmatpush1.bf16.msra.mxu0 0
    %1227 = vmatprep.subr.bf16.mxu0 0
    %1228 = vmatpush1.bf16.msra.mxu0 0
    %1229 = vmatprep.subr.bf16.mxu0 0
    %1230 = vmatpush1.bf16.msra.mxu0 0
    %1231 = vmatprep.subr.bf16.mxu0 0
    %1232 = vmatpush1.bf16.msra.mxu0 0
    %1233 = vmatprep.subr.bf16.mxu0 0
    %1234 = vmatpush1.bf16.msra.mxu0 0
    %1235 = vmatprep.subr.bf16.mxu0 0
    %1236 = vmatpush1.bf16.msra.mxu0 0
    %1237 = vmatprep.mubr.bf16.mxu0 0
    %1238 = vmatmul.mubr.bf16.gmra.mrb[0].mxu0 %v778
    %v1239 = vpop.f32.mrb[0].mxu0
    %v1240 = vadd.f32 %v848, %v1239
    %v1241 = vpop.f32.mrb[0].mxu0
    %v1242 = vadd.f32 %v852, %v1241
    %v1243 = vpop.f32.mrb[0].mxu0
    %v1244 = vpop.f32.mrb[0].mxu0
    %1245 = vdwg.mxu0
    %1246 = vmatprep.subr.bf16.mxu0 %v1080
    %1247 = vmatpush1.bf16.msra.mxu0 %v1079
    %1248 = vmatprep.subr.bf16.mxu0 %v1088
    %1249 = vmatpush1.bf16.msra.mxu0 %v1087
    %1250 = vmatprep.subr.bf16.mxu0 %v1096
    %1251 = vmatpush1.bf16.msra.mxu0 %v1095
    %1252 = vmatprep.subr.bf16.mxu0 %v1104
    %1253 = vmatpush1.bf16.msra.mxu0 %v1103
    %1254 = vmatprep.subr.bf16.mxu0 %v1112
    %1255 = vmatpush1.bf16.msra.mxu0 %v1111
    %1256 = vmatprep.subr.bf16.mxu0 %v1120
    %1257 = vmatpush1.bf16.msra.mxu0 %v1119
    %1258 = vmatprep.subr.bf16.mxu0 %v1128
    %1259 = vmatpush1.bf16.msra.mxu0 %v1127
    %1260 = vmatprep.subr.bf16.mxu0 %v1136
    %1261 = vmatpush1.bf16.msra.mxu0 %v1135
    %1262 = vmatprep.subr.bf16.mxu0 0
    %1263 = vmatpush1.bf16.msra.mxu0 0
    %1264 = vmatprep.subr.bf16.mxu0 0
    %1265 = vmatpush1.bf16.msra.mxu0 0
    %1266 = vmatprep.subr.bf16.mxu0 0
    %1267 = vmatpush1.bf16.msra.mxu0 0
    %1268 = vmatprep.subr.bf16.mxu0 0
    %1269 = vmatpush1.bf16.msra.mxu0 0
    %1270 = vmatprep.subr.bf16.mxu0 0
    %1271 = vmatpush1.bf16.msra.mxu0 0
    %1272 = vmatprep.subr.bf16.mxu0 0
    %1273 = vmatpush1.bf16.msra.mxu0 0
    %1274 = vmatprep.subr.bf16.mxu0 0
    %1275 = vmatpush1.bf16.msra.mxu0 0
    %1276 = vmatprep.subr.bf16.mxu0 0
    %1277 = vmatpush1.bf16.msra.mxu0 0
    %1278 = vmatprep.mubr.bf16.mxu0 0
    %1279 = vmatmul.mubr.bf16.gmra.mrb[0].mxu0 %v778
    %v1280 = vpop.f32.mrb[0].mxu0
    %v1281 = vadd.f32 %v856, %v1280
    %v1282 = vpop.f32.mrb[0].mxu0
    %v1283 = vadd.f32 %v860, %v1282
    %v1284 = vpop.f32.mrb[0].mxu0
    %v1285 = vpop.f32.mrb[0].mxu0
    %1286 = vdwg.mxu0
    %1287 = vmatprep.subr.bf16.mxu0 %v1082
    %1288 = vmatpush1.bf16.msra.mxu0 %v1081
    %1289 = vmatprep.subr.bf16.mxu0 %v1090
    %1290 = vmatpush1.bf16.msra.mxu0 %v1089
    %1291 = vmatprep.subr.bf16.mxu0 %v1098
    %1292 = vmatpush1.bf16.msra.mxu0 %v1097
    %1293 = vmatprep.subr.bf16.mxu0 %v1106
    %1294 = vmatpush1.bf16.msra.mxu0 %v1105
    %1295 = vmatprep.subr.bf16.mxu0 %v1114
    %1296 = vmatpush1.bf16.msra.mxu0 %v1113
    %1297 = vmatprep.subr.bf16.mxu0 %v1122
    %1298 = vmatpush1.bf16.msra.mxu0 %v1121
    %1299 = vmatprep.subr.bf16.mxu0 %v1130
    %1300 = vmatpush1.bf16.msra.mxu0 %v1129
    %1301 = vmatprep.subr.bf16.mxu0 %v1138
    %1302 = vmatpush1.bf16.msra.mxu0 %v1137
    %1303 = vmatprep.subr.bf16.mxu0 0
    %1304 = vmatpush1.bf16.msra.mxu0 0
    %1305 = vmatprep.subr.bf16.mxu0 0
    %1306 = vmatpush1.bf16.msra.mxu0 0
    %1307 = vmatprep.subr.bf16.mxu0 0
    %1308 = vmatpush1.bf16.msra.mxu0 0
    %1309 = vmatprep.subr.bf16.mxu0 0
    %1310 = vmatpush1.bf16.msra.mxu0 0
    %1311 = vmatprep.subr.bf16.mxu0 0
    %1312 = vmatpush1.bf16.msra.mxu0 0
    %1313 = vmatprep.subr.bf16.mxu0 0
    %1314 = vmatpush1.bf16.msra.mxu0 0
    %1315 = vmatprep.subr.bf16.mxu0 0
    %1316 = vmatpush1.bf16.msra.mxu0 0
    %1317 = vmatprep.subr.bf16.mxu0 0
    %1318 = vmatpush1.bf16.msra.mxu0 0
    %1319 = vmatprep.mubr.bf16.mxu0 0
    %1320 = vmatmul.mubr.bf16.gmra.mrb[0].mxu0 %v778
    %v1321 = vpop.f32.mrb[0].mxu0
    %v1322 = vadd.f32 %v864, %v1321
    %v1323 = vpop.f32.mrb[0].mxu0
    %v1324 = vadd.f32 %v868, %v1323
    %v1325 = vpop.f32.mrb[0].mxu0
    %v1326 = vpop.f32.mrb[0].mxu0
    %1327 = vdwg.mxu0
    %1328 = vmatprep.subr.bf16.mxu0 %v1084
    %1329 = vmatpush1.bf16.msra.mxu0 %v1083
    %1330 = vmatprep.subr.bf16.mxu0 %v1092
    %1331 = vmatpush1.bf16.msra.mxu0 %v1091
    %1332 = vmatprep.subr.bf16.mxu0 %v1100
    %1333 = vmatpush1.bf16.msra.mxu0 %v1099
    %1334 = vmatprep.subr.bf16.mxu0 %v1108
    %1335 = vmatpush1.bf16.msra.mxu0 %v1107
    %1336 = vmatprep.subr.bf16.mxu0 %v1116
    %1337 = vmatpush1.bf16.msra.mxu0 %v1115
    %1338 = vmatprep.subr.bf16.mxu0 %v1124
    %1339 = vmatpush1.bf16.msra.mxu0 %v1123
    %1340 = vmatprep.subr.bf16.mxu0 %v1132
    %1341 = vmatpush1.bf16.msra.mxu0 %v1131
    %1342 = vmatprep.subr.bf16.mxu0 %v1140
    %1343 = vmatpush1.bf16.msra.mxu0 %v1139
    %1344 = vmatprep.subr.bf16.mxu0 0
    %1345 = vmatpush1.bf16.msra.mxu0 0
    %1346 = vmatprep.subr.bf16.mxu0 0
    %1347 = vmatpush1.bf16.msra.mxu0 0
    %1348 = vmatprep.subr.bf16.mxu0 0
    %1349 = vmatpush1.bf16.msra.mxu0 0
    %1350 = vmatprep.subr.bf16.mxu0 0
    %1351 = vmatpush1.bf16.msra.mxu0 0
    %1352 = vmatprep.subr.bf16.mxu0 0
    %1353 = vmatpush1.bf16.msra.mxu0 0
    %1354 = vmatprep.subr.bf16.mxu0 0
    %1355 = vmatpush1.bf16.msra.mxu0 0
    %1356 = vmatprep.subr.bf16.mxu0 0
    %1357 = vmatpush1.bf16.msra.mxu0 0
    %1358 = vmatprep.subr.bf16.mxu0 0
    %1359 = vmatpush1.bf16.msra.mxu0 0
    %1360 = vmatprep.mubr.bf16.mxu0 0
    %1361 = vmatmul.mubr.bf16.gmra.mrb[0].mxu0 %v778
    %v1362 = vpop.f32.mrb[0].mxu0
    %v1363 = vadd.f32 %v872, %v1362
    %v1364 = vpop.f32.mrb[0].mxu0
    %v1365 = vadd.f32 %v876, %v1364
    %v1366 = vpop.f32.mrb[0].mxu0
    %v1367 = vpop.f32.mrb[0].mxu0
    %1368 = vdwg.mxu0
    %v1369 = vmax.f32 %v1240, 0.0
    %v1370 = vmax.f32 %v1242, 0.0
    %v1371 = vmax.f32 %v1281, 0.0
    %v1372 = vmax.f32 %v1283, 0.0
    %v1373 = vmax.f32 %v1322, 0.0
    %v1374 = vmax.f32 %v1324, 0.0
    %v1375 = vmax.f32 %v1363, 0.0
    %v1376 = vmax.f32 %v1365, 0.0
    %v1377 = vpack.c.bf16 %v1369, %v1369
    %v1378 = vpack.c.bf16 %v1370, %v1370
    %v1379 = vpack.c.bf16 %v1371, %v1371
    %v1380 = vpack.c.bf16 %v1372, %v1372
    %v1381 = vpack.c.bf16 %v1373, %v1373
    %v1382 = vpack.c.bf16 %v1374, %v1374
    %v1383 = vpack.c.bf16 %v1375, %v1375
    %v1384 = vpack.c.bf16 %v1376, %v1376
    %v1385 = vld [vmem:[%s5] sm:$0xff]
    %v1386 = vld [vmem:[%s5 + $0x8] sm:$0xff]
    %v1387 = vld [vmem:[%s5 + $0x10] sm:$0xff]
    %v1388 = vld [vmem:[%s5 + $0x18] sm:$0xff]
    %v1389 = vld [vmem:[%s5 + $0x20] sm:$0xff]
    %v1390 = vld [vmem:[%s5 + $0x28] sm:$0xff]
    %v1391 = vld [vmem:[%s5 + $0x30] sm:$0xff]
    %v1392 = vld [vmem:[%s5 + $0x38] sm:$0xff]
    %v1393 = vld [vmem:[%s5 + $0x40] sm:$0xff]
    %v1394 = vld [vmem:[%s5 + $0x48] sm:$0xff]
    %v1395 = vld [vmem:[%s5 + $0x50] sm:$0xff]
    %v1396 = vld [vmem:[%s5 + $0x58] sm:$0xff]
    %v1397 = vld [vmem:[%s5 + $0x60] sm:$0xff]
    %v1398 = vld [vmem:[%s5 + $0x68] sm:$0xff]
    %v1399 = vld [vmem:[%s5 + $0x70] sm:$0xff]
    %v1400 = vld [vmem:[%s5 + $0x78] sm:$0xff]
    %v1401 = vld [vmem:[%s5 + $0x80] sm:$0xff]
    %v1402 = vld [vmem:[%s5 + $0x88] sm:$0xff]
    %v1403 = vld [vmem:[%s5 + $0x90] sm:$0xff]
    %v1404 = vld [vmem:[%s5 + $0x98] sm:$0xff]
    %v1405 = vld [vmem:[%s5 + $0xa0] sm:$0xff]
    %v1406 = vld [vmem:[%s5 + $0xa8] sm:$0xff]
    %v1407 = vld [vmem:[%s5 + $0xb0] sm:$0xff]
    %v1408 = vld [vmem:[%s5 + $0xb8] sm:$0xff]
    %v1409 = vld [vmem:[%s5 + $0xc0] sm:$0xff]
    %v1410 = vld [vmem:[%s5 + $0xc8] sm:$0xff]
    %v1411 = vld [vmem:[%s5 + $0xd0] sm:$0xff]
    %v1412 = vld [vmem:[%s5 + $0xd8] sm:$0xff]
    %v1413 = vld [vmem:[%s5 + $0xe0] sm:$0xff]
    %v1414 = vld [vmem:[%s5 + $0xe8] sm:$0xff]
    %v1415 = vld [vmem:[%s5 + $0xf0] sm:$0xff]
    %v1416 = vld [vmem:[%s5 + $0xf8] sm:$0xff]
    %v1417 = vld [vmem:[%s5 + $0x100] sm:$0xff]
    %v1418 = vld [vmem:[%s5 + $0x108] sm:$0xff]
    %v1419 = vld [vmem:[%s5 + $0x110] sm:$0xff]
    %v1420 = vld [vmem:[%s5 + $0x118] sm:$0xff]
    %v1421 = vld [vmem:[%s5 + $0x120] sm:$0xff]
    %v1422 = vld [vmem:[%s5 + $0x128] sm:$0xff]
    %v1423 = vld [vmem:[%s5 + $0x130] sm:$0xff]
    %v1424 = vld [vmem:[%s5 + $0x138] sm:$0xff]
    %v1425 = vld [vmem:[%s5 + $0x140] sm:$0xff]
    %v1426 = vld [vmem:[%s5 + $0x148] sm:$0xff]
    %v1427 = vld [vmem:[%s5 + $0x150] sm:$0xff]
    %v1428 = vld [vmem:[%s5 + $0x158] sm:$0xff]
    %v1429 = vld [vmem:[%s5 + $0x160] sm:$0xff]
    %v1430 = vld [vmem:[%s5 + $0x168] sm:$0xff]
    %v1431 = vld [vmem:[%s5 + $0x170] sm:$0xff]
    %v1432 = vld [vmem:[%s5 + $0x178] sm:$0xff]
    %v1433 = vld [vmem:[%s5 + $0x180] sm:$0xff]
    %v1434 = vld [vmem:[%s5 + $0x188] sm:$0xff]
    %v1435 = vld [vmem:[%s5 + $0x190] sm:$0xff]
    %v1436 = vld [vmem:[%s5 + $0x198] sm:$0xff]
    %v1437 = vld [vmem:[%s5 + $0x1a0] sm:$0xff]
    %v1438 = vld [vmem:[%s5 + $0x1a8] sm:$0xff]
    %v1439 = vld [vmem:[%s5 + $0x1b0] sm:$0xff]
    %v1440 = vld [vmem:[%s5 + $0x1b8] sm:$0xff]
    %v1441 = vld [vmem:[%s5 + $0x1c0] sm:$0xff]
    %v1442 = vld [vmem:[%s5 + $0x1c8] sm:$0xff]
    %v1443 = vld [vmem:[%s5 + $0x1d0] sm:$0xff]
    %v1444 = vld [vmem:[%s5 + $0x1d8] sm:$0xff]
    %v1445 = vld [vmem:[%s5 + $0x1e0] sm:$0xff]
    %v1446 = vld [vmem:[%s5 + $0x1e8] sm:$0xff]
    %v1447 = vld [vmem:[%s5 + $0x1f0] sm:$0xff]
    %v1448 = vld [vmem:[%s5 + $0x1f8] sm:$0xff]
    %v1449 = vld [vmem:[%s5 + $0x200] sm:$0xff]
    %v1450 = vld [vmem:[%s5 + $0x208] sm:$0xff]
    %v1451 = vld [vmem:[%s5 + $0x210] sm:$0xff]
    %v1452 = vld [vmem:[%s5 + $0x218] sm:$0xff]
    %v1453 = vld [vmem:[%s5 + $0x220] sm:$0xff]
    %v1454 = vld [vmem:[%s5 + $0x228] sm:$0xff]
    %v1455 = vld [vmem:[%s5 + $0x230] sm:$0xff]
    %v1456 = vld [vmem:[%s5 + $0x238] sm:$0xff]
    %v1457 = vld [vmem:[%s5 + $0x240] sm:$0xff]
    %v1458 = vld [vmem:[%s5 + $0x248] sm:$0xff]
    %v1459 = vld [vmem:[%s5 + $0x250] sm:$0xff]
    %v1460 = vld [vmem:[%s5 + $0x258] sm:$0xff]
    %v1461 = vld [vmem:[%s5 + $0x260] sm:$0xff]
    %v1462 = vld [vmem:[%s5 + $0x268] sm:$0xff]
    %v1463 = vld [vmem:[%s5 + $0x270] sm:$0xff]
    %v1464 = vld [vmem:[%s5 + $0x278] sm:$0xff]
    %v1465 = vld [vmem:[%s5 + $0x280] sm:$0xff]
    %v1466 = vld [vmem:[%s5 + $0x288] sm:$0xff]
    %v1467 = vld [vmem:[%s5 + $0x290] sm:$0xff]
    %v1468 = vld [vmem:[%s5 + $0x298] sm:$0xff]
    %v1469 = vld [vmem:[%s5 + $0x2a0] sm:$0xff]
    %v1470 = vld [vmem:[%s5 + $0x2a8] sm:$0xff]
    %v1471 = vld [vmem:[%s5 + $0x2b0] sm:$0xff]
    %v1472 = vld [vmem:[%s5 + $0x2b8] sm:$0xff]
    %v1473 = vld [vmem:[%s5 + $0x2c0] sm:$0xff]
    %v1474 = vld [vmem:[%s5 + $0x2c8] sm:$0xff]
    %v1475 = vld [vmem:[%s5 + $0x2d0] sm:$0xff]
    %v1476 = vld [vmem:[%s5 + $0x2d8] sm:$0xff]
    %v1477 = vld [vmem:[%s5 + $0x2e0] sm:$0xff]
    %v1478 = vld [vmem:[%s5 + $0x2e8] sm:$0xff]
    %v1479 = vld [vmem:[%s5 + $0x2f0] sm:$0xff]
    %v1480 = vld [vmem:[%s5 + $0x2f8] sm:$0xff]
    %v1481 = vld [vmem:[%s5 + $0x300] sm:$0xff]
    %v1482 = vld [vmem:[%s5 + $0x308] sm:$0xff]
    %v1483 = vld [vmem:[%s5 + $0x310] sm:$0xff]
    %v1484 = vld [vmem:[%s5 + $0x318] sm:$0xff]
    %v1485 = vld [vmem:[%s5 + $0x320] sm:$0xff]
    %v1486 = vld [vmem:[%s5 + $0x328] sm:$0xff]
    %v1487 = vld [vmem:[%s5 + $0x330] sm:$0xff]
    %v1488 = vld [vmem:[%s5 + $0x338] sm:$0xff]
    %v1489 = vld [vmem:[%s5 + $0x340] sm:$0xff]
    %v1490 = vld [vmem:[%s5 + $0x348] sm:$0xff]
    %v1491 = vld [vmem:[%s5 + $0x350] sm:$0xff]
    %v1492 = vld [vmem:[%s5 + $0x358] sm:$0xff]
    %v1493 = vld [vmem:[%s5 + $0x360] sm:$0xff]
    %v1494 = vld [vmem:[%s5 + $0x368] sm:$0xff]
    %v1495 = vld [vmem:[%s5 + $0x370] sm:$0xff]
    %v1496 = vld [vmem:[%s5 + $0x378] sm:$0xff]
    %v1497 = vld [vmem:[%s5 + $0x380] sm:$0xff]
    %v1498 = vld [vmem:[%s5 + $0x388] sm:$0xff]
    %v1499 = vld [vmem:[%s5 + $0x390] sm:$0xff]
    %v1500 = vld [vmem:[%s5 + $0x398] sm:$0xff]
    %v1501 = vld [vmem:[%s5 + $0x3a0] sm:$0xff]
    %v1502 = vld [vmem:[%s5 + $0x3a8] sm:$0xff]
    %v1503 = vld [vmem:[%s5 + $0x3b0] sm:$0xff]
    %v1504 = vld [vmem:[%s5 + $0x3b8] sm:$0xff]
    %v1505 = vld [vmem:[%s5 + $0x3c0] sm:$0xff]
    %v1506 = vld [vmem:[%s5 + $0x3c8] sm:$0xff]
    %v1507 = vld [vmem:[%s5 + $0x3d0] sm:$0xff]
    %v1508 = vld [vmem:[%s5 + $0x3d8] sm:$0xff]
    %v1509 = vld [vmem:[%s5 + $0x3e0] sm:$0xff]
    %v1510 = vld [vmem:[%s5 + $0x3e8] sm:$0xff]
    %v1511 = vld [vmem:[%s5 + $0x3f0] sm:$0xff]
    %v1512 = vld [vmem:[%s5 + $0x3f8] sm:$0xff]
    %v1513 = vld [vmem:[%s5 + $0x400] sm:$0xff]
    %v1514 = vld [vmem:[%s5 + $0x408] sm:$0xff]
    %v1515 = vld [vmem:[%s5 + $0x410] sm:$0xff]
    %v1516 = vld [vmem:[%s5 + $0x418] sm:$0xff]
    %v1517 = vld [vmem:[%s5 + $0x420] sm:$0xff]
    %v1518 = vld [vmem:[%s5 + $0x428] sm:$0xff]
    %v1519 = vld [vmem:[%s5 + $0x430] sm:$0xff]
    %v1520 = vld [vmem:[%s5 + $0x438] sm:$0xff]
    %v1521 = vld [vmem:[%s5 + $0x440] sm:$0xff]
    %v1522 = vld [vmem:[%s5 + $0x448] sm:$0xff]
    %v1523 = vld [vmem:[%s5 + $0x450] sm:$0xff]
    %v1524 = vld [vmem:[%s5 + $0x458] sm:$0xff]
    %v1525 = vld [vmem:[%s5 + $0x460] sm:$0xff]
    %v1526 = vld [vmem:[%s5 + $0x468] sm:$0xff]
    %v1527 = vld [vmem:[%s5 + $0x470] sm:$0xff]
    %v1528 = vld [vmem:[%s5 + $0x478] sm:$0xff]
    %v1529 = vld [vmem:[%s5 + $0x480] sm:$0xff]
    %v1530 = vld [vmem:[%s5 + $0x488] sm:$0xff]
    %v1531 = vld [vmem:[%s5 + $0x490] sm:$0xff]
    %v1532 = vld [vmem:[%s5 + $0x498] sm:$0xff]
    %v1533 = vld [vmem:[%s5 + $0x4a0] sm:$0xff]
    %v1534 = vld [vmem:[%s5 + $0x4a8] sm:$0xff]
    %v1535 = vld [vmem:[%s5 + $0x4b0] sm:$0xff]
    %v1536 = vld [vmem:[%s5 + $0x4b8] sm:$0xff]
    %v1537 = vld [vmem:[%s5 + $0x4c0] sm:$0xff]
    %v1538 = vld [vmem:[%s5 + $0x4c8] sm:$0xff]
    %v1539 = vld [vmem:[%s5 + $0x4d0] sm:$0xff]
    %v1540 = vld [vmem:[%s5 + $0x4d8] sm:$0xff]
    %v1541 = vld [vmem:[%s5 + $0x4e0] sm:$0xff]
    %v1542 = vld [vmem:[%s5 + $0x4e8] sm:$0xff]
    %v1543 = vld [vmem:[%s5 + $0x4f0] sm:$0xff]
    %v1544 = vld [vmem:[%s5 + $0x4f8] sm:$0xff]
    %v1545 = vld [vmem:[%s5 + $0x500] sm:$0xff]
    %v1546 = vld [vmem:[%s5 + $0x508] sm:$0xff]
    %v1547 = vld [vmem:[%s5 + $0x510] sm:$0xff]
    %v1548 = vld [vmem:[%s5 + $0x518] sm:$0xff]
    %v1549 = vld [vmem:[%s5 + $0x520] sm:$0xff]
    %v1550 = vld [vmem:[%s5 + $0x528] sm:$0xff]
    %v1551 = vld [vmem:[%s5 + $0x530] sm:$0xff]
    %v1552 = vld [vmem:[%s5 + $0x538] sm:$0xff]
    %v1553 = vld [vmem:[%s5 + $0x540] sm:$0xff]
    %v1554 = vld [vmem:[%s5 + $0x548] sm:$0xff]
    %v1555 = vld [vmem:[%s5 + $0x550] sm:$0xff]
    %v1556 = vld [vmem:[%s5 + $0x558] sm:$0xff]
    %v1557 = vld [vmem:[%s5 + $0x560] sm:$0xff]
    %v1558 = vld [vmem:[%s5 + $0x568] sm:$0xff]
    %v1559 = vld [vmem:[%s5 + $0x570] sm:$0xff]
    %v1560 = vld [vmem:[%s5 + $0x578] sm:$0xff]
    %v1561 = vld [vmem:[%s5 + $0x580] sm:$0xff]
    %v1562 = vld [vmem:[%s5 + $0x588] sm:$0xff]
    %v1563 = vld [vmem:[%s5 + $0x590] sm:$0xff]
    %v1564 = vld [vmem:[%s5 + $0x598] sm:$0xff]
    %v1565 = vld [vmem:[%s5 + $0x5a0] sm:$0xff]
    %v1566 = vld [vmem:[%s5 + $0x5a8] sm:$0xff]
    %v1567 = vld [vmem:[%s5 + $0x5b0] sm:$0xff]
    %v1568 = vld [vmem:[%s5 + $0x5b8] sm:$0xff]
    %v1569 = vld [vmem:[%s5 + $0x5c0] sm:$0xff]
    %v1570 = vld [vmem:[%s5 + $0x5c8] sm:$0xff]
    %v1571 = vld [vmem:[%s5 + $0x5d0] sm:$0xff]
    %v1572 = vld [vmem:[%s5 + $0x5d8] sm:$0xff]
    %v1573 = vld [vmem:[%s5 + $0x5e0] sm:$0xff]
    %v1574 = vld [vmem:[%s5 + $0x5e8] sm:$0xff]
    %v1575 = vld [vmem:[%s5 + $0x5f0] sm:$0xff]
    %v1576 = vld [vmem:[%s5 + $0x5f8] sm:$0xff]
    %v1577 = vld [vmem:[%s5 + $0x600] sm:$0xff]
    %v1578 = vld [vmem:[%s5 + $0x608] sm:$0xff]
    %v1579 = vld [vmem:[%s5 + $0x610] sm:$0xff]
    %v1580 = vld [vmem:[%s5 + $0x618] sm:$0xff]
    %v1581 = vld [vmem:[%s5 + $0x620] sm:$0xff]
    %v1582 = vld [vmem:[%s5 + $0x628] sm:$0xff]
    %v1583 = vld [vmem:[%s5 + $0x630] sm:$0xff]
    %v1584 = vld [vmem:[%s5 + $0x638] sm:$0xff]
    %v1585 = vld [vmem:[%s5 + $0x640] sm:$0xff]
    %v1586 = vld [vmem:[%s5 + $0x648] sm:$0xff]
    %v1587 = vld [vmem:[%s5 + $0x650] sm:$0xff]
    %v1588 = vld [vmem:[%s5 + $0x658] sm:$0xff]
    %v1589 = vld [vmem:[%s5 + $0x660] sm:$0xff]
    %v1590 = vld [vmem:[%s5 + $0x668] sm:$0xff]
    %v1591 = vld [vmem:[%s5 + $0x670] sm:$0xff]
    %v1592 = vld [vmem:[%s5 + $0x678] sm:$0xff]
    %v1593 = vld [vmem:[%s5 + $0x680] sm:$0xff]
    %v1594 = vld [vmem:[%s5 + $0x688] sm:$0xff]
    %v1595 = vld [vmem:[%s5 + $0x690] sm:$0xff]
    %v1596 = vld [vmem:[%s5 + $0x698] sm:$0xff]
    %v1597 = vld [vmem:[%s5 + $0x6a0] sm:$0xff]
    %v1598 = vld [vmem:[%s5 + $0x6a8] sm:$0xff]
    %v1599 = vld [vmem:[%s5 + $0x6b0] sm:$0xff]
    %v1600 = vld [vmem:[%s5 + $0x6b8] sm:$0xff]
    %v1601 = vld [vmem:[%s5 + $0x6c0] sm:$0xff]
    %v1602 = vld [vmem:[%s5 + $0x6c8] sm:$0xff]
    %v1603 = vld [vmem:[%s5 + $0x6d0] sm:$0xff]
    %v1604 = vld [vmem:[%s5 + $0x6d8] sm:$0xff]
    %v1605 = vld [vmem:[%s5 + $0x6e0] sm:$0xff]
    %v1606 = vld [vmem:[%s5 + $0x6e8] sm:$0xff]
    %v1607 = vld [vmem:[%s5 + $0x6f0] sm:$0xff]
    %v1608 = vld [vmem:[%s5 + $0x6f8] sm:$0xff]
    %v1609 = vld [vmem:[%s5 + $0x700] sm:$0xff]
    %v1610 = vld [vmem:[%s5 + $0x708] sm:$0xff]
    %v1611 = vld [vmem:[%s5 + $0x710] sm:$0xff]
    %v1612 = vld [vmem:[%s5 + $0x718] sm:$0xff]
    %v1613 = vld [vmem:[%s5 + $0x720] sm:$0xff]
    %v1614 = vld [vmem:[%s5 + $0x728] sm:$0xff]
    %v1615 = vld [vmem:[%s5 + $0x730] sm:$0xff]
    %v1616 = vld [vmem:[%s5 + $0x738] sm:$0xff]
    %v1617 = vld [vmem:[%s5 + $0x740] sm:$0xff]
    %v1618 = vld [vmem:[%s5 + $0x748] sm:$0xff]
    %v1619 = vld [vmem:[%s5 + $0x750] sm:$0xff]
    %v1620 = vld [vmem:[%s5 + $0x758] sm:$0xff]
    %v1621 = vld [vmem:[%s5 + $0x760] sm:$0xff]
    %v1622 = vld [vmem:[%s5 + $0x768] sm:$0xff]
    %v1623 = vld [vmem:[%s5 + $0x770] sm:$0xff]
    %v1624 = vld [vmem:[%s5 + $0x778] sm:$0xff]
    %v1625 = vld [vmem:[%s5 + $0x780] sm:$0xff]
    %v1626 = vld [vmem:[%s5 + $0x788] sm:$0xff]
    %v1627 = vld [vmem:[%s5 + $0x790] sm:$0xff]
    %v1628 = vld [vmem:[%s5 + $0x798] sm:$0xff]
    %v1629 = vld [vmem:[%s5 + $0x7a0] sm:$0xff]
    %v1630 = vld [vmem:[%s5 + $0x7a8] sm:$0xff]
    %v1631 = vld [vmem:[%s5 + $0x7b0] sm:$0xff]
    %v1632 = vld [vmem:[%s5 + $0x7b8] sm:$0xff]
    %v1633 = vld [vmem:[%s5 + $0x7c0] sm:$0xff]
    %v1634 = vld [vmem:[%s5 + $0x7c8] sm:$0xff]
    %v1635 = vld [vmem:[%s5 + $0x7d0] sm:$0xff]
    %v1636 = vld [vmem:[%s5 + $0x7d8] sm:$0xff]
    %v1637 = vld [vmem:[%s5 + $0x7e0] sm:$0xff]
    %v1638 = vld [vmem:[%s5 + $0x7e8] sm:$0xff]
    %v1639 = vld [vmem:[%s5 + $0x7f0] sm:$0xff]
    %v1640 = vld [vmem:[%s5 + $0x7f8] sm:$0xff]
    %v1641 = vld [vmem:[%s5 + $0x800] sm:$0xff]
    %v1642 = vld [vmem:[%s5 + $0x808] sm:$0xff]
    %v1643 = vld [vmem:[%s5 + $0x810] sm:$0xff]
    %v1644 = vld [vmem:[%s5 + $0x818] sm:$0xff]
    %v1645 = vld [vmem:[%s5 + $0x820] sm:$0xff]
    %v1646 = vld [vmem:[%s5 + $0x828] sm:$0xff]
    %v1647 = vld [vmem:[%s5 + $0x830] sm:$0xff]
    %v1648 = vld [vmem:[%s5 + $0x838] sm:$0xff]
    %v1649 = vld [vmem:[%s5 + $0x840] sm:$0xff]
    %v1650 = vld [vmem:[%s5 + $0x848] sm:$0xff]
    %v1651 = vld [vmem:[%s5 + $0x850] sm:$0xff]
    %v1652 = vld [vmem:[%s5 + $0x858] sm:$0xff]
    %v1653 = vld [vmem:[%s5 + $0x860] sm:$0xff]
    %v1654 = vld [vmem:[%s5 + $0x868] sm:$0xff]
    %v1655 = vld [vmem:[%s5 + $0x870] sm:$0xff]
    %v1656 = vld [vmem:[%s5 + $0x878] sm:$0xff]
    %v1657 = vld [vmem:[%s5 + $0x880] sm:$0xff]
    %v1658 = vld [vmem:[%s5 + $0x888] sm:$0xff]
    %v1659 = vld [vmem:[%s5 + $0x890] sm:$0xff]
    %v1660 = vld [vmem:[%s5 + $0x898] sm:$0xff]
    %v1661 = vld [vmem:[%s5 + $0x8a0] sm:$0xff]
    %v1662 = vld [vmem:[%s5 + $0x8a8] sm:$0xff]
    %v1663 = vld [vmem:[%s5 + $0x8b0] sm:$0xff]
    %v1664 = vld [vmem:[%s5 + $0x8b8] sm:$0xff]
    %v1665 = vld [vmem:[%s5 + $0x8c0] sm:$0xff]
    %v1666 = vld [vmem:[%s5 + $0x8c8] sm:$0xff]
    %v1667 = vld [vmem:[%s5 + $0x8d0] sm:$0xff]
    %v1668 = vld [vmem:[%s5 + $0x8d8] sm:$0xff]
    %v1669 = vld [vmem:[%s5 + $0x8e0] sm:$0xff]
    %v1670 = vld [vmem:[%s5 + $0x8e8] sm:$0xff]
    %v1671 = vld [vmem:[%s5 + $0x8f0] sm:$0xff]
    %v1672 = vld [vmem:[%s5 + $0x8f8] sm:$0xff]
    %v1673 = vld [vmem:[%s5 + $0x900] sm:$0xff]
    %v1674 = vld [vmem:[%s5 + $0x908] sm:$0xff]
    %v1675 = vld [vmem:[%s5 + $0x910] sm:$0xff]
    %v1676 = vld [vmem:[%s5 + $0x918] sm:$0xff]
    %v1677 = vld [vmem:[%s5 + $0x920] sm:$0xff]
    %v1678 = vld [vmem:[%s5 + $0x928] sm:$0xff]
    %v1679 = vld [vmem:[%s5 + $0x930] sm:$0xff]
    %v1680 = vld [vmem:[%s5 + $0x938] sm:$0xff]
    %v1681 = vld [vmem:[%s5 + $0x940] sm:$0xff]
    %v1682 = vld [vmem:[%s5 + $0x948] sm:$0xff]
    %v1683 = vld [vmem:[%s5 + $0x950] sm:$0xff]
    %v1684 = vld [vmem:[%s5 + $0x958] sm:$0xff]
    %v1685 = vld [vmem:[%s5 + $0x960] sm:$0xff]
    %v1686 = vld [vmem:[%s5 + $0x968] sm:$0xff]
    %v1687 = vld [vmem:[%s5 + $0x970] sm:$0xff]
    %v1688 = vld [vmem:[%s5 + $0x978] sm:$0xff]
    %v1689 = vld [vmem:[%s5 + $0x980] sm:$0xff]
    %v1690 = vld [vmem:[%s5 + $0x988] sm:$0xff]
    %v1691 = vld [vmem:[%s5 + $0x990] sm:$0xff]
    %v1692 = vld [vmem:[%s5 + $0x998] sm:$0xff]
    %v1693 = vld [vmem:[%s5 + $0x9a0] sm:$0xff]
    %v1694 = vld [vmem:[%s5 + $0x9a8] sm:$0xff]
    %v1695 = vld [vmem:[%s5 + $0x9b0] sm:$0xff]
    %v1696 = vld [vmem:[%s5 + $0x9b8] sm:$0xff]
    %v1697 = vld [vmem:[%s5 + $0x9c0] sm:$0xff]
    %v1698 = vld [vmem:[%s5 + $0x9c8] sm:$0xff]
    %v1699 = vld [vmem:[%s5 + $0x9d0] sm:$0xff]
    %v1700 = vld [vmem:[%s5 + $0x9d8] sm:$0xff]
    %v1701 = vld [vmem:[%s5 + $0x9e0] sm:$0xff]
    %v1702 = vld [vmem:[%s5 + $0x9e8] sm:$0xff]
    %v1703 = vld [vmem:[%s5 + $0x9f0] sm:$0xff]
    %v1704 = vld [vmem:[%s5 + $0x9f8] sm:$0xff]
    %v1705 = vld [vmem:[%s5 + $0xa00] sm:$0xff]
    %v1706 = vld [vmem:[%s5 + $0xa08] sm:$0xff]
    %v1707 = vld [vmem:[%s5 + $0xa10] sm:$0xff]
    %v1708 = vld [vmem:[%s5 + $0xa18] sm:$0xff]
    %v1709 = vld [vmem:[%s5 + $0xa20] sm:$0xff]
    %v1710 = vld [vmem:[%s5 + $0xa28] sm:$0xff]
    %v1711 = vld [vmem:[%s5 + $0xa30] sm:$0xff]
    %v1712 = vld [vmem:[%s5 + $0xa38] sm:$0xff]
    %v1713 = vld [vmem:[%s5 + $0xa40] sm:$0xff]
    %v1714 = vld [vmem:[%s5 + $0xa48] sm:$0xff]
    %v1715 = vld [vmem:[%s5 + $0xa50] sm:$0xff]
    %v1716 = vld [vmem:[%s5 + $0xa58] sm:$0xff]
    %v1717 = vld [vmem:[%s5 + $0xa60] sm:$0xff]
    %v1718 = vld [vmem:[%s5 + $0xa68] sm:$0xff]
    %v1719 = vld [vmem:[%s5 + $0xa70] sm:$0xff]
    %v1720 = vld [vmem:[%s5 + $0xa78] sm:$0xff]
    %v1721 = vld [vmem:[%s5 + $0xa80] sm:$0xff]
    %v1722 = vld [vmem:[%s5 + $0xa88] sm:$0xff]
    %v1723 = vld [vmem:[%s5 + $0xa90] sm:$0xff]
    %v1724 = vld [vmem:[%s5 + $0xa98] sm:$0xff]
    %v1725 = vld [vmem:[%s5 + $0xaa0] sm:$0xff]
    %v1726 = vld [vmem:[%s5 + $0xaa8] sm:$0xff]
    %v1727 = vld [vmem:[%s5 + $0xab0] sm:$0xff]
    %v1728 = vld [vmem:[%s5 + $0xab8] sm:$0xff]
    %v1729 = vld [vmem:[%s5 + $0xac0] sm:$0xff]
    %v1730 = vld [vmem:[%s5 + $0xac8] sm:$0xff]
    %v1731 = vld [vmem:[%s5 + $0xad0] sm:$0xff]
    %v1732 = vld [vmem:[%s5 + $0xad8] sm:$0xff]
    %v1733 = vld [vmem:[%s5 + $0xae0] sm:$0xff]
    %v1734 = vld [vmem:[%s5 + $0xae8] sm:$0xff]
    %v1735 = vld [vmem:[%s5 + $0xaf0] sm:$0xff]
    %v1736 = vld [vmem:[%s5 + $0xaf8] sm:$0xff]
    %v1737 = vld [vmem:[%s5 + $0xb00] sm:$0xff]
    %v1738 = vld [vmem:[%s5 + $0xb08] sm:$0xff]
    %v1739 = vld [vmem:[%s5 + $0xb10] sm:$0xff]
    %v1740 = vld [vmem:[%s5 + $0xb18] sm:$0xff]
    %v1741 = vld [vmem:[%s5 + $0xb20] sm:$0xff]
    %v1742 = vld [vmem:[%s5 + $0xb28] sm:$0xff]
    %v1743 = vld [vmem:[%s5 + $0xb30] sm:$0xff]
    %v1744 = vld [vmem:[%s5 + $0xb38] sm:$0xff]
    %v1745 = vld [vmem:[%s5 + $0xb40] sm:$0xff]
    %v1746 = vld [vmem:[%s5 + $0xb48] sm:$0xff]
    %v1747 = vld [vmem:[%s5 + $0xb50] sm:$0xff]
    %v1748 = vld [vmem:[%s5 + $0xb58] sm:$0xff]
    %v1749 = vld [vmem:[%s5 + $0xb60] sm:$0xff]
    %v1750 = vld [vmem:[%s5 + $0xb68] sm:$0xff]
    %v1751 = vld [vmem:[%s5 + $0xb70] sm:$0xff]
    %v1752 = vld [vmem:[%s5 + $0xb78] sm:$0xff]
    %v1753 = vld [vmem:[%s5 + $0xb80] sm:$0xff]
    %v1754 = vld [vmem:[%s5 + $0xb88] sm:$0xff]
    %v1755 = vld [vmem:[%s5 + $0xb90] sm:$0xff]
    %v1756 = vld [vmem:[%s5 + $0xb98] sm:$0xff]
    %v1757 = vld [vmem:[%s5 + $0xba0] sm:$0xff]
    %v1758 = vld [vmem:[%s5 + $0xba8] sm:$0xff]
    %v1759 = vld [vmem:[%s5 + $0xbb0] sm:$0xff]
    %v1760 = vld [vmem:[%s5 + $0xbb8] sm:$0xff]
    %v1761 = vld [vmem:[%s5 + $0xbc0] sm:$0xff]
    %v1762 = vld [vmem:[%s5 + $0xbc8] sm:$0xff]
    %v1763 = vld [vmem:[%s5 + $0xbd0] sm:$0xff]
    %v1764 = vld [vmem:[%s5 + $0xbd8] sm:$0xff]
    %v1765 = vld [vmem:[%s5 + $0xbe0] sm:$0xff]
    %v1766 = vld [vmem:[%s5 + $0xbe8] sm:$0xff]
    %v1767 = vld [vmem:[%s5 + $0xbf0] sm:$0xff]
    %v1768 = vld [vmem:[%s5 + $0xbf8] sm:$0xff]
    %v1769 = vld [vmem:[%s5 + $0xc00] sm:$0xff]
    %v1770 = vld [vmem:[%s5 + $0xc08] sm:$0xff]
    %v1771 = vld [vmem:[%s5 + $0xc10] sm:$0xff]
    %v1772 = vld [vmem:[%s5 + $0xc18] sm:$0xff]
    %v1773 = vld [vmem:[%s5 + $0xc20] sm:$0xff]
    %v1774 = vld [vmem:[%s5 + $0xc28] sm:$0xff]
    %v1775 = vld [vmem:[%s5 + $0xc30] sm:$0xff]
    %v1776 = vld [vmem:[%s5 + $0xc38] sm:$0xff]
    %v1777 = vld [vmem:[%s5 + $0xc40] sm:$0xff]
    %v1778 = vld [vmem:[%s5 + $0xc48] sm:$0xff]
    %v1779 = vld [vmem:[%s5 + $0xc50] sm:$0xff]
    %v1780 = vld [vmem:[%s5 + $0xc58] sm:$0xff]
    %v1781 = vld [vmem:[%s5 + $0xc60] sm:$0xff]
    %v1782 = vld [vmem:[%s5 + $0xc68] sm:$0xff]
    %v1783 = vld [vmem:[%s5 + $0xc70] sm:$0xff]
    %v1784 = vld [vmem:[%s5 + $0xc78] sm:$0xff]
    %v1785 = vld [vmem:[%s5 + $0xc80] sm:$0xff]
    %v1786 = vld [vmem:[%s5 + $0xc88] sm:$0xff]
    %v1787 = vld [vmem:[%s5 + $0xc90] sm:$0xff]
    %v1788 = vld [vmem:[%s5 + $0xc98] sm:$0xff]
    %v1789 = vld [vmem:[%s5 + $0xca0] sm:$0xff]
    %v1790 = vld [vmem:[%s5 + $0xca8] sm:$0xff]
    %v1791 = vld [vmem:[%s5 + $0xcb0] sm:$0xff]
    %v1792 = vld [vmem:[%s5 + $0xcb8] sm:$0xff]
    %v1793 = vld [vmem:[%s5 + $0xcc0] sm:$0xff]
    %v1794 = vld [vmem:[%s5 + $0xcc8] sm:$0xff]
    %v1795 = vld [vmem:[%s5 + $0xcd0] sm:$0xff]
    %v1796 = vld [vmem:[%s5 + $0xcd8] sm:$0xff]
    %v1797 = vld [vmem:[%s5 + $0xce0] sm:$0xff]
    %v1798 = vld [vmem:[%s5 + $0xce8] sm:$0xff]
    %v1799 = vld [vmem:[%s5 + $0xcf0] sm:$0xff]
    %v1800 = vld [vmem:[%s5 + $0xcf8] sm:$0xff]
    %v1801 = vld [vmem:[%s5 + $0xd00] sm:$0xff]
    %v1802 = vld [vmem:[%s5 + $0xd08] sm:$0xff]
    %v1803 = vld [vmem:[%s5 + $0xd10] sm:$0xff]
    %v1804 = vld [vmem:[%s5 + $0xd18] sm:$0xff]
    %v1805 = vld [vmem:[%s5 + $0xd20] sm:$0xff]
    %v1806 = vld [vmem:[%s5 + $0xd28] sm:$0xff]
    %v1807 = vld [vmem:[%s5 + $0xd30] sm:$0xff]
    %v1808 = vld [vmem:[%s5 + $0xd38] sm:$0xff]
    %v1809 = vld [vmem:[%s5 + $0xd40] sm:$0xff]
    %v1810 = vld [vmem:[%s5 + $0xd48] sm:$0xff]
    %v1811 = vld [vmem:[%s5 + $0xd50] sm:$0xff]
    %v1812 = vld [vmem:[%s5 + $0xd58] sm:$0xff]
    %v1813 = vld [vmem:[%s5 + $0xd60] sm:$0xff]
    %v1814 = vld [vmem:[%s5 + $0xd68] sm:$0xff]
    %v1815 = vld [vmem:[%s5 + $0xd70] sm:$0xff]
    %v1816 = vld [vmem:[%s5 + $0xd78] sm:$0xff]
    %v1817 = vld [vmem:[%s5 + $0xd80] sm:$0xff]
    %v1818 = vld [vmem:[%s5 + $0xd88] sm:$0xff]
    %v1819 = vld [vmem:[%s5 + $0xd90] sm:$0xff]
    %v1820 = vld [vmem:[%s5 + $0xd98] sm:$0xff]
    %v1821 = vld [vmem:[%s5 + $0xda0] sm:$0xff]
    %v1822 = vld [vmem:[%s5 + $0xda8] sm:$0xff]
    %v1823 = vld [vmem:[%s5 + $0xdb0] sm:$0xff]
    %v1824 = vld [vmem:[%s5 + $0xdb8] sm:$0xff]
    %v1825 = vld [vmem:[%s5 + $0xdc0] sm:$0xff]
    %v1826 = vld [vmem:[%s5 + $0xdc8] sm:$0xff]
    %v1827 = vld [vmem:[%s5 + $0xdd0] sm:$0xff]
    %v1828 = vld [vmem:[%s5 + $0xdd8] sm:$0xff]
    %v1829 = vld [vmem:[%s5 + $0xde0] sm:$0xff]
    %v1830 = vld [vmem:[%s5 + $0xde8] sm:$0xff]
    %v1831 = vld [vmem:[%s5 + $0xdf0] sm:$0xff]
    %v1832 = vld [vmem:[%s5 + $0xdf8] sm:$0xff]
    %v1833 = vld [vmem:[%s5 + $0xe00] sm:$0xff]
    %v1834 = vld [vmem:[%s5 + $0xe08] sm:$0xff]
    %v1835 = vld [vmem:[%s5 + $0xe10] sm:$0xff]
    %v1836 = vld [vmem:[%s5 + $0xe18] sm:$0xff]
    %v1837 = vld [vmem:[%s5 + $0xe20] sm:$0xff]
    %v1838 = vld [vmem:[%s5 + $0xe28] sm:$0xff]
    %v1839 = vld [vmem:[%s5 + $0xe30] sm:$0xff]
    %v1840 = vld [vmem:[%s5 + $0xe38] sm:$0xff]
    %v1841 = vld [vmem:[%s5 + $0xe40] sm:$0xff]
    %v1842 = vld [vmem:[%s5 + $0xe48] sm:$0xff]
    %v1843 = vld [vmem:[%s5 + $0xe50] sm:$0xff]
    %v1844 = vld [vmem:[%s5 + $0xe58] sm:$0xff]
    %v1845 = vld [vmem:[%s5 + $0xe60] sm:$0xff]
    %v1846 = vld [vmem:[%s5 + $0xe68] sm:$0xff]
    %v1847 = vld [vmem:[%s5 + $0xe70] sm:$0xff]
    %v1848 = vld [vmem:[%s5 + $0xe78] sm:$0xff]
    %v1849 = vld [vmem:[%s5 + $0xe80] sm:$0xff]
    %v1850 = vld [vmem:[%s5 + $0xe88] sm:$0xff]
    %v1851 = vld [vmem:[%s5 + $0xe90] sm:$0xff]
    %v1852 = vld [vmem:[%s5 + $0xe98] sm:$0xff]
    %v1853 = vld [vmem:[%s5 + $0xea0] sm:$0xff]
    %v1854 = vld [vmem:[%s5 + $0xea8] sm:$0xff]
    %v1855 = vld [vmem:[%s5 + $0xeb0] sm:$0xff]
    %v1856 = vld [vmem:[%s5 + $0xeb8] sm:$0xff]
    %v1857 = vld [vmem:[%s5 + $0xec0] sm:$0xff]
    %v1858 = vld [vmem:[%s5 + $0xec8] sm:$0xff]
    %v1859 = vld [vmem:[%s5 + $0xed0] sm:$0xff]
    %v1860 = vld [vmem:[%s5 + $0xed8] sm:$0xff]
    %v1861 = vld [vmem:[%s5 + $0xee0] sm:$0xff]
    %v1862 = vld [vmem:[%s5 + $0xee8] sm:$0xff]
    %v1863 = vld [vmem:[%s5 + $0xef0] sm:$0xff]
    %v1864 = vld [vmem:[%s5 + $0xef8] sm:$0xff]
    %v1865 = vld [vmem:[%s5 + $0xf00] sm:$0xff]
    %v1866 = vld [vmem:[%s5 + $0xf08] sm:$0xff]
    %v1867 = vld [vmem:[%s5 + $0xf10] sm:$0xff]
    %v1868 = vld [vmem:[%s5 + $0xf18] sm:$0xff]
    %v1869 = vld [vmem:[%s5 + $0xf20] sm:$0xff]
    %v1870 = vld [vmem:[%s5 + $0xf28] sm:$0xff]
    %v1871 = vld [vmem:[%s5 + $0xf30] sm:$0xff]
    %v1872 = vld [vmem:[%s5 + $0xf38] sm:$0xff]
    %v1873 = vld [vmem:[%s5 + $0xf40] sm:$0xff]
    %v1874 = vld [vmem:[%s5 + $0xf48] sm:$0xff]
    %v1875 = vld [vmem:[%s5 + $0xf50] sm:$0xff]
    %v1876 = vld [vmem:[%s5 + $0xf58] sm:$0xff]
    %v1877 = vld [vmem:[%s5 + $0xf60] sm:$0xff]
    %v1878 = vld [vmem:[%s5 + $0xf68] sm:$0xff]
    %v1879 = vld [vmem:[%s5 + $0xf70] sm:$0xff]
    %v1880 = vld [vmem:[%s5 + $0xf78] sm:$0xff]
    %v1881 = vld [vmem:[%s5 + $0xf80] sm:$0xff]
    %v1882 = vld [vmem:[%s5 + $0xf88] sm:$0xff]
    %v1883 = vld [vmem:[%s5 + $0xf90] sm:$0xff]
    %v1884 = vld [vmem:[%s5 + $0xf98] sm:$0xff]
    %v1885 = vld [vmem:[%s5 + $0xfa0] sm:$0xff]
    %v1886 = vld [vmem:[%s5 + $0xfa8] sm:$0xff]
    %v1887 = vld [vmem:[%s5 + $0xfb0] sm:$0xff]
    %v1888 = vld [vmem:[%s5 + $0xfb8] sm:$0xff]
    %v1889 = vld [vmem:[%s5 + $0xfc0] sm:$0xff]
    %v1890 = vld [vmem:[%s5 + $0xfc8] sm:$0xff]
    %v1891 = vld [vmem:[%s5 + $0xfd0] sm:$0xff]
    %v1892 = vld [vmem:[%s5 + $0xfd8] sm:$0xff]
    %v1893 = vld [vmem:[%s5 + $0xfe0] sm:$0xff]
    %v1894 = vld [vmem:[%s5 + $0xfe8] sm:$0xff]
    %v1895 = vld [vmem:[%s5 + $0xff0] sm:$0xff]
    %v1896 = vld [vmem:[%s5 + $0xff8] sm:$0xff]
    %v1897 = vld [vmem:[%s6] sm:$0xff]
    %v1899 = vlaneseq
    %v1900 = vshrl.u32 %v1899, 7
    %v1901 = vsub.s32 0, %v1900
    %v1902 = vrot.slane %v1897, %v1901
    %v1903 = vlaneseq
    %v1904 = vshrl.u32 %v1903, 7
    %v1905 = vsub.s32 1, %v1904
    %v1906 = vrot.slane %v1897, %v1905
    %v1907 = vlaneseq
    %v1908 = vshrl.u32 %v1907, 7
    %v1909 = vsub.s32 2, %v1908
    %v1910 = vrot.slane %v1897, %v1909
    %v1911 = vlaneseq
    %v1912 = vshrl.u32 %v1911, 7
    %v1913 = vsub.s32 3, %v1912
    %v1914 = vrot.slane %v1897, %v1913
    %v1915 = vlaneseq
    %v1916 = vshrl.u32 %v1915, 7
    %v1917 = vsub.s32 4, %v1916
    %v1918 = vrot.slane %v1897, %v1917
    %v1919 = vlaneseq
    %v1920 = vshrl.u32 %v1919, 7
    %v1921 = vsub.s32 5, %v1920
    %v1922 = vrot.slane %v1897, %v1921
    %v1923 = vlaneseq
    %v1924 = vshrl.u32 %v1923, 7
    %v1925 = vsub.s32 6, %v1924
    %v1926 = vrot.slane %v1897, %v1925
    %v1927 = vlaneseq
    %v1928 = vshrl.u32 %v1927, 7
    %v1929 = vsub.s32 7, %v1928
    %v1930 = vrot.slane %v1897, %v1929
    %v2451 = vunpack.c.l.b16 %v1385
    %v2452 = vunpack.c.h.b16 %v1385
    %v2453 = vunpack.c.l.b16 %v1386
    %v2454 = vunpack.c.h.b16 %v1386
    %v2455 = vunpack.c.l.b16 %v1387
    %v2456 = vunpack.c.h.b16 %v1387
    %v2457 = vunpack.c.l.b16 %v1388
    %v2458 = vunpack.c.h.b16 %v1388
    %v2459 = vunpack.c.l.b16 %v1389
    %v2460 = vunpack.c.h.b16 %v1389
    %v2461 = vunpack.c.l.b16 %v1390
    %v2462 = vunpack.c.h.b16 %v1390
    %v2463 = vunpack.c.l.b16 %v1391
    %v2464 = vunpack.c.h.b16 %v1391
    %v2465 = vunpack.c.l.b16 %v1392
    %v2466 = vunpack.c.h.b16 %v1392
    %v2467 = vunpack.c.l.b16 %v1393
    %v2468 = vunpack.c.h.b16 %v1393
    %v2469 = vunpack.c.l.b16 %v1394
    %v2470 = vunpack.c.h.b16 %v1394
    %v2471 = vunpack.c.l.b16 %v1395
    %v2472 = vunpack.c.h.b16 %v1395
    %v2473 = vunpack.c.l.b16 %v1396
    %v2474 = vunpack.c.h.b16 %v1396
    %v2475 = vunpack.c.l.b16 %v1397
    %v2476 = vunpack.c.h.b16 %v1397
    %v2477 = vunpack.c.l.b16 %v1398
    %v2478 = vunpack.c.h.b16 %v1398
    %v2479 = vunpack.c.l.b16 %v1399
    %v2480 = vunpack.c.h.b16 %v1399
    %v2481 = vunpack.c.l.b16 %v1400
    %v2482 = vunpack.c.h.b16 %v1400
    %v2483 = vunpack.c.l.b16 %v1401
    %v2484 = vunpack.c.h.b16 %v1401
    %v2485 = vunpack.c.l.b16 %v1402
    %v2486 = vunpack.c.h.b16 %v1402
    %v2487 = vunpack.c.l.b16 %v1403
    %v2488 = vunpack.c.h.b16 %v1403
    %v2489 = vunpack.c.l.b16 %v1404
    %v2490 = vunpack.c.h.b16 %v1404
    %v2491 = vunpack.c.l.b16 %v1405
    %v2492 = vunpack.c.h.b16 %v1405
    %v2493 = vunpack.c.l.b16 %v1406
    %v2494 = vunpack.c.h.b16 %v1406
    %v2495 = vunpack.c.l.b16 %v1407
    %v2496 = vunpack.c.h.b16 %v1407
    %v2497 = vunpack.c.l.b16 %v1408
    %v2498 = vunpack.c.h.b16 %v1408
    %v2499 = vunpack.c.l.b16 %v1409
    %v2500 = vunpack.c.h.b16 %v1409
    %v2501 = vunpack.c.l.b16 %v1410
    %v2502 = vunpack.c.h.b16 %v1410
    %v2503 = vunpack.c.l.b16 %v1411
    %v2504 = vunpack.c.h.b16 %v1411
    %v2505 = vunpack.c.l.b16 %v1412
    %v2506 = vunpack.c.h.b16 %v1412
    %v2507 = vunpack.c.l.b16 %v1413
    %v2508 = vunpack.c.h.b16 %v1413
    %v2509 = vunpack.c.l.b16 %v1414
    %v2510 = vunpack.c.h.b16 %v1414
    %v2511 = vunpack.c.l.b16 %v1415
    %v2512 = vunpack.c.h.b16 %v1415
    %v2513 = vunpack.c.l.b16 %v1416
    %v2514 = vunpack.c.h.b16 %v1416
    %v2515 = vunpack.c.l.b16 %v1417
    %v2516 = vunpack.c.h.b16 %v1417
    %v2517 = vunpack.c.l.b16 %v1418
    %v2518 = vunpack.c.h.b16 %v1418
    %v2519 = vunpack.c.l.b16 %v1419
    %v2520 = vunpack.c.h.b16 %v1419
    %v2521 = vunpack.c.l.b16 %v1420
    %v2522 = vunpack.c.h.b16 %v1420
    %v2523 = vunpack.c.l.b16 %v1421
    %v2524 = vunpack.c.h.b16 %v1421
    %v2525 = vunpack.c.l.b16 %v1422
    %v2526 = vunpack.c.h.b16 %v1422
    %v2527 = vunpack.c.l.b16 %v1423
    %v2528 = vunpack.c.h.b16 %v1423
    %v2529 = vunpack.c.l.b16 %v1424
    %v2530 = vunpack.c.h.b16 %v1424
    %v2531 = vunpack.c.l.b16 %v1425
    %v2532 = vunpack.c.h.b16 %v1425
    %v2533 = vunpack.c.l.b16 %v1426
    %v2534 = vunpack.c.h.b16 %v1426
    %v2535 = vunpack.c.l.b16 %v1427
    %v2536 = vunpack.c.h.b16 %v1427
    %v2537 = vunpack.c.l.b16 %v1428
    %v2538 = vunpack.c.h.b16 %v1428
    %v2539 = vunpack.c.l.b16 %v1429
    %v2540 = vunpack.c.h.b16 %v1429
    %v2541 = vunpack.c.l.b16 %v1430
    %v2542 = vunpack.c.h.b16 %v1430
    %v2543 = vunpack.c.l.b16 %v1431
    %v2544 = vunpack.c.h.b16 %v1431
    %v2545 = vunpack.c.l.b16 %v1432
    %v2546 = vunpack.c.h.b16 %v1432
    %v2547 = vunpack.c.l.b16 %v1433
    %v2548 = vunpack.c.h.b16 %v1433
    %v2549 = vunpack.c.l.b16 %v1434
    %v2550 = vunpack.c.h.b16 %v1434
    %v2551 = vunpack.c.l.b16 %v1435
    %v2552 = vunpack.c.h.b16 %v1435
    %v2553 = vunpack.c.l.b16 %v1436
    %v2554 = vunpack.c.h.b16 %v1436
    %v2555 = vunpack.c.l.b16 %v1437
    %v2556 = vunpack.c.h.b16 %v1437
    %v2557 = vunpack.c.l.b16 %v1438
    %v2558 = vunpack.c.h.b16 %v1438
    %v2559 = vunpack.c.l.b16 %v1439
    %v2560 = vunpack.c.h.b16 %v1439
    %v2561 = vunpack.c.l.b16 %v1440
    %v2562 = vunpack.c.h.b16 %v1440
    %v2563 = vunpack.c.l.b16 %v1441
    %v2564 = vunpack.c.h.b16 %v1441
    %v2565 = vunpack.c.l.b16 %v1442
    %v2566 = vunpack.c.h.b16 %v1442
    %v2567 = vunpack.c.l.b16 %v1443
    %v2568 = vunpack.c.h.b16 %v1443
    %v2569 = vunpack.c.l.b16 %v1444
    %v2570 = vunpack.c.h.b16 %v1444
    %v2571 = vunpack.c.l.b16 %v1445
    %v2572 = vunpack.c.h.b16 %v1445
    %v2573 = vunpack.c.l.b16 %v1446
    %v2574 = vunpack.c.h.b16 %v1446
    %v2575 = vunpack.c.l.b16 %v1447
    %v2576 = vunpack.c.h.b16 %v1447
    %v2577 = vunpack.c.l.b16 %v1448
    %v2578 = vunpack.c.h.b16 %v1448
    %v2579 = vunpack.c.l.b16 %v1449
    %v2580 = vunpack.c.h.b16 %v1449
    %v2581 = vunpack.c.l.b16 %v1450
    %v2582 = vunpack.c.h.b16 %v1450
    %v2583 = vunpack.c.l.b16 %v1451
    %v2584 = vunpack.c.h.b16 %v1451
    %v2585 = vunpack.c.l.b16 %v1452
    %v2586 = vunpack.c.h.b16 %v1452
    %v2587 = vunpack.c.l.b16 %v1453
    %v2588 = vunpack.c.h.b16 %v1453
    %v2589 = vunpack.c.l.b16 %v1454
    %v2590 = vunpack.c.h.b16 %v1454
    %v2591 = vunpack.c.l.b16 %v1455
    %v2592 = vunpack.c.h.b16 %v1455
    %v2593 = vunpack.c.l.b16 %v1456
    %v2594 = vunpack.c.h.b16 %v1456
    %v2595 = vunpack.c.l.b16 %v1457
    %v2596 = vunpack.c.h.b16 %v1457
    %v2597 = vunpack.c.l.b16 %v1458
    %v2598 = vunpack.c.h.b16 %v1458
    %v2599 = vunpack.c.l.b16 %v1459
    %v2600 = vunpack.c.h.b16 %v1459
    %v2601 = vunpack.c.l.b16 %v1460
    %v2602 = vunpack.c.h.b16 %v1460
    %v2603 = vunpack.c.l.b16 %v1461
    %v2604 = vunpack.c.h.b16 %v1461
    %v2605 = vunpack.c.l.b16 %v1462
    %v2606 = vunpack.c.h.b16 %v1462
    %v2607 = vunpack.c.l.b16 %v1463
    %v2608 = vunpack.c.h.b16 %v1463
    %v2609 = vunpack.c.l.b16 %v1464
    %v2610 = vunpack.c.h.b16 %v1464
    %v2611 = vunpack.c.l.b16 %v1465
    %v2612 = vunpack.c.h.b16 %v1465
    %v2613 = vunpack.c.l.b16 %v1466
    %v2614 = vunpack.c.h.b16 %v1466
    %v2615 = vunpack.c.l.b16 %v1467
    %v2616 = vunpack.c.h.b16 %v1467
    %v2617 = vunpack.c.l.b16 %v1468
    %v2618 = vunpack.c.h.b16 %v1468
    %v2619 = vunpack.c.l.b16 %v1469
    %v2620 = vunpack.c.h.b16 %v1469
    %v2621 = vunpack.c.l.b16 %v1470
    %v2622 = vunpack.c.h.b16 %v1470
    %v2623 = vunpack.c.l.b16 %v1471
    %v2624 = vunpack.c.h.b16 %v1471
    %v2625 = vunpack.c.l.b16 %v1472
    %v2626 = vunpack.c.h.b16 %v1472
    %v2627 = vunpack.c.l.b16 %v1473
    %v2628 = vunpack.c.h.b16 %v1473
    %v2629 = vunpack.c.l.b16 %v1474
    %v2630 = vunpack.c.h.b16 %v1474
    %v2631 = vunpack.c.l.b16 %v1475
    %v2632 = vunpack.c.h.b16 %v1475
    %v2633 = vunpack.c.l.b16 %v1476
    %v2634 = vunpack.c.h.b16 %v1476
    %v2635 = vunpack.c.l.b16 %v1477
    %v2636 = vunpack.c.h.b16 %v1477
    %v2637 = vunpack.c.l.b16 %v1478
    %v2638 = vunpack.c.h.b16 %v1478
    %v2639 = vunpack.c.l.b16 %v1479
    %v2640 = vunpack.c.h.b16 %v1479
    %v2641 = vunpack.c.l.b16 %v1480
    %v2642 = vunpack.c.h.b16 %v1480
    %v2643 = vunpack.c.l.b16 %v1481
    %v2644 = vunpack.c.h.b16 %v1481
    %v2645 = vunpack.c.l.b16 %v1482
    %v2646 = vunpack.c.h.b16 %v1482
    %v2647 = vunpack.c.l.b16 %v1483
    %v2648 = vunpack.c.h.b16 %v1483
    %v2649 = vunpack.c.l.b16 %v1484
    %v2650 = vunpack.c.h.b16 %v1484
    %v2651 = vunpack.c.l.b16 %v1485
    %v2652 = vunpack.c.h.b16 %v1485
    %v2653 = vunpack.c.l.b16 %v1486
    %v2654 = vunpack.c.h.b16 %v1486
    %v2655 = vunpack.c.l.b16 %v1487
    %v2656 = vunpack.c.h.b16 %v1487
    %v2657 = vunpack.c.l.b16 %v1488
    %v2658 = vunpack.c.h.b16 %v1488
    %v2659 = vunpack.c.l.b16 %v1489
    %v2660 = vunpack.c.h.b16 %v1489
    %v2661 = vunpack.c.l.b16 %v1490
    %v2662 = vunpack.c.h.b16 %v1490
    %v2663 = vunpack.c.l.b16 %v1491
    %v2664 = vunpack.c.h.b16 %v1491
    %v2665 = vunpack.c.l.b16 %v1492
    %v2666 = vunpack.c.h.b16 %v1492
    %v2667 = vunpack.c.l.b16 %v1493
    %v2668 = vunpack.c.h.b16 %v1493
    %v2669 = vunpack.c.l.b16 %v1494
    %v2670 = vunpack.c.h.b16 %v1494
    %v2671 = vunpack.c.l.b16 %v1495
    %v2672 = vunpack.c.h.b16 %v1495
    %v2673 = vunpack.c.l.b16 %v1496
    %v2674 = vunpack.c.h.b16 %v1496
    %v2675 = vunpack.c.l.b16 %v1497
    %v2676 = vunpack.c.h.b16 %v1497
    %v2677 = vunpack.c.l.b16 %v1498
    %v2678 = vunpack.c.h.b16 %v1498
    %v2679 = vunpack.c.l.b16 %v1499
    %v2680 = vunpack.c.h.b16 %v1499
    %v2681 = vunpack.c.l.b16 %v1500
    %v2682 = vunpack.c.h.b16 %v1500
    %v2683 = vunpack.c.l.b16 %v1501
    %v2684 = vunpack.c.h.b16 %v1501
    %v2685 = vunpack.c.l.b16 %v1502
    %v2686 = vunpack.c.h.b16 %v1502
    %v2687 = vunpack.c.l.b16 %v1503
    %v2688 = vunpack.c.h.b16 %v1503
    %v2689 = vunpack.c.l.b16 %v1504
    %v2690 = vunpack.c.h.b16 %v1504
    %v2691 = vunpack.c.l.b16 %v1505
    %v2692 = vunpack.c.h.b16 %v1505
    %v2693 = vunpack.c.l.b16 %v1506
    %v2694 = vunpack.c.h.b16 %v1506
    %v2695 = vunpack.c.l.b16 %v1507
    %v2696 = vunpack.c.h.b16 %v1507
    %v2697 = vunpack.c.l.b16 %v1508
    %v2698 = vunpack.c.h.b16 %v1508
    %v2699 = vunpack.c.l.b16 %v1509
    %v2700 = vunpack.c.h.b16 %v1509
    %v2701 = vunpack.c.l.b16 %v1510
    %v2702 = vunpack.c.h.b16 %v1510
    %v2703 = vunpack.c.l.b16 %v1511
    %v2704 = vunpack.c.h.b16 %v1511
    %v2705 = vunpack.c.l.b16 %v1512
    %v2706 = vunpack.c.h.b16 %v1512
    %v2707 = vunpack.c.l.b16 %v1513
    %v2708 = vunpack.c.h.b16 %v1513
    %v2709 = vunpack.c.l.b16 %v1514
    %v2710 = vunpack.c.h.b16 %v1514
    %v2711 = vunpack.c.l.b16 %v1515
    %v2712 = vunpack.c.h.b16 %v1515
    %v2713 = vunpack.c.l.b16 %v1516
    %v2714 = vunpack.c.h.b16 %v1516
    %v2715 = vunpack.c.l.b16 %v1517
    %v2716 = vunpack.c.h.b16 %v1517
    %v2717 = vunpack.c.l.b16 %v1518
    %v2718 = vunpack.c.h.b16 %v1518
    %v2719 = vunpack.c.l.b16 %v1519
    %v2720 = vunpack.c.h.b16 %v1519
    %v2721 = vunpack.c.l.b16 %v1520
    %v2722 = vunpack.c.h.b16 %v1520
    %v2723 = vunpack.c.l.b16 %v1521
    %v2724 = vunpack.c.h.b16 %v1521
    %v2725 = vunpack.c.l.b16 %v1522
    %v2726 = vunpack.c.h.b16 %v1522
    %v2727 = vunpack.c.l.b16 %v1523
    %v2728 = vunpack.c.h.b16 %v1523
    %v2729 = vunpack.c.l.b16 %v1524
    %v2730 = vunpack.c.h.b16 %v1524
    %v2731 = vunpack.c.l.b16 %v1525
    %v2732 = vunpack.c.h.b16 %v1525
    %v2733 = vunpack.c.l.b16 %v1526
    %v2734 = vunpack.c.h.b16 %v1526
    %v2735 = vunpack.c.l.b16 %v1527
    %v2736 = vunpack.c.h.b16 %v1527
    %v2737 = vunpack.c.l.b16 %v1528
    %v2738 = vunpack.c.h.b16 %v1528
    %v2739 = vunpack.c.l.b16 %v1529
    %v2740 = vunpack.c.h.b16 %v1529
    %v2741 = vunpack.c.l.b16 %v1530
    %v2742 = vunpack.c.h.b16 %v1530
    %v2743 = vunpack.c.l.b16 %v1531
    %v2744 = vunpack.c.h.b16 %v1531
    %v2745 = vunpack.c.l.b16 %v1532
    %v2746 = vunpack.c.h.b16 %v1532
    %v2747 = vunpack.c.l.b16 %v1533
    %v2748 = vunpack.c.h.b16 %v1533
    %v2749 = vunpack.c.l.b16 %v1534
    %v2750 = vunpack.c.h.b16 %v1534
    %v2751 = vunpack.c.l.b16 %v1535
    %v2752 = vunpack.c.h.b16 %v1535
    %v2753 = vunpack.c.l.b16 %v1536
    %v2754 = vunpack.c.h.b16 %v1536
    %v2755 = vunpack.c.l.b16 %v1537
    %v2756 = vunpack.c.h.b16 %v1537
    %v2757 = vunpack.c.l.b16 %v1538
    %v2758 = vunpack.c.h.b16 %v1538
    %v2759 = vunpack.c.l.b16 %v1539
    %v2760 = vunpack.c.h.b16 %v1539
    %v2761 = vunpack.c.l.b16 %v1540
    %v2762 = vunpack.c.h.b16 %v1540
    %v2763 = vunpack.c.l.b16 %v1541
    %v2764 = vunpack.c.h.b16 %v1541
    %v2765 = vunpack.c.l.b16 %v1542
    %v2766 = vunpack.c.h.b16 %v1542
    %v2767 = vunpack.c.l.b16 %v1543
    %v2768 = vunpack.c.h.b16 %v1543
    %v2769 = vunpack.c.l.b16 %v1544
    %v2770 = vunpack.c.h.b16 %v1544
    %v2771 = vunpack.c.l.b16 %v1545
    %v2772 = vunpack.c.h.b16 %v1545
    %v2773 = vunpack.c.l.b16 %v1546
    %v2774 = vunpack.c.h.b16 %v1546
    %v2775 = vunpack.c.l.b16 %v1547
    %v2776 = vunpack.c.h.b16 %v1547
    %v2777 = vunpack.c.l.b16 %v1548
    %v2778 = vunpack.c.h.b16 %v1548
    %v2779 = vunpack.c.l.b16 %v1549
    %v2780 = vunpack.c.h.b16 %v1549
    %v2781 = vunpack.c.l.b16 %v1550
    %v2782 = vunpack.c.h.b16 %v1550
    %v2783 = vunpack.c.l.b16 %v1551
    %v2784 = vunpack.c.h.b16 %v1551
    %v2785 = vunpack.c.l.b16 %v1552
    %v2786 = vunpack.c.h.b16 %v1552
    %v2787 = vunpack.c.l.b16 %v1553
    %v2788 = vunpack.c.h.b16 %v1553
    %v2789 = vunpack.c.l.b16 %v1554
    %v2790 = vunpack.c.h.b16 %v1554
    %v2791 = vunpack.c.l.b16 %v1555
    %v2792 = vunpack.c.h.b16 %v1555
    %v2793 = vunpack.c.l.b16 %v1556
    %v2794 = vunpack.c.h.b16 %v1556
    %v2795 = vunpack.c.l.b16 %v1557
    %v2796 = vunpack.c.h.b16 %v1557
    %v2797 = vunpack.c.l.b16 %v1558
    %v2798 = vunpack.c.h.b16 %v1558
    %v2799 = vunpack.c.l.b16 %v1559
    %v2800 = vunpack.c.h.b16 %v1559
    %v2801 = vunpack.c.l.b16 %v1560
    %v2802 = vunpack.c.h.b16 %v1560
    %v2803 = vunpack.c.l.b16 %v1561
    %v2804 = vunpack.c.h.b16 %v1561
    %v2805 = vunpack.c.l.b16 %v1562
    %v2806 = vunpack.c.h.b16 %v1562
    %v2807 = vunpack.c.l.b16 %v1563
    %v2808 = vunpack.c.h.b16 %v1563
    %v2809 = vunpack.c.l.b16 %v1564
    %v2810 = vunpack.c.h.b16 %v1564
    %v2811 = vunpack.c.l.b16 %v1565
    %v2812 = vunpack.c.h.b16 %v1565
    %v2813 = vunpack.c.l.b16 %v1566
    %v2814 = vunpack.c.h.b16 %v1566
    %v2815 = vunpack.c.l.b16 %v1567
    %v2816 = vunpack.c.h.b16 %v1567
    %v2817 = vunpack.c.l.b16 %v1568
    %v2818 = vunpack.c.h.b16 %v1568
    %v2819 = vunpack.c.l.b16 %v1569
    %v2820 = vunpack.c.h.b16 %v1569
    %v2821 = vunpack.c.l.b16 %v1570
    %v2822 = vunpack.c.h.b16 %v1570
    %v2823 = vunpack.c.l.b16 %v1571
    %v2824 = vunpack.c.h.b16 %v1571
    %v2825 = vunpack.c.l.b16 %v1572
    %v2826 = vunpack.c.h.b16 %v1572
    %v2827 = vunpack.c.l.b16 %v1573
    %v2828 = vunpack.c.h.b16 %v1573
    %v2829 = vunpack.c.l.b16 %v1574
    %v2830 = vunpack.c.h.b16 %v1574
    %v2831 = vunpack.c.l.b16 %v1575
    %v2832 = vunpack.c.h.b16 %v1575
    %v2833 = vunpack.c.l.b16 %v1576
    %v2834 = vunpack.c.h.b16 %v1576
    %v2835 = vunpack.c.l.b16 %v1577
    %v2836 = vunpack.c.h.b16 %v1577
    %v2837 = vunpack.c.l.b16 %v1578
    %v2838 = vunpack.c.h.b16 %v1578
    %v2839 = vunpack.c.l.b16 %v1579
    %v2840 = vunpack.c.h.b16 %v1579
    %v2841 = vunpack.c.l.b16 %v1580
    %v2842 = vunpack.c.h.b16 %v1580
    %v2843 = vunpack.c.l.b16 %v1581
    %v2844 = vunpack.c.h.b16 %v1581
    %v2845 = vunpack.c.l.b16 %v1582
    %v2846 = vunpack.c.h.b16 %v1582
    %v2847 = vunpack.c.l.b16 %v1583
    %v2848 = vunpack.c.h.b16 %v1583
    %v2849 = vunpack.c.l.b16 %v1584
    %v2850 = vunpack.c.h.b16 %v1584
    %v2851 = vunpack.c.l.b16 %v1585
    %v2852 = vunpack.c.h.b16 %v1585
    %v2853 = vunpack.c.l.b16 %v1586
    %v2854 = vunpack.c.h.b16 %v1586
    %v2855 = vunpack.c.l.b16 %v1587
    %v2856 = vunpack.c.h.b16 %v1587
    %v2857 = vunpack.c.l.b16 %v1588
    %v2858 = vunpack.c.h.b16 %v1588
    %v2859 = vunpack.c.l.b16 %v1589
    %v2860 = vunpack.c.h.b16 %v1589
    %v2861 = vunpack.c.l.b16 %v1590
    %v2862 = vunpack.c.h.b16 %v1590
    %v2863 = vunpack.c.l.b16 %v1591
    %v2864 = vunpack.c.h.b16 %v1591
    %v2865 = vunpack.c.l.b16 %v1592
    %v2866 = vunpack.c.h.b16 %v1592
    %v2867 = vunpack.c.l.b16 %v1593
    %v2868 = vunpack.c.h.b16 %v1593
    %v2869 = vunpack.c.l.b16 %v1594
    %v2870 = vunpack.c.h.b16 %v1594
    %v2871 = vunpack.c.l.b16 %v1595
    %v2872 = vunpack.c.h.b16 %v1595
    %v2873 = vunpack.c.l.b16 %v1596
    %v2874 = vunpack.c.h.b16 %v1596
    %v2875 = vunpack.c.l.b16 %v1597
    %v2876 = vunpack.c.h.b16 %v1597
    %v2877 = vunpack.c.l.b16 %v1598
    %v2878 = vunpack.c.h.b16 %v1598
    %v2879 = vunpack.c.l.b16 %v1599
    %v2880 = vunpack.c.h.b16 %v1599
    %v2881 = vunpack.c.l.b16 %v1600
    %v2882 = vunpack.c.h.b16 %v1600
    %v2883 = vunpack.c.l.b16 %v1601
    %v2884 = vunpack.c.h.b16 %v1601
    %v2885 = vunpack.c.l.b16 %v1602
    %v2886 = vunpack.c.h.b16 %v1602
    %v2887 = vunpack.c.l.b16 %v1603
    %v2888 = vunpack.c.h.b16 %v1603
    %v2889 = vunpack.c.l.b16 %v1604
    %v2890 = vunpack.c.h.b16 %v1604
    %v2891 = vunpack.c.l.b16 %v1605
    %v2892 = vunpack.c.h.b16 %v1605
    %v2893 = vunpack.c.l.b16 %v1606
    %v2894 = vunpack.c.h.b16 %v1606
    %v2895 = vunpack.c.l.b16 %v1607
    %v2896 = vunpack.c.h.b16 %v1607
    %v2897 = vunpack.c.l.b16 %v1608
    %v2898 = vunpack.c.h.b16 %v1608
    %v2899 = vunpack.c.l.b16 %v1609
    %v2900 = vunpack.c.h.b16 %v1609
    %v2901 = vunpack.c.l.b16 %v1610
    %v2902 = vunpack.c.h.b16 %v1610
    %v2903 = vunpack.c.l.b16 %v1611
    %v2904 = vunpack.c.h.b16 %v1611
    %v2905 = vunpack.c.l.b16 %v1612
    %v2906 = vunpack.c.h.b16 %v1612
    %v2907 = vunpack.c.l.b16 %v1613
    %v2908 = vunpack.c.h.b16 %v1613
    %v2909 = vunpack.c.l.b16 %v1614
    %v2910 = vunpack.c.h.b16 %v1614
    %v2911 = vunpack.c.l.b16 %v1615
    %v2912 = vunpack.c.h.b16 %v1615
    %v2913 = vunpack.c.l.b16 %v1616
    %v2914 = vunpack.c.h.b16 %v1616
    %v2915 = vunpack.c.l.b16 %v1617
    %v2916 = vunpack.c.h.b16 %v1617
    %v2917 = vunpack.c.l.b16 %v1618
    %v2918 = vunpack.c.h.b16 %v1618
    %v2919 = vunpack.c.l.b16 %v1619
    %v2920 = vunpack.c.h.b16 %v1619
    %v2921 = vunpack.c.l.b16 %v1620
    %v2922 = vunpack.c.h.b16 %v1620
    %v2923 = vunpack.c.l.b16 %v1621
    %v2924 = vunpack.c.h.b16 %v1621
    %v2925 = vunpack.c.l.b16 %v1622
    %v2926 = vunpack.c.h.b16 %v1622
    %v2927 = vunpack.c.l.b16 %v1623
    %v2928 = vunpack.c.h.b16 %v1623
    %v2929 = vunpack.c.l.b16 %v1624
    %v2930 = vunpack.c.h.b16 %v1624
    %v2931 = vunpack.c.l.b16 %v1625
    %v2932 = vunpack.c.h.b16 %v1625
    %v2933 = vunpack.c.l.b16 %v1626
    %v2934 = vunpack.c.h.b16 %v1626
    %v2935 = vunpack.c.l.b16 %v1627
    %v2936 = vunpack.c.h.b16 %v1627
    %v2937 = vunpack.c.l.b16 %v1628
    %v2938 = vunpack.c.h.b16 %v1628
    %v2939 = vunpack.c.l.b16 %v1629
    %v2940 = vunpack.c.h.b16 %v1629
    %v2941 = vunpack.c.l.b16 %v1630
    %v2942 = vunpack.c.h.b16 %v1630
    %v2943 = vunpack.c.l.b16 %v1631
    %v2944 = vunpack.c.h.b16 %v1631
    %v2945 = vunpack.c.l.b16 %v1632
    %v2946 = vunpack.c.h.b16 %v1632
    %v2947 = vunpack.c.l.b16 %v1633
    %v2948 = vunpack.c.h.b16 %v1633
    %v2949 = vunpack.c.l.b16 %v1634
    %v2950 = vunpack.c.h.b16 %v1634
    %v2951 = vunpack.c.l.b16 %v1635
    %v2952 = vunpack.c.h.b16 %v1635
    %v2953 = vunpack.c.l.b16 %v1636
    %v2954 = vunpack.c.h.b16 %v1636
    %v2955 = vunpack.c.l.b16 %v1637
    %v2956 = vunpack.c.h.b16 %v1637
    %v2957 = vunpack.c.l.b16 %v1638
    %v2958 = vunpack.c.h.b16 %v1638
    %v2959 = vunpack.c.l.b16 %v1639
    %v2960 = vunpack.c.h.b16 %v1639
    %v2961 = vunpack.c.l.b16 %v1640
    %v2962 = vunpack.c.h.b16 %v1640
    %v2963 = vunpack.c.l.b16 %v1641
    %v2964 = vunpack.c.h.b16 %v1641
    %v2965 = vunpack.c.l.b16 %v1642
    %v2966 = vunpack.c.h.b16 %v1642
    %v2967 = vunpack.c.l.b16 %v1643
    %v2968 = vunpack.c.h.b16 %v1643
    %v2969 = vunpack.c.l.b16 %v1644
    %v2970 = vunpack.c.h.b16 %v1644
    %v2971 = vunpack.c.l.b16 %v1645
    %v2972 = vunpack.c.h.b16 %v1645
    %v2973 = vunpack.c.l.b16 %v1646
    %v2974 = vunpack.c.h.b16 %v1646
    %v2975 = vunpack.c.l.b16 %v1647
    %v2976 = vunpack.c.h.b16 %v1647
    %v2977 = vunpack.c.l.b16 %v1648
    %v2978 = vunpack.c.h.b16 %v1648
    %v2979 = vunpack.c.l.b16 %v1649
    %v2980 = vunpack.c.h.b16 %v1649
    %v2981 = vunpack.c.l.b16 %v1650
    %v2982 = vunpack.c.h.b16 %v1650
    %v2983 = vunpack.c.l.b16 %v1651
    %v2984 = vunpack.c.h.b16 %v1651
    %v2985 = vunpack.c.l.b16 %v1652
    %v2986 = vunpack.c.h.b16 %v1652
    %v2987 = vunpack.c.l.b16 %v1653
    %v2988 = vunpack.c.h.b16 %v1653
    %v2989 = vunpack.c.l.b16 %v1654
    %v2990 = vunpack.c.h.b16 %v1654
    %v2991 = vunpack.c.l.b16 %v1655
    %v2992 = vunpack.c.h.b16 %v1655
    %v2993 = vunpack.c.l.b16 %v1656
    %v2994 = vunpack.c.h.b16 %v1656
    %v2995 = vunpack.c.l.b16 %v1657
    %v2996 = vunpack.c.h.b16 %v1657
    %v2997 = vunpack.c.l.b16 %v1658
    %v2998 = vunpack.c.h.b16 %v1658
    %v2999 = vunpack.c.l.b16 %v1659
    %v3000 = vunpack.c.h.b16 %v1659
    %v3001 = vunpack.c.l.b16 %v1660
    %v3002 = vunpack.c.h.b16 %v1660
    %v3003 = vunpack.c.l.b16 %v1661
    %v3004 = vunpack.c.h.b16 %v1661
    %v3005 = vunpack.c.l.b16 %v1662
    %v3006 = vunpack.c.h.b16 %v1662
    %v3007 = vunpack.c.l.b16 %v1663
    %v3008 = vunpack.c.h.b16 %v1663
    %v3009 = vunpack.c.l.b16 %v1664
    %v3010 = vunpack.c.h.b16 %v1664
    %v3011 = vunpack.c.l.b16 %v1665
    %v3012 = vunpack.c.h.b16 %v1665
    %v3013 = vunpack.c.l.b16 %v1666
    %v3014 = vunpack.c.h.b16 %v1666
    %v3015 = vunpack.c.l.b16 %v1667
    %v3016 = vunpack.c.h.b16 %v1667
    %v3017 = vunpack.c.l.b16 %v1668
    %v3018 = vunpack.c.h.b16 %v1668
    %v3019 = vunpack.c.l.b16 %v1669
    %v3020 = vunpack.c.h.b16 %v1669
    %v3021 = vunpack.c.l.b16 %v1670
    %v3022 = vunpack.c.h.b16 %v1670
    %v3023 = vunpack.c.l.b16 %v1671
    %v3024 = vunpack.c.h.b16 %v1671
    %v3025 = vunpack.c.l.b16 %v1672
    %v3026 = vunpack.c.h.b16 %v1672
    %v3027 = vunpack.c.l.b16 %v1673
    %v3028 = vunpack.c.h.b16 %v1673
    %v3029 = vunpack.c.l.b16 %v1674
    %v3030 = vunpack.c.h.b16 %v1674
    %v3031 = vunpack.c.l.b16 %v1675
    %v3032 = vunpack.c.h.b16 %v1675
    %v3033 = vunpack.c.l.b16 %v1676
    %v3034 = vunpack.c.h.b16 %v1676
    %v3035 = vunpack.c.l.b16 %v1677
    %v3036 = vunpack.c.h.b16 %v1677
    %v3037 = vunpack.c.l.b16 %v1678
    %v3038 = vunpack.c.h.b16 %v1678
    %v3039 = vunpack.c.l.b16 %v1679
    %v3040 = vunpack.c.h.b16 %v1679
    %v3041 = vunpack.c.l.b16 %v1680
    %v3042 = vunpack.c.h.b16 %v1680
    %v3043 = vunpack.c.l.b16 %v1681
    %v3044 = vunpack.c.h.b16 %v1681
    %v3045 = vunpack.c.l.b16 %v1682
    %v3046 = vunpack.c.h.b16 %v1682
    %v3047 = vunpack.c.l.b16 %v1683
    %v3048 = vunpack.c.h.b16 %v1683
    %v3049 = vunpack.c.l.b16 %v1684
    %v3050 = vunpack.c.h.b16 %v1684
    %v3051 = vunpack.c.l.b16 %v1685
    %v3052 = vunpack.c.h.b16 %v1685
    %v3053 = vunpack.c.l.b16 %v1686
    %v3054 = vunpack.c.h.b16 %v1686
    %v3055 = vunpack.c.l.b16 %v1687
    %v3056 = vunpack.c.h.b16 %v1687
    %v3057 = vunpack.c.l.b16 %v1688
    %v3058 = vunpack.c.h.b16 %v1688
    %v3059 = vunpack.c.l.b16 %v1689
    %v3060 = vunpack.c.h.b16 %v1689
    %v3061 = vunpack.c.l.b16 %v1690
    %v3062 = vunpack.c.h.b16 %v1690
    %v3063 = vunpack.c.l.b16 %v1691
    %v3064 = vunpack.c.h.b16 %v1691
    %v3065 = vunpack.c.l.b16 %v1692
    %v3066 = vunpack.c.h.b16 %v1692
    %v3067 = vunpack.c.l.b16 %v1693
    %v3068 = vunpack.c.h.b16 %v1693
    %v3069 = vunpack.c.l.b16 %v1694
    %v3070 = vunpack.c.h.b16 %v1694
    %v3071 = vunpack.c.l.b16 %v1695
    %v3072 = vunpack.c.h.b16 %v1695
    %v3073 = vunpack.c.l.b16 %v1696
    %v3074 = vunpack.c.h.b16 %v1696
    %v3075 = vunpack.c.l.b16 %v1697
    %v3076 = vunpack.c.h.b16 %v1697
    %v3077 = vunpack.c.l.b16 %v1698
    %v3078 = vunpack.c.h.b16 %v1698
    %v3079 = vunpack.c.l.b16 %v1699
    %v3080 = vunpack.c.h.b16 %v1699
    %v3081 = vunpack.c.l.b16 %v1700
    %v3082 = vunpack.c.h.b16 %v1700
    %v3083 = vunpack.c.l.b16 %v1701
    %v3084 = vunpack.c.h.b16 %v1701
    %v3085 = vunpack.c.l.b16 %v1702
    %v3086 = vunpack.c.h.b16 %v1702
    %v3087 = vunpack.c.l.b16 %v1703
    %v3088 = vunpack.c.h.b16 %v1703
    %v3089 = vunpack.c.l.b16 %v1704
    %v3090 = vunpack.c.h.b16 %v1704
    %v3091 = vunpack.c.l.b16 %v1705
    %v3092 = vunpack.c.h.b16 %v1705
    %v3093 = vunpack.c.l.b16 %v1706
    %v3094 = vunpack.c.h.b16 %v1706
    %v3095 = vunpack.c.l.b16 %v1707
    %v3096 = vunpack.c.h.b16 %v1707
    %v3097 = vunpack.c.l.b16 %v1708
    %v3098 = vunpack.c.h.b16 %v1708
    %v3099 = vunpack.c.l.b16 %v1709
    %v3100 = vunpack.c.h.b16 %v1709
    %v3101 = vunpack.c.l.b16 %v1710
    %v3102 = vunpack.c.h.b16 %v1710
    %v3103 = vunpack.c.l.b16 %v1711
    %v3104 = vunpack.c.h.b16 %v1711
    %v3105 = vunpack.c.l.b16 %v1712
    %v3106 = vunpack.c.h.b16 %v1712
    %v3107 = vunpack.c.l.b16 %v1713
    %v3108 = vunpack.c.h.b16 %v1713
    %v3109 = vunpack.c.l.b16 %v1714
    %v3110 = vunpack.c.h.b16 %v1714
    %v3111 = vunpack.c.l.b16 %v1715
    %v3112 = vunpack.c.h.b16 %v1715
    %v3113 = vunpack.c.l.b16 %v1716
    %v3114 = vunpack.c.h.b16 %v1716
    %v3115 = vunpack.c.l.b16 %v1717
    %v3116 = vunpack.c.h.b16 %v1717
    %v3117 = vunpack.c.l.b16 %v1718
    %v3118 = vunpack.c.h.b16 %v1718
    %v3119 = vunpack.c.l.b16 %v1719
    %v3120 = vunpack.c.h.b16 %v1719
    %v3121 = vunpack.c.l.b16 %v1720
    %v3122 = vunpack.c.h.b16 %v1720
    %v3123 = vunpack.c.l.b16 %v1721
    %v3124 = vunpack.c.h.b16 %v1721
    %v3125 = vunpack.c.l.b16 %v1722
    %v3126 = vunpack.c.h.b16 %v1722
    %v3127 = vunpack.c.l.b16 %v1723
    %v3128 = vunpack.c.h.b16 %v1723
    %v3129 = vunpack.c.l.b16 %v1724
    %v3130 = vunpack.c.h.b16 %v1724
    %v3131 = vunpack.c.l.b16 %v1725
    %v3132 = vunpack.c.h.b16 %v1725
    %v3133 = vunpack.c.l.b16 %v1726
    %v3134 = vunpack.c.h.b16 %v1726
    %v3135 = vunpack.c.l.b16 %v1727
    %v3136 = vunpack.c.h.b16 %v1727
    %v3137 = vunpack.c.l.b16 %v1728
    %v3138 = vunpack.c.h.b16 %v1728
    %v3139 = vunpack.c.l.b16 %v1729
    %v3140 = vunpack.c.h.b16 %v1729
    %v3141 = vunpack.c.l.b16 %v1730
    %v3142 = vunpack.c.h.b16 %v1730
    %v3143 = vunpack.c.l.b16 %v1731
    %v3144 = vunpack.c.h.b16 %v1731
    %v3145 = vunpack.c.l.b16 %v1732
    %v3146 = vunpack.c.h.b16 %v1732
    %v3147 = vunpack.c.l.b16 %v1733
    %v3148 = vunpack.c.h.b16 %v1733
    %v3149 = vunpack.c.l.b16 %v1734
    %v3150 = vunpack.c.h.b16 %v1734
    %v3151 = vunpack.c.l.b16 %v1735
    %v3152 = vunpack.c.h.b16 %v1735
    %v3153 = vunpack.c.l.b16 %v1736
    %v3154 = vunpack.c.h.b16 %v1736
    %v3155 = vunpack.c.l.b16 %v1737
    %v3156 = vunpack.c.h.b16 %v1737
    %v3157 = vunpack.c.l.b16 %v1738
    %v3158 = vunpack.c.h.b16 %v1738
    %v3159 = vunpack.c.l.b16 %v1739
    %v3160 = vunpack.c.h.b16 %v1739
    %v3161 = vunpack.c.l.b16 %v1740
    %v3162 = vunpack.c.h.b16 %v1740
    %v3163 = vunpack.c.l.b16 %v1741
    %v3164 = vunpack.c.h.b16 %v1741
    %v3165 = vunpack.c.l.b16 %v1742
    %v3166 = vunpack.c.h.b16 %v1742
    %v3167 = vunpack.c.l.b16 %v1743
    %v3168 = vunpack.c.h.b16 %v1743
    %v3169 = vunpack.c.l.b16 %v1744
    %v3170 = vunpack.c.h.b16 %v1744
    %v3171 = vunpack.c.l.b16 %v1745
    %v3172 = vunpack.c.h.b16 %v1745
    %v3173 = vunpack.c.l.b16 %v1746
    %v3174 = vunpack.c.h.b16 %v1746
    %v3175 = vunpack.c.l.b16 %v1747
    %v3176 = vunpack.c.h.b16 %v1747
    %v3177 = vunpack.c.l.b16 %v1748
    %v3178 = vunpack.c.h.b16 %v1748
    %v3179 = vunpack.c.l.b16 %v1749
    %v3180 = vunpack.c.h.b16 %v1749
    %v3181 = vunpack.c.l.b16 %v1750
    %v3182 = vunpack.c.h.b16 %v1750
    %v3183 = vunpack.c.l.b16 %v1751
    %v3184 = vunpack.c.h.b16 %v1751
    %v3185 = vunpack.c.l.b16 %v1752
    %v3186 = vunpack.c.h.b16 %v1752
    %v3187 = vunpack.c.l.b16 %v1753
    %v3188 = vunpack.c.h.b16 %v1753
    %v3189 = vunpack.c.l.b16 %v1754
    %v3190 = vunpack.c.h.b16 %v1754
    %v3191 = vunpack.c.l.b16 %v1755
    %v3192 = vunpack.c.h.b16 %v1755
    %v3193 = vunpack.c.l.b16 %v1756
    %v3194 = vunpack.c.h.b16 %v1756
    %v3195 = vunpack.c.l.b16 %v1757
    %v3196 = vunpack.c.h.b16 %v1757
    %v3197 = vunpack.c.l.b16 %v1758
    %v3198 = vunpack.c.h.b16 %v1758
    %v3199 = vunpack.c.l.b16 %v1759
    %v3200 = vunpack.c.h.b16 %v1759
    %v3201 = vunpack.c.l.b16 %v1760
    %v3202 = vunpack.c.h.b16 %v1760
    %v3203 = vunpack.c.l.b16 %v1761
    %v3204 = vunpack.c.h.b16 %v1761
    %v3205 = vunpack.c.l.b16 %v1762
    %v3206 = vunpack.c.h.b16 %v1762
    %v3207 = vunpack.c.l.b16 %v1763
    %v3208 = vunpack.c.h.b16 %v1763
    %v3209 = vunpack.c.l.b16 %v1764
    %v3210 = vunpack.c.h.b16 %v1764
    %v3211 = vunpack.c.l.b16 %v1765
    %v3212 = vunpack.c.h.b16 %v1765
    %v3213 = vunpack.c.l.b16 %v1766
    %v3214 = vunpack.c.h.b16 %v1766
    %v3215 = vunpack.c.l.b16 %v1767
    %v3216 = vunpack.c.h.b16 %v1767
    %v3217 = vunpack.c.l.b16 %v1768
    %v3218 = vunpack.c.h.b16 %v1768
    %v3219 = vunpack.c.l.b16 %v1769
    %v3220 = vunpack.c.h.b16 %v1769
    %v3221 = vunpack.c.l.b16 %v1770
    %v3222 = vunpack.c.h.b16 %v1770
    %v3223 = vunpack.c.l.b16 %v1771
    %v3224 = vunpack.c.h.b16 %v1771
    %v3225 = vunpack.c.l.b16 %v1772
    %v3226 = vunpack.c.h.b16 %v1772
    %v3227 = vunpack.c.l.b16 %v1773
    %v3228 = vunpack.c.h.b16 %v1773
    %v3229 = vunpack.c.l.b16 %v1774
    %v3230 = vunpack.c.h.b16 %v1774
    %v3231 = vunpack.c.l.b16 %v1775
    %v3232 = vunpack.c.h.b16 %v1775
    %v3233 = vunpack.c.l.b16 %v1776
    %v3234 = vunpack.c.h.b16 %v1776
    %v3235 = vunpack.c.l.b16 %v1777
    %v3236 = vunpack.c.h.b16 %v1777
    %v3237 = vunpack.c.l.b16 %v1778
    %v3238 = vunpack.c.h.b16 %v1778
    %v3239 = vunpack.c.l.b16 %v1779
    %v3240 = vunpack.c.h.b16 %v1779
    %v3241 = vunpack.c.l.b16 %v1780
    %v3242 = vunpack.c.h.b16 %v1780
    %v3243 = vunpack.c.l.b16 %v1781
    %v3244 = vunpack.c.h.b16 %v1781
    %v3245 = vunpack.c.l.b16 %v1782
    %v3246 = vunpack.c.h.b16 %v1782
    %v3247 = vunpack.c.l.b16 %v1783
    %v3248 = vunpack.c.h.b16 %v1783
    %v3249 = vunpack.c.l.b16 %v1784
    %v3250 = vunpack.c.h.b16 %v1784
    %v3251 = vunpack.c.l.b16 %v1785
    %v3252 = vunpack.c.h.b16 %v1785
    %v3253 = vunpack.c.l.b16 %v1786
    %v3254 = vunpack.c.h.b16 %v1786
    %v3255 = vunpack.c.l.b16 %v1787
    %v3256 = vunpack.c.h.b16 %v1787
    %v3257 = vunpack.c.l.b16 %v1788
    %v3258 = vunpack.c.h.b16 %v1788
    %v3259 = vunpack.c.l.b16 %v1789
    %v3260 = vunpack.c.h.b16 %v1789
    %v3261 = vunpack.c.l.b16 %v1790
    %v3262 = vunpack.c.h.b16 %v1790
    %v3263 = vunpack.c.l.b16 %v1791
    %v3264 = vunpack.c.h.b16 %v1791
    %v3265 = vunpack.c.l.b16 %v1792
    %v3266 = vunpack.c.h.b16 %v1792
    %v3267 = vunpack.c.l.b16 %v1793
    %v3268 = vunpack.c.h.b16 %v1793
    %v3269 = vunpack.c.l.b16 %v1794
    %v3270 = vunpack.c.h.b16 %v1794
    %v3271 = vunpack.c.l.b16 %v1795
    %v3272 = vunpack.c.h.b16 %v1795
    %v3273 = vunpack.c.l.b16 %v1796
    %v3274 = vunpack.c.h.b16 %v1796
    %v3275 = vunpack.c.l.b16 %v1797
    %v3276 = vunpack.c.h.b16 %v1797
    %v3277 = vunpack.c.l.b16 %v1798
    %v3278 = vunpack.c.h.b16 %v1798
    %v3279 = vunpack.c.l.b16 %v1799
    %v3280 = vunpack.c.h.b16 %v1799
    %v3281 = vunpack.c.l.b16 %v1800
    %v3282 = vunpack.c.h.b16 %v1800
    %v3283 = vunpack.c.l.b16 %v1801
    %v3284 = vunpack.c.h.b16 %v1801
    %v3285 = vunpack.c.l.b16 %v1802
    %v3286 = vunpack.c.h.b16 %v1802
    %v3287 = vunpack.c.l.b16 %v1803
    %v3288 = vunpack.c.h.b16 %v1803
    %v3289 = vunpack.c.l.b16 %v1804
    %v3290 = vunpack.c.h.b16 %v1804
    %v3291 = vunpack.c.l.b16 %v1805
    %v3292 = vunpack.c.h.b16 %v1805
    %v3293 = vunpack.c.l.b16 %v1806
    %v3294 = vunpack.c.h.b16 %v1806
    %v3295 = vunpack.c.l.b16 %v1807
    %v3296 = vunpack.c.h.b16 %v1807
    %v3297 = vunpack.c.l.b16 %v1808
    %v3298 = vunpack.c.h.b16 %v1808
    %v3299 = vunpack.c.l.b16 %v1809
    %v3300 = vunpack.c.h.b16 %v1809
    %v3301 = vunpack.c.l.b16 %v1810
    %v3302 = vunpack.c.h.b16 %v1810
    %v3303 = vunpack.c.l.b16 %v1811
    %v3304 = vunpack.c.h.b16 %v1811
    %v3305 = vunpack.c.l.b16 %v1812
    %v3306 = vunpack.c.h.b16 %v1812
    %v3307 = vunpack.c.l.b16 %v1813
    %v3308 = vunpack.c.h.b16 %v1813
    %v3309 = vunpack.c.l.b16 %v1814
    %v3310 = vunpack.c.h.b16 %v1814
    %v3311 = vunpack.c.l.b16 %v1815
    %v3312 = vunpack.c.h.b16 %v1815
    %v3313 = vunpack.c.l.b16 %v1816
    %v3314 = vunpack.c.h.b16 %v1816
    %v3315 = vunpack.c.l.b16 %v1817
    %v3316 = vunpack.c.h.b16 %v1817
    %v3317 = vunpack.c.l.b16 %v1818
    %v3318 = vunpack.c.h.b16 %v1818
    %v3319 = vunpack.c.l.b16 %v1819
    %v3320 = vunpack.c.h.b16 %v1819
    %v3321 = vunpack.c.l.b16 %v1820
    %v3322 = vunpack.c.h.b16 %v1820
    %v3323 = vunpack.c.l.b16 %v1821
    %v3324 = vunpack.c.h.b16 %v1821
    %v3325 = vunpack.c.l.b16 %v1822
    %v3326 = vunpack.c.h.b16 %v1822
    %v3327 = vunpack.c.l.b16 %v1823
    %v3328 = vunpack.c.h.b16 %v1823
    %v3329 = vunpack.c.l.b16 %v1824
    %v3330 = vunpack.c.h.b16 %v1824
    %v3331 = vunpack.c.l.b16 %v1825
    %v3332 = vunpack.c.h.b16 %v1825
    %v3333 = vunpack.c.l.b16 %v1826
    %v3334 = vunpack.c.h.b16 %v1826
    %v3335 = vunpack.c.l.b16 %v1827
    %v3336 = vunpack.c.h.b16 %v1827
    %v3337 = vunpack.c.l.b16 %v1828
    %v3338 = vunpack.c.h.b16 %v1828
    %v3339 = vunpack.c.l.b16 %v1829
    %v3340 = vunpack.c.h.b16 %v1829
    %v3341 = vunpack.c.l.b16 %v1830
    %v3342 = vunpack.c.h.b16 %v1830
    %v3343 = vunpack.c.l.b16 %v1831
    %v3344 = vunpack.c.h.b16 %v1831
    %v3345 = vunpack.c.l.b16 %v1832
    %v3346 = vunpack.c.h.b16 %v1832
    %v3347 = vunpack.c.l.b16 %v1833
    %v3348 = vunpack.c.h.b16 %v1833
    %v3349 = vunpack.c.l.b16 %v1834
    %v3350 = vunpack.c.h.b16 %v1834
    %v3351 = vunpack.c.l.b16 %v1835
    %v3352 = vunpack.c.h.b16 %v1835
    %v3353 = vunpack.c.l.b16 %v1836
    %v3354 = vunpack.c.h.b16 %v1836
    %v3355 = vunpack.c.l.b16 %v1837
    %v3356 = vunpack.c.h.b16 %v1837
    %v3357 = vunpack.c.l.b16 %v1838
    %v3358 = vunpack.c.h.b16 %v1838
    %v3359 = vunpack.c.l.b16 %v1839
    %v3360 = vunpack.c.h.b16 %v1839
    %v3361 = vunpack.c.l.b16 %v1840
    %v3362 = vunpack.c.h.b16 %v1840
    %v3363 = vunpack.c.l.b16 %v1841
    %v3364 = vunpack.c.h.b16 %v1841
    %v3365 = vunpack.c.l.b16 %v1842
    %v3366 = vunpack.c.h.b16 %v1842
    %v3367 = vunpack.c.l.b16 %v1843
    %v3368 = vunpack.c.h.b16 %v1843
    %v3369 = vunpack.c.l.b16 %v1844
    %v3370 = vunpack.c.h.b16 %v1844
    %v3371 = vunpack.c.l.b16 %v1845
    %v3372 = vunpack.c.h.b16 %v1845
    %v3373 = vunpack.c.l.b16 %v1846
    %v3374 = vunpack.c.h.b16 %v1846
    %v3375 = vunpack.c.l.b16 %v1847
    %v3376 = vunpack.c.h.b16 %v1847
    %v3377 = vunpack.c.l.b16 %v1848
    %v3378 = vunpack.c.h.b16 %v1848
    %v3379 = vunpack.c.l.b16 %v1849
    %v3380 = vunpack.c.h.b16 %v1849
    %v3381 = vunpack.c.l.b16 %v1850
    %v3382 = vunpack.c.h.b16 %v1850
    %v3383 = vunpack.c.l.b16 %v1851
    %v3384 = vunpack.c.h.b16 %v1851
    %v3385 = vunpack.c.l.b16 %v1852
    %v3386 = vunpack.c.h.b16 %v1852
    %v3387 = vunpack.c.l.b16 %v1853
    %v3388 = vunpack.c.h.b16 %v1853
    %v3389 = vunpack.c.l.b16 %v1854
    %v3390 = vunpack.c.h.b16 %v1854
    %v3391 = vunpack.c.l.b16 %v1855
    %v3392 = vunpack.c.h.b16 %v1855
    %v3393 = vunpack.c.l.b16 %v1856
    %v3394 = vunpack.c.h.b16 %v1856
    %v3395 = vunpack.c.l.b16 %v1857
    %v3396 = vunpack.c.h.b16 %v1857
    %v3397 = vunpack.c.l.b16 %v1858
    %v3398 = vunpack.c.h.b16 %v1858
    %v3399 = vunpack.c.l.b16 %v1859
    %v3400 = vunpack.c.h.b16 %v1859
    %v3401 = vunpack.c.l.b16 %v1860
    %v3402 = vunpack.c.h.b16 %v1860
    %v3403 = vunpack.c.l.b16 %v1861
    %v3404 = vunpack.c.h.b16 %v1861
    %v3405 = vunpack.c.l.b16 %v1862
    %v3406 = vunpack.c.h.b16 %v1862
    %v3407 = vunpack.c.l.b16 %v1863
    %v3408 = vunpack.c.h.b16 %v1863
    %v3409 = vunpack.c.l.b16 %v1864
    %v3410 = vunpack.c.h.b16 %v1864
    %v3411 = vunpack.c.l.b16 %v1865
    %v3412 = vunpack.c.h.b16 %v1865
    %v3413 = vunpack.c.l.b16 %v1866
    %v3414 = vunpack.c.h.b16 %v1866
    %v3415 = vunpack.c.l.b16 %v1867
    %v3416 = vunpack.c.h.b16 %v1867
    %v3417 = vunpack.c.l.b16 %v1868
    %v3418 = vunpack.c.h.b16 %v1868
    %v3419 = vunpack.c.l.b16 %v1869
    %v3420 = vunpack.c.h.b16 %v1869
    %v3421 = vunpack.c.l.b16 %v1870
    %v3422 = vunpack.c.h.b16 %v1870
    %v3423 = vunpack.c.l.b16 %v1871
    %v3424 = vunpack.c.h.b16 %v1871
    %v3425 = vunpack.c.l.b16 %v1872
    %v3426 = vunpack.c.h.b16 %v1872
    %v3427 = vunpack.c.l.b16 %v1873
    %v3428 = vunpack.c.h.b16 %v1873
    %v3429 = vunpack.c.l.b16 %v1874
    %v3430 = vunpack.c.h.b16 %v1874
    %v3431 = vunpack.c.l.b16 %v1875
    %v3432 = vunpack.c.h.b16 %v1875
    %v3433 = vunpack.c.l.b16 %v1876
    %v3434 = vunpack.c.h.b16 %v1876
    %v3435 = vunpack.c.l.b16 %v1877
    %v3436 = vunpack.c.h.b16 %v1877
    %v3437 = vunpack.c.l.b16 %v1878
    %v3438 = vunpack.c.h.b16 %v1878
    %v3439 = vunpack.c.l.b16 %v1879
    %v3440 = vunpack.c.h.b16 %v1879
    %v3441 = vunpack.c.l.b16 %v1880
    %v3442 = vunpack.c.h.b16 %v1880
    %v3443 = vunpack.c.l.b16 %v1881
    %v3444 = vunpack.c.h.b16 %v1881
    %v3445 = vunpack.c.l.b16 %v1882
    %v3446 = vunpack.c.h.b16 %v1882
    %v3447 = vunpack.c.l.b16 %v1883
    %v3448 = vunpack.c.h.b16 %v1883
    %v3449 = vunpack.c.l.b16 %v1884
    %v3450 = vunpack.c.h.b16 %v1884
    %v3451 = vunpack.c.l.b16 %v1885
    %v3452 = vunpack.c.h.b16 %v1885
    %v3453 = vunpack.c.l.b16 %v1886
    %v3454 = vunpack.c.h.b16 %v1886
    %v3455 = vunpack.c.l.b16 %v1887
    %v3456 = vunpack.c.h.b16 %v1887
    %v3457 = vunpack.c.l.b16 %v1888
    %v3458 = vunpack.c.h.b16 %v1888
    %v3459 = vunpack.c.l.b16 %v1889
    %v3460 = vunpack.c.h.b16 %v1889
    %v3461 = vunpack.c.l.b16 %v1890
    %v3462 = vunpack.c.h.b16 %v1890
    %v3463 = vunpack.c.l.b16 %v1891
    %v3464 = vunpack.c.h.b16 %v1891
    %v3465 = vunpack.c.l.b16 %v1892
    %v3466 = vunpack.c.h.b16 %v1892
    %v3467 = vunpack.c.l.b16 %v1893
    %v3468 = vunpack.c.h.b16 %v1893
    %v3469 = vunpack.c.l.b16 %v1894
    %v3470 = vunpack.c.h.b16 %v1894
    %v3471 = vunpack.c.l.b16 %v1895
    %v3472 = vunpack.c.h.b16 %v1895
    %v3473 = vunpack.c.l.b16 %v1896
    %v3474 = vunpack.c.h.b16 %v1896
    %v3475 = vpack.c.b16 %v2459, %v2451
    %v3476 = vpack.c.b16 %v2460, %v2452
    %v3477 = vpack.c.b16 %v2461, %v2453
    %v3478 = vpack.c.b16 %v2462, %v2454
    %v3479 = vpack.c.b16 %v2463, %v2455
    %v3480 = vpack.c.b16 %v2464, %v2456
    %v3481 = vpack.c.b16 %v2465, %v2457
    %v3482 = vpack.c.b16 %v2466, %v2458
    %v3483 = vpack.c.b16 %v2475, %v2467
    %v3484 = vpack.c.b16 %v2476, %v2468
    %v3485 = vpack.c.b16 %v2477, %v2469
    %v3486 = vpack.c.b16 %v2478, %v2470
    %v3487 = vpack.c.b16 %v2479, %v2471
    %v3488 = vpack.c.b16 %v2480, %v2472
    %v3489 = vpack.c.b16 %v2481, %v2473
    %v3490 = vpack.c.b16 %v2482, %v2474
    %v3491 = vpack.c.b16 %v2491, %v2483
    %v3492 = vpack.c.b16 %v2492, %v2484
    %v3493 = vpack.c.b16 %v2493, %v2485
    %v3494 = vpack.c.b16 %v2494, %v2486
    %v3495 = vpack.c.b16 %v2495, %v2487
    %v3496 = vpack.c.b16 %v2496, %v2488
    %v3497 = vpack.c.b16 %v2497, %v2489
    %v3498 = vpack.c.b16 %v2498, %v2490
    %v3499 = vpack.c.b16 %v2507, %v2499
    %v3500 = vpack.c.b16 %v2508, %v2500
    %v3501 = vpack.c.b16 %v2509, %v2501
    %v3502 = vpack.c.b16 %v2510, %v2502
    %v3503 = vpack.c.b16 %v2511, %v2503
    %v3504 = vpack.c.b16 %v2512, %v2504
    %v3505 = vpack.c.b16 %v2513, %v2505
    %v3506 = vpack.c.b16 %v2514, %v2506
    %v3507 = vpack.c.b16 %v2523, %v2515
    %v3508 = vpack.c.b16 %v2524, %v2516
    %v3509 = vpack.c.b16 %v2525, %v2517
    %v3510 = vpack.c.b16 %v2526, %v2518
    %v3511 = vpack.c.b16 %v2527, %v2519
    %v3512 = vpack.c.b16 %v2528, %v2520
    %v3513 = vpack.c.b16 %v2529, %v2521
    %v3514 = vpack.c.b16 %v2530, %v2522
    %v3515 = vpack.c.b16 %v2539, %v2531
    %v3516 = vpack.c.b16 %v2540, %v2532
    %v3517 = vpack.c.b16 %v2541, %v2533
    %v3518 = vpack.c.b16 %v2542, %v2534
    %v3519 = vpack.c.b16 %v2543, %v2535
    %v3520 = vpack.c.b16 %v2544, %v2536
    %v3521 = vpack.c.b16 %v2545, %v2537
    %v3522 = vpack.c.b16 %v2546, %v2538
    %v3523 = vpack.c.b16 %v2555, %v2547
    %v3524 = vpack.c.b16 %v2556, %v2548
    %v3525 = vpack.c.b16 %v2557, %v2549
    %v3526 = vpack.c.b16 %v2558, %v2550
    %v3527 = vpack.c.b16 %v2559, %v2551
    %v3528 = vpack.c.b16 %v2560, %v2552
    %v3529 = vpack.c.b16 %v2561, %v2553
    %v3530 = vpack.c.b16 %v2562, %v2554
    %v3531 = vpack.c.b16 %v2571, %v2563
    %v3532 = vpack.c.b16 %v2572, %v2564
    %v3533 = vpack.c.b16 %v2573, %v2565
    %v3534 = vpack.c.b16 %v2574, %v2566
    %v3535 = vpack.c.b16 %v2575, %v2567
    %v3536 = vpack.c.b16 %v2576, %v2568
    %v3537 = vpack.c.b16 %v2577, %v2569
    %v3538 = vpack.c.b16 %v2578, %v2570
    %v3539 = vpack.c.b16 %v2587, %v2579
    %v3540 = vpack.c.b16 %v2588, %v2580
    %v3541 = vpack.c.b16 %v2589, %v2581
    %v3542 = vpack.c.b16 %v2590, %v2582
    %v3543 = vpack.c.b16 %v2591, %v2583
    %v3544 = vpack.c.b16 %v2592, %v2584
    %v3545 = vpack.c.b16 %v2593, %v2585
    %v3546 = vpack.c.b16 %v2594, %v2586
    %v3547 = vpack.c.b16 %v2603, %v2595
    %v3548 = vpack.c.b16 %v2604, %v2596
    %v3549 = vpack.c.b16 %v2605, %v2597
    %v3550 = vpack.c.b16 %v2606, %v2598
    %v3551 = vpack.c.b16 %v2607, %v2599
    %v3552 = vpack.c.b16 %v2608, %v2600
    %v3553 = vpack.c.b16 %v2609, %v2601
    %v3554 = vpack.c.b16 %v2610, %v2602
    %v3555 = vpack.c.b16 %v2619, %v2611
    %v3556 = vpack.c.b16 %v2620, %v2612
    %v3557 = vpack.c.b16 %v2621, %v2613
    %v3558 = vpack.c.b16 %v2622, %v2614
    %v3559 = vpack.c.b16 %v2623, %v2615
    %v3560 = vpack.c.b16 %v2624, %v2616
    %v3561 = vpack.c.b16 %v2625, %v2617
    %v3562 = vpack.c.b16 %v2626, %v2618
    %v3563 = vpack.c.b16 %v2635, %v2627
    %v3564 = vpack.c.b16 %v2636, %v2628
    %v3565 = vpack.c.b16 %v2637, %v2629
    %v3566 = vpack.c.b16 %v2638, %v2630
    %v3567 = vpack.c.b16 %v2639, %v2631
    %v3568 = vpack.c.b16 %v2640, %v2632
    %v3569 = vpack.c.b16 %v2641, %v2633
    %v3570 = vpack.c.b16 %v2642, %v2634
    %v3571 = vpack.c.b16 %v2651, %v2643
    %v3572 = vpack.c.b16 %v2652, %v2644
    %v3573 = vpack.c.b16 %v2653, %v2645
    %v3574 = vpack.c.b16 %v2654, %v2646
    %v3575 = vpack.c.b16 %v2655, %v2647
    %v3576 = vpack.c.b16 %v2656, %v2648
    %v3577 = vpack.c.b16 %v2657, %v2649
    %v3578 = vpack.c.b16 %v2658, %v2650
    %v3579 = vpack.c.b16 %v2667, %v2659
    %v3580 = vpack.c.b16 %v2668, %v2660
    %v3581 = vpack.c.b16 %v2669, %v2661
    %v3582 = vpack.c.b16 %v2670, %v2662
    %v3583 = vpack.c.b16 %v2671, %v2663
    %v3584 = vpack.c.b16 %v2672, %v2664
    %v3585 = vpack.c.b16 %v2673, %v2665
    %v3586 = vpack.c.b16 %v2674, %v2666
    %v3587 = vpack.c.b16 %v2683, %v2675
    %v3588 = vpack.c.b16 %v2684, %v2676
    %v3589 = vpack.c.b16 %v2685, %v2677
    %v3590 = vpack.c.b16 %v2686, %v2678
    %v3591 = vpack.c.b16 %v2687, %v2679
    %v3592 = vpack.c.b16 %v2688, %v2680
    %v3593 = vpack.c.b16 %v2689, %v2681
    %v3594 = vpack.c.b16 %v2690, %v2682
    %v3595 = vpack.c.b16 %v2699, %v2691
    %v3596 = vpack.c.b16 %v2700, %v2692
    %v3597 = vpack.c.b16 %v2701, %v2693
    %v3598 = vpack.c.b16 %v2702, %v2694
    %v3599 = vpack.c.b16 %v2703, %v2695
    %v3600 = vpack.c.b16 %v2704, %v2696
    %v3601 = vpack.c.b16 %v2705, %v2697
    %v3602 = vpack.c.b16 %v2706, %v2698
    %v3603 = vpack.c.b16 %v2715, %v2707
    %v3604 = vpack.c.b16 %v2716, %v2708
    %v3605 = vpack.c.b16 %v2717, %v2709
    %v3606 = vpack.c.b16 %v2718, %v2710
    %v3607 = vpack.c.b16 %v2719, %v2711
    %v3608 = vpack.c.b16 %v2720, %v2712
    %v3609 = vpack.c.b16 %v2721, %v2713
    %v3610 = vpack.c.b16 %v2722, %v2714
    %v3611 = vpack.c.b16 %v2731, %v2723
    %v3612 = vpack.c.b16 %v2732, %v2724
    %v3613 = vpack.c.b16 %v2733, %v2725
    %v3614 = vpack.c.b16 %v2734, %v2726
    %v3615 = vpack.c.b16 %v2735, %v2727
    %v3616 = vpack.c.b16 %v2736, %v2728
    %v3617 = vpack.c.b16 %v2737, %v2729
    %v3618 = vpack.c.b16 %v2738, %v2730
    %v3619 = vpack.c.b16 %v2747, %v2739
    %v3620 = vpack.c.b16 %v2748, %v2740
    %v3621 = vpack.c.b16 %v2749, %v2741
    %v3622 = vpack.c.b16 %v2750, %v2742
    %v3623 = vpack.c.b16 %v2751, %v2743
    %v3624 = vpack.c.b16 %v2752, %v2744
    %v3625 = vpack.c.b16 %v2753, %v2745
    %v3626 = vpack.c.b16 %v2754, %v2746
    %v3627 = vpack.c.b16 %v2763, %v2755
    %v3628 = vpack.c.b16 %v2764, %v2756
    %v3629 = vpack.c.b16 %v2765, %v2757
    %v3630 = vpack.c.b16 %v2766, %v2758
    %v3631 = vpack.c.b16 %v2767, %v2759
    %v3632 = vpack.c.b16 %v2768, %v2760
    %v3633 = vpack.c.b16 %v2769, %v2761
    %v3634 = vpack.c.b16 %v2770, %v2762
    %v3635 = vpack.c.b16 %v2779, %v2771
    %v3636 = vpack.c.b16 %v2780, %v2772
    %v3637 = vpack.c.b16 %v2781, %v2773
    %v3638 = vpack.c.b16 %v2782, %v2774
    %v3639 = vpack.c.b16 %v2783, %v2775
    %v3640 = vpack.c.b16 %v2784, %v2776
    %v3641 = vpack.c.b16 %v2785, %v2777
    %v3642 = vpack.c.b16 %v2786, %v2778
    %v3643 = vpack.c.b16 %v2795, %v2787
    %v3644 = vpack.c.b16 %v2796, %v2788
    %v3645 = vpack.c.b16 %v2797, %v2789
    %v3646 = vpack.c.b16 %v2798, %v2790
    %v3647 = vpack.c.b16 %v2799, %v2791
    %v3648 = vpack.c.b16 %v2800, %v2792
    %v3649 = vpack.c.b16 %v2801, %v2793
    %v3650 = vpack.c.b16 %v2802, %v2794
    %v3651 = vpack.c.b16 %v2811, %v2803
    %v3652 = vpack.c.b16 %v2812, %v2804
    %v3653 = vpack.c.b16 %v2813, %v2805
    %v3654 = vpack.c.b16 %v2814, %v2806
    %v3655 = vpack.c.b16 %v2815, %v2807
    %v3656 = vpack.c.b16 %v2816, %v2808
    %v3657 = vpack.c.b16 %v2817, %v2809
    %v3658 = vpack.c.b16 %v2818, %v2810
    %v3659 = vpack.c.b16 %v2827, %v2819
    %v3660 = vpack.c.b16 %v2828, %v2820
    %v3661 = vpack.c.b16 %v2829, %v2821
    %v3662 = vpack.c.b16 %v2830, %v2822
    %v3663 = vpack.c.b16 %v2831, %v2823
    %v3664 = vpack.c.b16 %v2832, %v2824
    %v3665 = vpack.c.b16 %v2833, %v2825
    %v3666 = vpack.c.b16 %v2834, %v2826
    %v3667 = vpack.c.b16 %v2843, %v2835
    %v3668 = vpack.c.b16 %v2844, %v2836
    %v3669 = vpack.c.b16 %v2845, %v2837
    %v3670 = vpack.c.b16 %v2846, %v2838
    %v3671 = vpack.c.b16 %v2847, %v2839
    %v3672 = vpack.c.b16 %v2848, %v2840
    %v3673 = vpack.c.b16 %v2849, %v2841
    %v3674 = vpack.c.b16 %v2850, %v2842
    %v3675 = vpack.c.b16 %v2859, %v2851
    %v3676 = vpack.c.b16 %v2860, %v2852
    %v3677 = vpack.c.b16 %v2861, %v2853
    %v3678 = vpack.c.b16 %v2862, %v2854
    %v3679 = vpack.c.b16 %v2863, %v2855
    %v3680 = vpack.c.b16 %v2864, %v2856
    %v3681 = vpack.c.b16 %v2865, %v2857
    %v3682 = vpack.c.b16 %v2866, %v2858
    %v3683 = vpack.c.b16 %v2875, %v2867
    %v3684 = vpack.c.b16 %v2876, %v2868
    %v3685 = vpack.c.b16 %v2877, %v2869
    %v3686 = vpack.c.b16 %v2878, %v2870
    %v3687 = vpack.c.b16 %v2879, %v2871
    %v3688 = vpack.c.b16 %v2880, %v2872
    %v3689 = vpack.c.b16 %v2881, %v2873
    %v3690 = vpack.c.b16 %v2882, %v2874
    %v3691 = vpack.c.b16 %v2891, %v2883
    %v3692 = vpack.c.b16 %v2892, %v2884
    %v3693 = vpack.c.b16 %v2893, %v2885
    %v3694 = vpack.c.b16 %v2894, %v2886
    %v3695 = vpack.c.b16 %v2895, %v2887
    %v3696 = vpack.c.b16 %v2896, %v2888
    %v3697 = vpack.c.b16 %v2897, %v2889
    %v3698 = vpack.c.b16 %v2898, %v2890
    %v3699 = vpack.c.b16 %v2907, %v2899
    %v3700 = vpack.c.b16 %v2908, %v2900
    %v3701 = vpack.c.b16 %v2909, %v2901
    %v3702 = vpack.c.b16 %v2910, %v2902
    %v3703 = vpack.c.b16 %v2911, %v2903
    %v3704 = vpack.c.b16 %v2912, %v2904
    %v3705 = vpack.c.b16 %v2913, %v2905
    %v3706 = vpack.c.b16 %v2914, %v2906
    %v3707 = vpack.c.b16 %v2923, %v2915
    %v3708 = vpack.c.b16 %v2924, %v2916
    %v3709 = vpack.c.b16 %v2925, %v2917
    %v3710 = vpack.c.b16 %v2926, %v2918
    %v3711 = vpack.c.b16 %v2927, %v2919
    %v3712 = vpack.c.b16 %v2928, %v2920
    %v3713 = vpack.c.b16 %v2929, %v2921
    %v3714 = vpack.c.b16 %v2930, %v2922
    %v3715 = vpack.c.b16 %v2939, %v2931
    %v3716 = vpack.c.b16 %v2940, %v2932
    %v3717 = vpack.c.b16 %v2941, %v2933
    %v3718 = vpack.c.b16 %v2942, %v2934
    %v3719 = vpack.c.b16 %v2943, %v2935
    %v3720 = vpack.c.b16 %v2944, %v2936
    %v3721 = vpack.c.b16 %v2945, %v2937
    %v3722 = vpack.c.b16 %v2946, %v2938
    %v3723 = vpack.c.b16 %v2955, %v2947
    %v3724 = vpack.c.b16 %v2956, %v2948
    %v3725 = vpack.c.b16 %v2957, %v2949
    %v3726 = vpack.c.b16 %v2958, %v2950
    %v3727 = vpack.c.b16 %v2959, %v2951
    %v3728 = vpack.c.b16 %v2960, %v2952
    %v3729 = vpack.c.b16 %v2961, %v2953
    %v3730 = vpack.c.b16 %v2962, %v2954
    %v3731 = vpack.c.b16 %v2971, %v2963
    %v3732 = vpack.c.b16 %v2972, %v2964
    %v3733 = vpack.c.b16 %v2973, %v2965
    %v3734 = vpack.c.b16 %v2974, %v2966
    %v3735 = vpack.c.b16 %v2975, %v2967
    %v3736 = vpack.c.b16 %v2976, %v2968
    %v3737 = vpack.c.b16 %v2977, %v2969
    %v3738 = vpack.c.b16 %v2978, %v2970
    %v3739 = vpack.c.b16 %v2987, %v2979
    %v3740 = vpack.c.b16 %v2988, %v2980
    %v3741 = vpack.c.b16 %v2989, %v2981
    %v3742 = vpack.c.b16 %v2990, %v2982
    %v3743 = vpack.c.b16 %v2991, %v2983
    %v3744 = vpack.c.b16 %v2992, %v2984
    %v3745 = vpack.c.b16 %v2993, %v2985
    %v3746 = vpack.c.b16 %v2994, %v2986
    %v3747 = vpack.c.b16 %v3003, %v2995
    %v3748 = vpack.c.b16 %v3004, %v2996
    %v3749 = vpack.c.b16 %v3005, %v2997
    %v3750 = vpack.c.b16 %v3006, %v2998
    %v3751 = vpack.c.b16 %v3007, %v2999
    %v3752 = vpack.c.b16 %v3008, %v3000
    %v3753 = vpack.c.b16 %v3009, %v3001
    %v3754 = vpack.c.b16 %v3010, %v3002
    %v3755 = vpack.c.b16 %v3019, %v3011
    %v3756 = vpack.c.b16 %v3020, %v3012
    %v3757 = vpack.c.b16 %v3021, %v3013
    %v3758 = vpack.c.b16 %v3022, %v3014
    %v3759 = vpack.c.b16 %v3023, %v3015
    %v3760 = vpack.c.b16 %v3024, %v3016
    %v3761 = vpack.c.b16 %v3025, %v3017
    %v3762 = vpack.c.b16 %v3026, %v3018
    %v3763 = vpack.c.b16 %v3035, %v3027
    %v3764 = vpack.c.b16 %v3036, %v3028
    %v3765 = vpack.c.b16 %v3037, %v3029
    %v3766 = vpack.c.b16 %v3038, %v3030
    %v3767 = vpack.c.b16 %v3039, %v3031
    %v3768 = vpack.c.b16 %v3040, %v3032
    %v3769 = vpack.c.b16 %v3041, %v3033
    %v3770 = vpack.c.b16 %v3042, %v3034
    %v3771 = vpack.c.b16 %v3051, %v3043
    %v3772 = vpack.c.b16 %v3052, %v3044
    %v3773 = vpack.c.b16 %v3053, %v3045
    %v3774 = vpack.c.b16 %v3054, %v3046
    %v3775 = vpack.c.b16 %v3055, %v3047
    %v3776 = vpack.c.b16 %v3056, %v3048
    %v3777 = vpack.c.b16 %v3057, %v3049
    %v3778 = vpack.c.b16 %v3058, %v3050
    %v3779 = vpack.c.b16 %v3067, %v3059
    %v3780 = vpack.c.b16 %v3068, %v3060
    %v3781 = vpack.c.b16 %v3069, %v3061
    %v3782 = vpack.c.b16 %v3070, %v3062
    %v3783 = vpack.c.b16 %v3071, %v3063
    %v3784 = vpack.c.b16 %v3072, %v3064
    %v3785 = vpack.c.b16 %v3073, %v3065
    %v3786 = vpack.c.b16 %v3074, %v3066
    %v3787 = vpack.c.b16 %v3083, %v3075
    %v3788 = vpack.c.b16 %v3084, %v3076
    %v3789 = vpack.c.b16 %v3085, %v3077
    %v3790 = vpack.c.b16 %v3086, %v3078
    %v3791 = vpack.c.b16 %v3087, %v3079
    %v3792 = vpack.c.b16 %v3088, %v3080
    %v3793 = vpack.c.b16 %v3089, %v3081
    %v3794 = vpack.c.b16 %v3090, %v3082
    %v3795 = vpack.c.b16 %v3099, %v3091
    %v3796 = vpack.c.b16 %v3100, %v3092
    %v3797 = vpack.c.b16 %v3101, %v3093
    %v3798 = vpack.c.b16 %v3102, %v3094
    %v3799 = vpack.c.b16 %v3103, %v3095
    %v3800 = vpack.c.b16 %v3104, %v3096
    %v3801 = vpack.c.b16 %v3105, %v3097
    %v3802 = vpack.c.b16 %v3106, %v3098
    %v3803 = vpack.c.b16 %v3115, %v3107
    %v3804 = vpack.c.b16 %v3116, %v3108
    %v3805 = vpack.c.b16 %v3117, %v3109
    %v3806 = vpack.c.b16 %v3118, %v3110
    %v3807 = vpack.c.b16 %v3119, %v3111
    %v3808 = vpack.c.b16 %v3120, %v3112
    %v3809 = vpack.c.b16 %v3121, %v3113
    %v3810 = vpack.c.b16 %v3122, %v3114
    %v3811 = vpack.c.b16 %v3131, %v3123
    %v3812 = vpack.c.b16 %v3132, %v3124
    %v3813 = vpack.c.b16 %v3133, %v3125
    %v3814 = vpack.c.b16 %v3134, %v3126
    %v3815 = vpack.c.b16 %v3135, %v3127
    %v3816 = vpack.c.b16 %v3136, %v3128
    %v3817 = vpack.c.b16 %v3137, %v3129
    %v3818 = vpack.c.b16 %v3138, %v3130
    %v3819 = vpack.c.b16 %v3147, %v3139
    %v3820 = vpack.c.b16 %v3148, %v3140
    %v3821 = vpack.c.b16 %v3149, %v3141
    %v3822 = vpack.c.b16 %v3150, %v3142
    %v3823 = vpack.c.b16 %v3151, %v3143
    %v3824 = vpack.c.b16 %v3152, %v3144
    %v3825 = vpack.c.b16 %v3153, %v3145
    %v3826 = vpack.c.b16 %v3154, %v3146
    %v3827 = vpack.c.b16 %v3163, %v3155
    %v3828 = vpack.c.b16 %v3164, %v3156
    %v3829 = vpack.c.b16 %v3165, %v3157
    %v3830 = vpack.c.b16 %v3166, %v3158
    %v3831 = vpack.c.b16 %v3167, %v3159
    %v3832 = vpack.c.b16 %v3168, %v3160
    %v3833 = vpack.c.b16 %v3169, %v3161
    %v3834 = vpack.c.b16 %v3170, %v3162
    %v3835 = vpack.c.b16 %v3179, %v3171
    %v3836 = vpack.c.b16 %v3180, %v3172
    %v3837 = vpack.c.b16 %v3181, %v3173
    %v3838 = vpack.c.b16 %v3182, %v3174
    %v3839 = vpack.c.b16 %v3183, %v3175
    %v3840 = vpack.c.b16 %v3184, %v3176
    %v3841 = vpack.c.b16 %v3185, %v3177
    %v3842 = vpack.c.b16 %v3186, %v3178
    %v3843 = vpack.c.b16 %v3195, %v3187
    %v3844 = vpack.c.b16 %v3196, %v3188
    %v3845 = vpack.c.b16 %v3197, %v3189
    %v3846 = vpack.c.b16 %v3198, %v3190
    %v3847 = vpack.c.b16 %v3199, %v3191
    %v3848 = vpack.c.b16 %v3200, %v3192
    %v3849 = vpack.c.b16 %v3201, %v3193
    %v3850 = vpack.c.b16 %v3202, %v3194
    %v3851 = vpack.c.b16 %v3211, %v3203
    %v3852 = vpack.c.b16 %v3212, %v3204
    %v3853 = vpack.c.b16 %v3213, %v3205
    %v3854 = vpack.c.b16 %v3214, %v3206
    %v3855 = vpack.c.b16 %v3215, %v3207
    %v3856 = vpack.c.b16 %v3216, %v3208
    %v3857 = vpack.c.b16 %v3217, %v3209
    %v3858 = vpack.c.b16 %v3218, %v3210
    %v3859 = vpack.c.b16 %v3227, %v3219
    %v3860 = vpack.c.b16 %v3228, %v3220
    %v3861 = vpack.c.b16 %v3229, %v3221
    %v3862 = vpack.c.b16 %v3230, %v3222
    %v3863 = vpack.c.b16 %v3231, %v3223
    %v3864 = vpack.c.b16 %v3232, %v3224
    %v3865 = vpack.c.b16 %v3233, %v3225
    %v3866 = vpack.c.b16 %v3234, %v3226
    %v3867 = vpack.c.b16 %v3243, %v3235
    %v3868 = vpack.c.b16 %v3244, %v3236
    %v3869 = vpack.c.b16 %v3245, %v3237
    %v3870 = vpack.c.b16 %v3246, %v3238
    %v3871 = vpack.c.b16 %v3247, %v3239
    %v3872 = vpack.c.b16 %v3248, %v3240
    %v3873 = vpack.c.b16 %v3249, %v3241
    %v3874 = vpack.c.b16 %v3250, %v3242
    %v3875 = vpack.c.b16 %v3259, %v3251
    %v3876 = vpack.c.b16 %v3260, %v3252
    %v3877 = vpack.c.b16 %v3261, %v3253
    %v3878 = vpack.c.b16 %v3262, %v3254
    %v3879 = vpack.c.b16 %v3263, %v3255
    %v3880 = vpack.c.b16 %v3264, %v3256
    %v3881 = vpack.c.b16 %v3265, %v3257
    %v3882 = vpack.c.b16 %v3266, %v3258
    %v3883 = vpack.c.b16 %v3275, %v3267
    %v3884 = vpack.c.b16 %v3276, %v3268
    %v3885 = vpack.c.b16 %v3277, %v3269
    %v3886 = vpack.c.b16 %v3278, %v3270
    %v3887 = vpack.c.b16 %v3279, %v3271
    %v3888 = vpack.c.b16 %v3280, %v3272
    %v3889 = vpack.c.b16 %v3281, %v3273
    %v3890 = vpack.c.b16 %v3282, %v3274
    %v3891 = vpack.c.b16 %v3291, %v3283
    %v3892 = vpack.c.b16 %v3292, %v3284
    %v3893 = vpack.c.b16 %v3293, %v3285
    %v3894 = vpack.c.b16 %v3294, %v3286
    %v3895 = vpack.c.b16 %v3295, %v3287
    %v3896 = vpack.c.b16 %v3296, %v3288
    %v3897 = vpack.c.b16 %v3297, %v3289
    %v3898 = vpack.c.b16 %v3298, %v3290
    %v3899 = vpack.c.b16 %v3307, %v3299
    %v3900 = vpack.c.b16 %v3308, %v3300
    %v3901 = vpack.c.b16 %v3309, %v3301
    %v3902 = vpack.c.b16 %v3310, %v3302
    %v3903 = vpack.c.b16 %v3311, %v3303
    %v3904 = vpack.c.b16 %v3312, %v3304
    %v3905 = vpack.c.b16 %v3313, %v3305
    %v3906 = vpack.c.b16 %v3314, %v3306
    %v3907 = vpack.c.b16 %v3323, %v3315
    %v3908 = vpack.c.b16 %v3324, %v3316
    %v3909 = vpack.c.b16 %v3325, %v3317
    %v3910 = vpack.c.b16 %v3326, %v3318
    %v3911 = vpack.c.b16 %v3327, %v3319
    %v3912 = vpack.c.b16 %v3328, %v3320
    %v3913 = vpack.c.b16 %v3329, %v3321
    %v3914 = vpack.c.b16 %v3330, %v3322
    %v3915 = vpack.c.b16 %v3339, %v3331
    %v3916 = vpack.c.b16 %v3340, %v3332
    %v3917 = vpack.c.b16 %v3341, %v3333
    %v3918 = vpack.c.b16 %v3342, %v3334
    %v3919 = vpack.c.b16 %v3343, %v3335
    %v3920 = vpack.c.b16 %v3344, %v3336
    %v3921 = vpack.c.b16 %v3345, %v3337
    %v3922 = vpack.c.b16 %v3346, %v3338
    %v3923 = vpack.c.b16 %v3355, %v3347
    %v3924 = vpack.c.b16 %v3356, %v3348
    %v3925 = vpack.c.b16 %v3357, %v3349
    %v3926 = vpack.c.b16 %v3358, %v3350
    %v3927 = vpack.c.b16 %v3359, %v3351
    %v3928 = vpack.c.b16 %v3360, %v3352
    %v3929 = vpack.c.b16 %v3361, %v3353
    %v3930 = vpack.c.b16 %v3362, %v3354
    %v3931 = vpack.c.b16 %v3371, %v3363
    %v3932 = vpack.c.b16 %v3372, %v3364
    %v3933 = vpack.c.b16 %v3373, %v3365
    %v3934 = vpack.c.b16 %v3374, %v3366
    %v3935 = vpack.c.b16 %v3375, %v3367
    %v3936 = vpack.c.b16 %v3376, %v3368
    %v3937 = vpack.c.b16 %v3377, %v3369
    %v3938 = vpack.c.b16 %v3378, %v3370
    %v3939 = vpack.c.b16 %v3387, %v3379
    %v3940 = vpack.c.b16 %v3388, %v3380
    %v3941 = vpack.c.b16 %v3389, %v3381
    %v3942 = vpack.c.b16 %v3390, %v3382
    %v3943 = vpack.c.b16 %v3391, %v3383
    %v3944 = vpack.c.b16 %v3392, %v3384
    %v3945 = vpack.c.b16 %v3393, %v3385
    %v3946 = vpack.c.b16 %v3394, %v3386
    %v3947 = vpack.c.b16 %v3403, %v3395
    %v3948 = vpack.c.b16 %v3404, %v3396
    %v3949 = vpack.c.b16 %v3405, %v3397
    %v3950 = vpack.c.b16 %v3406, %v3398
    %v3951 = vpack.c.b16 %v3407, %v3399
    %v3952 = vpack.c.b16 %v3408, %v3400
    %v3953 = vpack.c.b16 %v3409, %v3401
    %v3954 = vpack.c.b16 %v3410, %v3402
    %v3955 = vpack.c.b16 %v3419, %v3411
    %v3956 = vpack.c.b16 %v3420, %v3412
    %v3957 = vpack.c.b16 %v3421, %v3413
    %v3958 = vpack.c.b16 %v3422, %v3414
    %v3959 = vpack.c.b16 %v3423, %v3415
    %v3960 = vpack.c.b16 %v3424, %v3416
    %v3961 = vpack.c.b16 %v3425, %v3417
    %v3962 = vpack.c.b16 %v3426, %v3418
    %v3963 = vpack.c.b16 %v3435, %v3427
    %v3964 = vpack.c.b16 %v3436, %v3428
    %v3965 = vpack.c.b16 %v3437, %v3429
    %v3966 = vpack.c.b16 %v3438, %v3430
    %v3967 = vpack.c.b16 %v3439, %v3431
    %v3968 = vpack.c.b16 %v3440, %v3432
    %v3969 = vpack.c.b16 %v3441, %v3433
    %v3970 = vpack.c.b16 %v3442, %v3434
    %v3971 = vpack.c.b16 %v3451, %v3443
    %v3972 = vpack.c.b16 %v3452, %v3444
    %v3973 = vpack.c.b16 %v3453, %v3445
    %v3974 = vpack.c.b16 %v3454, %v3446
    %v3975 = vpack.c.b16 %v3455, %v3447
    %v3976 = vpack.c.b16 %v3456, %v3448
    %v3977 = vpack.c.b16 %v3457, %v3449
    %v3978 = vpack.c.b16 %v3458, %v3450
    %v3979 = vpack.c.b16 %v3467, %v3459
    %v3980 = vpack.c.b16 %v3468, %v3460
    %v3981 = vpack.c.b16 %v3469, %v3461
    %v3982 = vpack.c.b16 %v3470, %v3462
    %v3983 = vpack.c.b16 %v3471, %v3463
    %v3984 = vpack.c.b16 %v3472, %v3464
    %v3985 = vpack.c.b16 %v3473, %v3465
    %v3986 = vpack.c.b16 %v3474, %v3466
    %4499 = vmatprep.subr.bf16.mxu0 %v3476
    %4500 = vmatpush1.bf16.msra.mxu0 %v3475
    %4501 = vmatprep.subr.bf16.mxu0 %v3484
    %4502 = vmatpush1.bf16.msra.mxu0 %v3483
    %4503 = vmatprep.subr.bf16.mxu0 %v3492
    %4504 = vmatpush1.bf16.msra.mxu0 %v3491
    %4505 = vmatprep.subr.bf16.mxu0 %v3500
    %4506 = vmatpush1.bf16.msra.mxu0 %v3499
    %4507 = vmatprep.subr.bf16.mxu0 %v3508
    %4508 = vmatpush1.bf16.msra.mxu0 %v3507
    %4509 = vmatprep.subr.bf16.mxu0 %v3516
    %4510 = vmatpush1.bf16.msra.mxu0 %v3515
    %4511 = vmatprep.subr.bf16.mxu0 %v3524
    %4512 = vmatpush1.bf16.msra.mxu0 %v3523
    %4513 = vmatprep.subr.bf16.mxu0 %v3532
    %4514 = vmatpush1.bf16.msra.mxu0 %v3531
    %4515 = vmatprep.subr.bf16.mxu0 %v3540
    %4516 = vmatpush1.bf16.msra.mxu0 %v3539
    %4517 = vmatprep.subr.bf16.mxu0 %v3548
    %4518 = vmatpush1.bf16.msra.mxu0 %v3547
    %4519 = vmatprep.subr.bf16.mxu0 %v3556
    %4520 = vmatpush1.bf16.msra.mxu0 %v3555
    %4521 = vmatprep.subr.bf16.mxu0 %v3564
    %4522 = vmatpush1.bf16.msra.mxu0 %v3563
    %4523 = vmatprep.subr.bf16.mxu0 %v3572
    %4524 = vmatpush1.bf16.msra.mxu0 %v3571
    %4525 = vmatprep.subr.bf16.mxu0 %v3580
    %4526 = vmatpush1.bf16.msra.mxu0 %v3579
    %4527 = vmatprep.subr.bf16.mxu0 %v3588
    %4528 = vmatpush1.bf16.msra.mxu0 %v3587
    %4529 = vmatprep.subr.bf16.mxu0 %v3596
    %4530 = vmatpush1.bf16.msra.mxu0 %v3595
    %4531 = vmatprep.mubr.bf16.mxu0 %v1378
    %4532 = vmatmul.mubr.bf16.gmra.mrb[0].mxu0 %v1377
    %v4533 = vpop.f32.mrb[0].mxu0
    %v4534 = vadd.f32 %v1902, %v4533
    %v4535 = vpop.f32.mrb[0].mxu0
    %v4536 = vadd.f32 %v1906, %v4535
    %v4537 = vpop.f32.mrb[0].mxu0
    %v4538 = vpop.f32.mrb[0].mxu0
    %4539 = vdwg.mxu0
    %4540 = vmatprep.subr.bf16.mxu0 %v3604
    %4541 = vmatpush1.bf16.msra.mxu0 %v3603
    %4542 = vmatprep.subr.bf16.mxu0 %v3612
    %4543 = vmatpush1.bf16.msra.mxu0 %v3611
    %4544 = vmatprep.subr.bf16.mxu0 %v3620
    %4545 = vmatpush1.bf16.msra.mxu0 %v3619
    %4546 = vmatprep.subr.bf16.mxu0 %v3628
    %4547 = vmatpush1.bf16.msra.mxu0 %v3627
    %4548 = vmatprep.subr.bf16.mxu0 %v3636
    %4549 = vmatpush1.bf16.msra.mxu0 %v3635
    %4550 = vmatprep.subr.bf16.mxu0 %v3644
    %4551 = vmatpush1.bf16.msra.mxu0 %v3643
    %4552 = vmatprep.subr.bf16.mxu0 %v3652
    %4553 = vmatpush1.bf16.msra.mxu0 %v3651
    %4554 = vmatprep.subr.bf16.mxu0 %v3660
    %4555 = vmatpush1.bf16.msra.mxu0 %v3659
    %4556 = vmatprep.subr.bf16.mxu0 %v3668
    %4557 = vmatpush1.bf16.msra.mxu0 %v3667
    %4558 = vmatprep.subr.bf16.mxu0 %v3676
    %4559 = vmatpush1.bf16.msra.mxu0 %v3675
    %4560 = vmatprep.subr.bf16.mxu0 %v3684
    %4561 = vmatpush1.bf16.msra.mxu0 %v3683
    %4562 = vmatprep.subr.bf16.mxu0 %v3692
    %4563 = vmatpush1.bf16.msra.mxu0 %v3691
    %4564 = vmatprep.subr.bf16.mxu0 %v3700
    %4565 = vmatpush1.bf16.msra.mxu0 %v3699
    %4566 = vmatprep.subr.bf16.mxu0 %v3708
    %4567 = vmatpush1.bf16.msra.mxu0 %v3707
    %4568 = vmatprep.subr.bf16.mxu0 %v3716
    %4569 = vmatpush1.bf16.msra.mxu0 %v3715
    %4570 = vmatprep.subr.bf16.mxu0 %v3724
    %4571 = vmatpush1.bf16.msra.mxu0 %v3723
    %4572 = vmatprep.mubr.bf16.mxu0 %v1380
    %4573 = vmatmul.mubr.bf16.gmra.mrb[0].mxu0 %v1379
    %v4574 = vpop.f32.mrb[0].mxu0
    %v4575 = vadd.f32 %v4534, %v4574
    %v4576 = vpop.f32.mrb[0].mxu0
    %v4577 = vadd.f32 %v4536, %v4576
    %v4578 = vpop.f32.mrb[0].mxu0
    %v4579 = vpop.f32.mrb[0].mxu0
    %4580 = vdwg.mxu0
    %4581 = vmatprep.subr.bf16.mxu0 %v3732
    %4582 = vmatpush1.bf16.msra.mxu0 %v3731
    %4583 = vmatprep.subr.bf16.mxu0 %v3740
    %4584 = vmatpush1.bf16.msra.mxu0 %v3739
    %4585 = vmatprep.subr.bf16.mxu0 %v3748
    %4586 = vmatpush1.bf16.msra.mxu0 %v3747
    %4587 = vmatprep.subr.bf16.mxu0 %v3756
    %4588 = vmatpush1.bf16.msra.mxu0 %v3755
    %4589 = vmatprep.subr.bf16.mxu0 %v3764
    %4590 = vmatpush1.bf16.msra.mxu0 %v3763
    %4591 = vmatprep.subr.bf16.mxu0 %v3772
    %4592 = vmatpush1.bf16.msra.mxu0 %v3771
    %4593 = vmatprep.subr.bf16.mxu0 %v3780
    %4594 = vmatpush1.bf16.msra.mxu0 %v3779
    %4595 = vmatprep.subr.bf16.mxu0 %v3788
    %4596 = vmatpush1.bf16.msra.mxu0 %v3787
    %4597 = vmatprep.subr.bf16.mxu0 %v3796
    %4598 = vmatpush1.bf16.msra.mxu0 %v3795
    %4599 = vmatprep.subr.bf16.mxu0 %v3804
    %4600 = vmatpush1.bf16.msra.mxu0 %v3803
    %4601 = vmatprep.subr.bf16.mxu0 %v3812
    %4602 = vmatpush1.bf16.msra.mxu0 %v3811
    %4603 = vmatprep.subr.bf16.mxu0 %v3820
    %4604 = vmatpush1.bf16.msra.mxu0 %v3819
    %4605 = vmatprep.subr.bf16.mxu0 %v3828
    %4606 = vmatpush1.bf16.msra.mxu0 %v3827
    %4607 = vmatprep.subr.bf16.mxu0 %v3836
    %4608 = vmatpush1.bf16.msra.mxu0 %v3835
    %4609 = vmatprep.subr.bf16.mxu0 %v3844
    %4610 = vmatpush1.bf16.msra.mxu0 %v3843
    %4611 = vmatprep.subr.bf16.mxu0 %v3852
    %4612 = vmatpush1.bf16.msra.mxu0 %v3851
    %4613 = vmatprep.mubr.bf16.mxu0 %v1382
    %4614 = vmatmul.mubr.bf16.gmra.mrb[0].mxu0 %v1381
    %v4615 = vpop.f32.mrb[0].mxu0
    %v4616 = vadd.f32 %v4575, %v4615
    %v4617 = vpop.f32.mrb[0].mxu0
    %v4618 = vadd.f32 %v4577, %v4617
    %v4619 = vpop.f32.mrb[0].mxu0
    %v4620 = vpop.f32.mrb[0].mxu0
    %4621 = vdwg.mxu0
    %4622 = vmatprep.subr.bf16.mxu0 %v3860
    %4623 = vmatpush1.bf16.msra.mxu0 %v3859
    %4624 = vmatprep.subr.bf16.mxu0 %v3868
    %4625 = vmatpush1.bf16.msra.mxu0 %v3867
    %4626 = vmatprep.subr.bf16.mxu0 %v3876
    %4627 = vmatpush1.bf16.msra.mxu0 %v3875
    %4628 = vmatprep.subr.bf16.mxu0 %v3884
    %4629 = vmatpush1.bf16.msra.mxu0 %v3883
    %4630 = vmatprep.subr.bf16.mxu0 %v3892
    %4631 = vmatpush1.bf16.msra.mxu0 %v3891
    %4632 = vmatprep.subr.bf16.mxu0 %v3900
    %4633 = vmatpush1.bf16.msra.mxu0 %v3899
    %4634 = vmatprep.subr.bf16.mxu0 %v3908
    %4635 = vmatpush1.bf16.msra.mxu0 %v3907
    %4636 = vmatprep.subr.bf16.mxu0 %v3916
    %4637 = vmatpush1.bf16.msra.mxu0 %v3915
    %4638 = vmatprep.subr.bf16.mxu0 %v3924
    %4639 = vmatpush1.bf16.msra.mxu0 %v3923
    %4640 = vmatprep.subr.bf16.mxu0 %v3932
    %4641 = vmatpush1.bf16.msra.mxu0 %v3931
    %4642 = vmatprep.subr.bf16.mxu0 %v3940
    %4643 = vmatpush1.bf16.msra.mxu0 %v3939
    %4644 = vmatprep.subr.bf16.mxu0 %v3948
    %4645 = vmatpush1.bf16.msra.mxu0 %v3947
    %4646 = vmatprep.subr.bf16.mxu0 %v3956
    %4647 = vmatpush1.bf16.msra.mxu0 %v3955
    %4648 = vmatprep.subr.bf16.mxu0 %v3964
    %4649 = vmatpush1.bf16.msra.mxu0 %v3963
    %4650 = vmatprep.subr.bf16.mxu0 %v3972
    %4651 = vmatpush1.bf16.msra.mxu0 %v3971
    %4652 = vmatprep.subr.bf16.mxu0 %v3980
    %4653 = vmatpush1.bf16.msra.mxu0 %v3979
    %4654 = vmatprep.mubr.bf16.mxu0 %v1384
    %4655 = vmatmul.mubr.bf16.gmra.mrb[0].mxu0 %v1383
    %v4656 = vpop.f32.mrb[0].mxu0
    %v4657 = vadd.f32 %v4616, %v4656
    %v4658 = vpop.f32.mrb[0].mxu0
    %v4659 = vadd.f32 %v4618, %v4658
    %v4660 = vpop.f32.mrb[0].mxu0
    %v4661 = vpop.f32.mrb[0].mxu0
    %4662 = vdwg.mxu0
    %4663 = vmatprep.subr.bf16.mxu0 %v3478
    %4664 = vmatpush1.bf16.msra.mxu0 %v3477
    %4665 = vmatprep.subr.bf16.mxu0 %v3486
    %4666 = vmatpush1.bf16.msra.mxu0 %v3485
    %4667 = vmatprep.subr.bf16.mxu0 %v3494
    %4668 = vmatpush1.bf16.msra.mxu0 %v3493
    %4669 = vmatprep.subr.bf16.mxu0 %v3502
    %4670 = vmatpush1.bf16.msra.mxu0 %v3501
    %4671 = vmatprep.subr.bf16.mxu0 %v3510
    %4672 = vmatpush1.bf16.msra.mxu0 %v3509
    %4673 = vmatprep.subr.bf16.mxu0 %v3518
    %4674 = vmatpush1.bf16.msra.mxu0 %v3517
    %4675 = vmatprep.subr.bf16.mxu0 %v3526
    %4676 = vmatpush1.bf16.msra.mxu0 %v3525
    %4677 = vmatprep.subr.bf16.mxu0 %v3534
    %4678 = vmatpush1.bf16.msra.mxu0 %v3533
    %4679 = vmatprep.subr.bf16.mxu0 %v3542
    %4680 = vmatpush1.bf16.msra.mxu0 %v3541
    %4681 = vmatprep.subr.bf16.mxu0 %v3550
    %4682 = vmatpush1.bf16.msra.mxu0 %v3549
    %4683 = vmatprep.subr.bf16.mxu0 %v3558
    %4684 = vmatpush1.bf16.msra.mxu0 %v3557
    %4685 = vmatprep.subr.bf16.mxu0 %v3566
    %4686 = vmatpush1.bf16.msra.mxu0 %v3565
    %4687 = vmatprep.subr.bf16.mxu0 %v3574
    %4688 = vmatpush1.bf16.msra.mxu0 %v3573
    %4689 = vmatprep.subr.bf16.mxu0 %v3582
    %4690 = vmatpush1.bf16.msra.mxu0 %v3581
    %4691 = vmatprep.subr.bf16.mxu0 %v3590
    %4692 = vmatpush1.bf16.msra.mxu0 %v3589
    %4693 = vmatprep.subr.bf16.mxu0 %v3598
    %4694 = vmatpush1.bf16.msra.mxu0 %v3597
    %4695 = vmatprep.mubr.bf16.mxu0 %v1378
    %4696 = vmatmul.mubr.bf16.gmra.mrb[0].mxu0 %v1377
    %v4697 = vpop.f32.mrb[0].mxu0
    %v4698 = vadd.f32 %v1910, %v4697
    %v4699 = vpop.f32.mrb[0].mxu0
    %v4700 = vadd.f32 %v1914, %v4699
    %v4701 = vpop.f32.mrb[0].mxu0
    %v4702 = vpop.f32.mrb[0].mxu0
    %4703 = vdwg.mxu0
    %4704 = vmatprep.subr.bf16.mxu0 %v3606
    %4705 = vmatpush1.bf16.msra.mxu0 %v3605
    %4706 = vmatprep.subr.bf16.mxu0 %v3614
    %4707 = vmatpush1.bf16.msra.mxu0 %v3613
    %4708 = vmatprep.subr.bf16.mxu0 %v3622
    %4709 = vmatpush1.bf16.msra.mxu0 %v3621
    %4710 = vmatprep.subr.bf16.mxu0 %v3630
    %4711 = vmatpush1.bf16.msra.mxu0 %v3629
    %4712 = vmatprep.subr.bf16.mxu0 %v3638
    %4713 = vmatpush1.bf16.msra.mxu0 %v3637
    %4714 = vmatprep.subr.bf16.mxu0 %v3646
    %4715 = vmatpush1.bf16.msra.mxu0 %v3645
    %4716 = vmatprep.subr.bf16.mxu0 %v3654
    %4717 = vmatpush1.bf16.msra.mxu0 %v3653
    %4718 = vmatprep.subr.bf16.mxu0 %v3662
    %4719 = vmatpush1.bf16.msra.mxu0 %v3661
    %4720 = vmatprep.subr.bf16.mxu0 %v3670
    %4721 = vmatpush1.bf16.msra.mxu0 %v3669
    %4722 = vmatprep.subr.bf16.mxu0 %v3678
    %4723 = vmatpush1.bf16.msra.mxu0 %v3677
    %4724 = vmatprep.subr.bf16.mxu0 %v3686
    %4725 = vmatpush1.bf16.msra.mxu0 %v3685
    %4726 = vmatprep.subr.bf16.mxu0 %v3694
    %4727 = vmatpush1.bf16.msra.mxu0 %v3693
    %4728 = vmatprep.subr.bf16.mxu0 %v3702
    %4729 = vmatpush1.bf16.msra.mxu0 %v3701
    %4730 = vmatprep.subr.bf16.mxu0 %v3710
    %4731 = vmatpush1.bf16.msra.mxu0 %v3709
    %4732 = vmatprep.subr.bf16.mxu0 %v3718
    %4733 = vmatpush1.bf16.msra.mxu0 %v3717
    %4734 = vmatprep.subr.bf16.mxu0 %v3726
    %4735 = vmatpush1.bf16.msra.mxu0 %v3725
    %4736 = vmatprep.mubr.bf16.mxu0 %v1380
    %4737 = vmatmul.mubr.bf16.gmra.mrb[0].mxu0 %v1379
    %v4738 = vpop.f32.mrb[0].mxu0
    %v4739 = vadd.f32 %v4698, %v4738
    %v4740 = vpop.f32.mrb[0].mxu0
    %v4741 = vadd.f32 %v4700, %v4740
    %v4742 = vpop.f32.mrb[0].mxu0
    %v4743 = vpop.f32.mrb[0].mxu0
    %4744 = vdwg.mxu0
    %4745 = vmatprep.subr.bf16.mxu0 %v3734
    %4746 = vmatpush1.bf16.msra.mxu0 %v3733
    %4747 = vmatprep.subr.bf16.mxu0 %v3742
    %4748 = vmatpush1.bf16.msra.mxu0 %v3741
    %4749 = vmatprep.subr.bf16.mxu0 %v3750
    %4750 = vmatpush1.bf16.msra.mxu0 %v3749
    %4751 = vmatprep.subr.bf16.mxu0 %v3758
    %4752 = vmatpush1.bf16.msra.mxu0 %v3757
    %4753 = vmatprep.subr.bf16.mxu0 %v3766
    %4754 = vmatpush1.bf16.msra.mxu0 %v3765
    %4755 = vmatprep.subr.bf16.mxu0 %v3774
    %4756 = vmatpush1.bf16.msra.mxu0 %v3773
    %4757 = vmatprep.subr.bf16.mxu0 %v3782
    %4758 = vmatpush1.bf16.msra.mxu0 %v3781
    %4759 = vmatprep.subr.bf16.mxu0 %v3790
    %4760 = vmatpush1.bf16.msra.mxu0 %v3789
    %4761 = vmatprep.subr.bf16.mxu0 %v3798
    %4762 = vmatpush1.bf16.msra.mxu0 %v3797
    %4763 = vmatprep.subr.bf16.mxu0 %v3806
    %4764 = vmatpush1.bf16.msra.mxu0 %v3805
    %4765 = vmatprep.subr.bf16.mxu0 %v3814
    %4766 = vmatpush1.bf16.msra.mxu0 %v3813
    %4767 = vmatprep.subr.bf16.mxu0 %v3822
    %4768 = vmatpush1.bf16.msra.mxu0 %v3821
    %4769 = vmatprep.subr.bf16.mxu0 %v3830
    %4770 = vmatpush1.bf16.msra.mxu0 %v3829
    %4771 = vmatprep.subr.bf16.mxu0 %v3838
    %4772 = vmatpush1.bf16.msra.mxu0 %v3837
    %4773 = vmatprep.subr.bf16.mxu0 %v3846
    %4774 = vmatpush1.bf16.msra.mxu0 %v3845
    %4775 = vmatprep.subr.bf16.mxu0 %v3854
    %4776 = vmatpush1.bf16.msra.mxu0 %v3853
    %4777 = vmatprep.mubr.bf16.mxu0 %v1382
    %4778 = vmatmul.mubr.bf16.gmra.mrb[0].mxu0 %v1381
    %v4779 = vpop.f32.mrb[0].mxu0
    %v4780 = vadd.f32 %v4739, %v4779
    %v4781 = vpop.f32.mrb[0].mxu0
    %v4782 = vadd.f32 %v4741, %v4781
    %v4783 = vpop.f32.mrb[0].mxu0
    %v4784 = vpop.f32.mrb[0].mxu0
    %4785 = vdwg.mxu0
    %4786 = vmatprep.subr.bf16.mxu0 %v3862
    %4787 = vmatpush1.bf16.msra.mxu0 %v3861
    %4788 = vmatprep.subr.bf16.mxu0 %v3870
    %4789 = vmatpush1.bf16.msra.mxu0 %v3869
    %4790 = vmatprep.subr.bf16.mxu0 %v3878
    %4791 = vmatpush1.bf16.msra.mxu0 %v3877
    %4792 = vmatprep.subr.bf16.mxu0 %v3886
    %4793 = vmatpush1.bf16.msra.mxu0 %v3885
    %4794 = vmatprep.subr.bf16.mxu0 %v3894
    %4795 = vmatpush1.bf16.msra.mxu0 %v3893
    %4796 = vmatprep.subr.bf16.mxu0 %v3902
    %4797 = vmatpush1.bf16.msra.mxu0 %v3901
    %4798 = vmatprep.subr.bf16.mxu0 %v3910
    %4799 = vmatpush1.bf16.msra.mxu0 %v3909
    %4800 = vmatprep.subr.bf16.mxu0 %v3918
    %4801 = vmatpush1.bf16.msra.mxu0 %v3917
    %4802 = vmatprep.subr.bf16.mxu0 %v3926
    %4803 = vmatpush1.bf16.msra.mxu0 %v3925
    %4804 = vmatprep.subr.bf16.mxu0 %v3934
    %4805 = vmatpush1.bf16.msra.mxu0 %v3933
    %4806 = vmatprep.subr.bf16.mxu0 %v3942
    %4807 = vmatpush1.bf16.msra.mxu0 %v3941
    %4808 = vmatprep.subr.bf16.mxu0 %v3950
    %4809 = vmatpush1.bf16.msra.mxu0 %v3949
    %4810 = vmatprep.subr.bf16.mxu0 %v3958
    %4811 = vmatpush1.bf16.msra.mxu0 %v3957
    %4812 = vmatprep.subr.bf16.mxu0 %v3966
    %4813 = vmatpush1.bf16.msra.mxu0 %v3965
    %4814 = vmatprep.subr.bf16.mxu0 %v3974
    %4815 = vmatpush1.bf16.msra.mxu0 %v3973
    %4816 = vmatprep.subr.bf16.mxu0 %v3982
    %4817 = vmatpush1.bf16.msra.mxu0 %v3981
    %4818 = vmatprep.mubr.bf16.mxu0 %v1384
    %4819 = vmatmul.mubr.bf16.gmra.mrb[0].mxu0 %v1383
    %v4820 = vpop.f32.mrb[0].mxu0
    %v4821 = vadd.f32 %v4780, %v4820
    %v4822 = vpop.f32.mrb[0].mxu0
    %v4823 = vadd.f32 %v4782, %v4822
    %v4824 = vpop.f32.mrb[0].mxu0
    %v4825 = vpop.f32.mrb[0].mxu0
    %4826 = vdwg.mxu0
    %4827 = vmatprep.subr.bf16.mxu0 %v3480
    %4828 = vmatpush1.bf16.msra.mxu0 %v3479
    %4829 = vmatprep.subr.bf16.mxu0 %v3488
    %4830 = vmatpush1.bf16.msra.mxu0 %v3487
    %4831 = vmatprep.subr.bf16.mxu0 %v3496
    %4832 = vmatpush1.bf16.msra.mxu0 %v3495
    %4833 = vmatprep.subr.bf16.mxu0 %v3504
    %4834 = vmatpush1.bf16.msra.mxu0 %v3503
    %4835 = vmatprep.subr.bf16.mxu0 %v3512
    %4836 = vmatpush1.bf16.msra.mxu0 %v3511
    %4837 = vmatprep.subr.bf16.mxu0 %v3520
    %4838 = vmatpush1.bf16.msra.mxu0 %v3519
    %4839 = vmatprep.subr.bf16.mxu0 %v3528
    %4840 = vmatpush1.bf16.msra.mxu0 %v3527
    %4841 = vmatprep.subr.bf16.mxu0 %v3536
    %4842 = vmatpush1.bf16.msra.mxu0 %v3535
    %4843 = vmatprep.subr.bf16.mxu0 %v3544
    %4844 = vmatpush1.bf16.msra.mxu0 %v3543
    %4845 = vmatprep.subr.bf16.mxu0 %v3552
    %4846 = vmatpush1.bf16.msra.mxu0 %v3551
    %4847 = vmatprep.subr.bf16.mxu0 %v3560
    %4848 = vmatpush1.bf16.msra.mxu0 %v3559
    %4849 = vmatprep.subr.bf16.mxu0 %v3568
    %4850 = vmatpush1.bf16.msra.mxu0 %v3567
    %4851 = vmatprep.subr.bf16.mxu0 %v3576
    %4852 = vmatpush1.bf16.msra.mxu0 %v3575
    %4853 = vmatprep.subr.bf16.mxu0 %v3584
    %4854 = vmatpush1.bf16.msra.mxu0 %v3583
    %4855 = vmatprep.subr.bf16.mxu0 %v3592
    %4856 = vmatpush1.bf16.msra.mxu0 %v3591
    %4857 = vmatprep.subr.bf16.mxu0 %v3600
    %4858 = vmatpush1.bf16.msra.mxu0 %v3599
    %4859 = vmatprep.mubr.bf16.mxu0 %v1378
    %4860 = vmatmul.mubr.bf16.gmra.mrb[0].mxu0 %v1377
    %v4861 = vpop.f32.mrb[0].mxu0
    %v4862 = vadd.f32 %v1918, %v4861
    %v4863 = vpop.f32.mrb[0].mxu0
    %v4864 = vadd.f32 %v1922, %v4863
    %v4865 = vpop.f32.mrb[0].mxu0
    %v4866 = vpop.f32.mrb[0].mxu0
    %4867 = vdwg.mxu0
    %4868 = vmatprep.subr.bf16.mxu0 %v3608
    %4869 = vmatpush1.bf16.msra.mxu0 %v3607
    %4870 = vmatprep.subr.bf16.mxu0 %v3616
    %4871 = vmatpush1.bf16.msra.mxu0 %v3615
    %4872 = vmatprep.subr.bf16.mxu0 %v3624
    %4873 = vmatpush1.bf16.msra.mxu0 %v3623
    %4874 = vmatprep.subr.bf16.mxu0 %v3632
    %4875 = vmatpush1.bf16.msra.mxu0 %v3631
    %4876 = vmatprep.subr.bf16.mxu0 %v3640
    %4877 = vmatpush1.bf16.msra.mxu0 %v3639
    %4878 = vmatprep.subr.bf16.mxu0 %v3648
    %4879 = vmatpush1.bf16.msra.mxu0 %v3647
    %4880 = vmatprep.subr.bf16.mxu0 %v3656
    %4881 = vmatpush1.bf16.msra.mxu0 %v3655
    %4882 = vmatprep.subr.bf16.mxu0 %v3664
    %4883 = vmatpush1.bf16.msra.mxu0 %v3663
    %4884 = vmatprep.subr.bf16.mxu0 %v3672
    %4885 = vmatpush1.bf16.msra.mxu0 %v3671
    %4886 = vmatprep.subr.bf16.mxu0 %v3680
    %4887 = vmatpush1.bf16.msra.mxu0 %v3679
    %4888 = vmatprep.subr.bf16.mxu0 %v3688
    %4889 = vmatpush1.bf16.msra.mxu0 %v3687
    %4890 = vmatprep.subr.bf16.mxu0 %v3696
    %4891 = vmatpush1.bf16.msra.mxu0 %v3695
    %4892 = vmatprep.subr.bf16.mxu0 %v3704
    %4893 = vmatpush1.bf16.msra.mxu0 %v3703
    %4894 = vmatprep.subr.bf16.mxu0 %v3712
    %4895 = vmatpush1.bf16.msra.mxu0 %v3711
    %4896 = vmatprep.subr.bf16.mxu0 %v3720
    %4897 = vmatpush1.bf16.msra.mxu0 %v3719
    %4898 = vmatprep.subr.bf16.mxu0 %v3728
    %4899 = vmatpush1.bf16.msra.mxu0 %v3727
    %4900 = vmatprep.mubr.bf16.mxu0 %v1380
    %4901 = vmatmul.mubr.bf16.gmra.mrb[0].mxu0 %v1379
    %v4902 = vpop.f32.mrb[0].mxu0
    %v4903 = vadd.f32 %v4862, %v4902
    %v4904 = vpop.f32.mrb[0].mxu0
    %v4905 = vadd.f32 %v4864, %v4904
    %v4906 = vpop.f32.mrb[0].mxu0
    %v4907 = vpop.f32.mrb[0].mxu0
    %4908 = vdwg.mxu0
    %4909 = vmatprep.subr.bf16.mxu0 %v3736
    %4910 = vmatpush1.bf16.msra.mxu0 %v3735
    %4911 = vmatprep.subr.bf16.mxu0 %v3744
    %4912 = vmatpush1.bf16.msra.mxu0 %v3743
    %4913 = vmatprep.subr.bf16.mxu0 %v3752
    %4914 = vmatpush1.bf16.msra.mxu0 %v3751
    %4915 = vmatprep.subr.bf16.mxu0 %v3760
    %4916 = vmatpush1.bf16.msra.mxu0 %v3759
    %4917 = vmatprep.subr.bf16.mxu0 %v3768
    %4918 = vmatpush1.bf16.msra.mxu0 %v3767
    %4919 = vmatprep.subr.bf16.mxu0 %v3776
    %4920 = vmatpush1.bf16.msra.mxu0 %v3775
    %4921 = vmatprep.subr.bf16.mxu0 %v3784
    %4922 = vmatpush1.bf16.msra.mxu0 %v3783
    %4923 = vmatprep.subr.bf16.mxu0 %v3792
    %4924 = vmatpush1.bf16.msra.mxu0 %v3791
    %4925 = vmatprep.subr.bf16.mxu0 %v3800
    %4926 = vmatpush1.bf16.msra.mxu0 %v3799
    %4927 = vmatprep.subr.bf16.mxu0 %v3808
    %4928 = vmatpush1.bf16.msra.mxu0 %v3807
    %4929 = vmatprep.subr.bf16.mxu0 %v3816
    %4930 = vmatpush1.bf16.msra.mxu0 %v3815
    %4931 = vmatprep.subr.bf16.mxu0 %v3824
    %4932 = vmatpush1.bf16.msra.mxu0 %v3823
    %4933 = vmatprep.subr.bf16.mxu0 %v3832
    %4934 = vmatpush1.bf16.msra.mxu0 %v3831
    %4935 = vmatprep.subr.bf16.mxu0 %v3840
    %4936 = vmatpush1.bf16.msra.mxu0 %v3839
    %4937 = vmatprep.subr.bf16.mxu0 %v3848
    %4938 = vmatpush1.bf16.msra.mxu0 %v3847
    %4939 = vmatprep.subr.bf16.mxu0 %v3856
    %4940 = vmatpush1.bf16.msra.mxu0 %v3855
    %4941 = vmatprep.mubr.bf16.mxu0 %v1382
    %4942 = vmatmul.mubr.bf16.gmra.mrb[0].mxu0 %v1381
    %v4943 = vpop.f32.mrb[0].mxu0
    %v4944 = vadd.f32 %v4903, %v4943
    %v4945 = vpop.f32.mrb[0].mxu0
    %v4946 = vadd.f32 %v4905, %v4945
    %v4947 = vpop.f32.mrb[0].mxu0
    %v4948 = vpop.f32.mrb[0].mxu0
    %4949 = vdwg.mxu0
    %4950 = vmatprep.subr.bf16.mxu0 %v3864
    %4951 = vmatpush1.bf16.msra.mxu0 %v3863
    %4952 = vmatprep.subr.bf16.mxu0 %v3872
    %4953 = vmatpush1.bf16.msra.mxu0 %v3871
    %4954 = vmatprep.subr.bf16.mxu0 %v3880
    %4955 = vmatpush1.bf16.msra.mxu0 %v3879
    %4956 = vmatprep.subr.bf16.mxu0 %v3888
    %4957 = vmatpush1.bf16.msra.mxu0 %v3887
    %4958 = vmatprep.subr.bf16.mxu0 %v3896
    %4959 = vmatpush1.bf16.msra.mxu0 %v3895
    %4960 = vmatprep.subr.bf16.mxu0 %v3904
    %4961 = vmatpush1.bf16.msra.mxu0 %v3903
    %4962 = vmatprep.subr.bf16.mxu0 %v3912
    %4963 = vmatpush1.bf16.msra.mxu0 %v3911
    %4964 = vmatprep.subr.bf16.mxu0 %v3920
    %4965 = vmatpush1.bf16.msra.mxu0 %v3919
    %4966 = vmatprep.subr.bf16.mxu0 %v3928
    %4967 = vmatpush1.bf16.msra.mxu0 %v3927
    %4968 = vmatprep.subr.bf16.mxu0 %v3936
    %4969 = vmatpush1.bf16.msra.mxu0 %v3935
    %4970 = vmatprep.subr.bf16.mxu0 %v3944
    %4971 = vmatpush1.bf16.msra.mxu0 %v3943
    %4972 = vmatprep.subr.bf16.mxu0 %v3952
    %4973 = vmatpush1.bf16.msra.mxu0 %v3951
    %4974 = vmatprep.subr.bf16.mxu0 %v3960
    %4975 = vmatpush1.bf16.msra.mxu0 %v3959
    %4976 = vmatprep.subr.bf16.mxu0 %v3968
    %4977 = vmatpush1.bf16.msra.mxu0 %v3967
    %4978 = vmatprep.subr.bf16.mxu0 %v3976
    %4979 = vmatpush1.bf16.msra.mxu0 %v3975
    %4980 = vmatprep.subr.bf16.mxu0 %v3984
    %4981 = vmatpush1.bf16.msra.mxu0 %v3983
    %4982 = vmatprep.mubr.bf16.mxu0 %v1384
    %4983 = vmatmul.mubr.bf16.gmra.mrb[0].mxu0 %v1383
    %v4984 = vpop.f32.mrb[0].mxu0
    %v4985 = vadd.f32 %v4944, %v4984
    %v4986 = vpop.f32.mrb[0].mxu0
    %v4987 = vadd.f32 %v4946, %v4986
    %v4988 = vpop.f32.mrb[0].mxu0
    %v4989 = vpop.f32.mrb[0].mxu0
    %4990 = vdwg.mxu0
    %4991 = vmatprep.subr.bf16.mxu0 %v3482
    %4992 = vmatpush1.bf16.msra.mxu0 %v3481
    %4993 = vmatprep.subr.bf16.mxu0 %v3490
    %4994 = vmatpush1.bf16.msra.mxu0 %v3489
    %4995 = vmatprep.subr.bf16.mxu0 %v3498
    %4996 = vmatpush1.bf16.msra.mxu0 %v3497
    %4997 = vmatprep.subr.bf16.mxu0 %v3506
    %4998 = vmatpush1.bf16.msra.mxu0 %v3505
    %4999 = vmatprep.subr.bf16.mxu0 %v3514
    %5000 = vmatpush1.bf16.msra.mxu0 %v3513
    %5001 = vmatprep.subr.bf16.mxu0 %v3522
    %5002 = vmatpush1.bf16.msra.mxu0 %v3521
    %5003 = vmatprep.subr.bf16.mxu0 %v3530
    %5004 = vmatpush1.bf16.msra.mxu0 %v3529
    %5005 = vmatprep.subr.bf16.mxu0 %v3538
    %5006 = vmatpush1.bf16.msra.mxu0 %v3537
    %5007 = vmatprep.subr.bf16.mxu0 %v3546
    %5008 = vmatpush1.bf16.msra.mxu0 %v3545
    %5009 = vmatprep.subr.bf16.mxu0 %v3554
    %5010 = vmatpush1.bf16.msra.mxu0 %v3553
    %5011 = vmatprep.subr.bf16.mxu0 %v3562
    %5012 = vmatpush1.bf16.msra.mxu0 %v3561
    %5013 = vmatprep.subr.bf16.mxu0 %v3570
    %5014 = vmatpush1.bf16.msra.mxu0 %v3569
    %5015 = vmatprep.subr.bf16.mxu0 %v3578
    %5016 = vmatpush1.bf16.msra.mxu0 %v3577
    %5017 = vmatprep.subr.bf16.mxu0 %v3586
    %5018 = vmatpush1.bf16.msra.mxu0 %v3585
    %5019 = vmatprep.subr.bf16.mxu0 %v3594
    %5020 = vmatpush1.bf16.msra.mxu0 %v3593
    %5021 = vmatprep.subr.bf16.mxu0 %v3602
    %5022 = vmatpush1.bf16.msra.mxu0 %v3601
    %5023 = vmatprep.mubr.bf16.mxu0 %v1378
    %5024 = vmatmul.mubr.bf16.gmra.mrb[0].mxu0 %v1377
    %v5025 = vpop.f32.mrb[0].mxu0
    %v5026 = vadd.f32 %v1926, %v5025
    %v5027 = vpop.f32.mrb[0].mxu0
    %v5028 = vadd.f32 %v1930, %v5027
    %v5029 = vpop.f32.mrb[0].mxu0
    %v5030 = vpop.f32.mrb[0].mxu0
    %5031 = vdwg.mxu0
    %5032 = vmatprep.subr.bf16.mxu0 %v3610
    %5033 = vmatpush1.bf16.msra.mxu0 %v3609
    %5034 = vmatprep.subr.bf16.mxu0 %v3618
    %5035 = vmatpush1.bf16.msra.mxu0 %v3617
    %5036 = vmatprep.subr.bf16.mxu0 %v3626
    %5037 = vmatpush1.bf16.msra.mxu0 %v3625
    %5038 = vmatprep.subr.bf16.mxu0 %v3634
    %5039 = vmatpush1.bf16.msra.mxu0 %v3633
    %5040 = vmatprep.subr.bf16.mxu0 %v3642
    %5041 = vmatpush1.bf16.msra.mxu0 %v3641
    %5042 = vmatprep.subr.bf16.mxu0 %v3650
    %5043 = vmatpush1.bf16.msra.mxu0 %v3649
    %5044 = vmatprep.subr.bf16.mxu0 %v3658
    %5045 = vmatpush1.bf16.msra.mxu0 %v3657
    %5046 = vmatprep.subr.bf16.mxu0 %v3666
    %5047 = vmatpush1.bf16.msra.mxu0 %v3665
    %5048 = vmatprep.subr.bf16.mxu0 %v3674
    %5049 = vmatpush1.bf16.msra.mxu0 %v3673
    %5050 = vmatprep.subr.bf16.mxu0 %v3682
    %5051 = vmatpush1.bf16.msra.mxu0 %v3681
    %5052 = vmatprep.subr.bf16.mxu0 %v3690
    %5053 = vmatpush1.bf16.msra.mxu0 %v3689
    %5054 = vmatprep.subr.bf16.mxu0 %v3698
    %5055 = vmatpush1.bf16.msra.mxu0 %v3697
    %5056 = vmatprep.subr.bf16.mxu0 %v3706
    %5057 = vmatpush1.bf16.msra.mxu0 %v3705
    %5058 = vmatprep.subr.bf16.mxu0 %v3714
    %5059 = vmatpush1.bf16.msra.mxu0 %v3713
    %5060 = vmatprep.subr.bf16.mxu0 %v3722
    %5061 = vmatpush1.bf16.msra.mxu0 %v3721
    %5062 = vmatprep.subr.bf16.mxu0 %v3730
    %5063 = vmatpush1.bf16.msra.mxu0 %v3729
    %5064 = vmatprep.mubr.bf16.mxu0 %v1380
    %5065 = vmatmul.mubr.bf16.gmra.mrb[0].mxu0 %v1379
    %v5066 = vpop.f32.mrb[0].mxu0
    %v5067 = vadd.f32 %v5026, %v5066
    %v5068 = vpop.f32.mrb[0].mxu0
    %v5069 = vadd.f32 %v5028, %v5068
    %v5070 = vpop.f32.mrb[0].mxu0
    %v5071 = vpop.f32.mrb[0].mxu0
    %5072 = vdwg.mxu0
    %5073 = vmatprep.subr.bf16.mxu0 %v3738
    %5074 = vmatpush1.bf16.msra.mxu0 %v3737
    %5075 = vmatprep.subr.bf16.mxu0 %v3746
    %5076 = vmatpush1.bf16.msra.mxu0 %v3745
    %5077 = vmatprep.subr.bf16.mxu0 %v3754
    %5078 = vmatpush1.bf16.msra.mxu0 %v3753
    %5079 = vmatprep.subr.bf16.mxu0 %v3762
    %5080 = vmatpush1.bf16.msra.mxu0 %v3761
    %5081 = vmatprep.subr.bf16.mxu0 %v3770
    %5082 = vmatpush1.bf16.msra.mxu0 %v3769
    %5083 = vmatprep.subr.bf16.mxu0 %v3778
    %5084 = vmatpush1.bf16.msra.mxu0 %v3777
    %5085 = vmatprep.subr.bf16.mxu0 %v3786
    %5086 = vmatpush1.bf16.msra.mxu0 %v3785
    %5087 = vmatprep.subr.bf16.mxu0 %v3794
    %5088 = vmatpush1.bf16.msra.mxu0 %v3793
    %5089 = vmatprep.subr.bf16.mxu0 %v3802
    %5090 = vmatpush1.bf16.msra.mxu0 %v3801
    %5091 = vmatprep.subr.bf16.mxu0 %v3810
    %5092 = vmatpush1.bf16.msra.mxu0 %v3809
    %5093 = vmatprep.subr.bf16.mxu0 %v3818
    %5094 = vmatpush1.bf16.msra.mxu0 %v3817
    %5095 = vmatprep.subr.bf16.mxu0 %v3826
    %5096 = vmatpush1.bf16.msra.mxu0 %v3825
    %5097 = vmatprep.subr.bf16.mxu0 %v3834
    %5098 = vmatpush1.bf16.msra.mxu0 %v3833
    %5099 = vmatprep.subr.bf16.mxu0 %v3842
    %5100 = vmatpush1.bf16.msra.mxu0 %v3841
    %5101 = vmatprep.subr.bf16.mxu0 %v3850
    %5102 = vmatpush1.bf16.msra.mxu0 %v3849
    %5103 = vmatprep.subr.bf16.mxu0 %v3858
    %5104 = vmatpush1.bf16.msra.mxu0 %v3857
    %5105 = vmatprep.mubr.bf16.mxu0 %v1382
    %5106 = vmatmul.mubr.bf16.gmra.mrb[0].mxu0 %v1381
    %v5107 = vpop.f32.mrb[0].mxu0
    %v5108 = vadd.f32 %v5067, %v5107
    %v5109 = vpop.f32.mrb[0].mxu0
    %v5110 = vadd.f32 %v5069, %v5109
    %v5111 = vpop.f32.mrb[0].mxu0
    %v5112 = vpop.f32.mrb[0].mxu0
    %5113 = vdwg.mxu0
    %5114 = vmatprep.subr.bf16.mxu0 %v3866
    %5115 = vmatpush1.bf16.msra.mxu0 %v3865
    %5116 = vmatprep.subr.bf16.mxu0 %v3874
    %5117 = vmatpush1.bf16.msra.mxu0 %v3873
    %5118 = vmatprep.subr.bf16.mxu0 %v3882
    %5119 = vmatpush1.bf16.msra.mxu0 %v3881
    %5120 = vmatprep.subr.bf16.mxu0 %v3890
    %5121 = vmatpush1.bf16.msra.mxu0 %v3889
    %5122 = vmatprep.subr.bf16.mxu0 %v3898
    %5123 = vmatpush1.bf16.msra.mxu0 %v3897
    %5124 = vmatprep.subr.bf16.mxu0 %v3906
    %5125 = vmatpush1.bf16.msra.mxu0 %v3905
    %5126 = vmatprep.subr.bf16.mxu0 %v3914
    %5127 = vmatpush1.bf16.msra.mxu0 %v3913
    %5128 = vmatprep.subr.bf16.mxu0 %v3922
    %5129 = vmatpush1.bf16.msra.mxu0 %v3921
    %5130 = vmatprep.subr.bf16.mxu0 %v3930
    %5131 = vmatpush1.bf16.msra.mxu0 %v3929
    %5132 = vmatprep.subr.bf16.mxu0 %v3938
    %5133 = vmatpush1.bf16.msra.mxu0 %v3937
    %5134 = vmatprep.subr.bf16.mxu0 %v3946
    %5135 = vmatpush1.bf16.msra.mxu0 %v3945
    %5136 = vmatprep.subr.bf16.mxu0 %v3954
    %5137 = vmatpush1.bf16.msra.mxu0 %v3953
    %5138 = vmatprep.subr.bf16.mxu0 %v3962
    %5139 = vmatpush1.bf16.msra.mxu0 %v3961
    %5140 = vmatprep.subr.bf16.mxu0 %v3970
    %5141 = vmatpush1.bf16.msra.mxu0 %v3969
    %5142 = vmatprep.subr.bf16.mxu0 %v3978
    %5143 = vmatpush1.bf16.msra.mxu0 %v3977
    %5144 = vmatprep.subr.bf16.mxu0 %v3986
    %5145 = vmatpush1.bf16.msra.mxu0 %v3985
    %5146 = vmatprep.mubr.bf16.mxu0 %v1384
    %5147 = vmatmul.mubr.bf16.gmra.mrb[0].mxu0 %v1383
    %v5148 = vpop.f32.mrb[0].mxu0
    %v5149 = vadd.f32 %v5108, %v5148
    %v5150 = vpop.f32.mrb[0].mxu0
    %v5151 = vadd.f32 %v5110, %v5150
    %v5152 = vpop.f32.mrb[0].mxu0
    %v5153 = vpop.f32.mrb[0].mxu0
    %5154 = vdwg.mxu0
    %v5155 = vmax.f32 %v4657, 0.0
    %v5156 = vmax.f32 %v4659, 0.0
    %v5157 = vmax.f32 %v4821, 0.0
    %v5158 = vmax.f32 %v4823, 0.0
    %v5159 = vmax.f32 %v4985, 0.0
    %v5160 = vmax.f32 %v4987, 0.0
    %v5161 = vmax.f32 %v5149, 0.0
    %v5162 = vmax.f32 %v5151, 0.0
    %v5163 = vpack.c.bf16 %v5155, %v5155
    %v5164 = vpack.c.bf16 %v5156, %v5156
    %v5165 = vpack.c.bf16 %v5157, %v5157
    %v5166 = vpack.c.bf16 %v5158, %v5158
    %v5167 = vpack.c.bf16 %v5159, %v5159
    %v5168 = vpack.c.bf16 %v5160, %v5160
    %v5169 = vpack.c.bf16 %v5161, %v5161
    %v5170 = vpack.c.bf16 %v5162, %v5162
    %v5171 = vld [vmem:[%s7] sm:$0xf]
    %v5172 = vld [vmem:[%s7 + $0x4] sm:$0xf]
    %v5173 = vld [vmem:[%s7 + $0x8] sm:$0xf]
    %v5174 = vld [vmem:[%s7 + $0xc] sm:$0xf]
    %v5175 = vld [vmem:[%s7 + $0x10] sm:$0xf]
    %v5176 = vld [vmem:[%s7 + $0x14] sm:$0xf]
    %v5177 = vld [vmem:[%s7 + $0x18] sm:$0xf]
    %v5178 = vld [vmem:[%s7 + $0x1c] sm:$0xf]
    %v5179 = vld [vmem:[%s7 + $0x20] sm:$0xf]
    %v5180 = vld [vmem:[%s7 + $0x24] sm:$0xf]
    %v5181 = vld [vmem:[%s7 + $0x28] sm:$0xf]
    %v5182 = vld [vmem:[%s7 + $0x2c] sm:$0xf]
    %v5183 = vld [vmem:[%s7 + $0x30] sm:$0xf]
    %v5184 = vld [vmem:[%s7 + $0x34] sm:$0xf]
    %v5185 = vld [vmem:[%s7 + $0x38] sm:$0xf]
    %v5186 = vld [vmem:[%s7 + $0x3c] sm:$0xf]
    %v5187 = vld [vmem:[%s7 + $0x40] sm:$0xf]
    %v5188 = vld [vmem:[%s7 + $0x44] sm:$0xf]
    %v5189 = vld [vmem:[%s7 + $0x48] sm:$0xf]
    %v5190 = vld [vmem:[%s7 + $0x4c] sm:$0xf]
    %v5191 = vld [vmem:[%s7 + $0x50] sm:$0xf]
    %v5192 = vld [vmem:[%s7 + $0x54] sm:$0xf]
    %v5193 = vld [vmem:[%s7 + $0x58] sm:$0xf]
    %v5194 = vld [vmem:[%s7 + $0x5c] sm:$0xf]
    %v5195 = vld [vmem:[%s7 + $0x60] sm:$0xf]
    %v5196 = vld [vmem:[%s7 + $0x64] sm:$0xf]
    %v5197 = vld [vmem:[%s7 + $0x68] sm:$0xf]
    %v5198 = vld [vmem:[%s7 + $0x6c] sm:$0xf]
    %v5199 = vld [vmem:[%s7 + $0x70] sm:$0xf]
    %v5200 = vld [vmem:[%s7 + $0x74] sm:$0xf]
    %v5201 = vld [vmem:[%s7 + $0x78] sm:$0xf]
    %v5202 = vld [vmem:[%s7 + $0x7c] sm:$0xf]
    %v5203 = vld [vmem:[%s7 + $0x80] sm:$0xf]
    %v5204 = vld [vmem:[%s7 + $0x84] sm:$0xf]
    %v5205 = vld [vmem:[%s7 + $0x88] sm:$0xf]
    %v5206 = vld [vmem:[%s7 + $0x8c] sm:$0xf]
    %v5207 = vld [vmem:[%s7 + $0x90] sm:$0xf]
    %v5208 = vld [vmem:[%s7 + $0x94] sm:$0xf]
    %v5209 = vld [vmem:[%s7 + $0x98] sm:$0xf]
    %v5210 = vld [vmem:[%s7 + $0x9c] sm:$0xf]
    %v5211 = vld [vmem:[%s7 + $0xa0] sm:$0xf]
    %v5212 = vld [vmem:[%s7 + $0xa4] sm:$0xf]
    %v5213 = vld [vmem:[%s7 + $0xa8] sm:$0xf]
    %v5214 = vld [vmem:[%s7 + $0xac] sm:$0xf]
    %v5215 = vld [vmem:[%s7 + $0xb0] sm:$0xf]
    %v5216 = vld [vmem:[%s7 + $0xb4] sm:$0xf]
    %v5217 = vld [vmem:[%s7 + $0xb8] sm:$0xf]
    %v5218 = vld [vmem:[%s7 + $0xbc] sm:$0xf]
    %v5219 = vld [vmem:[%s7 + $0xc0] sm:$0xf]
    %v5220 = vld [vmem:[%s7 + $0xc4] sm:$0xf]
    %v5221 = vld [vmem:[%s7 + $0xc8] sm:$0xf]
    %v5222 = vld [vmem:[%s7 + $0xcc] sm:$0xf]
    %v5223 = vld [vmem:[%s7 + $0xd0] sm:$0xf]
    %v5224 = vld [vmem:[%s7 + $0xd4] sm:$0xf]
    %v5225 = vld [vmem:[%s7 + $0xd8] sm:$0xf]
    %v5226 = vld [vmem:[%s7 + $0xdc] sm:$0xf]
    %v5227 = vld [vmem:[%s7 + $0xe0] sm:$0xf]
    %v5228 = vld [vmem:[%s7 + $0xe4] sm:$0xf]
    %v5229 = vld [vmem:[%s7 + $0xe8] sm:$0xf]
    %v5230 = vld [vmem:[%s7 + $0xec] sm:$0xf]
    %v5231 = vld [vmem:[%s7 + $0xf0] sm:$0xf]
    %v5232 = vld [vmem:[%s7 + $0xf4] sm:$0xf]
    %v5233 = vld [vmem:[%s7 + $0xf8] sm:$0xf]
    %v5234 = vld [vmem:[%s7 + $0xfc] sm:$0xf]
    %v5235 = vld [vmem:[%s7 + $0x100] sm:$0xf]
    %v5236 = vld [vmem:[%s7 + $0x104] sm:$0xf]
    %v5237 = vld [vmem:[%s7 + $0x108] sm:$0xf]
    %v5238 = vld [vmem:[%s7 + $0x10c] sm:$0xf]
    %v5239 = vld [vmem:[%s7 + $0x110] sm:$0xf]
    %v5240 = vld [vmem:[%s7 + $0x114] sm:$0xf]
    %v5241 = vld [vmem:[%s7 + $0x118] sm:$0xf]
    %v5242 = vld [vmem:[%s7 + $0x11c] sm:$0xf]
    %v5243 = vld [vmem:[%s7 + $0x120] sm:$0xf]
    %v5244 = vld [vmem:[%s7 + $0x124] sm:$0xf]
    %v5245 = vld [vmem:[%s7 + $0x128] sm:$0xf]
    %v5246 = vld [vmem:[%s7 + $0x12c] sm:$0xf]
    %v5247 = vld [vmem:[%s7 + $0x130] sm:$0xf]
    %v5248 = vld [vmem:[%s7 + $0x134] sm:$0xf]
    %v5249 = vld [vmem:[%s7 + $0x138] sm:$0xf]
    %v5250 = vld [vmem:[%s7 + $0x13c] sm:$0xf]
    %v5251 = vld [vmem:[%s7 + $0x140] sm:$0xf]
    %v5252 = vld [vmem:[%s7 + $0x144] sm:$0xf]
    %v5253 = vld [vmem:[%s7 + $0x148] sm:$0xf]
    %v5254 = vld [vmem:[%s7 + $0x14c] sm:$0xf]
    %v5255 = vld [vmem:[%s7 + $0x150] sm:$0xf]
    %v5256 = vld [vmem:[%s7 + $0x154] sm:$0xf]
    %v5257 = vld [vmem:[%s7 + $0x158] sm:$0xf]
    %v5258 = vld [vmem:[%s7 + $0x15c] sm:$0xf]
    %v5259 = vld [vmem:[%s7 + $0x160] sm:$0xf]
    %v5260 = vld [vmem:[%s7 + $0x164] sm:$0xf]
    %v5261 = vld [vmem:[%s7 + $0x168] sm:$0xf]
    %v5262 = vld [vmem:[%s7 + $0x16c] sm:$0xf]
    %v5263 = vld [vmem:[%s7 + $0x170] sm:$0xf]
    %v5264 = vld [vmem:[%s7 + $0x174] sm:$0xf]
    %v5265 = vld [vmem:[%s7 + $0x178] sm:$0xf]
    %v5266 = vld [vmem:[%s7 + $0x17c] sm:$0xf]
    %v5267 = vld [vmem:[%s7 + $0x180] sm:$0xf]
    %v5268 = vld [vmem:[%s7 + $0x184] sm:$0xf]
    %v5269 = vld [vmem:[%s7 + $0x188] sm:$0xf]
    %v5270 = vld [vmem:[%s7 + $0x18c] sm:$0xf]
    %v5271 = vld [vmem:[%s7 + $0x190] sm:$0xf]
    %v5272 = vld [vmem:[%s7 + $0x194] sm:$0xf]
    %v5273 = vld [vmem:[%s7 + $0x198] sm:$0xf]
    %v5274 = vld [vmem:[%s7 + $0x19c] sm:$0xf]
    %v5275 = vld [vmem:[%s7 + $0x1a0] sm:$0xf]
    %v5276 = vld [vmem:[%s7 + $0x1a4] sm:$0xf]
    %v5277 = vld [vmem:[%s7 + $0x1a8] sm:$0xf]
    %v5278 = vld [vmem:[%s7 + $0x1ac] sm:$0xf]
    %v5279 = vld [vmem:[%s7 + $0x1b0] sm:$0xf]
    %v5280 = vld [vmem:[%s7 + $0x1b4] sm:$0xf]
    %v5281 = vld [vmem:[%s7 + $0x1b8] sm:$0xf]
    %v5282 = vld [vmem:[%s7 + $0x1bc] sm:$0xf]
    %v5283 = vld [vmem:[%s7 + $0x1c0] sm:$0xf]
    %v5284 = vld [vmem:[%s7 + $0x1c4] sm:$0xf]
    %v5285 = vld [vmem:[%s7 + $0x1c8] sm:$0xf]
    %v5286 = vld [vmem:[%s7 + $0x1cc] sm:$0xf]
    %v5287 = vld [vmem:[%s7 + $0x1d0] sm:$0xf]
    %v5288 = vld [vmem:[%s7 + $0x1d4] sm:$0xf]
    %v5289 = vld [vmem:[%s7 + $0x1d8] sm:$0xf]
    %v5290 = vld [vmem:[%s7 + $0x1dc] sm:$0xf]
    %v5291 = vld [vmem:[%s7 + $0x1e0] sm:$0xf]
    %v5292 = vld [vmem:[%s7 + $0x1e4] sm:$0xf]
    %v5293 = vld [vmem:[%s7 + $0x1e8] sm:$0xf]
    %v5294 = vld [vmem:[%s7 + $0x1ec] sm:$0xf]
    %v5295 = vld [vmem:[%s7 + $0x1f0] sm:$0xf]
    %v5296 = vld [vmem:[%s7 + $0x1f4] sm:$0xf]
    %v5297 = vld [vmem:[%s7 + $0x1f8] sm:$0xf]
    %v5298 = vld [vmem:[%s7 + $0x1fc] sm:$0xf]
    %v5299 = vld [vmem:[%s8] sm:$0x1]
    %v5301 = vlaneseq
    %v5302 = vshrl.u32 %v5301, 7
    %v5303 = vsub.s32 0, %v5302
    %v5304 = vrot.slane %v5299, %v5303
    %v5434 = vunpack.c.l.b16 %v5171
    %v5435 = vunpack.c.l.b16 %v5172
    %v5436 = vunpack.c.l.b16 %v5173
    %v5437 = vunpack.c.l.b16 %v5174
    %v5438 = vunpack.c.l.b16 %v5175
    %v5439 = vunpack.c.l.b16 %v5176
    %v5440 = vunpack.c.l.b16 %v5177
    %v5441 = vunpack.c.l.b16 %v5178
    %v5442 = vunpack.c.l.b16 %v5179
    %v5443 = vunpack.c.l.b16 %v5180
    %v5444 = vunpack.c.l.b16 %v5181
    %v5445 = vunpack.c.l.b16 %v5182
    %v5446 = vunpack.c.l.b16 %v5183
    %v5447 = vunpack.c.l.b16 %v5184
    %v5448 = vunpack.c.l.b16 %v5185
    %v5449 = vunpack.c.l.b16 %v5186
    %v5450 = vunpack.c.l.b16 %v5187
    %v5451 = vunpack.c.l.b16 %v5188
    %v5452 = vunpack.c.l.b16 %v5189
    %v5453 = vunpack.c.l.b16 %v5190
    %v5454 = vunpack.c.l.b16 %v5191
    %v5455 = vunpack.c.l.b16 %v5192
    %v5456 = vunpack.c.l.b16 %v5193
    %v5457 = vunpack.c.l.b16 %v5194
    %v5458 = vunpack.c.l.b16 %v5195
    %v5459 = vunpack.c.l.b16 %v5196
    %v5460 = vunpack.c.l.b16 %v5197
    %v5461 = vunpack.c.l.b16 %v5198
    %v5462 = vunpack.c.l.b16 %v5199
    %v5463 = vunpack.c.l.b16 %v5200
    %v5464 = vunpack.c.l.b16 %v5201
    %v5465 = vunpack.c.l.b16 %v5202
    %v5466 = vunpack.c.l.b16 %v5203
    %v5467 = vunpack.c.l.b16 %v5204
    %v5468 = vunpack.c.l.b16 %v5205
    %v5469 = vunpack.c.l.b16 %v5206
    %v5470 = vunpack.c.l.b16 %v5207
    %v5471 = vunpack.c.l.b16 %v5208
    %v5472 = vunpack.c.l.b16 %v5209
    %v5473 = vunpack.c.l.b16 %v5210
    %v5474 = vunpack.c.l.b16 %v5211
    %v5475 = vunpack.c.l.b16 %v5212
    %v5476 = vunpack.c.l.b16 %v5213
    %v5477 = vunpack.c.l.b16 %v5214
    %v5478 = vunpack.c.l.b16 %v5215
    %v5479 = vunpack.c.l.b16 %v5216
    %v5480 = vunpack.c.l.b16 %v5217
    %v5481 = vunpack.c.l.b16 %v5218
    %v5482 = vunpack.c.l.b16 %v5219
    %v5483 = vunpack.c.l.b16 %v5220
    %v5484 = vunpack.c.l.b16 %v5221
    %v5485 = vunpack.c.l.b16 %v5222
    %v5486 = vunpack.c.l.b16 %v5223
    %v5487 = vunpack.c.l.b16 %v5224
    %v5488 = vunpack.c.l.b16 %v5225
    %v5489 = vunpack.c.l.b16 %v5226
    %v5490 = vunpack.c.l.b16 %v5227
    %v5491 = vunpack.c.l.b16 %v5228
    %v5492 = vunpack.c.l.b16 %v5229
    %v5493 = vunpack.c.l.b16 %v5230
    %v5494 = vunpack.c.l.b16 %v5231
    %v5495 = vunpack.c.l.b16 %v5232
    %v5496 = vunpack.c.l.b16 %v5233
    %v5497 = vunpack.c.l.b16 %v5234
    %v5498 = vunpack.c.l.b16 %v5235
    %v5499 = vunpack.c.l.b16 %v5236
    %v5500 = vunpack.c.l.b16 %v5237
    %v5501 = vunpack.c.l.b16 %v5238
    %v5502 = vunpack.c.l.b16 %v5239
    %v5503 = vunpack.c.l.b16 %v5240
    %v5504 = vunpack.c.l.b16 %v5241
    %v5505 = vunpack.c.l.b16 %v5242
    %v5506 = vunpack.c.l.b16 %v5243
    %v5507 = vunpack.c.l.b16 %v5244
    %v5508 = vunpack.c.l.b16 %v5245
    %v5509 = vunpack.c.l.b16 %v5246
    %v5510 = vunpack.c.l.b16 %v5247
    %v5511 = vunpack.c.l.b16 %v5248
    %v5512 = vunpack.c.l.b16 %v5249
    %v5513 = vunpack.c.l.b16 %v5250
    %v5514 = vunpack.c.l.b16 %v5251
    %v5515 = vunpack.c.l.b16 %v5252
    %v5516 = vunpack.c.l.b16 %v5253
    %v5517 = vunpack.c.l.b16 %v5254
    %v5518 = vunpack.c.l.b16 %v5255
    %v5519 = vunpack.c.l.b16 %v5256
    %v5520 = vunpack.c.l.b16 %v5257
    %v5521 = vunpack.c.l.b16 %v5258
    %v5522 = vunpack.c.l.b16 %v5259
    %v5523 = vunpack.c.l.b16 %v5260
    %v5524 = vunpack.c.l.b16 %v5261
    %v5525 = vunpack.c.l.b16 %v5262
    %v5526 = vunpack.c.l.b16 %v5263
    %v5527 = vunpack.c.l.b16 %v5264
    %v5528 = vunpack.c.l.b16 %v5265
    %v5529 = vunpack.c.l.b16 %v5266
    %v5530 = vunpack.c.l.b16 %v5267
    %v5531 = vunpack.c.l.b16 %v5268
    %v5532 = vunpack.c.l.b16 %v5269
    %v5533 = vunpack.c.l.b16 %v5270
    %v5534 = vunpack.c.l.b16 %v5271
    %v5535 = vunpack.c.l.b16 %v5272
    %v5536 = vunpack.c.l.b16 %v5273
    %v5537 = vunpack.c.l.b16 %v5274
    %v5538 = vunpack.c.l.b16 %v5275
    %v5539 = vunpack.c.l.b16 %v5276
    %v5540 = vunpack.c.l.b16 %v5277
    %v5541 = vunpack.c.l.b16 %v5278
    %v5542 = vunpack.c.l.b16 %v5279
    %v5543 = vunpack.c.l.b16 %v5280
    %v5544 = vunpack.c.l.b16 %v5281
    %v5545 = vunpack.c.l.b16 %v5282
    %v5546 = vunpack.c.l.b16 %v5283
    %v5547 = vunpack.c.l.b16 %v5284
    %v5548 = vunpack.c.l.b16 %v5285
    %v5549 = vunpack.c.l.b16 %v5286
    %v5550 = vunpack.c.l.b16 %v5287
    %v5551 = vunpack.c.l.b16 %v5288
    %v5552 = vunpack.c.l.b16 %v5289
    %v5553 = vunpack.c.l.b16 %v5290
    %v5554 = vunpack.c.l.b16 %v5291
    %v5555 = vunpack.c.l.b16 %v5292
    %v5556 = vunpack.c.l.b16 %v5293
    %v5557 = vunpack.c.l.b16 %v5294
    %v5558 = vunpack.c.l.b16 %v5295
    %v5559 = vunpack.c.l.b16 %v5296
    %v5560 = vunpack.c.l.b16 %v5297
    %v5561 = vunpack.c.l.b16 %v5298
    %v5562 = vpack.c.b16 %v5435, %v5434
    %v5563 = vpack.c.b16 %v5437, %v5436
    %v5564 = vpack.c.b16 %v5439, %v5438
    %v5565 = vpack.c.b16 %v5441, %v5440
    %v5566 = vpack.c.b16 %v5443, %v5442
    %v5567 = vpack.c.b16 %v5445, %v5444
    %v5568 = vpack.c.b16 %v5447, %v5446
    %v5569 = vpack.c.b16 %v5449, %v5448
    %v5570 = vpack.c.b16 %v5451, %v5450
    %v5571 = vpack.c.b16 %v5453, %v5452
    %v5572 = vpack.c.b16 %v5455, %v5454
    %v5573 = vpack.c.b16 %v5457, %v5456
    %v5574 = vpack.c.b16 %v5459, %v5458
    %v5575 = vpack.c.b16 %v5461, %v5460
    %v5576 = vpack.c.b16 %v5463, %v5462
    %v5577 = vpack.c.b16 %v5465, %v5464
    %v5578 = vpack.c.b16 %v5467, %v5466
    %v5579 = vpack.c.b16 %v5469, %v5468
    %v5580 = vpack.c.b16 %v5471, %v5470
    %v5581 = vpack.c.b16 %v5473, %v5472
    %v5582 = vpack.c.b16 %v5475, %v5474
    %v5583 = vpack.c.b16 %v5477, %v5476
    %v5584 = vpack.c.b16 %v5479, %v5478
    %v5585 = vpack.c.b16 %v5481, %v5480
    %v5586 = vpack.c.b16 %v5483, %v5482
    %v5587 = vpack.c.b16 %v5485, %v5484
    %v5588 = vpack.c.b16 %v5487, %v5486
    %v5589 = vpack.c.b16 %v5489, %v5488
    %v5590 = vpack.c.b16 %v5491, %v5490
    %v5591 = vpack.c.b16 %v5493, %v5492
    %v5592 = vpack.c.b16 %v5495, %v5494
    %v5593 = vpack.c.b16 %v5497, %v5496
    %v5594 = vpack.c.b16 %v5499, %v5498
    %v5595 = vpack.c.b16 %v5501, %v5500
    %v5596 = vpack.c.b16 %v5503, %v5502
    %v5597 = vpack.c.b16 %v5505, %v5504
    %v5598 = vpack.c.b16 %v5507, %v5506
    %v5599 = vpack.c.b16 %v5509, %v5508
    %v5600 = vpack.c.b16 %v5511, %v5510
    %v5601 = vpack.c.b16 %v5513, %v5512
    %v5602 = vpack.c.b16 %v5515, %v5514
    %v5603 = vpack.c.b16 %v5517, %v5516
    %v5604 = vpack.c.b16 %v5519, %v5518
    %v5605 = vpack.c.b16 %v5521, %v5520
    %v5606 = vpack.c.b16 %v5523, %v5522
    %v5607 = vpack.c.b16 %v5525, %v5524
    %v5608 = vpack.c.b16 %v5527, %v5526
    %v5609 = vpack.c.b16 %v5529, %v5528
    %v5610 = vpack.c.b16 %v5531, %v5530
    %v5611 = vpack.c.b16 %v5533, %v5532
    %v5612 = vpack.c.b16 %v5535, %v5534
    %v5613 = vpack.c.b16 %v5537, %v5536
    %v5614 = vpack.c.b16 %v5539, %v5538
    %v5615 = vpack.c.b16 %v5541, %v5540
    %v5616 = vpack.c.b16 %v5543, %v5542
    %v5617 = vpack.c.b16 %v5545, %v5544
    %v5618 = vpack.c.b16 %v5547, %v5546
    %v5619 = vpack.c.b16 %v5549, %v5548
    %v5620 = vpack.c.b16 %v5551, %v5550
    %v5621 = vpack.c.b16 %v5553, %v5552
    %v5622 = vpack.c.b16 %v5555, %v5554
    %v5623 = vpack.c.b16 %v5557, %v5556
    %v5624 = vpack.c.b16 %v5559, %v5558
    %v5625 = vpack.c.b16 %v5561, %v5560
    %5690 = vmatprep.subr.bf16.mxu0 0
    %5691 = vmatpush1.bf16.msra.mxu0 %v5562
    %5692 = vmatprep.subr.bf16.mxu0 0
    %5693 = vmatpush1.bf16.msra.mxu0 %v5563
    %5694 = vmatprep.subr.bf16.mxu0 0
    %5695 = vmatpush1.bf16.msra.mxu0 %v5564
    %5696 = vmatprep.subr.bf16.mxu0 0
    %5697 = vmatpush1.bf16.msra.mxu0 %v5565
    %5698 = vmatprep.subr.bf16.mxu0 0
    %5699 = vmatpush1.bf16.msra.mxu0 %v5566
    %5700 = vmatprep.subr.bf16.mxu0 0
    %5701 = vmatpush1.bf16.msra.mxu0 %v5567
    %5702 = vmatprep.subr.bf16.mxu0 0
    %5703 = vmatpush1.bf16.msra.mxu0 %v5568
    %5704 = vmatprep.subr.bf16.mxu0 0
    %5705 = vmatpush1.bf16.msra.mxu0 %v5569
    %5706 = vmatprep.subr.bf16.mxu0 0
    %5707 = vmatpush1.bf16.msra.mxu0 %v5570
    %5708 = vmatprep.subr.bf16.mxu0 0
    %5709 = vmatpush1.bf16.msra.mxu0 %v5571
    %5710 = vmatprep.subr.bf16.mxu0 0
    %5711 = vmatpush1.bf16.msra.mxu0 %v5572
    %5712 = vmatprep.subr.bf16.mxu0 0
    %5713 = vmatpush1.bf16.msra.mxu0 %v5573
    %5714 = vmatprep.subr.bf16.mxu0 0
    %5715 = vmatpush1.bf16.msra.mxu0 %v5574
    %5716 = vmatprep.subr.bf16.mxu0 0
    %5717 = vmatpush1.bf16.msra.mxu0 %v5575
    %5718 = vmatprep.subr.bf16.mxu0 0
    %5719 = vmatpush1.bf16.msra.mxu0 %v5576
    %5720 = vmatprep.subr.bf16.mxu0 0
    %5721 = vmatpush1.bf16.msra.mxu0 %v5577
    %5722 = vmatprep.mubr.bf16.mxu0 %v5164
    %5723 = vmatmul.mubr.bf16.gmra.mrb[0].mxu0 %v5163
    %v5724 = vpop.f32.mrb[0].mxu0
    %v5725 = vadd.f32 %v5304, %v5724
    %v5726 = vpop.f32.mrb[0].mxu0
    %v5727 = vpop.f32.mrb[0].mxu0
    %v5728 = vpop.f32.mrb[0].mxu0
    %5729 = vdwg.mxu0
    %5730 = vmatprep.subr.bf16.mxu0 0
    %5731 = vmatpush1.bf16.msra.mxu0 %v5578
    %5732 = vmatprep.subr.bf16.mxu0 0
    %5733 = vmatpush1.bf16.msra.mxu0 %v5579
    %5734 = vmatprep.subr.bf16.mxu0 0
    %5735 = vmatpush1.bf16.msra.mxu0 %v5580
    %5736 = vmatprep.subr.bf16.mxu0 0
    %5737 = vmatpush1.bf16.msra.mxu0 %v5581
    %5738 = vmatprep.subr.bf16.mxu0 0
    %5739 = vmatpush1.bf16.msra.mxu0 %v5582
    %5740 = vmatprep.subr.bf16.mxu0 0
    %5741 = vmatpush1.bf16.msra.mxu0 %v5583
    %5742 = vmatprep.subr.bf16.mxu0 0
    %5743 = vmatpush1.bf16.msra.mxu0 %v5584
    %5744 = vmatprep.subr.bf16.mxu0 0
    %5745 = vmatpush1.bf16.msra.mxu0 %v5585
    %5746 = vmatprep.subr.bf16.mxu0 0
    %5747 = vmatpush1.bf16.msra.mxu0 %v5586
    %5748 = vmatprep.subr.bf16.mxu0 0
    %5749 = vmatpush1.bf16.msra.mxu0 %v5587
    %5750 = vmatprep.subr.bf16.mxu0 0
    %5751 = vmatpush1.bf16.msra.mxu0 %v5588
    %5752 = vmatprep.subr.bf16.mxu0 0
    %5753 = vmatpush1.bf16.msra.mxu0 %v5589
    %5754 = vmatprep.subr.bf16.mxu0 0
    %5755 = vmatpush1.bf16.msra.mxu0 %v5590
    %5756 = vmatprep.subr.bf16.mxu0 0
    %5757 = vmatpush1.bf16.msra.mxu0 %v5591
    %5758 = vmatprep.subr.bf16.mxu0 0
    %5759 = vmatpush1.bf16.msra.mxu0 %v5592
    %5760 = vmatprep.subr.bf16.mxu0 0
    %5761 = vmatpush1.bf16.msra.mxu0 %v5593
    %5762 = vmatprep.mubr.bf16.mxu0 %v5166
    %5763 = vmatmul.mubr.bf16.gmra.mrb[0].mxu0 %v5165
    %v5764 = vpop.f32.mrb[0].mxu0
    %v5765 = vadd.f32 %v5725, %v5764
    %v5766 = vpop.f32.mrb[0].mxu0
    %v5767 = vpop.f32.mrb[0].mxu0
    %v5768 = vpop.f32.mrb[0].mxu0
    %5769 = vdwg.mxu0
    %5770 = vmatprep.subr.bf16.mxu0 0
    %5771 = vmatpush1.bf16.msra.mxu0 %v5594
    %5772 = vmatprep.subr.bf16.mxu0 0
    %5773 = vmatpush1.bf16.msra.mxu0 %v5595
    %5774 = vmatprep.subr.bf16.mxu0 0
    %5775 = vmatpush1.bf16.msra.mxu0 %v5596
    %5776 = vmatprep.subr.bf16.mxu0 0
    %5777 = vmatpush1.bf16.msra.mxu0 %v5597
    %5778 = vmatprep.subr.bf16.mxu0 0
    %5779 = vmatpush1.bf16.msra.mxu0 %v5598
    %5780 = vmatprep.subr.bf16.mxu0 0
    %5781 = vmatpush1.bf16.msra.mxu0 %v5599
    %5782 = vmatprep.subr.bf16.mxu0 0
    %5783 = vmatpush1.bf16.msra.mxu0 %v5600
    %5784 = vmatprep.subr.bf16.mxu0 0
    %5785 = vmatpush1.bf16.msra.mxu0 %v5601
    %5786 = vmatprep.subr.bf16.mxu0 0
    %5787 = vmatpush1.bf16.msra.mxu0 %v5602
    %5788 = vmatprep.subr.bf16.mxu0 0
    %5789 = vmatpush1.bf16.msra.mxu0 %v5603
    %5790 = vmatprep.subr.bf16.mxu0 0
    %5791 = vmatpush1.bf16.msra.mxu0 %v5604
    %5792 = vmatprep.subr.bf16.mxu0 0
    %5793 = vmatpush1.bf16.msra.mxu0 %v5605
    %5794 = vmatprep.subr.bf16.mxu0 0
    %5795 = vmatpush1.bf16.msra.mxu0 %v5606
    %5796 = vmatprep.subr.bf16.mxu0 0
    %5797 = vmatpush1.bf16.msra.mxu0 %v5607
    %5798 = vmatprep.subr.bf16.mxu0 0
    %5799 = vmatpush1.bf16.msra.mxu0 %v5608
    %5800 = vmatprep.subr.bf16.mxu0 0
    %5801 = vmatpush1.bf16.msra.mxu0 %v5609
    %5802 = vmatprep.mubr.bf16.mxu0 %v5168
    %5803 = vmatmul.mubr.bf16.gmra.mrb[0].mxu0 %v5167
    %v5804 = vpop.f32.mrb[0].mxu0
    %v5805 = vadd.f32 %v5765, %v5804
    %v5806 = vpop.f32.mrb[0].mxu0
    %v5807 = vpop.f32.mrb[0].mxu0
    %v5808 = vpop.f32.mrb[0].mxu0
    %5809 = vdwg.mxu0
    %5810 = vmatprep.subr.bf16.mxu0 0
    %5811 = vmatpush1.bf16.msra.mxu0 %v5610
    %5812 = vmatprep.subr.bf16.mxu0 0
    %5813 = vmatpush1.bf16.msra.mxu0 %v5611
    %5814 = vmatprep.subr.bf16.mxu0 0
    %5815 = vmatpush1.bf16.msra.mxu0 %v5612
    %5816 = vmatprep.subr.bf16.mxu0 0
    %5817 = vmatpush1.bf16.msra.mxu0 %v5613
    %5818 = vmatprep.subr.bf16.mxu0 0
    %5819 = vmatpush1.bf16.msra.mxu0 %v5614
    %5820 = vmatprep.subr.bf16.mxu0 0
    %5821 = vmatpush1.bf16.msra.mxu0 %v5615
    %5822 = vmatprep.subr.bf16.mxu0 0
    %5823 = vmatpush1.bf16.msra.mxu0 %v5616
    %5824 = vmatprep.subr.bf16.mxu0 0
    %5825 = vmatpush1.bf16.msra.mxu0 %v5617
    %5826 = vmatprep.subr.bf16.mxu0 0
    %5827 = vmatpush1.bf16.msra.mxu0 %v5618
    %5828 = vmatprep.subr.bf16.mxu0 0
    %5829 = vmatpush1.bf16.msra.mxu0 %v5619
    %5830 = vmatprep.subr.bf16.mxu0 0
    %5831 = vmatpush1.bf16.msra.mxu0 %v5620
    %5832 = vmatprep.subr.bf16.mxu0 0
    %5833 = vmatpush1.bf16.msra.mxu0 %v5621
    %5834 = vmatprep.subr.bf16.mxu0 0
    %5835 = vmatpush1.bf16.msra.mxu0 %v5622
    %5836 = vmatprep.subr.bf16.mxu0 0
    %5837 = vmatpush1.bf16.msra.mxu0 %v5623
    %5838 = vmatprep.subr.bf16.mxu0 0
    %5839 = vmatpush1.bf16.msra.mxu0 %v5624
    %5840 = vmatprep.subr.bf16.mxu0 0
    %5841 = vmatpush1.bf16.msra.mxu0 %v5625
    %5842 = vmatprep.mubr.bf16.mxu0 %v5170
    %5843 = vmatmul.mubr.bf16.gmra.mrb[0].mxu0 %v5169
    %v5844 = vpop.f32.mrb[0].mxu0
    %v5845 = vadd.f32 %v5805, %v5844
    %v5846 = vpop.f32.mrb[0].mxu0
    %v5847 = vpop.f32.mrb[0].mxu0
    %v5848 = vpop.f32.mrb[0].mxu0
    %5849 = vdwg.mxu0
    %v5850 = vtanh.pop %v5845
    %5851 = vst [vmem:[%s10] sm:$0x3] %v5850
    // Predicated region
    $region38: #{_lambda_.3} parent=1 // pred_check
      _
    $region39: #{_lambda_.3} parent=1 // pred_check_branch
      %5853 = sbr.rel (0) target = $region41
    $region40: #{_lambda_.3} parent=1 // pred_region
      %s5855 = ssub.s32 32, 32
      %5856 = vsyncadd [#allocation3], %s5855
      %s5858 = sshll.u32 [#allocation2], 4
      %s5859 = int_to_ptr.vmem [resolvable:$true] %s5858
      %5861 = dma.vmem_to_hbm [thread:$0]  %s5859, 32, %s9, [#allocation3]
    $region41: #{_lambda_.3} parent=1 // pred_fallthru
      _
    // Predicated region
    $region42: #{_lambda_.3} parent=1 // pred_check
      _
    $region43: #{_lambda_.3} parent=1 // pred_check_branch
      %5863 = sbr.rel (0) target = $region45
    $region44: #{_lambda_.3} parent=1 // pred_region
      _
    $region45: #{_lambda_.3} parent=1 // pred_fallthru
      _
    // Predicated region
    $region46: #{_lambda_.3} parent=1 // pred_check
      _
    $region47: #{_lambda_.3} parent=1 // pred_check_branch
      %5865 = sbr.rel (0) target = $region49
    $region48: #{_lambda_.3} parent=1 // pred_region
      %5866 = dma.done [#allocation3], 32
    $region49: #{_lambda_.3} parent=1 // pred_fallthru
      _
    // Predicated region
    $region50: #{_lambda_.3} parent=1 // pred_check
      _
    $region51: #{_lambda_.3} parent=1 // pred_check_branch
      %5868 = sbr.rel (0) target = $region53
    $region52: #{_lambda_.3} parent=1 // pred_region
      _
    $region53: #{_lambda_.3} parent=1 // pred_fallthru
      _
    %5869 = vsyncpa [#allocation3], 1

</llo_original>
